<compile_context>
chip_gen: v7x
topology: tpu7x:2x2x1
jax: 0.10.0
libtpu: 0.0.40
codegen_flags: <defaults>
</compile_context>

<pallas_src>
import math

import jax
import jax.numpy as jnp
from jax.experimental import pallas as pl
from jax.experimental.pallas import tpu as pltpu


CP = 128                              # padded channel lanes (all real C must be <= 128)
VMEM_LIMIT = 32 * 1024 * 1024         # explicit scoped-VMEM budget (safe on v5e/v6e/v7x)


# --------------------------- parameter preparation ---------------------------

class KeyGen:
    def __init__(self, seed=0):
        self.key = jax.random.PRNGKey(seed)

    def __call__(self):
        self.key, sub = jax.random.split(self.key)
        return sub


def _conv_w(kg, cout, cin, k):
    # PyTorch Conv1d weight layout (Cout, Cin, K), bias=False.
    return 0.2 * jax.random.normal(kg(), (cout, cin, k), jnp.float32)


def _prep_taps(w):
    """(Cout, Cin, K) -> (K, CP, CP) bf16 tap matrices; lane padding is exact zeros."""
    cout, cin, k = w.shape
    taps = jnp.transpose(w, (2, 1, 0))                        # (K, Cin, Cout)
    out = jnp.zeros((k, CP, CP), jnp.bfloat16)
    return out.at[:, :cin, :cout].set(taps.astype(jnp.bfloat16))


def _prep_mat(w):
    """1x1 conv weight (Cout, Cin, 1) -> (CP, CP) bf16 matrix."""
    return _prep_taps(w)[0]


def _bn_fold(c, zero_gamma=False, eps=1e-5):
    """BatchNorm1d right after __init__ (gamma=1 or 0, beta=0, mean=0, var=1),
    folded to per-channel scale/shift rows of length CP (zero outside real channels)."""
    gamma = 0.0 if zero_gamma else 1.0
    scale = jnp.full((c,), gamma / math.sqrt(1.0 + eps), jnp.float32)
    s = jnp.zeros((CP,), jnp.float32).at[:c].set(scale)
    b = jnp.zeros((CP,), jnp.float32)                         # shift is exactly zero
    return s, b


def build_res(kg, in_channels, n_layers, n_features, init_ker_size, depth,
              zero_init, degrid=True, tail=True):
    if init_ker_size % 2 != 1:
        raise ValueError("init_ker_size must be an odd number")
    if 2 ** n_layers > n_features:
        raise ValueError("2**n_layers>n_features")
    factor = 1.41
    c_final = int(factor ** n_layers * in_channels)
    assert in_channels <= CP and c_final <= CP, "channel counts must fit in 128 lanes"

    taps, mats, bn_s, bn_b = [], [], [], []
    tap_rows = 0

    # init conv (stride 1, padding (K-1)/2, keeps channel count & length)
    init_tap = tap_rows
    taps.append(_prep_taps(_conv_w(kg, in_channels, in_channels, init_ker_size)))
    tap_rows += init_ker_size

    layer_defs = []
    for i in range(n_layers):
        layer_defs.append((int(factor ** i * in_channels),
                           int(factor ** (i + 1) * in_channels),
                           2 ** i, 2, True))
    if degrid:
        c = int(factor ** n_layers * in_channels)
        layer_defs.append((c, c, 1, 1, False))

    blocks = []
    for (in_ch, out_ch, dil, l_stride, res_on) in layer_defs:
        for j in range(depth):
            first = (j == 0)
            stride = l_stride if first else 1
            bn1_c = in_ch if first else out_ch

            bn_idx = len(bn_s)
            s, b = _bn_fold(bn1_c);            bn_s.append(s); bn_b.append(b)   # bn1
            s, b = _bn_fold(in_ch);            bn_s.append(s); bn_b.append(b)   # bn2
            s, b = _bn_fold(in_ch, zero_init); bn_s.append(s); bn_b.append(b)   # bn3

            cv1 = len(mats); mats.append(_prep_mat(_conv_w(kg, in_ch, bn1_c, 1)))
            tap = tap_rows
            taps.append(_prep_taps(_conv_w(kg, in_ch, in_ch, 3))); tap_rows += 3
            cv3 = len(mats); mats.append(_prep_mat(_conv_w(kg, out_ch, in_ch, 1)))

            down = None
            if first or stride != 1:
                wd = _conv_w(kg, out_ch, in_ch, 1)   # exists in PyTorch even when unused
                if res_on:
                    down = len(mats); mats.append(_prep_mat(wd))
            blocks.append(dict(dil=dil, stride=stride, res_on=res_on,
                               bn=bn_idx, cv1=cv1, cv3=cv3, tap=tap, down=down))

    fc_w_raw = 0.2 * jax.random.normal(kg(), (c_final,), jnp.float32)
    fc_w = jnp.zeros((1, CP), jnp.float32).at[0, :c_final].set(fc_w_raw)
    fc_b = jnp.zeros((1, 1), jnp.float32)    # TODO(synk): Linear bias kept at 0.

    params = dict(taps=jnp.concatenate(taps, axis=0),
                  mats=jnp.stack(mats, axis=0),
                  bn_s=jnp.stack(bn_s, axis=0),
                  bn_b=jnp.stack(bn_b, axis=0),
                  fc_w=fc_w, fc_b=fc_b)
    plan = dict(C0=in_channels, c_final=c_final, init_tap=init_tap,
                init_K=init_ker_size, blocks=blocks, tail=tail)
    return dict(params=params, plan=plan)


# ------------------------------- fused kernel -------------------------------

def _make_fused_kernel(plan, lengths, BT, L0, tail):
    init_K = plan["init_K"]
    blocks = plan["blocks"]
    L_final = lengths[-1][1] if lengths else L0

    def kernel(x_ref, tap_ref, mat_ref, bns_ref, bnb_ref, fcw_ref, fcb_ref, o_ref,
               stage_ref, pad_ref, gbuf_ref, resbuf_ref):

        def bn_relu(h, idx):
            s = bns_ref[pl.ds(idx, 1), :]
            b = bnb_ref[pl.ds(idx, 1), :]
            return jnp.maximum(h * s + b, 0.0)

        def conv1x1(h, idx):
            return jnp.dot(h.astype(jnp.bfloat16), mat_ref[idx],
                           preferred_element_type=jnp.float32)

        def window(src_ref, start, size, stride):
            if stride == 1:
                return src_ref[pl.ds(start, size), :]
            return src_ref[pl.ds(start, size, stride=stride), :]

        def conv_taps(src_ref, tap_base, K, dil, stride, L_in, L_out):
            # Per-sample K-tap dilated/strided conv via a halo'd VMEM scratch.
            pad = dil * (K - 1) // 2
            S = L_in + 2 * pad
            zhalo = jnp.zeros((max(pad, 1), CP), jnp.float32)
            for b in range(BT):
                base = b * S
                if pad > 0:                          # zero only the halo rows
                    pad_ref[pl.ds(base, pad), :] = zhalo[:pad]
                    pad_ref[pl.ds(base + pad + L_in, pad), :] = zhalo[:pad]
                pad_ref[pl.ds(base + pad, L_in), :] = src_ref[pl.ds(b * L_in, L_in), :]
            for b in range(BT):
                base = b * S
                acc = jnp.zeros((L_out, CP), jnp.float32)
                for k in range(K):
                    win = window(pad_ref, base + k * dil, L_out, stride)
                    acc = acc + jnp.dot(win.astype(jnp.bfloat16),
                                        tap_ref[tap_base + k],
                                        preferred_element_type=jnp.float32)
                gbuf_ref[pl.ds(b * L_out, L_out), :] = acc
            return gbuf_ref[pl.ds(0, BT * L_out), :]

        # ---- init conv on the raw (channel-padded) input ----
        h = conv_taps(x_ref, plan["init_tap"], init_K, 1, 1, L0, L0)

        # ---- residual blocks (fully unrolled at trace time) ----
        for blk, (L_in, L_out) in zip(blocks, lengths):
            dil, stride = blk["dil"], blk["stride"]
            res_on, down = blk["res_on"], blk["down"]
            x_val = h                                            # block input (flat)

            if res_on and down is not None:
                # strided 1x1 downsample of the raw block input
                stage_ref[pl.ds(0, BT * L_in), :] = x_val
                for b in range(BT):
                    win = window(stage_ref, b * L_in, L_out, stride)
                    resbuf_ref[pl.ds(b * L_out, L_out), :] = jnp.dot(
                        win.astype(jnp.bfloat16), mat_ref[down],
                        preferred_element_type=jnp.float32)

            h = conv1x1(bn_relu(x_val, blk["bn"]), blk["cv1"])       # bn1+relu+cv1
            h = bn_relu(h, blk["bn"] + 1)                            # bn2+relu
            stage_ref[pl.ds(0, BT * L_in), :] = h
            h = conv_taps(stage_ref, blk["tap"], 3, dil, stride, L_in, L_out)  # cv2
            h = conv1x1(bn_relu(h, blk["bn"] + 2), blk["cv3"])       # bn3+relu+cv3
            if res_on:
                h = h + (resbuf_ref[pl.ds(0, BT * L_out), :]
                         if down is not None else x_val)

        # ---- tail: AdaptiveAvgPool1d(1) + Linear(C, 1) ----
        if tail:
            gbuf_ref[pl.ds(0, BT * L_final), :] = h
            inv_l = 1.0 / float(L_final)
            for b in range(BT):
                chunk = gbuf_ref[pl.ds(b * L_final, L_final), :]
                pooled = jnp.sum(chunk, axis=0, keepdims=True) * inv_l     # (1, CP)
                y = jnp.sum(pooled * fcw_ref[...], axis=-1, keepdims=True) + fcb_ref[...]
                o_ref[pl.ds(b, 1), :] = y
        else:
            o_ref[...] = h

    return kernel


def _pick_bt(N, L0):
    """Batch-tile size: fill the MXU M dim (~256 rows) while keeping N % BT == 0
    and the BlockSpec (8,128) rules satisfied."""
    cap = max(1, 256 // max(L0, 1))
    if N <= cap:
        return N
    for bt in range(min(cap, N), 0, -1):
        if N % bt == 0 and bt % 8 == 0 and (bt * L0) % 8 == 0:
            return bt
    return N


def res_forward(model, x_nlc):
    """x_nlc: (N, L, C) float32 (PyTorch NCL transposed). Returns (N, 1) when tail."""
    params, plan = model["params"], model["plan"]
    N, L0, C0 = x_nlc.shape
    assert C0 == plan["C0"]
    tail = plan["tail"]
    blocks = plan["blocks"]

    # static length schedule through the blocks
    lengths = []
    L = L0
    for blk in blocks:
        L_out = (L - 1) // blk["stride"] + 1
        lengths.append((L, L_out))
        L = L_out
    L_final = L

    BT = _pick_bt(N, L0)
    grid = (N // BT,)

    pad_chunks = [L0 + 2 * ((plan["init_K"] - 1) // 2)]
    pad_chunks += [L_in + 2 * blk["dil"] for blk, (L_in, _) in zip(blocks, lengths)]
    pad_rows = BT * max(pad_chunks)

    x2 = jnp.pad(x_nlc.astype(jnp.float32),
                 ((0, 0), (0, 0), (0, CP - C0))).reshape(N * L0, CP)

    kernel = _make_fused_kernel(plan, lengths, BT, L0, tail)

    n_tap = params["taps"].shape[0]
    n_mat = params["mats"].shape[0]
    n_bn = params["bn_s"].shape[0]

    in_specs = [
        pl.BlockSpec((BT * L0, CP), lambda n: (n, 0)),          # activations
        pl.BlockSpec((n_tap, CP, CP), lambda n: (0, 0, 0)),     # conv tap matrices
        pl.BlockSpec((n_mat, CP, CP), lambda n: (0, 0, 0)),     # 1x1 conv matrices
        pl.BlockSpec((n_bn, CP), lambda n: (0, 0)),             # BN scales
        pl.BlockSpec((n_bn, CP), lambda n: (0, 0)),             # BN shifts
        pl.BlockSpec((1, CP), lambda n: (0, 0)),                # fc weight
        pl.BlockSpec((1, 1), lambda n: (0, 0)),                 # fc bias
    ]
    if tail:
        out_shape = jax.ShapeDtypeStruct((N, 1), jnp.float32)
        out_specs = pl.BlockSpec((BT, 1), lambda n: (n, 0))
    else:
        out_shape = jax.ShapeDtypeStruct((N * L_final, CP), jnp.float32)
        out_specs = pl.BlockSpec((BT * L_final, CP), lambda n: (n, 0))

    scratch_shapes = [
        pltpu.VMEM((BT * L0, CP), jnp.float32),      # staging for cv2 input / downsample src
        pltpu.VMEM((pad_rows, CP), jnp.float32),     # halo'd conv scratch
        pltpu.VMEM((BT * L0, CP), jnp.float32),      # per-sample conv outputs restacked
        pltpu.VMEM((BT * L0, CP), jnp.float32),      # downsample residual restacked
    ]

    out = pl.pallas_call(
        kernel,
        out_shape=out_shape,
        grid=grid,
        in_specs=in_specs,
        out_specs=out_specs,
        scratch_shapes=scratch_shapes,
        compiler_params=pltpu.CompilerParams(
            dimension_semantics=("parallel",),
            vmem_limit_bytes=VMEM_LIMIT),
    )(x2, params["taps"], params["mats"], params["bn_s"], params["bn_b"],
      params["fc_w"], params["fc_b"])

    if tail:
        return out
    h = out.reshape(N, L_final, CP)[..., :plan["c_final"]]
    return jnp.transpose(h, (0, 2, 1))                # back to PyTorch NCL layout


# ----------------------------------- main -----------------------------------

if __name__ == "__main__":
    # small config consistent with the module's constraints:
    # in_channels=4, n_layers=2, n_features(=seq len)=16, init_ker_size=3, depth=2
    N, C0, L = 2, 4, 16
    kg = KeyGen(seed=0)
    model = build_res(kg, in_channels=C0, n_layers=2, n_features=L,
                      init_ker_size=3, depth=2, zero_init=False,
                      degrid=True, tail=True)

    # PyTorch-style NCL input, transposed to kernel layout NLC
    x_ncl = jax.random.normal(jax.random.PRNGKey(0), (N, C0, L), jnp.float32)
    x = jnp.transpose(x_ncl, (0, 2, 1))               # (N, L, C)

    out = jax.block_until_ready(res_forward(model, x))
    assert out.shape == (N, 1), out.shape
    print("KERNEL_OK")
</pallas_src>

<mosaic_0001>
module attributes {stable_mosaic.version = 11 : i64} {
  func.func @kernel(%arg0: i32, %arg1: memref<32x128xf32, #tpu.memory_space<vmem>>, %arg2: memref<21x128x128xbf16, #tpu.memory_space<vmem>>, %arg3: memref<14x128x128xbf16, #tpu.memory_space<vmem>>, %arg4: memref<18x128xf32, #tpu.memory_space<vmem>>, %arg5: memref<18x128xf32, #tpu.memory_space<vmem>>, %arg6: memref<1x128xf32, #tpu.memory_space<vmem>>, %arg7: memref<1x1xf32, #tpu.memory_space<vmem>>, %arg8: memref<2x1xf32, #tpu.memory_space<vmem>>, %arg9: memref<32x128xf32, #tpu.memory_space<vmem>>, %arg10: memref<36x128xf32, #tpu.memory_space<vmem>>, %arg11: memref<32x128xf32, #tpu.memory_space<vmem>>, %arg12: memref<32x128xf32, #tpu.memory_space<vmem>>) attributes {dimension_semantics = [#tpu.dimension_semantics<parallel>], iteration_bounds = array<i64: 1>, scalar_prefetch = 0 : i64, scratch_operands = 4 : i64, tpu.core_type = #tpu.core_type<tc>, window_params = [{transform_indices = @transform_0, window_bounds = array<i64: 32, 128>}, {pipeline_mode = #tpu.pipeline_mode<synchronous>, transform_indices = @transform_1, window_bounds = array<i64: 21, 128, 128>}, {pipeline_mode = #tpu.pipeline_mode<synchronous>, transform_indices = @transform_2, window_bounds = array<i64: 14, 128, 128>}, {pipeline_mode = #tpu.pipeline_mode<synchronous>, transform_indices = @transform_3, window_bounds = array<i64: 18, 128>}, {pipeline_mode = #tpu.pipeline_mode<synchronous>, transform_indices = @transform_4, window_bounds = array<i64: 18, 128>}, {pipeline_mode = #tpu.pipeline_mode<synchronous>, transform_indices = @transform_5, window_bounds = array<i64: 1, 128>}, {pipeline_mode = #tpu.pipeline_mode<synchronous>, transform_indices = @transform_6, window_bounds = array<i64: 1, 1>}, {transform_indices = @transform_7, window_bounds = array<i64: 2, 1>}]} {
    %cst = arith.constant 0.000000e+00 : f32
    %0 = vector.broadcast %cst : f32 to vector<1x128xf32>
    %c0 = arith.constant 0 : index
    %c0_0 = arith.constant 0 : index
    %1 = vector.load %arg10[%c0, %c0_0] : memref<36x128xf32, #tpu.memory_space<vmem>>, vector<1x128xf32>
    tpu.vector_store %arg10[%c0, %c0_0], %0 {strides = array<i32>} : memref<36x128xf32, #tpu.memory_space<vmem>>, vector<1x128xf32>,
    %c17 = arith.constant 17 : index
    %c0_1 = arith.constant 0 : index
    %2 = vector.load %arg10[%c17, %c0_1] : memref<36x128xf32, #tpu.memory_space<vmem>>, vector<1x128xf32>
    tpu.vector_store %arg10[%c17, %c0_1], %0 {strides = array<i32>} : memref<36x128xf32, #tpu.memory_space<vmem>>, vector<1x128xf32>,
    %c0_2 = arith.constant 0 : index
    %c0_3 = arith.constant 0 : index
    %3 = vector.load %arg1[%c0_2, %c0_3] : memref<32x128xf32, #tpu.memory_space<vmem>>, vector<16x128xf32>
    %c1 = arith.constant 1 : index
    %c0_4 = arith.constant 0 : index
    %4 = vector.load %arg10[%c1, %c0_4] : memref<36x128xf32, #tpu.memory_space<vmem>>, vector<16x128xf32>
    tpu.vector_store %arg10[%c1, %c0_4], %3 {strides = array<i32>} : memref<36x128xf32, #tpu.memory_space<vmem>>, vector<16x128xf32>,
    %c18 = arith.constant 18 : index
    %c0_5 = arith.constant 0 : index
    %5 = vector.load %arg10[%c18, %c0_5] : memref<36x128xf32, #tpu.memory_space<vmem>>, vector<1x128xf32>
    tpu.vector_store %arg10[%c18, %c0_5], %0 {strides = array<i32>} : memref<36x128xf32, #tpu.memory_space<vmem>>, vector<1x128xf32>,
    %c35 = arith.constant 35 : index
    %c0_6 = arith.constant 0 : index
    %6 = vector.load %arg10[%c35, %c0_6] : memref<36x128xf32, #tpu.memory_space<vmem>>, vector<1x128xf32>
    tpu.vector_store %arg10[%c35, %c0_6], %0 {strides = array<i32>} : memref<36x128xf32, #tpu.memory_space<vmem>>, vector<1x128xf32>,
    %c16 = arith.constant 16 : index
    %c0_7 = arith.constant 0 : index
    %7 = vector.load %arg1[%c16, %c0_7] : memref<32x128xf32, #tpu.memory_space<vmem>>, vector<16x128xf32>
    %c19 = arith.constant 19 : index
    %c0_8 = arith.constant 0 : index
    %8 = vector.load %arg10[%c19, %c0_8] : memref<36x128xf32, #tpu.memory_space<vmem>>, vector<16x128xf32>
    tpu.vector_store %arg10[%c19, %c0_8], %7 {strides = array<i32>} : memref<36x128xf32, #tpu.memory_space<vmem>>, vector<16x128xf32>,
    %cst_9 = arith.constant 0.000000e+00 : f32
    %9 = vector.broadcast %cst_9 : f32 to vector<16x128xf32>
    %c0_10 = arith.constant 0 : index
    %c0_11 = arith.constant 0 : index
    %10 = vector.load %arg10[%c0_10, %c0_11] : memref<36x128xf32, #tpu.memory_space<vmem>>, vector<16x128xf32>
    %11 = arith.truncf %10 : vector<16x128xf32> to vector<16x128xbf16>
    %c0_12 = arith.constant 0 : index
    %c0_13 = arith.constant 0 : index
    %c0_14 = arith.constant 0 : index
    %12 = vector.load %arg2[%c0_12, %c0_13, %c0_14] : memref<21x128x128xbf16, #tpu.memory_space<vmem>>, vector<1x128x128xbf16>
    %13 = vector.shape_cast %12 : vector<1x128x128xbf16> to vector<128x128xbf16>
    %cst_15 = arith.constant dense<0.000000e+00> : vector<16x128xf32>
    %14 = tpu.matmul %11, %13, %cst_15 {dimension_numbers = #tpu.dot_dimension_numbers<[1], [0], [0], [1], [0, 0, 1, 1], [], []>} : vector<16x128xbf16>, vector<128x128xbf16>, vector<16x128xf32> -> vector<16x128xf32>
    %15 = arith.addf %9, %14 : vector<16x128xf32>
    %c1_16 = arith.constant 1 : index
    %c0_17 = arith.constant 0 : index
    %16 = vector.load %arg10[%c1_16, %c0_17] : memref<36x128xf32, #tpu.memory_space<vmem>>, vector<16x128xf32>
    %17 = arith.truncf %16 : vector<16x128xf32> to vector<16x128xbf16>
    %c1_18 = arith.constant 1 : index
    %c0_19 = arith.constant 0 : index
    %c0_20 = arith.constant 0 : index
    %18 = vector.load %arg2[%c1_18, %c0_19, %c0_20] : memref<21x128x128xbf16, #tpu.memory_space<vmem>>, vector<1x128x128xbf16>
    %19 = vector.shape_cast %18 : vector<1x128x128xbf16> to vector<128x128xbf16>
    %cst_21 = arith.constant dense<0.000000e+00> : vector<16x128xf32>
    %20 = tpu.matmul %17, %19, %cst_21 {dimension_numbers = #tpu.dot_dimension_numbers<[1], [0], [0], [1], [0, 0, 1, 1], [], []>} : vector<16x128xbf16>, vector<128x128xbf16>, vector<16x128xf32> -> vector<16x128xf32>
    %21 = arith.addf %15, %20 : vector<16x128xf32>
    %c2 = arith.constant 2 : index
    %c0_22 = arith.constant 0 : index
    %22 = vector.load %arg10[%c2, %c0_22] : memref<36x128xf32, #tpu.memory_space<vmem>>, vector<16x128xf32>
    %23 = arith.truncf %22 : vector<16x128xf32> to vector<16x128xbf16>
    %c2_23 = arith.constant 2 : index
    %c0_24 = arith.constant 0 : index
    %c0_25 = arith.constant 0 : index
    %24 = vector.load %arg2[%c2_23, %c0_24, %c0_25] : memref<21x128x128xbf16, #tpu.memory_space<vmem>>, vector<1x128x128xbf16>
    %25 = vector.shape_cast %24 : vector<1x128x128xbf16> to vector<128x128xbf16>
    %cst_26 = arith.constant dense<0.000000e+00> : vector<16x128xf32>
    %26 = tpu.matmul %23, %25, %cst_26 {dimension_numbers = #tpu.dot_dimension_numbers<[1], [0], [0], [1], [0, 0, 1, 1], [], []>} : vector<16x128xbf16>, vector<128x128xbf16>, vector<16x128xf32> -> vector<16x128xf32>
    %27 = arith.addf %21, %26 : vector<16x128xf32>
    %c0_27 = arith.constant 0 : index
    %c0_28 = arith.constant 0 : index
    %28 = vector.load %arg11[%c0_27, %c0_28] : memref<32x128xf32, #tpu.memory_space<vmem>>, vector<16x128xf32>
    tpu.vector_store %arg11[%c0_27, %c0_28], %27 {strides = array<i32>} : memref<32x128xf32, #tpu.memory_space<vmem>>, vector<16x128xf32>,
    %cst_29 = arith.constant 0.000000e+00 : f32
    %29 = vector.broadcast %cst_29 : f32 to vector<16x128xf32>
    %c18_30 = arith.constant 18 : index
    %c0_31 = arith.constant 0 : index
    %30 = vector.load %arg10[%c18_30, %c0_31] : memref<36x128xf32, #tpu.memory_space<vmem>>, vector<16x128xf32>
    %31 = arith.truncf %30 : vector<16x128xf32> to vector<16x128xbf16>
    %c0_32 = arith.constant 0 : index
    %c0_33 = arith.constant 0 : index
    %c0_34 = arith.constant 0 : index
    %32 = vector.load %arg2[%c0_32, %c0_33, %c0_34] : memref<21x128x128xbf16, #tpu.memory_space<vmem>>, vector<1x128x128xbf16>
    %33 = vector.shape_cast %32 : vector<1x128x128xbf16> to vector<128x128xbf16>
    %cst_35 = arith.constant dense<0.000000e+00> : vector<16x128xf32>
    %34 = tpu.matmul %31, %33, %cst_35 {dimension_numbers = #tpu.dot_dimension_numbers<[1], [0], [0], [1], [0, 0, 1, 1], [], []>} : vector<16x128xbf16>, vector<128x128xbf16>, vector<16x128xf32> -> vector<16x128xf32>
    %35 = arith.addf %29, %34 : vector<16x128xf32>
    %c19_36 = arith.constant 19 : index
    %c0_37 = arith.constant 0 : index
    %36 = vector.load %arg10[%c19_36, %c0_37] : memref<36x128xf32, #tpu.memory_space<vmem>>, vector<16x128xf32>
    %37 = arith.truncf %36 : vector<16x128xf32> to vector<16x128xbf16>
    %c1_38 = arith.constant 1 : index
    %c0_39 = arith.constant 0 : index
    %c0_40 = arith.constant 0 : index
    %38 = vector.load %arg2[%c1_38, %c0_39, %c0_40] : memref<21x128x128xbf16, #tpu.memory_space<vmem>>, vector<1x128x128xbf16>
    %39 = vector.shape_cast %38 : vector<1x128x128xbf16> to vector<128x128xbf16>
    %cst_41 = arith.constant dense<0.000000e+00> : vector<16x128xf32>
    %40 = tpu.matmul %37, %39, %cst_41 {dimension_numbers = #tpu.dot_dimension_numbers<[1], [0], [0], [1], [0, 0, 1, 1], [], []>} : vector<16x128xbf16>, vector<128x128xbf16>, vector<16x128xf32> -> vector<16x128xf32>
    %41 = arith.addf %35, %40 : vector<16x128xf32>
    %c20 = arith.constant 20 : index
    %c0_42 = arith.constant 0 : index
    %42 = vector.load %arg10[%c20, %c0_42] : memref<36x128xf32, #tpu.memory_space<vmem>>, vector<16x128xf32>
    %43 = arith.truncf %42 : vector<16x128xf32> to vector<16x128xbf16>
    %c2_43 = arith.constant 2 : index
    %c0_44 = arith.constant 0 : index
    %c0_45 = arith.constant 0 : index
    %44 = vector.load %arg2[%c2_43, %c0_44, %c0_45] : memref<21x128x128xbf16, #tpu.memory_space<vmem>>, vector<1x128x128xbf16>
    %45 = vector.shape_cast %44 : vector<1x128x128xbf16> to vector<128x128xbf16>
    %cst_46 = arith.constant dense<0.000000e+00> : vector<16x128xf32>
    %46 = tpu.matmul %43, %45, %cst_46 {dimension_numbers = #tpu.dot_dimension_numbers<[1], [0], [0], [1], [0, 0, 1, 1], [], []>} : vector<16x128xbf16>, vector<128x128xbf16>, vector<16x128xf32> -> vector<16x128xf32>
    %47 = arith.addf %41, %46 : vector<16x128xf32>
    %c16_47 = arith.constant 16 : index
    %c0_48 = arith.constant 0 : index
    %48 = vector.load %arg11[%c16_47, %c0_48] : memref<32x128xf32, #tpu.memory_space<vmem>>, vector<16x128xf32>
    tpu.vector_store %arg11[%c16_47, %c0_48], %47 {strides = array<i32>} : memref<32x128xf32, #tpu.memory_space<vmem>>, vector<16x128xf32>,
    %c0_49 = arith.constant 0 : index
    %c0_50 = arith.constant 0 : index
    %49 = vector.load %arg11[%c0_49, %c0_50] : memref<32x128xf32, #tpu.memory_space<vmem>>, vector<32x128xf32>
    %c0_51 = arith.constant 0 : index
    %c0_52 = arith.constant 0 : index
    %50 = vector.load %arg9[%c0_51, %c0_52] : memref<32x128xf32, #tpu.memory_space<vmem>>, vector<32x128xf32>
    tpu.vector_store %arg9[%c0_51, %c0_52], %49 {strides = array<i32>} : memref<32x128xf32, #tpu.memory_space<vmem>>, vector<32x128xf32>,
    %c0_53 = arith.constant 0 : index
    %c0_54 = arith.constant 0 : index
    %51 = tpu.strided_load %arg9[%c0_53, %c0_54] {strides = array<i32: 2, 1>} : memref<32x128xf32, #tpu.memory_space<vmem>>, vector<8x128xf32>
    %52 = arith.truncf %51 : vector<8x128xf32> to vector<8x128xbf16>
    %c2_55 = arith.constant 2 : index
    %c0_56 = arith.constant 0 : index
    %c0_57 = arith.constant 0 : index
    %53 = vector.load %arg3[%c2_55, %c0_56, %c0_57] : memref<14x128x128xbf16, #tpu.memory_space<vmem>>, vector<1x128x128xbf16>
    %54 = vector.shape_cast %53 : vector<1x128x128xbf16> to vector<128x128xbf16>
    %cst_58 = arith.constant dense<0.000000e+00> : vector<8x128xf32>
    %55 = tpu.matmul %52, %54, %cst_58 {dimension_numbers = #tpu.dot_dimension_numbers<[1], [0], [0], [1], [0, 0, 1, 1], [], []>} : vector<8x128xbf16>, vector<128x128xbf16>, vector<8x128xf32> -> vector<8x128xf32>
    %c0_59 = arith.constant 0 : index
    %c0_60 = arith.constant 0 : index
    %56 = vector.load %arg12[%c0_59, %c0_60] : memref<32x128xf32, #tpu.memory_space<vmem>>, vector<8x128xf32>
    tpu.vector_store %arg12[%c0_59, %c0_60], %55 {strides = array<i32>} : memref<32x128xf32, #tpu.memory_space<vmem>>, vector<8x128xf32>,
    %c16_61 = arith.constant 16 : index
    %c0_62 = arith.constant 0 : index
    %57 = tpu.strided_load %arg9[%c16_61, %c0_62] {strides = array<i32: 2, 1>} : memref<32x128xf32, #tpu.memory_space<vmem>>, vector<8x128xf32>
    %58 = arith.truncf %57 : vector<8x128xf32> to vector<8x128xbf16>
    %c2_63 = arith.constant 2 : index
    %c0_64 = arith.constant 0 : index
    %c0_65 = arith.constant 0 : index
    %59 = vector.load %arg3[%c2_63, %c0_64, %c0_65] : memref<14x128x128xbf16, #tpu.memory_space<vmem>>, vector<1x128x128xbf16>
    %60 = vector.shape_cast %59 : vector<1x128x128xbf16> to vector<128x128xbf16>
    %cst_66 = arith.constant dense<0.000000e+00> : vector<8x128xf32>
    %61 = tpu.matmul %58, %60, %cst_66 {dimension_numbers = #tpu.dot_dimension_numbers<[1], [0], [0], [1], [0, 0, 1, 1], [], []>} : vector<8x128xbf16>, vector<128x128xbf16>, vector<8x128xf32> -> vector<8x128xf32>
    %c8 = arith.constant 8 : index
    %c0_67 = arith.constant 0 : index
    %62 = vector.load %arg12[%c8, %c0_67] : memref<32x128xf32, #tpu.memory_space<vmem>>, vector<8x128xf32>
    tpu.vector_store %arg12[%c8, %c0_67], %61 {strides = array<i32>} : memref<32x128xf32, #tpu.memory_space<vmem>>, vector<8x128xf32>,
    %c0_68 = arith.constant 0 : index
    %c0_69 = arith.constant 0 : index
    %63 = vector.load %arg4[%c0_68, %c0_69] : memref<18x128xf32, #tpu.memory_space<vmem>>, vector<1x128xf32>
    %c0_70 = arith.constant 0 : index
    %c0_71 = arith.constant 0 : index
    %64 = vector.load %arg5[%c0_70, %c0_71] : memref<18x128xf32, #tpu.memory_space<vmem>>, vector<1x128xf32>
    %65 = vector.broadcast %63 : vector<1x128xf32> to vector<32x128xf32>
    %66 = arith.mulf %49, %65 : vector<32x128xf32>
    %67 = vector.broadcast %64 : vector<1x128xf32> to vector<32x128xf32>
    %68 = arith.addf %66, %67 : vector<32x128xf32>
    %cst_72 = arith.constant 0.000000e+00 : f32
    %69 = vector.broadcast %cst_72 : f32 to vector<32x128xf32>
    %70 = arith.maximumf %68, %69 : vector<32x128xf32>
    %71 = arith.truncf %70 : vector<32x128xf32> to vector<32x128xbf16>
    %c0_73 = arith.constant 0 : index
    %c0_74 = arith.constant 0 : index
    %c0_75 = arith.constant 0 : index
    %72 = vector.load %arg3[%c0_73, %c0_74, %c0_75] : memref<14x128x128xbf16, #tpu.memory_space<vmem>>, vector<1x128x128xbf16>
    %73 = vector.shape_cast %72 : vector<1x128x128xbf16> to vector<128x128xbf16>
    %cst_76 = arith.constant dense<0.000000e+00> : vector<32x128xf32>
    %74 = tpu.matmul %71, %73, %cst_76 {dimension_numbers = #tpu.dot_dimension_numbers<[1], [0], [0], [1], [0, 0, 1, 1], [], []>} : vector<32x128xbf16>, vector<128x128xbf16>, vector<32x128xf32> -> vector<32x128xf32>
    %c1_77 = arith.constant 1 : index
    %c0_78 = arith.constant 0 : index
    %75 = vector.load %arg4[%c1_77, %c0_78] : memref<18x128xf32, #tpu.memory_space<vmem>>, vector<1x128xf32>
    %c1_79 = arith.constant 1 : index
    %c0_80 = arith.constant 0 : index
    %76 = vector.load %arg5[%c1_79, %c0_80] : memref<18x128xf32, #tpu.memory_space<vmem>>, vector<1x128xf32>
    %77 = vector.broadcast %75 : vector<1x128xf32> to vector<32x128xf32>
    %78 = arith.mulf %74, %77 : vector<32x128xf32>
    %79 = vector.broadcast %76 : vector<1x128xf32> to vector<32x128xf32>
    %80 = arith.addf %78, %79 : vector<32x128xf32>
    %cst_81 = arith.constant 0.000000e+00 : f32
    %81 = vector.broadcast %cst_81 : f32 to vector<32x128xf32>
    %82 = arith.maximumf %80, %81 : vector<32x128xf32>
    %c0_82 = arith.constant 0 : index
    %c0_83 = arith.constant 0 : index
    %83 = vector.load %arg9[%c0_82, %c0_83] : memref<32x128xf32, #tpu.memory_space<vmem>>, vector<32x128xf32>
    tpu.vector_store %arg9[%c0_82, %c0_83], %82 {strides = array<i32>} : memref<32x128xf32, #tpu.memory_space<vmem>>, vector<32x128xf32>,
    %cst_84 = arith.constant 0.000000e+00 : f32
    %84 = vector.broadcast %cst_84 : f32 to vector<1x128xf32>
    %c0_85 = arith.constant 0 : index
    %c0_86 = arith.constant 0 : index
    %85 = vector.load %arg10[%c0_85, %c0_86] : memref<36x128xf32, #tpu.memory_space<vmem>>, vector<1x128xf32>
    tpu.vector_store %arg10[%c0_85, %c0_86], %84 {strides = array<i32>} : memref<36x128xf32, #tpu.memory_space<vmem>>, vector<1x128xf32>,
    %c17_87 = arith.constant 17 : index
    %c0_88 = arith.constant 0 : index
    %86 = vector.load %arg10[%c17_87, %c0_88] : memref<36x128xf32, #tpu.memory_space<vmem>>, vector<1x128xf32>
    tpu.vector_store %arg10[%c17_87, %c0_88], %84 {strides = array<i32>} : memref<36x128xf32, #tpu.memory_space<vmem>>, vector<1x128xf32>,
    %c0_89 = arith.constant 0 : index
    %c0_90 = arith.constant 0 : index
    %87 = vector.load %arg9[%c0_89, %c0_90] : memref<32x128xf32, #tpu.memory_space<vmem>>, vector<16x128xf32>
    %c1_91 = arith.constant 1 : index
    %c0_92 = arith.constant 0 : index
    %88 = vector.load %arg10[%c1_91, %c0_92] : memref<36x128xf32, #tpu.memory_space<vmem>>, vector<16x128xf32>
    tpu.vector_store %arg10[%c1_91, %c0_92], %87 {strides = array<i32>} : memref<36x128xf32, #tpu.memory_space<vmem>>, vector<16x128xf32>,
    %c18_93 = arith.constant 18 : index
    %c0_94 = arith.constant 0 : index
    %89 = vector.load %arg10[%c18_93, %c0_94] : memref<36x128xf32, #tpu.memory_space<vmem>>, vector<1x128xf32>
    tpu.vector_store %arg10[%c18_93, %c0_94], %84 {strides = array<i32>} : memref<36x128xf32, #tpu.memory_space<vmem>>, vector<1x128xf32>,
    %c35_95 = arith.constant 35 : index
    %c0_96 = arith.constant 0 : index
    %90 = vector.load %arg10[%c35_95, %c0_96] : memref<36x128xf32, #tpu.memory_space<vmem>>, vector<1x128xf32>
    tpu.vector_store %arg10[%c35_95, %c0_96], %84 {strides = array<i32>} : memref<36x128xf32, #tpu.memory_space<vmem>>, vector<1x128xf32>,
    %c16_97 = arith.constant 16 : index
    %c0_98 = arith.constant 0 : index
    %91 = vector.load %arg9[%c16_97, %c0_98] : memref<32x128xf32, #tpu.memory_space<vmem>>, vector<16x128xf32>
    %c19_99 = arith.constant 19 : index
    %c0_100 = arith.constant 0 : index
    %92 = vector.load %arg10[%c19_99, %c0_100] : memref<36x128xf32, #tpu.memory_space<vmem>>, vector<16x128xf32>
    tpu.vector_store %arg10[%c19_99, %c0_100], %91 {strides = array<i32>} : memref<36x128xf32, #tpu.memory_space<vmem>>, vector<16x128xf32>,
    %cst_101 = arith.constant 0.000000e+00 : f32
    %93 = vector.broadcast %cst_101 : f32 to vector<8x128xf32>
    %c0_102 = arith.constant 0 : index
    %c0_103 = arith.constant 0 : index
    %94 = tpu.strided_load %arg10[%c0_102, %c0_103] {strides = array<i32: 2, 1>} : memref<36x128xf32, #tpu.memory_space<vmem>>, vector<8x128xf32>
    %95 = arith.truncf %94 : vector<8x128xf32> to vector<8x128xbf16>
    %c3 = arith.constant 3 : index
    %c0_104 = arith.constant 0 : index
    %c0_105 = arith.constant 0 : index
    %96 = vector.load %arg2[%c3, %c0_104, %c0_105] : memref<21x128x128xbf16, #tpu.memory_space<vmem>>, vector<1x128x128xbf16>
    %97 = vector.shape_cast %96 : vector<1x128x128xbf16> to vector<128x128xbf16>
    %cst_106 = arith.constant dense<0.000000e+00> : vector<8x128xf32>
    %98 = tpu.matmul %95, %97, %cst_106 {dimension_numbers = #tpu.dot_dimension_numbers<[1], [0], [0], [1], [0, 0, 1, 1], [], []>} : vector<8x128xbf16>, vector<128x128xbf16>, vector<8x128xf32> -> vector<8x128xf32>
    %99 = arith.addf %93, %98 : vector<8x128xf32>
    %c1_107 = arith.constant 1 : index
    %c0_108 = arith.constant 0 : index
    %100 = tpu.strided_load %arg10[%c1_107, %c0_108] {strides = array<i32: 2, 1>} : memref<36x128xf32, #tpu.memory_space<vmem>>, vector<8x128xf32>
    %101 = arith.truncf %100 : vector<8x128xf32> to vector<8x128xbf16>
    %c4 = arith.constant 4 : index
    %c0_109 = arith.constant 0 : index
    %c0_110 = arith.constant 0 : index
    %102 = vector.load %arg2[%c4, %c0_109, %c0_110] : memref<21x128x128xbf16, #tpu.memory_space<vmem>>, vector<1x128x128xbf16>
    %103 = vector.shape_cast %102 : vector<1x128x128xbf16> to vector<128x128xbf16>
    %cst_111 = arith.constant dense<0.000000e+00> : vector<8x128xf32>
    %104 = tpu.matmul %101, %103, %cst_111 {dimension_numbers = #tpu.dot_dimension_numbers<[1], [0], [0], [1], [0, 0, 1, 1], [], []>} : vector<8x128xbf16>, vector<128x128xbf16>, vector<8x128xf32> -> vector<8x128xf32>
    %105 = arith.addf %99, %104 : vector<8x128xf32>
    %c2_112 = arith.constant 2 : index
    %c0_113 = arith.constant 0 : index
    %106 = tpu.strided_load %arg10[%c2_112, %c0_113] {strides = array<i32: 2, 1>} : memref<36x128xf32, #tpu.memory_space<vmem>>, vector<8x128xf32>
    %107 = arith.truncf %106 : vector<8x128xf32> to vector<8x128xbf16>
    %c5 = arith.constant 5 : index
    %c0_114 = arith.constant 0 : index
    %c0_115 = arith.constant 0 : index
    %108 = vector.load %arg2[%c5, %c0_114, %c0_115] : memref<21x128x128xbf16, #tpu.memory_space<vmem>>, vector<1x128x128xbf16>
    %109 = vector.shape_cast %108 : vector<1x128x128xbf16> to vector<128x128xbf16>
    %cst_116 = arith.constant dense<0.000000e+00> : vector<8x128xf32>
    %110 = tpu.matmul %107, %109, %cst_116 {dimension_numbers = #tpu.dot_dimension_numbers<[1], [0], [0], [1], [0, 0, 1, 1], [], []>} : vector<8x128xbf16>, vector<128x128xbf16>, vector<8x128xf32> -> vector<8x128xf32>
    %111 = arith.addf %105, %110 : vector<8x128xf32>
    %c0_117 = arith.constant 0 : index
    %c0_118 = arith.constant 0 : index
    %112 = vector.load %arg11[%c0_117, %c0_118] : memref<32x128xf32, #tpu.memory_space<vmem>>, vector<8x128xf32>
    tpu.vector_store %arg11[%c0_117, %c0_118], %111 {strides = array<i32>} : memref<32x128xf32, #tpu.memory_space<vmem>>, vector<8x128xf32>,
    %cst_119 = arith.constant 0.000000e+00 : f32
    %113 = vector.broadcast %cst_119 : f32 to vector<8x128xf32>
    %c18_120 = arith.constant 18 : index
    %c0_121 = arith.constant 0 : index
    %114 = tpu.strided_load %arg10[%c18_120, %c0_121] {strides = array<i32: 2, 1>} : memref<36x128xf32, #tpu.memory_space<vmem>>, vector<8x128xf32>
    %115 = arith.truncf %114 : vector<8x128xf32> to vector<8x128xbf16>
    %c3_122 = arith.constant 3 : index
    %c0_123 = arith.constant 0 : index
    %c0_124 = arith.constant 0 : index
    %116 = vector.load %arg2[%c3_122, %c0_123, %c0_124] : memref<21x128x128xbf16, #tpu.memory_space<vmem>>, vector<1x128x128xbf16>
    %117 = vector.shape_cast %116 : vector<1x128x128xbf16> to vector<128x128xbf16>
    %cst_125 = arith.constant dense<0.000000e+00> : vector<8x128xf32>
    %118 = tpu.matmul %115, %117, %cst_125 {dimension_numbers = #tpu.dot_dimension_numbers<[1], [0], [0], [1], [0, 0, 1, 1], [], []>} : vector<8x128xbf16>, vector<128x128xbf16>, vector<8x128xf32> -> vector<8x128xf32>
    %119 = arith.addf %113, %118 : vector<8x128xf32>
    %c19_126 = arith.constant 19 : index
    %c0_127 = arith.constant 0 : index
    %120 = tpu.strided_load %arg10[%c19_126, %c0_127] {strides = array<i32: 2, 1>} : memref<36x128xf32, #tpu.memory_space<vmem>>, vector<8x128xf32>
    %121 = arith.truncf %120 : vector<8x128xf32> to vector<8x128xbf16>
    %c4_128 = arith.constant 4 : index
    %c0_129 = arith.constant 0 : index
    %c0_130 = arith.constant 0 : index
    %122 = vector.load %arg2[%c4_128, %c0_129, %c0_130] : memref<21x128x128xbf16, #tpu.memory_space<vmem>>, vector<1x128x128xbf16>
    %123 = vector.shape_cast %122 : vector<1x128x128xbf16> to vector<128x128xbf16>
    %cst_131 = arith.constant dense<0.000000e+00> : vector<8x128xf32>
    %124 = tpu.matmul %121, %123, %cst_131 {dimension_numbers = #tpu.dot_dimension_numbers<[1], [0], [0], [1], [0, 0, 1, 1], [], []>} : vector<8x128xbf16>, vector<128x128xbf16>, vector<8x128xf32> -> vector<8x128xf32>
    %125 = arith.addf %119, %124 : vector<8x128xf32>
    %c20_132 = arith.constant 20 : index
    %c0_133 = arith.constant 0 : index
    %126 = tpu.strided_load %arg10[%c20_132, %c0_133] {strides = array<i32: 2, 1>} : memref<36x128xf32, #tpu.memory_space<vmem>>, vector<8x128xf32>
    %127 = arith.truncf %126 : vector<8x128xf32> to vector<8x128xbf16>
    %c5_134 = arith.constant 5 : index
    %c0_135 = arith.constant 0 : index
    %c0_136 = arith.constant 0 : index
    %128 = vector.load %arg2[%c5_134, %c0_135, %c0_136] : memref<21x128x128xbf16, #tpu.memory_space<vmem>>, vector<1x128x128xbf16>
    %129 = vector.shape_cast %128 : vector<1x128x128xbf16> to vector<128x128xbf16>
    %cst_137 = arith.constant dense<0.000000e+00> : vector<8x128xf32>
    %130 = tpu.matmul %127, %129, %cst_137 {dimension_numbers = #tpu.dot_dimension_numbers<[1], [0], [0], [1], [0, 0, 1, 1], [], []>} : vector<8x128xbf16>, vector<128x128xbf16>, vector<8x128xf32> -> vector<8x128xf32>
    %131 = arith.addf %125, %130 : vector<8x128xf32>
    %c8_138 = arith.constant 8 : index
    %c0_139 = arith.constant 0 : index
    %132 = vector.load %arg11[%c8_138, %c0_139] : memref<32x128xf32, #tpu.memory_space<vmem>>, vector<8x128xf32>
    tpu.vector_store %arg11[%c8_138, %c0_139], %131 {strides = array<i32>} : memref<32x128xf32, #tpu.memory_space<vmem>>, vector<8x128xf32>,
    %c0_140 = arith.constant 0 : index
    %c0_141 = arith.constant 0 : index
    %133 = vector.load %arg11[%c0_140, %c0_141] : memref<32x128xf32, #tpu.memory_space<vmem>>, vector<16x128xf32>
    %c2_142 = arith.constant 2 : index
    %c0_143 = arith.constant 0 : index
    %134 = vector.load %arg4[%c2_142, %c0_143] : memref<18x128xf32, #tpu.memory_space<vmem>>, vector<1x128xf32>
    %c2_144 = arith.constant 2 : index
    %c0_145 = arith.constant 0 : index
    %135 = vector.load %arg5[%c2_144, %c0_145] : memref<18x128xf32, #tpu.memory_space<vmem>>, vector<1x128xf32>
    %136 = vector.broadcast %134 : vector<1x128xf32> to vector<16x128xf32>
    %137 = arith.mulf %133, %136 : vector<16x128xf32>
    %138 = vector.broadcast %135 : vector<1x128xf32> to vector<16x128xf32>
    %139 = arith.addf %137, %138 : vector<16x128xf32>
    %cst_146 = arith.constant 0.000000e+00 : f32
    %140 = vector.broadcast %cst_146 : f32 to vector<16x128xf32>
    %141 = arith.maximumf %139, %140 : vector<16x128xf32>
    %142 = arith.truncf %141 : vector<16x128xf32> to vector<16x128xbf16>
    %c1_147 = arith.constant 1 : index
    %c0_148 = arith.constant 0 : index
    %c0_149 = arith.constant 0 : index
    %143 = vector.load %arg3[%c1_147, %c0_148, %c0_149] : memref<14x128x128xbf16, #tpu.memory_space<vmem>>, vector<1x128x128xbf16>
    %144 = vector.shape_cast %143 : vector<1x128x128xbf16> to vector<128x128xbf16>
    %cst_150 = arith.constant dense<0.000000e+00> : vector<16x128xf32>
    %145 = tpu.matmul %142, %144, %cst_150 {dimension_numbers = #tpu.dot_dimension_numbers<[1], [0], [0], [1], [0, 0, 1, 1], [], []>} : vector<16x128xbf16>, vector<128x128xbf16>, vector<16x128xf32> -> vector<16x128xf32>
    %c0_151 = arith.constant 0 : index
    %c0_152 = arith.constant 0 : index
    %146 = vector.load %arg12[%c0_151, %c0_152] : memref<32x128xf32, #tpu.memory_space<vmem>>, vector<16x128xf32>
    %147 = arith.addf %145, %146 : vector<16x128xf32>
    %c3_153 = arith.constant 3 : index
    %c0_154 = arith.constant 0 : index
    %148 = vector.load %arg4[%c3_153, %c0_154] : memref<18x128xf32, #tpu.memory_space<vmem>>, vector<1x128xf32>
    %c3_155 = arith.constant 3 : index
    %c0_156 = arith.constant 0 : index
    %149 = vector.load %arg5[%c3_155, %c0_156] : memref<18x128xf32, #tpu.memory_space<vmem>>, vector<1x128xf32>
    %150 = vector.broadcast %148 : vector<1x128xf32> to vector<16x128xf32>
    %151 = arith.mulf %147, %150 : vector<16x128xf32>
    %152 = vector.broadcast %149 : vector<1x128xf32> to vector<16x128xf32>
    %153 = arith.addf %151, %152 : vector<16x128xf32>
    %cst_157 = arith.constant 0.000000e+00 : f32
    %154 = vector.broadcast %cst_157 : f32 to vector<16x128xf32>
    %155 = arith.maximumf %153, %154 : vector<16x128xf32>
    %156 = arith.truncf %155 : vector<16x128xf32> to vector<16x128xbf16>
    %c3_158 = arith.constant 3 : index
    %c0_159 = arith.constant 0 : index
    %c0_160 = arith.constant 0 : index
    %157 = vector.load %arg3[%c3_158, %c0_159, %c0_160] : memref<14x128x128xbf16, #tpu.memory_space<vmem>>, vector<1x128x128xbf16>
    %158 = vector.shape_cast %157 : vector<1x128x128xbf16> to vector<128x128xbf16>
    %cst_161 = arith.constant dense<0.000000e+00> : vector<16x128xf32>
    %159 = tpu.matmul %156, %158, %cst_161 {dimension_numbers = #tpu.dot_dimension_numbers<[1], [0], [0], [1], [0, 0, 1, 1], [], []>} : vector<16x128xbf16>, vector<128x128xbf16>, vector<16x128xf32> -> vector<16x128xf32>
    %c4_162 = arith.constant 4 : index
    %c0_163 = arith.constant 0 : index
    %160 = vector.load %arg4[%c4_162, %c0_163] : memref<18x128xf32, #tpu.memory_space<vmem>>, vector<1x128xf32>
    %c4_164 = arith.constant 4 : index
    %c0_165 = arith.constant 0 : index
    %161 = vector.load %arg5[%c4_164, %c0_165] : memref<18x128xf32, #tpu.memory_space<vmem>>, vector<1x128xf32>
    %162 = vector.broadcast %160 : vector<1x128xf32> to vector<16x128xf32>
    %163 = arith.mulf %159, %162 : vector<16x128xf32>
    %164 = vector.broadcast %161 : vector<1x128xf32> to vector<16x128xf32>
    %165 = arith.addf %163, %164 : vector<16x128xf32>
    %cst_166 = arith.constant 0.000000e+00 : f32
    %166 = vector.broadcast %cst_166 : f32 to vector<16x128xf32>
    %167 = arith.maximumf %165, %166 : vector<16x128xf32>
    %c0_167 = arith.constant 0 : index
    %c0_168 = arith.constant 0 : index
    %168 = vector.load %arg9[%c0_167, %c0_168] : memref<32x128xf32, #tpu.memory_space<vmem>>, vector<16x128xf32>
    tpu.vector_store %arg9[%c0_167, %c0_168], %167 {strides = array<i32>} : memref<32x128xf32, #tpu.memory_space<vmem>>, vector<16x128xf32>,
    %cst_169 = arith.constant 0.000000e+00 : f32
    %169 = vector.broadcast %cst_169 : f32 to vector<1x128xf32>
    %c0_170 = arith.constant 0 : index
    %c0_171 = arith.constant 0 : index
    %170 = vector.load %arg10[%c0_170, %c0_171] : memref<36x128xf32, #tpu.memory_space<vmem>>, vector<1x128xf32>
    tpu.vector_store %arg10[%c0_170, %c0_171], %169 {strides = array<i32>} : memref<36x128xf32, #tpu.memory_space<vmem>>, vector<1x128xf32>,
    %c9 = arith.constant 9 : index
    %c0_172 = arith.constant 0 : index
    %171 = vector.load %arg10[%c9, %c0_172] : memref<36x128xf32, #tpu.memory_space<vmem>>, vector<1x128xf32>
    tpu.vector_store %arg10[%c9, %c0_172], %169 {strides = array<i32>} : memref<36x128xf32, #tpu.memory_space<vmem>>, vector<1x128xf32>,
    %c0_173 = arith.constant 0 : index
    %c0_174 = arith.constant 0 : index
    %172 = vector.load %arg9[%c0_173, %c0_174] : memref<32x128xf32, #tpu.memory_space<vmem>>, vector<8x128xf32>
    %c1_175 = arith.constant 1 : index
    %c0_176 = arith.constant 0 : index
    %173 = vector.load %arg10[%c1_175, %c0_176] : memref<36x128xf32, #tpu.memory_space<vmem>>, vector<8x128xf32>
    tpu.vector_store %arg10[%c1_175, %c0_176], %172 {strides = array<i32>} : memref<36x128xf32, #tpu.memory_space<vmem>>, vector<8x128xf32>,
    %c10 = arith.constant 10 : index
    %c0_177 = arith.constant 0 : index
    %174 = vector.load %arg10[%c10, %c0_177] : memref<36x128xf32, #tpu.memory_space<vmem>>, vector<1x128xf32>
    tpu.vector_store %arg10[%c10, %c0_177], %169 {strides = array<i32>} : memref<36x128xf32, #tpu.memory_space<vmem>>, vector<1x128xf32>,
    %c19_178 = arith.constant 19 : index
    %c0_179 = arith.constant 0 : index
    %175 = vector.load %arg10[%c19_178, %c0_179] : memref<36x128xf32, #tpu.memory_space<vmem>>, vector<1x128xf32>
    tpu.vector_store %arg10[%c19_178, %c0_179], %169 {strides = array<i32>} : memref<36x128xf32, #tpu.memory_space<vmem>>, vector<1x128xf32>,
    %c8_180 = arith.constant 8 : index
    %c0_181 = arith.constant 0 : index
    %176 = vector.load %arg9[%c8_180, %c0_181] : memref<32x128xf32, #tpu.memory_space<vmem>>, vector<8x128xf32>
    %c11 = arith.constant 11 : index
    %c0_182 = arith.constant 0 : index
    %177 = vector.load %arg10[%c11, %c0_182] : memref<36x128xf32, #tpu.memory_space<vmem>>, vector<8x128xf32>
    tpu.vector_store %arg10[%c11, %c0_182], %176 {strides = array<i32>} : memref<36x128xf32, #tpu.memory_space<vmem>>, vector<8x128xf32>,
    %cst_183 = arith.constant 0.000000e+00 : f32
    %178 = vector.broadcast %cst_183 : f32 to vector<8x128xf32>
    %c0_184 = arith.constant 0 : index
    %c0_185 = arith.constant 0 : index
    %179 = vector.load %arg10[%c0_184, %c0_185] : memref<36x128xf32, #tpu.memory_space<vmem>>, vector<8x128xf32>
    %180 = arith.truncf %179 : vector<8x128xf32> to vector<8x128xbf16>
    %c6 = arith.constant 6 : index
    %c0_186 = arith.constant 0 : index
    %c0_187 = arith.constant 0 : index
    %181 = vector.load %arg2[%c6, %c0_186, %c0_187] : memref<21x128x128xbf16, #tpu.memory_space<vmem>>, vector<1x128x128xbf16>
    %182 = vector.shape_cast %181 : vector<1x128x128xbf16> to vector<128x128xbf16>
    %cst_188 = arith.constant dense<0.000000e+00> : vector<8x128xf32>
    %183 = tpu.matmul %180, %182, %cst_188 {dimension_numbers = #tpu.dot_dimension_numbers<[1], [0], [0], [1], [0, 0, 1, 1], [], []>} : vector<8x128xbf16>, vector<128x128xbf16>, vector<8x128xf32> -> vector<8x128xf32>
    %184 = arith.addf %178, %183 : vector<8x128xf32>
    %c1_189 = arith.constant 1 : index
    %c0_190 = arith.constant 0 : index
    %185 = vector.load %arg10[%c1_189, %c0_190] : memref<36x128xf32, #tpu.memory_space<vmem>>, vector<8x128xf32>
    %186 = arith.truncf %185 : vector<8x128xf32> to vector<8x128xbf16>
    %c7 = arith.constant 7 : index
    %c0_191 = arith.constant 0 : index
    %c0_192 = arith.constant 0 : index
    %187 = vector.load %arg2[%c7, %c0_191, %c0_192] : memref<21x128x128xbf16, #tpu.memory_space<vmem>>, vector<1x128x128xbf16>
    %188 = vector.shape_cast %187 : vector<1x128x128xbf16> to vector<128x128xbf16>
    %cst_193 = arith.constant dense<0.000000e+00> : vector<8x128xf32>
    %189 = tpu.matmul %186, %188, %cst_193 {dimension_numbers = #tpu.dot_dimension_numbers<[1], [0], [0], [1], [0, 0, 1, 1], [], []>} : vector<8x128xbf16>, vector<128x128xbf16>, vector<8x128xf32> -> vector<8x128xf32>
    %190 = arith.addf %184, %189 : vector<8x128xf32>
    %c2_194 = arith.constant 2 : index
    %c0_195 = arith.constant 0 : index
    %191 = vector.load %arg10[%c2_194, %c0_195] : memref<36x128xf32, #tpu.memory_space<vmem>>, vector<8x128xf32>
    %192 = arith.truncf %191 : vector<8x128xf32> to vector<8x128xbf16>
    %c8_196 = arith.constant 8 : index
    %c0_197 = arith.constant 0 : index
    %c0_198 = arith.constant 0 : index
    %193 = vector.load %arg2[%c8_196, %c0_197, %c0_198] : memref<21x128x128xbf16, #tpu.memory_space<vmem>>, vector<1x128x128xbf16>
    %194 = vector.shape_cast %193 : vector<1x128x128xbf16> to vector<128x128xbf16>
    %cst_199 = arith.constant dense<0.000000e+00> : vector<8x128xf32>
    %195 = tpu.matmul %192, %194, %cst_199 {dimension_numbers = #tpu.dot_dimension_numbers<[1], [0], [0], [1], [0, 0, 1, 1], [], []>} : vector<8x128xbf16>, vector<128x128xbf16>, vector<8x128xf32> -> vector<8x128xf32>
    %196 = arith.addf %190, %195 : vector<8x128xf32>
    %c0_200 = arith.constant 0 : index
    %c0_201 = arith.constant 0 : index
    %197 = vector.load %arg11[%c0_200, %c0_201] : memref<32x128xf32, #tpu.memory_space<vmem>>, vector<8x128xf32>
    tpu.vector_store %arg11[%c0_200, %c0_201], %196 {strides = array<i32>} : memref<32x128xf32, #tpu.memory_space<vmem>>, vector<8x128xf32>,
    %cst_202 = arith.constant 0.000000e+00 : f32
    %198 = vector.broadcast %cst_202 : f32 to vector<8x128xf32>
    %c10_203 = arith.constant 10 : index
    %c0_204 = arith.constant 0 : index
    %199 = vector.load %arg10[%c10_203, %c0_204] : memref<36x128xf32, #tpu.memory_space<vmem>>, vector<8x128xf32>
    %200 = arith.truncf %199 : vector<8x128xf32> to vector<8x128xbf16>
    %c6_205 = arith.constant 6 : index
    %c0_206 = arith.constant 0 : index
    %c0_207 = arith.constant 0 : index
    %201 = vector.load %arg2[%c6_205, %c0_206, %c0_207] : memref<21x128x128xbf16, #tpu.memory_space<vmem>>, vector<1x128x128xbf16>
    %202 = vector.shape_cast %201 : vector<1x128x128xbf16> to vector<128x128xbf16>
    %cst_208 = arith.constant dense<0.000000e+00> : vector<8x128xf32>
    %203 = tpu.matmul %200, %202, %cst_208 {dimension_numbers = #tpu.dot_dimension_numbers<[1], [0], [0], [1], [0, 0, 1, 1], [], []>} : vector<8x128xbf16>, vector<128x128xbf16>, vector<8x128xf32> -> vector<8x128xf32>
    %204 = arith.addf %198, %203 : vector<8x128xf32>
    %c11_209 = arith.constant 11 : index
    %c0_210 = arith.constant 0 : index
    %205 = vector.load %arg10[%c11_209, %c0_210] : memref<36x128xf32, #tpu.memory_space<vmem>>, vector<8x128xf32>
    %206 = arith.truncf %205 : vector<8x128xf32> to vector<8x128xbf16>
    %c7_211 = arith.constant 7 : index
    %c0_212 = arith.constant 0 : index
    %c0_213 = arith.constant 0 : index
    %207 = vector.load %arg2[%c7_211, %c0_212, %c0_213] : memref<21x128x128xbf16, #tpu.memory_space<vmem>>, vector<1x128x128xbf16>
    %208 = vector.shape_cast %207 : vector<1x128x128xbf16> to vector<128x128xbf16>
    %cst_214 = arith.constant dense<0.000000e+00> : vector<8x128xf32>
    %209 = tpu.matmul %206, %208, %cst_214 {dimension_numbers = #tpu.dot_dimension_numbers<[1], [0], [0], [1], [0, 0, 1, 1], [], []>} : vector<8x128xbf16>, vector<128x128xbf16>, vector<8x128xf32> -> vector<8x128xf32>
    %210 = arith.addf %204, %209 : vector<8x128xf32>
    %c12 = arith.constant 12 : index
    %c0_215 = arith.constant 0 : index
    %211 = vector.load %arg10[%c12, %c0_215] : memref<36x128xf32, #tpu.memory_space<vmem>>, vector<8x128xf32>
    %212 = arith.truncf %211 : vector<8x128xf32> to vector<8x128xbf16>
    %c8_216 = arith.constant 8 : index
    %c0_217 = arith.constant 0 : index
    %c0_218 = arith.constant 0 : index
    %213 = vector.load %arg2[%c8_216, %c0_217, %c0_218] : memref<21x128x128xbf16, #tpu.memory_space<vmem>>, vector<1x128x128xbf16>
    %214 = vector.shape_cast %213 : vector<1x128x128xbf16> to vector<128x128xbf16>
    %cst_219 = arith.constant dense<0.000000e+00> : vector<8x128xf32>
    %215 = tpu.matmul %212, %214, %cst_219 {dimension_numbers = #tpu.dot_dimension_numbers<[1], [0], [0], [1], [0, 0, 1, 1], [], []>} : vector<8x128xbf16>, vector<128x128xbf16>, vector<8x128xf32> -> vector<8x128xf32>
    %216 = arith.addf %210, %215 : vector<8x128xf32>
    %c8_220 = arith.constant 8 : index
    %c0_221 = arith.constant 0 : index
    %217 = vector.load %arg11[%c8_220, %c0_221] : memref<32x128xf32, #tpu.memory_space<vmem>>, vector<8x128xf32>
    tpu.vector_store %arg11[%c8_220, %c0_221], %216 {strides = array<i32>} : memref<32x128xf32, #tpu.memory_space<vmem>>, vector<8x128xf32>,
    %c0_222 = arith.constant 0 : index
    %c0_223 = arith.constant 0 : index
    %218 = vector.load %arg11[%c0_222, %c0_223] : memref<32x128xf32, #tpu.memory_space<vmem>>, vector<16x128xf32>
    %c5_224 = arith.constant 5 : index
    %c0_225 = arith.constant 0 : index
    %219 = vector.load %arg4[%c5_224, %c0_225] : memref<18x128xf32, #tpu.memory_space<vmem>>, vector<1x128xf32>
    %c5_226 = arith.constant 5 : index
    %c0_227 = arith.constant 0 : index
    %220 = vector.load %arg5[%c5_226, %c0_227] : memref<18x128xf32, #tpu.memory_space<vmem>>, vector<1x128xf32>
    %221 = vector.broadcast %219 : vector<1x128xf32> to vector<16x128xf32>
    %222 = arith.mulf %218, %221 : vector<16x128xf32>
    %223 = vector.broadcast %220 : vector<1x128xf32> to vector<16x128xf32>
    %224 = arith.addf %222, %223 : vector<16x128xf32>
    %cst_228 = arith.constant 0.000000e+00 : f32
    %225 = vector.broadcast %cst_228 : f32 to vector<16x128xf32>
    %226 = arith.maximumf %224, %225 : vector<16x128xf32>
    %227 = arith.truncf %226 : vector<16x128xf32> to vector<16x128xbf16>
    %c4_229 = arith.constant 4 : index
    %c0_230 = arith.constant 0 : index
    %c0_231 = arith.constant 0 : index
    %228 = vector.load %arg3[%c4_229, %c0_230, %c0_231] : memref<14x128x128xbf16, #tpu.memory_space<vmem>>, vector<1x128x128xbf16>
    %229 = vector.shape_cast %228 : vector<1x128x128xbf16> to vector<128x128xbf16>
    %cst_232 = arith.constant dense<0.000000e+00> : vector<16x128xf32>
    %230 = tpu.matmul %227, %229, %cst_232 {dimension_numbers = #tpu.dot_dimension_numbers<[1], [0], [0], [1], [0, 0, 1, 1], [], []>} : vector<16x128xbf16>, vector<128x128xbf16>, vector<16x128xf32> -> vector<16x128xf32>
    %231 = arith.addf %230, %147 : vector<16x128xf32>
    %c0_233 = arith.constant 0 : index
    %c0_234 = arith.constant 0 : index
    %232 = vector.load %arg9[%c0_233, %c0_234] : memref<32x128xf32, #tpu.memory_space<vmem>>, vector<16x128xf32>
    tpu.vector_store %arg9[%c0_233, %c0_234], %231 {strides = array<i32>} : memref<32x128xf32, #tpu.memory_space<vmem>>, vector<16x128xf32>,
    %c0_235 = arith.constant 0 : index
    %c0_236 = arith.constant 0 : index
    %233 = tpu.strided_load %arg9[%c0_235, %c0_236] {strides = array<i32: 2, 1>} : memref<32x128xf32, #tpu.memory_space<vmem>>, vector<4x128xf32>
    %234 = arith.truncf %233 : vector<4x128xf32> to vector<4x128xbf16>
    %c7_237 = arith.constant 7 : index
    %c0_238 = arith.constant 0 : index
    %c0_239 = arith.constant 0 : index
    %235 = vector.load %arg3[%c7_237, %c0_238, %c0_239] : memref<14x128x128xbf16, #tpu.memory_space<vmem>>, vector<1x128x128xbf16>
    %236 = vector.shape_cast %235 : vector<1x128x128xbf16> to vector<128x128xbf16>
    %cst_240 = arith.constant dense<0.000000e+00> : vector<4x128xf32>
    %237 = tpu.matmul %234, %236, %cst_240 {dimension_numbers = #tpu.dot_dimension_numbers<[1], [0], [0], [1], [0, 0, 1, 1], [], []>} : vector<4x128xbf16>, vector<128x128xbf16>, vector<4x128xf32> -> vector<4x128xf32>
    %c0_241 = arith.constant 0 : index
    %c0_242 = arith.constant 0 : index
    %238 = vector.load %arg12[%c0_241, %c0_242] : memref<32x128xf32, #tpu.memory_space<vmem>>, vector<4x128xf32>
    tpu.vector_store %arg12[%c0_241, %c0_242], %237 {strides = array<i32>} : memref<32x128xf32, #tpu.memory_space<vmem>>, vector<4x128xf32>,
    %c8_243 = arith.constant 8 : index
    %c0_244 = arith.constant 0 : index
    %239 = tpu.strided_load %arg9[%c8_243, %c0_244] {strides = array<i32: 2, 1>} : memref<32x128xf32, #tpu.memory_space<vmem>>, vector<4x128xf32>
    %240 = arith.truncf %239 : vector<4x128xf32> to vector<4x128xbf16>
    %c7_245 = arith.constant 7 : index
    %c0_246 = arith.constant 0 : index
    %c0_247 = arith.constant 0 : index
    %241 = vector.load %arg3[%c7_245, %c0_246, %c0_247] : memref<14x128x128xbf16, #tpu.memory_space<vmem>>, vector<1x128x128xbf16>
    %242 = vector.shape_cast %241 : vector<1x128x128xbf16> to vector<128x128xbf16>
    %cst_248 = arith.constant dense<0.000000e+00> : vector<4x128xf32>
    %243 = tpu.matmul %240, %242, %cst_248 {dimension_numbers = #tpu.dot_dimension_numbers<[1], [0], [0], [1], [0, 0, 1, 1], [], []>} : vector<4x128xbf16>, vector<128x128xbf16>, vector<4x128xf32> -> vector<4x128xf32>
    %c4_249 = arith.constant 4 : index
    %c0_250 = arith.constant 0 : index
    %244 = vector.load %arg12[%c4_249, %c0_250] : memref<32x128xf32, #tpu.memory_space<vmem>>, vector<4x128xf32>
    tpu.vector_store %arg12[%c4_249, %c0_250], %243 {strides = array<i32>} : memref<32x128xf32, #tpu.memory_space<vmem>>, vector<4x128xf32>,
    %c6_251 = arith.constant 6 : index
    %c0_252 = arith.constant 0 : index
    %245 = vector.load %arg4[%c6_251, %c0_252] : memref<18x128xf32, #tpu.memory_space<vmem>>, vector<1x128xf32>
    %c6_253 = arith.constant 6 : index
    %c0_254 = arith.constant 0 : index
    %246 = vector.load %arg5[%c6_253, %c0_254] : memref<18x128xf32, #tpu.memory_space<vmem>>, vector<1x128xf32>
    %247 = vector.broadcast %245 : vector<1x128xf32> to vector<16x128xf32>
    %248 = arith.mulf %231, %247 : vector<16x128xf32>
    %249 = vector.broadcast %246 : vector<1x128xf32> to vector<16x128xf32>
    %250 = arith.addf %248, %249 : vector<16x128xf32>
    %cst_255 = arith.constant 0.000000e+00 : f32
    %251 = vector.broadcast %cst_255 : f32 to vector<16x128xf32>
    %252 = arith.maximumf %250, %251 : vector<16x128xf32>
    %253 = arith.truncf %252 : vector<16x128xf32> to vector<16x128xbf16>
    %c5_256 = arith.constant 5 : index
    %c0_257 = arith.constant 0 : index
    %c0_258 = arith.constant 0 : index
    %254 = vector.load %arg3[%c5_256, %c0_257, %c0_258] : memref<14x128x128xbf16, #tpu.memory_space<vmem>>, vector<1x128x128xbf16>
    %255 = vector.shape_cast %254 : vector<1x128x128xbf16> to vector<128x128xbf16>
    %cst_259 = arith.constant dense<0.000000e+00> : vector<16x128xf32>
    %256 = tpu.matmul %253, %255, %cst_259 {dimension_numbers = #tpu.dot_dimension_numbers<[1], [0], [0], [1], [0, 0, 1, 1], [], []>} : vector<16x128xbf16>, vector<128x128xbf16>, vector<16x128xf32> -> vector<16x128xf32>
    %c7_260 = arith.constant 7 : index
    %c0_261 = arith.constant 0 : index
    %257 = vector.load %arg4[%c7_260, %c0_261] : memref<18x128xf32, #tpu.memory_space<vmem>>, vector<1x128xf32>
    %c7_262 = arith.constant 7 : index
    %c0_263 = arith.constant 0 : index
    %258 = vector.load %arg5[%c7_262, %c0_263] : memref<18x128xf32, #tpu.memory_space<vmem>>, vector<1x128xf32>
    %259 = vector.broadcast %257 : vector<1x128xf32> to vector<16x128xf32>
    %260 = arith.mulf %256, %259 : vector<16x128xf32>
    %261 = vector.broadcast %258 : vector<1x128xf32> to vector<16x128xf32>
    %262 = arith.addf %260, %261 : vector<16x128xf32>
    %cst_264 = arith.constant 0.000000e+00 : f32
    %263 = vector.broadcast %cst_264 : f32 to vector<16x128xf32>
    %264 = arith.maximumf %262, %263 : vector<16x128xf32>
    %c0_265 = arith.constant 0 : index
    %c0_266 = arith.constant 0 : index
    %265 = vector.load %arg9[%c0_265, %c0_266] : memref<32x128xf32, #tpu.memory_space<vmem>>, vector<16x128xf32>
    tpu.vector_store %arg9[%c0_265, %c0_266], %264 {strides = array<i32>} : memref<32x128xf32, #tpu.memory_space<vmem>>, vector<16x128xf32>,
    %cst_267 = arith.constant 0.000000e+00 : f32
    %266 = vector.broadcast %cst_267 : f32 to vector<2x128xf32>
    %c0_268 = arith.constant 0 : index
    %c0_269 = arith.constant 0 : index
    %267 = vector.load %arg10[%c0_268, %c0_269] : memref<36x128xf32, #tpu.memory_space<vmem>>, vector<2x128xf32>
    tpu.vector_store %arg10[%c0_268, %c0_269], %266 {strides = array<i32>} : memref<36x128xf32, #tpu.memory_space<vmem>>, vector<2x128xf32>,
    %c10_270 = arith.constant 10 : index
    %c0_271 = arith.constant 0 : index
    %268 = vector.load %arg10[%c10_270, %c0_271] : memref<36x128xf32, #tpu.memory_space<vmem>>, vector<2x128xf32>
    tpu.vector_store %arg10[%c10_270, %c0_271], %266 {strides = array<i32>} : memref<36x128xf32, #tpu.memory_space<vmem>>, vector<2x128xf32>,
    %c0_272 = arith.constant 0 : index
    %c0_273 = arith.constant 0 : index
    %269 = vector.load %arg9[%c0_272, %c0_273] : memref<32x128xf32, #tpu.memory_space<vmem>>, vector<8x128xf32>
    %c2_274 = arith.constant 2 : index
    %c0_275 = arith.constant 0 : index
    %270 = vector.load %arg10[%c2_274, %c0_275] : memref<36x128xf32, #tpu.memory_space<vmem>>, vector<8x128xf32>
    tpu.vector_store %arg10[%c2_274, %c0_275], %269 {strides = array<i32>} : memref<36x128xf32, #tpu.memory_space<vmem>>, vector<8x128xf32>,
    %c12_276 = arith.constant 12 : index
    %c0_277 = arith.constant 0 : index
    %271 = vector.load %arg10[%c12_276, %c0_277] : memref<36x128xf32, #tpu.memory_space<vmem>>, vector<2x128xf32>
    tpu.vector_store %arg10[%c12_276, %c0_277], %266 {strides = array<i32>} : memref<36x128xf32, #tpu.memory_space<vmem>>, vector<2x128xf32>,
    %c22 = arith.constant 22 : index
    %c0_278 = arith.constant 0 : index
    %272 = vector.load %arg10[%c22, %c0_278] : memref<36x128xf32, #tpu.memory_space<vmem>>, vector<2x128xf32>
    tpu.vector_store %arg10[%c22, %c0_278], %266 {strides = array<i32>} : memref<36x128xf32, #tpu.memory_space<vmem>>, vector<2x128xf32>,
    %c8_279 = arith.constant 8 : index
    %c0_280 = arith.constant 0 : index
    %273 = vector.load %arg9[%c8_279, %c0_280] : memref<32x128xf32, #tpu.memory_space<vmem>>, vector<8x128xf32>
    %c14 = arith.constant 14 : index
    %c0_281 = arith.constant 0 : index
    %274 = vector.load %arg10[%c14, %c0_281] : memref<36x128xf32, #tpu.memory_space<vmem>>, vector<8x128xf32>
    tpu.vector_store %arg10[%c14, %c0_281], %273 {strides = array<i32>} : memref<36x128xf32, #tpu.memory_space<vmem>>, vector<8x128xf32>,
    %cst_282 = arith.constant 0.000000e+00 : f32
    %275 = vector.broadcast %cst_282 : f32 to vector<4x128xf32>
    %c0_283 = arith.constant 0 : index
    %c0_284 = arith.constant 0 : index
    %276 = tpu.strided_load %arg10[%c0_283, %c0_284] {strides = array<i32: 2, 1>} : memref<36x128xf32, #tpu.memory_space<vmem>>, vector<4x128xf32>
    %277 = arith.truncf %276 : vector<4x128xf32> to vector<4x128xbf16>
    %c9_285 = arith.constant 9 : index
    %c0_286 = arith.constant 0 : index
    %c0_287 = arith.constant 0 : index
    %278 = vector.load %arg2[%c9_285, %c0_286, %c0_287] : memref<21x128x128xbf16, #tpu.memory_space<vmem>>, vector<1x128x128xbf16>
    %279 = vector.shape_cast %278 : vector<1x128x128xbf16> to vector<128x128xbf16>
    %cst_288 = arith.constant dense<0.000000e+00> : vector<4x128xf32>
    %280 = tpu.matmul %277, %279, %cst_288 {dimension_numbers = #tpu.dot_dimension_numbers<[1], [0], [0], [1], [0, 0, 1, 1], [], []>} : vector<4x128xbf16>, vector<128x128xbf16>, vector<4x128xf32> -> vector<4x128xf32>
    %281 = arith.addf %275, %280 : vector<4x128xf32>
    %c2_289 = arith.constant 2 : index
    %c0_290 = arith.constant 0 : index
    %282 = tpu.strided_load %arg10[%c2_289, %c0_290] {strides = array<i32: 2, 1>} : memref<36x128xf32, #tpu.memory_space<vmem>>, vector<4x128xf32>
    %283 = arith.truncf %282 : vector<4x128xf32> to vector<4x128xbf16>
    %c10_291 = arith.constant 10 : index
    %c0_292 = arith.constant 0 : index
    %c0_293 = arith.constant 0 : index
    %284 = vector.load %arg2[%c10_291, %c0_292, %c0_293] : memref<21x128x128xbf16, #tpu.memory_space<vmem>>, vector<1x128x128xbf16>
    %285 = vector.shape_cast %284 : vector<1x128x128xbf16> to vector<128x128xbf16>
    %cst_294 = arith.constant dense<0.000000e+00> : vector<4x128xf32>
    %286 = tpu.matmul %283, %285, %cst_294 {dimension_numbers = #tpu.dot_dimension_numbers<[1], [0], [0], [1], [0, 0, 1, 1], [], []>} : vector<4x128xbf16>, vector<128x128xbf16>, vector<4x128xf32> -> vector<4x128xf32>
    %287 = arith.addf %281, %286 : vector<4x128xf32>
    %c4_295 = arith.constant 4 : index
    %c0_296 = arith.constant 0 : index
    %288 = tpu.strided_load %arg10[%c4_295, %c0_296] {strides = array<i32: 2, 1>} : memref<36x128xf32, #tpu.memory_space<vmem>>, vector<4x128xf32>
    %289 = arith.truncf %288 : vector<4x128xf32> to vector<4x128xbf16>
    %c11_297 = arith.constant 11 : index
    %c0_298 = arith.constant 0 : index
    %c0_299 = arith.constant 0 : index
    %290 = vector.load %arg2[%c11_297, %c0_298, %c0_299] : memref<21x128x128xbf16, #tpu.memory_space<vmem>>, vector<1x128x128xbf16>
    %291 = vector.shape_cast %290 : vector<1x128x128xbf16> to vector<128x128xbf16>
    %cst_300 = arith.constant dense<0.000000e+00> : vector<4x128xf32>
    %292 = tpu.matmul %289, %291, %cst_300 {dimension_numbers = #tpu.dot_dimension_numbers<[1], [0], [0], [1], [0, 0, 1, 1], [], []>} : vector<4x128xbf16>, vector<128x128xbf16>, vector<4x128xf32> -> vector<4x128xf32>
    %293 = arith.addf %287, %292 : vector<4x128xf32>
    %c0_301 = arith.constant 0 : index
    %c0_302 = arith.constant 0 : index
    %294 = vector.load %arg11[%c0_301, %c0_302] : memref<32x128xf32, #tpu.memory_space<vmem>>, vector<4x128xf32>
    tpu.vector_store %arg11[%c0_301, %c0_302], %293 {strides = array<i32>} : memref<32x128xf32, #tpu.memory_space<vmem>>, vector<4x128xf32>,
    %cst_303 = arith.constant 0.000000e+00 : f32
    %295 = vector.broadcast %cst_303 : f32 to vector<4x128xf32>
    %c12_304 = arith.constant 12 : index
    %c0_305 = arith.constant 0 : index
    %296 = tpu.strided_load %arg10[%c12_304, %c0_305] {strides = array<i32: 2, 1>} : memref<36x128xf32, #tpu.memory_space<vmem>>, vector<4x128xf32>
    %297 = arith.truncf %296 : vector<4x128xf32> to vector<4x128xbf16>
    %c9_306 = arith.constant 9 : index
    %c0_307 = arith.constant 0 : index
    %c0_308 = arith.constant 0 : index
    %298 = vector.load %arg2[%c9_306, %c0_307, %c0_308] : memref<21x128x128xbf16, #tpu.memory_space<vmem>>, vector<1x128x128xbf16>
    %299 = vector.shape_cast %298 : vector<1x128x128xbf16> to vector<128x128xbf16>
    %cst_309 = arith.constant dense<0.000000e+00> : vector<4x128xf32>
    %300 = tpu.matmul %297, %299, %cst_309 {dimension_numbers = #tpu.dot_dimension_numbers<[1], [0], [0], [1], [0, 0, 1, 1], [], []>} : vector<4x128xbf16>, vector<128x128xbf16>, vector<4x128xf32> -> vector<4x128xf32>
    %301 = arith.addf %295, %300 : vector<4x128xf32>
    %c14_310 = arith.constant 14 : index
    %c0_311 = arith.constant 0 : index
    %302 = tpu.strided_load %arg10[%c14_310, %c0_311] {strides = array<i32: 2, 1>} : memref<36x128xf32, #tpu.memory_space<vmem>>, vector<4x128xf32>
    %303 = arith.truncf %302 : vector<4x128xf32> to vector<4x128xbf16>
    %c10_312 = arith.constant 10 : index
    %c0_313 = arith.constant 0 : index
    %c0_314 = arith.constant 0 : index
    %304 = vector.load %arg2[%c10_312, %c0_313, %c0_314] : memref<21x128x128xbf16, #tpu.memory_space<vmem>>, vector<1x128x128xbf16>
    %305 = vector.shape_cast %304 : vector<1x128x128xbf16> to vector<128x128xbf16>
    %cst_315 = arith.constant dense<0.000000e+00> : vector<4x128xf32>
    %306 = tpu.matmul %303, %305, %cst_315 {dimension_numbers = #tpu.dot_dimension_numbers<[1], [0], [0], [1], [0, 0, 1, 1], [], []>} : vector<4x128xbf16>, vector<128x128xbf16>, vector<4x128xf32> -> vector<4x128xf32>
    %307 = arith.addf %301, %306 : vector<4x128xf32>
    %c16_316 = arith.constant 16 : index
    %c0_317 = arith.constant 0 : index
    %308 = tpu.strided_load %arg10[%c16_316, %c0_317] {strides = array<i32: 2, 1>} : memref<36x128xf32, #tpu.memory_space<vmem>>, vector<4x128xf32>
    %309 = arith.truncf %308 : vector<4x128xf32> to vector<4x128xbf16>
    %c11_318 = arith.constant 11 : index
    %c0_319 = arith.constant 0 : index
    %c0_320 = arith.constant 0 : index
    %310 = vector.load %arg2[%c11_318, %c0_319, %c0_320] : memref<21x128x128xbf16, #tpu.memory_space<vmem>>, vector<1x128x128xbf16>
    %311 = vector.shape_cast %310 : vector<1x128x128xbf16> to vector<128x128xbf16>
    %cst_321 = arith.constant dense<0.000000e+00> : vector<4x128xf32>
    %312 = tpu.matmul %309, %311, %cst_321 {dimension_numbers = #tpu.dot_dimension_numbers<[1], [0], [0], [1], [0, 0, 1, 1], [], []>} : vector<4x128xbf16>, vector<128x128xbf16>, vector<4x128xf32> -> vector<4x128xf32>
    %313 = arith.addf %307, %312 : vector<4x128xf32>
    %c4_322 = arith.constant 4 : index
    %c0_323 = arith.constant 0 : index
    %314 = vector.load %arg11[%c4_322, %c0_323] : memref<32x128xf32, #tpu.memory_space<vmem>>, vector<4x128xf32>
    tpu.vector_store %arg11[%c4_322, %c0_323], %313 {strides = array<i32>} : memref<32x128xf32, #tpu.memory_space<vmem>>, vector<4x128xf32>,
    %c0_324 = arith.constant 0 : index
    %c0_325 = arith.constant 0 : index
    %315 = vector.load %arg11[%c0_324, %c0_325] : memref<32x128xf32, #tpu.memory_space<vmem>>, vector<8x128xf32>
    %c8_326 = arith.constant 8 : index
    %c0_327 = arith.constant 0 : index
    %316 = vector.load %arg4[%c8_326, %c0_327] : memref<18x128xf32, #tpu.memory_space<vmem>>, vector<1x128xf32>
    %c8_328 = arith.constant 8 : index
    %c0_329 = arith.constant 0 : index
    %317 = vector.load %arg5[%c8_328, %c0_329] : memref<18x128xf32, #tpu.memory_space<vmem>>, vector<1x128xf32>
    %318 = vector.broadcast %316 : vector<1x128xf32> to vector<8x128xf32>
    %319 = arith.mulf %315, %318 : vector<8x128xf32>
    %320 = vector.broadcast %317 : vector<1x128xf32> to vector<8x128xf32>
    %321 = arith.addf %319, %320 : vector<8x128xf32>
    %cst_330 = arith.constant 0.000000e+00 : f32
    %322 = vector.broadcast %cst_330 : f32 to vector<8x128xf32>
    %323 = arith.maximumf %321, %322 : vector<8x128xf32>
    %324 = arith.truncf %323 : vector<8x128xf32> to vector<8x128xbf16>
    %c6_331 = arith.constant 6 : index
    %c0_332 = arith.constant 0 : index
    %c0_333 = arith.constant 0 : index
    %325 = vector.load %arg3[%c6_331, %c0_332, %c0_333] : memref<14x128x128xbf16, #tpu.memory_space<vmem>>, vector<1x128x128xbf16>
    %326 = vector.shape_cast %325 : vector<1x128x128xbf16> to vector<128x128xbf16>
    %cst_334 = arith.constant dense<0.000000e+00> : vector<8x128xf32>
    %327 = tpu.matmul %324, %326, %cst_334 {dimension_numbers = #tpu.dot_dimension_numbers<[1], [0], [0], [1], [0, 0, 1, 1], [], []>} : vector<8x128xbf16>, vector<128x128xbf16>, vector<8x128xf32> -> vector<8x128xf32>
    %c0_335 = arith.constant 0 : index
    %c0_336 = arith.constant 0 : index
    %328 = vector.load %arg12[%c0_335, %c0_336] : memref<32x128xf32, #tpu.memory_space<vmem>>, vector<8x128xf32>
    %329 = arith.addf %327, %328 : vector<8x128xf32>
    %c9_337 = arith.constant 9 : index
    %c0_338 = arith.constant 0 : index
    %330 = vector.load %arg4[%c9_337, %c0_338] : memref<18x128xf32, #tpu.memory_space<vmem>>, vector<1x128xf32>
    %c9_339 = arith.constant 9 : index
    %c0_340 = arith.constant 0 : index
    %331 = vector.load %arg5[%c9_339, %c0_340] : memref<18x128xf32, #tpu.memory_space<vmem>>, vector<1x128xf32>
    %332 = vector.broadcast %330 : vector<1x128xf32> to vector<8x128xf32>
    %333 = arith.mulf %329, %332 : vector<8x128xf32>
    %334 = vector.broadcast %331 : vector<1x128xf32> to vector<8x128xf32>
    %335 = arith.addf %333, %334 : vector<8x128xf32>
    %cst_341 = arith.constant 0.000000e+00 : f32
    %336 = vector.broadcast %cst_341 : f32 to vector<8x128xf32>
    %337 = arith.maximumf %335, %336 : vector<8x128xf32>
    %338 = arith.truncf %337 : vector<8x128xf32> to vector<8x128xbf16>
    %c8_342 = arith.constant 8 : index
    %c0_343 = arith.constant 0 : index
    %c0_344 = arith.constant 0 : index
    %339 = vector.load %arg3[%c8_342, %c0_343, %c0_344] : memref<14x128x128xbf16, #tpu.memory_space<vmem>>, vector<1x128x128xbf16>
    %340 = vector.shape_cast %339 : vector<1x128x128xbf16> to vector<128x128xbf16>
    %cst_345 = arith.constant dense<0.000000e+00> : vector<8x128xf32>
    %341 = tpu.matmul %338, %340, %cst_345 {dimension_numbers = #tpu.dot_dimension_numbers<[1], [0], [0], [1], [0, 0, 1, 1], [], []>} : vector<8x128xbf16>, vector<128x128xbf16>, vector<8x128xf32> -> vector<8x128xf32>
    %c10_346 = arith.constant 10 : index
    %c0_347 = arith.constant 0 : index
    %342 = vector.load %arg4[%c10_346, %c0_347] : memref<18x128xf32, #tpu.memory_space<vmem>>, vector<1x128xf32>
    %c10_348 = arith.constant 10 : index
    %c0_349 = arith.constant 0 : index
    %343 = vector.load %arg5[%c10_348, %c0_349] : memref<18x128xf32, #tpu.memory_space<vmem>>, vector<1x128xf32>
    %344 = vector.broadcast %342 : vector<1x128xf32> to vector<8x128xf32>
    %345 = arith.mulf %341, %344 : vector<8x128xf32>
    %346 = vector.broadcast %343 : vector<1x128xf32> to vector<8x128xf32>
    %347 = arith.addf %345, %346 : vector<8x128xf32>
    %cst_350 = arith.constant 0.000000e+00 : f32
    %348 = vector.broadcast %cst_350 : f32 to vector<8x128xf32>
    %349 = arith.maximumf %347, %348 : vector<8x128xf32>
    %c0_351 = arith.constant 0 : index
    %c0_352 = arith.constant 0 : index
    %350 = vector.load %arg9[%c0_351, %c0_352] : memref<32x128xf32, #tpu.memory_space<vmem>>, vector<8x128xf32>
    tpu.vector_store %arg9[%c0_351, %c0_352], %349 {strides = array<i32>} : memref<32x128xf32, #tpu.memory_space<vmem>>, vector<8x128xf32>,
    %cst_353 = arith.constant 0.000000e+00 : f32
    %351 = vector.broadcast %cst_353 : f32 to vector<2x128xf32>
    %c0_354 = arith.constant 0 : index
    %c0_355 = arith.constant 0 : index
    %352 = vector.load %arg10[%c0_354, %c0_355] : memref<36x128xf32, #tpu.memory_space<vmem>>, vector<2x128xf32>
    tpu.vector_store %arg10[%c0_354, %c0_355], %351 {strides = array<i32>} : memref<36x128xf32, #tpu.memory_space<vmem>>, vector<2x128xf32>,
    %c6_356 = arith.constant 6 : index
    %c0_357 = arith.constant 0 : index
    %353 = vector.load %arg10[%c6_356, %c0_357] : memref<36x128xf32, #tpu.memory_space<vmem>>, vector<2x128xf32>
    tpu.vector_store %arg10[%c6_356, %c0_357], %351 {strides = array<i32>} : memref<36x128xf32, #tpu.memory_space<vmem>>, vector<2x128xf32>,
    %c0_358 = arith.constant 0 : index
    %c0_359 = arith.constant 0 : index
    %354 = vector.load %arg9[%c0_358, %c0_359] : memref<32x128xf32, #tpu.memory_space<vmem>>, vector<4x128xf32>
    %c2_360 = arith.constant 2 : index
    %c0_361 = arith.constant 0 : index
    %355 = vector.load %arg10[%c2_360, %c0_361] : memref<36x128xf32, #tpu.memory_space<vmem>>, vector<4x128xf32>
    tpu.vector_store %arg10[%c2_360, %c0_361], %354 {strides = array<i32>} : memref<36x128xf32, #tpu.memory_space<vmem>>, vector<4x128xf32>,
    %c8_362 = arith.constant 8 : index
    %c0_363 = arith.constant 0 : index
    %356 = vector.load %arg10[%c8_362, %c0_363] : memref<36x128xf32, #tpu.memory_space<vmem>>, vector<2x128xf32>
    tpu.vector_store %arg10[%c8_362, %c0_363], %351 {strides = array<i32>} : memref<36x128xf32, #tpu.memory_space<vmem>>, vector<2x128xf32>,
    %c14_364 = arith.constant 14 : index
    %c0_365 = arith.constant 0 : index
    %357 = vector.load %arg10[%c14_364, %c0_365] : memref<36x128xf32, #tpu.memory_space<vmem>>, vector<2x128xf32>
    tpu.vector_store %arg10[%c14_364, %c0_365], %351 {strides = array<i32>} : memref<36x128xf32, #tpu.memory_space<vmem>>, vector<2x128xf32>,
    %c4_366 = arith.constant 4 : index
    %c0_367 = arith.constant 0 : index
    %358 = vector.load %arg9[%c4_366, %c0_367] : memref<32x128xf32, #tpu.memory_space<vmem>>, vector<4x128xf32>
    %c10_368 = arith.constant 10 : index
    %c0_369 = arith.constant 0 : index
    %359 = vector.load %arg10[%c10_368, %c0_369] : memref<36x128xf32, #tpu.memory_space<vmem>>, vector<4x128xf32>
    tpu.vector_store %arg10[%c10_368, %c0_369], %358 {strides = array<i32>} : memref<36x128xf32, #tpu.memory_space<vmem>>, vector<4x128xf32>,
    %cst_370 = arith.constant 0.000000e+00 : f32
    %360 = vector.broadcast %cst_370 : f32 to vector<4x128xf32>
    %c0_371 = arith.constant 0 : index
    %c0_372 = arith.constant 0 : index
    %361 = vector.load %arg10[%c0_371, %c0_372] : memref<36x128xf32, #tpu.memory_space<vmem>>, vector<4x128xf32>
    %362 = arith.truncf %361 : vector<4x128xf32> to vector<4x128xbf16>
    %c12_373 = arith.constant 12 : index
    %c0_374 = arith.constant 0 : index
    %c0_375 = arith.constant 0 : index
    %363 = vector.load %arg2[%c12_373, %c0_374, %c0_375] : memref<21x128x128xbf16, #tpu.memory_space<vmem>>, vector<1x128x128xbf16>
    %364 = vector.shape_cast %363 : vector<1x128x128xbf16> to vector<128x128xbf16>
    %cst_376 = arith.constant dense<0.000000e+00> : vector<4x128xf32>
    %365 = tpu.matmul %362, %364, %cst_376 {dimension_numbers = #tpu.dot_dimension_numbers<[1], [0], [0], [1], [0, 0, 1, 1], [], []>} : vector<4x128xbf16>, vector<128x128xbf16>, vector<4x128xf32> -> vector<4x128xf32>
    %366 = arith.addf %360, %365 : vector<4x128xf32>
    %c2_377 = arith.constant 2 : index
    %c0_378 = arith.constant 0 : index
    %367 = vector.load %arg10[%c2_377, %c0_378] : memref<36x128xf32, #tpu.memory_space<vmem>>, vector<4x128xf32>
    %368 = arith.truncf %367 : vector<4x128xf32> to vector<4x128xbf16>
    %c13 = arith.constant 13 : index
    %c0_379 = arith.constant 0 : index
    %c0_380 = arith.constant 0 : index
    %369 = vector.load %arg2[%c13, %c0_379, %c0_380] : memref<21x128x128xbf16, #tpu.memory_space<vmem>>, vector<1x128x128xbf16>
    %370 = vector.shape_cast %369 : vector<1x128x128xbf16> to vector<128x128xbf16>
    %cst_381 = arith.constant dense<0.000000e+00> : vector<4x128xf32>
    %371 = tpu.matmul %368, %370, %cst_381 {dimension_numbers = #tpu.dot_dimension_numbers<[1], [0], [0], [1], [0, 0, 1, 1], [], []>} : vector<4x128xbf16>, vector<128x128xbf16>, vector<4x128xf32> -> vector<4x128xf32>
    %372 = arith.addf %366, %371 : vector<4x128xf32>
    %c4_382 = arith.constant 4 : index
    %c0_383 = arith.constant 0 : index
    %373 = vector.load %arg10[%c4_382, %c0_383] : memref<36x128xf32, #tpu.memory_space<vmem>>, vector<4x128xf32>
    %374 = arith.truncf %373 : vector<4x128xf32> to vector<4x128xbf16>
    %c14_384 = arith.constant 14 : index
    %c0_385 = arith.constant 0 : index
    %c0_386 = arith.constant 0 : index
    %375 = vector.load %arg2[%c14_384, %c0_385, %c0_386] : memref<21x128x128xbf16, #tpu.memory_space<vmem>>, vector<1x128x128xbf16>
    %376 = vector.shape_cast %375 : vector<1x128x128xbf16> to vector<128x128xbf16>
    %cst_387 = arith.constant dense<0.000000e+00> : vector<4x128xf32>
    %377 = tpu.matmul %374, %376, %cst_387 {dimension_numbers = #tpu.dot_dimension_numbers<[1], [0], [0], [1], [0, 0, 1, 1], [], []>} : vector<4x128xbf16>, vector<128x128xbf16>, vector<4x128xf32> -> vector<4x128xf32>
    %378 = arith.addf %372, %377 : vector<4x128xf32>
    %c0_388 = arith.constant 0 : index
    %c0_389 = arith.constant 0 : index
    %379 = vector.load %arg11[%c0_388, %c0_389] : memref<32x128xf32, #tpu.memory_space<vmem>>, vector<4x128xf32>
    tpu.vector_store %arg11[%c0_388, %c0_389], %378 {strides = array<i32>} : memref<32x128xf32, #tpu.memory_space<vmem>>, vector<4x128xf32>,
    %cst_390 = arith.constant 0.000000e+00 : f32
    %380 = vector.broadcast %cst_390 : f32 to vector<4x128xf32>
    %c8_391 = arith.constant 8 : index
    %c0_392 = arith.constant 0 : index
    %381 = vector.load %arg10[%c8_391, %c0_392] : memref<36x128xf32, #tpu.memory_space<vmem>>, vector<4x128xf32>
    %382 = arith.truncf %381 : vector<4x128xf32> to vector<4x128xbf16>
    %c12_393 = arith.constant 12 : index
    %c0_394 = arith.constant 0 : index
    %c0_395 = arith.constant 0 : index
    %383 = vector.load %arg2[%c12_393, %c0_394, %c0_395] : memref<21x128x128xbf16, #tpu.memory_space<vmem>>, vector<1x128x128xbf16>
    %384 = vector.shape_cast %383 : vector<1x128x128xbf16> to vector<128x128xbf16>
    %cst_396 = arith.constant dense<0.000000e+00> : vector<4x128xf32>
    %385 = tpu.matmul %382, %384, %cst_396 {dimension_numbers = #tpu.dot_dimension_numbers<[1], [0], [0], [1], [0, 0, 1, 1], [], []>} : vector<4x128xbf16>, vector<128x128xbf16>, vector<4x128xf32> -> vector<4x128xf32>
    %386 = arith.addf %380, %385 : vector<4x128xf32>
    %c10_397 = arith.constant 10 : index
    %c0_398 = arith.constant 0 : index
    %387 = vector.load %arg10[%c10_397, %c0_398] : memref<36x128xf32, #tpu.memory_space<vmem>>, vector<4x128xf32>
    %388 = arith.truncf %387 : vector<4x128xf32> to vector<4x128xbf16>
    %c13_399 = arith.constant 13 : index
    %c0_400 = arith.constant 0 : index
    %c0_401 = arith.constant 0 : index
    %389 = vector.load %arg2[%c13_399, %c0_400, %c0_401] : memref<21x128x128xbf16, #tpu.memory_space<vmem>>, vector<1x128x128xbf16>
    %390 = vector.shape_cast %389 : vector<1x128x128xbf16> to vector<128x128xbf16>
    %cst_402 = arith.constant dense<0.000000e+00> : vector<4x128xf32>
    %391 = tpu.matmul %388, %390, %cst_402 {dimension_numbers = #tpu.dot_dimension_numbers<[1], [0], [0], [1], [0, 0, 1, 1], [], []>} : vector<4x128xbf16>, vector<128x128xbf16>, vector<4x128xf32> -> vector<4x128xf32>
    %392 = arith.addf %386, %391 : vector<4x128xf32>
    %c12_403 = arith.constant 12 : index
    %c0_404 = arith.constant 0 : index
    %393 = vector.load %arg10[%c12_403, %c0_404] : memref<36x128xf32, #tpu.memory_space<vmem>>, vector<4x128xf32>
    %394 = arith.truncf %393 : vector<4x128xf32> to vector<4x128xbf16>
    %c14_405 = arith.constant 14 : index
    %c0_406 = arith.constant 0 : index
    %c0_407 = arith.constant 0 : index
    %395 = vector.load %arg2[%c14_405, %c0_406, %c0_407] : memref<21x128x128xbf16, #tpu.memory_space<vmem>>, vector<1x128x128xbf16>
    %396 = vector.shape_cast %395 : vector<1x128x128xbf16> to vector<128x128xbf16>
    %cst_408 = arith.constant dense<0.000000e+00> : vector<4x128xf32>
    %397 = tpu.matmul %394, %396, %cst_408 {dimension_numbers = #tpu.dot_dimension_numbers<[1], [0], [0], [1], [0, 0, 1, 1], [], []>} : vector<4x128xbf16>, vector<128x128xbf16>, vector<4x128xf32> -> vector<4x128xf32>
    %398 = arith.addf %392, %397 : vector<4x128xf32>
    %c4_409 = arith.constant 4 : index
    %c0_410 = arith.constant 0 : index
    %399 = vector.load %arg11[%c4_409, %c0_410] : memref<32x128xf32, #tpu.memory_space<vmem>>, vector<4x128xf32>
    tpu.vector_store %arg11[%c4_409, %c0_410], %398 {strides = array<i32>} : memref<32x128xf32, #tpu.memory_space<vmem>>, vector<4x128xf32>,
    %c0_411 = arith.constant 0 : index
    %c0_412 = arith.constant 0 : index
    %400 = vector.load %arg11[%c0_411, %c0_412] : memref<32x128xf32, #tpu.memory_space<vmem>>, vector<8x128xf32>
    %c11_413 = arith.constant 11 : index
    %c0_414 = arith.constant 0 : index
    %401 = vector.load %arg4[%c11_413, %c0_414] : memref<18x128xf32, #tpu.memory_space<vmem>>, vector<1x128xf32>
    %c11_415 = arith.constant 11 : index
    %c0_416 = arith.constant 0 : index
    %402 = vector.load %arg5[%c11_415, %c0_416] : memref<18x128xf32, #tpu.memory_space<vmem>>, vector<1x128xf32>
    %403 = vector.broadcast %401 : vector<1x128xf32> to vector<8x128xf32>
    %404 = arith.mulf %400, %403 : vector<8x128xf32>
    %405 = vector.broadcast %402 : vector<1x128xf32> to vector<8x128xf32>
    %406 = arith.addf %404, %405 : vector<8x128xf32>
    %cst_417 = arith.constant 0.000000e+00 : f32
    %407 = vector.broadcast %cst_417 : f32 to vector<8x128xf32>
    %408 = arith.maximumf %406, %407 : vector<8x128xf32>
    %409 = arith.truncf %408 : vector<8x128xf32> to vector<8x128xbf16>
    %c9_418 = arith.constant 9 : index
    %c0_419 = arith.constant 0 : index
    %c0_420 = arith.constant 0 : index
    %410 = vector.load %arg3[%c9_418, %c0_419, %c0_420] : memref<14x128x128xbf16, #tpu.memory_space<vmem>>, vector<1x128x128xbf16>
    %411 = vector.shape_cast %410 : vector<1x128x128xbf16> to vector<128x128xbf16>
    %cst_421 = arith.constant dense<0.000000e+00> : vector<8x128xf32>
    %412 = tpu.matmul %409, %411, %cst_421 {dimension_numbers = #tpu.dot_dimension_numbers<[1], [0], [0], [1], [0, 0, 1, 1], [], []>} : vector<8x128xbf16>, vector<128x128xbf16>, vector<8x128xf32> -> vector<8x128xf32>
    %413 = arith.addf %412, %329 : vector<8x128xf32>
    %c12_422 = arith.constant 12 : index
    %c0_423 = arith.constant 0 : index
    %414 = vector.load %arg4[%c12_422, %c0_423] : memref<18x128xf32, #tpu.memory_space<vmem>>, vector<1x128xf32>
    %c12_424 = arith.constant 12 : index
    %c0_425 = arith.constant 0 : index
    %415 = vector.load %arg5[%c12_424, %c0_425] : memref<18x128xf32, #tpu.memory_space<vmem>>, vector<1x128xf32>
    %416 = vector.broadcast %414 : vector<1x128xf32> to vector<8x128xf32>
    %417 = arith.mulf %413, %416 : vector<8x128xf32>
    %418 = vector.broadcast %415 : vector<1x128xf32> to vector<8x128xf32>
    %419 = arith.addf %417, %418 : vector<8x128xf32>
    %cst_426 = arith.constant 0.000000e+00 : f32
    %420 = vector.broadcast %cst_426 : f32 to vector<8x128xf32>
    %421 = arith.maximumf %419, %420 : vector<8x128xf32>
    %422 = arith.truncf %421 : vector<8x128xf32> to vector<8x128xbf16>
    %c10_427 = arith.constant 10 : index
    %c0_428 = arith.constant 0 : index
    %c0_429 = arith.constant 0 : index
    %423 = vector.load %arg3[%c10_427, %c0_428, %c0_429] : memref<14x128x128xbf16, #tpu.memory_space<vmem>>, vector<1x128x128xbf16>
    %424 = vector.shape_cast %423 : vector<1x128x128xbf16> to vector<128x128xbf16>
    %cst_430 = arith.constant dense<0.000000e+00> : vector<8x128xf32>
    %425 = tpu.matmul %422, %424, %cst_430 {dimension_numbers = #tpu.dot_dimension_numbers<[1], [0], [0], [1], [0, 0, 1, 1], [], []>} : vector<8x128xbf16>, vector<128x128xbf16>, vector<8x128xf32> -> vector<8x128xf32>
    %c13_431 = arith.constant 13 : index
    %c0_432 = arith.constant 0 : index
    %426 = vector.load %arg4[%c13_431, %c0_432] : memref<18x128xf32, #tpu.memory_space<vmem>>, vector<1x128xf32>
    %c13_433 = arith.constant 13 : index
    %c0_434 = arith.constant 0 : index
    %427 = vector.load %arg5[%c13_433, %c0_434] : memref<18x128xf32, #tpu.memory_space<vmem>>, vector<1x128xf32>
    %428 = vector.broadcast %426 : vector<1x128xf32> to vector<8x128xf32>
    %429 = arith.mulf %425, %428 : vector<8x128xf32>
    %430 = vector.broadcast %427 : vector<1x128xf32> to vector<8x128xf32>
    %431 = arith.addf %429, %430 : vector<8x128xf32>
    %cst_435 = arith.constant 0.000000e+00 : f32
    %432 = vector.broadcast %cst_435 : f32 to vector<8x128xf32>
    %433 = arith.maximumf %431, %432 : vector<8x128xf32>
    %c0_436 = arith.constant 0 : index
    %c0_437 = arith.constant 0 : index
    %434 = vector.load %arg9[%c0_436, %c0_437] : memref<32x128xf32, #tpu.memory_space<vmem>>, vector<8x128xf32>
    tpu.vector_store %arg9[%c0_436, %c0_437], %433 {strides = array<i32>} : memref<32x128xf32, #tpu.memory_space<vmem>>, vector<8x128xf32>,
    %cst_438 = arith.constant 0.000000e+00 : f32
    %435 = vector.broadcast %cst_438 : f32 to vector<1x128xf32>
    %c0_439 = arith.constant 0 : index
    %c0_440 = arith.constant 0 : index
    %436 = vector.load %arg10[%c0_439, %c0_440] : memref<36x128xf32, #tpu.memory_space<vmem>>, vector<1x128xf32>
    tpu.vector_store %arg10[%c0_439, %c0_440], %435 {strides = array<i32>} : memref<36x128xf32, #tpu.memory_space<vmem>>, vector<1x128xf32>,
    %c5_441 = arith.constant 5 : index
    %c0_442 = arith.constant 0 : index
    %437 = vector.load %arg10[%c5_441, %c0_442] : memref<36x128xf32, #tpu.memory_space<vmem>>, vector<1x128xf32>
    tpu.vector_store %arg10[%c5_441, %c0_442], %435 {strides = array<i32>} : memref<36x128xf32, #tpu.memory_space<vmem>>, vector<1x128xf32>,
    %c0_443 = arith.constant 0 : index
    %c0_444 = arith.constant 0 : index
    %438 = vector.load %arg9[%c0_443, %c0_444] : memref<32x128xf32, #tpu.memory_space<vmem>>, vector<4x128xf32>
    %c1_445 = arith.constant 1 : index
    %c0_446 = arith.constant 0 : index
    %439 = vector.load %arg10[%c1_445, %c0_446] : memref<36x128xf32, #tpu.memory_space<vmem>>, vector<4x128xf32>
    tpu.vector_store %arg10[%c1_445, %c0_446], %438 {strides = array<i32>} : memref<36x128xf32, #tpu.memory_space<vmem>>, vector<4x128xf32>,
    %c6_447 = arith.constant 6 : index
    %c0_448 = arith.constant 0 : index
    %440 = vector.load %arg10[%c6_447, %c0_448] : memref<36x128xf32, #tpu.memory_space<vmem>>, vector<1x128xf32>
    tpu.vector_store %arg10[%c6_447, %c0_448], %435 {strides = array<i32>} : memref<36x128xf32, #tpu.memory_space<vmem>>, vector<1x128xf32>,
    %c11_449 = arith.constant 11 : index
    %c0_450 = arith.constant 0 : index
    %441 = vector.load %arg10[%c11_449, %c0_450] : memref<36x128xf32, #tpu.memory_space<vmem>>, vector<1x128xf32>
    tpu.vector_store %arg10[%c11_449, %c0_450], %435 {strides = array<i32>} : memref<36x128xf32, #tpu.memory_space<vmem>>, vector<1x128xf32>,
    %c4_451 = arith.constant 4 : index
    %c0_452 = arith.constant 0 : index
    %442 = vector.load %arg9[%c4_451, %c0_452] : memref<32x128xf32, #tpu.memory_space<vmem>>, vector<4x128xf32>
    %c7_453 = arith.constant 7 : index
    %c0_454 = arith.constant 0 : index
    %443 = vector.load %arg10[%c7_453, %c0_454] : memref<36x128xf32, #tpu.memory_space<vmem>>, vector<4x128xf32>
    tpu.vector_store %arg10[%c7_453, %c0_454], %442 {strides = array<i32>} : memref<36x128xf32, #tpu.memory_space<vmem>>, vector<4x128xf32>,
    %cst_455 = arith.constant 0.000000e+00 : f32
    %444 = vector.broadcast %cst_455 : f32 to vector<4x128xf32>
    %c0_456 = arith.constant 0 : index
    %c0_457 = arith.constant 0 : index
    %445 = vector.load %arg10[%c0_456, %c0_457] : memref<36x128xf32, #tpu.memory_space<vmem>>, vector<4x128xf32>
    %446 = arith.truncf %445 : vector<4x128xf32> to vector<4x128xbf16>
    %c15 = arith.constant 15 : index
    %c0_458 = arith.constant 0 : index
    %c0_459 = arith.constant 0 : index
    %447 = vector.load %arg2[%c15, %c0_458, %c0_459] : memref<21x128x128xbf16, #tpu.memory_space<vmem>>, vector<1x128x128xbf16>
    %448 = vector.shape_cast %447 : vector<1x128x128xbf16> to vector<128x128xbf16>
    %cst_460 = arith.constant dense<0.000000e+00> : vector<4x128xf32>
    %449 = tpu.matmul %446, %448, %cst_460 {dimension_numbers = #tpu.dot_dimension_numbers<[1], [0], [0], [1], [0, 0, 1, 1], [], []>} : vector<4x128xbf16>, vector<128x128xbf16>, vector<4x128xf32> -> vector<4x128xf32>
    %450 = arith.addf %444, %449 : vector<4x128xf32>
    %c1_461 = arith.constant 1 : index
    %c0_462 = arith.constant 0 : index
    %451 = vector.load %arg10[%c1_461, %c0_462] : memref<36x128xf32, #tpu.memory_space<vmem>>, vector<4x128xf32>
    %452 = arith.truncf %451 : vector<4x128xf32> to vector<4x128xbf16>
    %c16_463 = arith.constant 16 : index
    %c0_464 = arith.constant 0 : index
    %c0_465 = arith.constant 0 : index
    %453 = vector.load %arg2[%c16_463, %c0_464, %c0_465] : memref<21x128x128xbf16, #tpu.memory_space<vmem>>, vector<1x128x128xbf16>
    %454 = vector.shape_cast %453 : vector<1x128x128xbf16> to vector<128x128xbf16>
    %cst_466 = arith.constant dense<0.000000e+00> : vector<4x128xf32>
    %455 = tpu.matmul %452, %454, %cst_466 {dimension_numbers = #tpu.dot_dimension_numbers<[1], [0], [0], [1], [0, 0, 1, 1], [], []>} : vector<4x128xbf16>, vector<128x128xbf16>, vector<4x128xf32> -> vector<4x128xf32>
    %456 = arith.addf %450, %455 : vector<4x128xf32>
    %c2_467 = arith.constant 2 : index
    %c0_468 = arith.constant 0 : index
    %457 = vector.load %arg10[%c2_467, %c0_468] : memref<36x128xf32, #tpu.memory_space<vmem>>, vector<4x128xf32>
    %458 = arith.truncf %457 : vector<4x128xf32> to vector<4x128xbf16>
    %c17_469 = arith.constant 17 : index
    %c0_470 = arith.constant 0 : index
    %c0_471 = arith.constant 0 : index
    %459 = vector.load %arg2[%c17_469, %c0_470, %c0_471] : memref<21x128x128xbf16, #tpu.memory_space<vmem>>, vector<1x128x128xbf16>
    %460 = vector.shape_cast %459 : vector<1x128x128xbf16> to vector<128x128xbf16>
    %cst_472 = arith.constant dense<0.000000e+00> : vector<4x128xf32>
    %461 = tpu.matmul %458, %460, %cst_472 {dimension_numbers = #tpu.dot_dimension_numbers<[1], [0], [0], [1], [0, 0, 1, 1], [], []>} : vector<4x128xbf16>, vector<128x128xbf16>, vector<4x128xf32> -> vector<4x128xf32>
    %462 = arith.addf %456, %461 : vector<4x128xf32>
    %c0_473 = arith.constant 0 : index
    %c0_474 = arith.constant 0 : index
    %463 = vector.load %arg11[%c0_473, %c0_474] : memref<32x128xf32, #tpu.memory_space<vmem>>, vector<4x128xf32>
    tpu.vector_store %arg11[%c0_473, %c0_474], %462 {strides = array<i32>} : memref<32x128xf32, #tpu.memory_space<vmem>>, vector<4x128xf32>,
    %cst_475 = arith.constant 0.000000e+00 : f32
    %464 = vector.broadcast %cst_475 : f32 to vector<4x128xf32>
    %c6_476 = arith.constant 6 : index
    %c0_477 = arith.constant 0 : index
    %465 = vector.load %arg10[%c6_476, %c0_477] : memref<36x128xf32, #tpu.memory_space<vmem>>, vector<4x128xf32>
    %466 = arith.truncf %465 : vector<4x128xf32> to vector<4x128xbf16>
    %c15_478 = arith.constant 15 : index
    %c0_479 = arith.constant 0 : index
    %c0_480 = arith.constant 0 : index
    %467 = vector.load %arg2[%c15_478, %c0_479, %c0_480] : memref<21x128x128xbf16, #tpu.memory_space<vmem>>, vector<1x128x128xbf16>
    %468 = vector.shape_cast %467 : vector<1x128x128xbf16> to vector<128x128xbf16>
    %cst_481 = arith.constant dense<0.000000e+00> : vector<4x128xf32>
    %469 = tpu.matmul %466, %468, %cst_481 {dimension_numbers = #tpu.dot_dimension_numbers<[1], [0], [0], [1], [0, 0, 1, 1], [], []>} : vector<4x128xbf16>, vector<128x128xbf16>, vector<4x128xf32> -> vector<4x128xf32>
    %470 = arith.addf %464, %469 : vector<4x128xf32>
    %c7_482 = arith.constant 7 : index
    %c0_483 = arith.constant 0 : index
    %471 = vector.load %arg10[%c7_482, %c0_483] : memref<36x128xf32, #tpu.memory_space<vmem>>, vector<4x128xf32>
    %472 = arith.truncf %471 : vector<4x128xf32> to vector<4x128xbf16>
    %c16_484 = arith.constant 16 : index
    %c0_485 = arith.constant 0 : index
    %c0_486 = arith.constant 0 : index
    %473 = vector.load %arg2[%c16_484, %c0_485, %c0_486] : memref<21x128x128xbf16, #tpu.memory_space<vmem>>, vector<1x128x128xbf16>
    %474 = vector.shape_cast %473 : vector<1x128x128xbf16> to vector<128x128xbf16>
    %cst_487 = arith.constant dense<0.000000e+00> : vector<4x128xf32>
    %475 = tpu.matmul %472, %474, %cst_487 {dimension_numbers = #tpu.dot_dimension_numbers<[1], [0], [0], [1], [0, 0, 1, 1], [], []>} : vector<4x128xbf16>, vector<128x128xbf16>, vector<4x128xf32> -> vector<4x128xf32>
    %476 = arith.addf %470, %475 : vector<4x128xf32>
    %c8_488 = arith.constant 8 : index
    %c0_489 = arith.constant 0 : index
    %477 = vector.load %arg10[%c8_488, %c0_489] : memref<36x128xf32, #tpu.memory_space<vmem>>, vector<4x128xf32>
    %478 = arith.truncf %477 : vector<4x128xf32> to vector<4x128xbf16>
    %c17_490 = arith.constant 17 : index
    %c0_491 = arith.constant 0 : index
    %c0_492 = arith.constant 0 : index
    %479 = vector.load %arg2[%c17_490, %c0_491, %c0_492] : memref<21x128x128xbf16, #tpu.memory_space<vmem>>, vector<1x128x128xbf16>
    %480 = vector.shape_cast %479 : vector<1x128x128xbf16> to vector<128x128xbf16>
    %cst_493 = arith.constant dense<0.000000e+00> : vector<4x128xf32>
    %481 = tpu.matmul %478, %480, %cst_493 {dimension_numbers = #tpu.dot_dimension_numbers<[1], [0], [0], [1], [0, 0, 1, 1], [], []>} : vector<4x128xbf16>, vector<128x128xbf16>, vector<4x128xf32> -> vector<4x128xf32>
    %482 = arith.addf %476, %481 : vector<4x128xf32>
    %c4_494 = arith.constant 4 : index
    %c0_495 = arith.constant 0 : index
    %483 = vector.load %arg11[%c4_494, %c0_495] : memref<32x128xf32, #tpu.memory_space<vmem>>, vector<4x128xf32>
    tpu.vector_store %arg11[%c4_494, %c0_495], %482 {strides = array<i32>} : memref<32x128xf32, #tpu.memory_space<vmem>>, vector<4x128xf32>,
    %c0_496 = arith.constant 0 : index
    %c0_497 = arith.constant 0 : index
    %484 = vector.load %arg11[%c0_496, %c0_497] : memref<32x128xf32, #tpu.memory_space<vmem>>, vector<8x128xf32>
    %c14_498 = arith.constant 14 : index
    %c0_499 = arith.constant 0 : index
    %485 = vector.load %arg4[%c14_498, %c0_499] : memref<18x128xf32, #tpu.memory_space<vmem>>, vector<1x128xf32>
    %c14_500 = arith.constant 14 : index
    %c0_501 = arith.constant 0 : index
    %486 = vector.load %arg5[%c14_500, %c0_501] : memref<18x128xf32, #tpu.memory_space<vmem>>, vector<1x128xf32>
    %487 = vector.broadcast %485 : vector<1x128xf32> to vector<8x128xf32>
    %488 = arith.mulf %484, %487 : vector<8x128xf32>
    %489 = vector.broadcast %486 : vector<1x128xf32> to vector<8x128xf32>
    %490 = arith.addf %488, %489 : vector<8x128xf32>
    %cst_502 = arith.constant 0.000000e+00 : f32
    %491 = vector.broadcast %cst_502 : f32 to vector<8x128xf32>
    %492 = arith.maximumf %490, %491 : vector<8x128xf32>
    %493 = arith.truncf %492 : vector<8x128xf32> to vector<8x128xbf16>
    %c11_503 = arith.constant 11 : index
    %c0_504 = arith.constant 0 : index
    %c0_505 = arith.constant 0 : index
    %494 = vector.load %arg3[%c11_503, %c0_504, %c0_505] : memref<14x128x128xbf16, #tpu.memory_space<vmem>>, vector<1x128x128xbf16>
    %495 = vector.shape_cast %494 : vector<1x128x128xbf16> to vector<128x128xbf16>
    %cst_506 = arith.constant dense<0.000000e+00> : vector<8x128xf32>
    %496 = tpu.matmul %493, %495, %cst_506 {dimension_numbers = #tpu.dot_dimension_numbers<[1], [0], [0], [1], [0, 0, 1, 1], [], []>} : vector<8x128xbf16>, vector<128x128xbf16>, vector<8x128xf32> -> vector<8x128xf32>
    %c15_507 = arith.constant 15 : index
    %c0_508 = arith.constant 0 : index
    %497 = vector.load %arg4[%c15_507, %c0_508] : memref<18x128xf32, #tpu.memory_space<vmem>>, vector<1x128xf32>
    %c15_509 = arith.constant 15 : index
    %c0_510 = arith.constant 0 : index
    %498 = vector.load %arg5[%c15_509, %c0_510] : memref<18x128xf32, #tpu.memory_space<vmem>>, vector<1x128xf32>
    %499 = vector.broadcast %497 : vector<1x128xf32> to vector<8x128xf32>
    %500 = arith.mulf %496, %499 : vector<8x128xf32>
    %501 = vector.broadcast %498 : vector<1x128xf32> to vector<8x128xf32>
    %502 = arith.addf %500, %501 : vector<8x128xf32>
    %cst_511 = arith.constant 0.000000e+00 : f32
    %503 = vector.broadcast %cst_511 : f32 to vector<8x128xf32>
    %504 = arith.maximumf %502, %503 : vector<8x128xf32>
    %505 = arith.truncf %504 : vector<8x128xf32> to vector<8x128xbf16>
    %c12_512 = arith.constant 12 : index
    %c0_513 = arith.constant 0 : index
    %c0_514 = arith.constant 0 : index
    %506 = vector.load %arg3[%c12_512, %c0_513, %c0_514] : memref<14x128x128xbf16, #tpu.memory_space<vmem>>, vector<1x128x128xbf16>
    %507 = vector.shape_cast %506 : vector<1x128x128xbf16> to vector<128x128xbf16>
    %cst_515 = arith.constant dense<0.000000e+00> : vector<8x128xf32>
    %508 = tpu.matmul %505, %507, %cst_515 {dimension_numbers = #tpu.dot_dimension_numbers<[1], [0], [0], [1], [0, 0, 1, 1], [], []>} : vector<8x128xbf16>, vector<128x128xbf16>, vector<8x128xf32> -> vector<8x128xf32>
    %c16_516 = arith.constant 16 : index
    %c0_517 = arith.constant 0 : index
    %509 = vector.load %arg4[%c16_516, %c0_517] : memref<18x128xf32, #tpu.memory_space<vmem>>, vector<1x128xf32>
    %c16_518 = arith.constant 16 : index
    %c0_519 = arith.constant 0 : index
    %510 = vector.load %arg5[%c16_518, %c0_519] : memref<18x128xf32, #tpu.memory_space<vmem>>, vector<1x128xf32>
    %511 = vector.broadcast %509 : vector<1x128xf32> to vector<8x128xf32>
    %512 = arith.mulf %508, %511 : vector<8x128xf32>
    %513 = vector.broadcast %510 : vector<1x128xf32> to vector<8x128xf32>
    %514 = arith.addf %512, %513 : vector<8x128xf32>
    %cst_520 = arith.constant 0.000000e+00 : f32
    %515 = vector.broadcast %cst_520 : f32 to vector<8x128xf32>
    %516 = arith.maximumf %514, %515 : vector<8x128xf32>
    %c0_521 = arith.constant 0 : index
    %c0_522 = arith.constant 0 : index
    %517 = vector.load %arg9[%c0_521, %c0_522] : memref<32x128xf32, #tpu.memory_space<vmem>>, vector<8x128xf32>
    tpu.vector_store %arg9[%c0_521, %c0_522], %516 {strides = array<i32>} : memref<32x128xf32, #tpu.memory_space<vmem>>, vector<8x128xf32>,
    %cst_523 = arith.constant 0.000000e+00 : f32
    %518 = vector.broadcast %cst_523 : f32 to vector<1x128xf32>
    %c0_524 = arith.constant 0 : index
    %c0_525 = arith.constant 0 : index
    %519 = vector.load %arg10[%c0_524, %c0_525] : memref<36x128xf32, #tpu.memory_space<vmem>>, vector<1x128xf32>
    tpu.vector_store %arg10[%c0_524, %c0_525], %518 {strides = array<i32>} : memref<36x128xf32, #tpu.memory_space<vmem>>, vector<1x128xf32>,
    %c5_526 = arith.constant 5 : index
    %c0_527 = arith.constant 0 : index
    %520 = vector.load %arg10[%c5_526, %c0_527] : memref<36x128xf32, #tpu.memory_space<vmem>>, vector<1x128xf32>
    tpu.vector_store %arg10[%c5_526, %c0_527], %518 {strides = array<i32>} : memref<36x128xf32, #tpu.memory_space<vmem>>, vector<1x128xf32>,
    %c0_528 = arith.constant 0 : index
    %c0_529 = arith.constant 0 : index
    %521 = vector.load %arg9[%c0_528, %c0_529] : memref<32x128xf32, #tpu.memory_space<vmem>>, vector<4x128xf32>
    %c1_530 = arith.constant 1 : index
    %c0_531 = arith.constant 0 : index
    %522 = vector.load %arg10[%c1_530, %c0_531] : memref<36x128xf32, #tpu.memory_space<vmem>>, vector<4x128xf32>
    tpu.vector_store %arg10[%c1_530, %c0_531], %521 {strides = array<i32>} : memref<36x128xf32, #tpu.memory_space<vmem>>, vector<4x128xf32>,
    %c6_532 = arith.constant 6 : index
    %c0_533 = arith.constant 0 : index
    %523 = vector.load %arg10[%c6_532, %c0_533] : memref<36x128xf32, #tpu.memory_space<vmem>>, vector<1x128xf32>
    tpu.vector_store %arg10[%c6_532, %c0_533], %518 {strides = array<i32>} : memref<36x128xf32, #tpu.memory_space<vmem>>, vector<1x128xf32>,
    %c11_534 = arith.constant 11 : index
    %c0_535 = arith.constant 0 : index
    %524 = vector.load %arg10[%c11_534, %c0_535] : memref<36x128xf32, #tpu.memory_space<vmem>>, vector<1x128xf32>
    tpu.vector_store %arg10[%c11_534, %c0_535], %518 {strides = array<i32>} : memref<36x128xf32, #tpu.memory_space<vmem>>, vector<1x128xf32>,
    %c4_536 = arith.constant 4 : index
    %c0_537 = arith.constant 0 : index
    %525 = vector.load %arg9[%c4_536, %c0_537] : memref<32x128xf32, #tpu.memory_space<vmem>>, vector<4x128xf32>
    %c7_538 = arith.constant 7 : index
    %c0_539 = arith.constant 0 : index
    %526 = vector.load %arg10[%c7_538, %c0_539] : memref<36x128xf32, #tpu.memory_space<vmem>>, vector<4x128xf32>
    tpu.vector_store %arg10[%c7_538, %c0_539], %525 {strides = array<i32>} : memref<36x128xf32, #tpu.memory_space<vmem>>, vector<4x128xf32>,
    %cst_540 = arith.constant 0.000000e+00 : f32
    %527 = vector.broadcast %cst_540 : f32 to vector<4x128xf32>
    %c0_541 = arith.constant 0 : index
    %c0_542 = arith.constant 0 : index
    %528 = vector.load %arg10[%c0_541, %c0_542] : memref<36x128xf32, #tpu.memory_space<vmem>>, vector<4x128xf32>
    %529 = arith.truncf %528 : vector<4x128xf32> to vector<4x128xbf16>
    %c18_543 = arith.constant 18 : index
    %c0_544 = arith.constant 0 : index
    %c0_545 = arith.constant 0 : index
    %530 = vector.load %arg2[%c18_543, %c0_544, %c0_545] : memref<21x128x128xbf16, #tpu.memory_space<vmem>>, vector<1x128x128xbf16>
    %531 = vector.shape_cast %530 : vector<1x128x128xbf16> to vector<128x128xbf16>
    %cst_546 = arith.constant dense<0.000000e+00> : vector<4x128xf32>
    %532 = tpu.matmul %529, %531, %cst_546 {dimension_numbers = #tpu.dot_dimension_numbers<[1], [0], [0], [1], [0, 0, 1, 1], [], []>} : vector<4x128xbf16>, vector<128x128xbf16>, vector<4x128xf32> -> vector<4x128xf32>
    %533 = arith.addf %527, %532 : vector<4x128xf32>
    %c1_547 = arith.constant 1 : index
    %c0_548 = arith.constant 0 : index
    %534 = vector.load %arg10[%c1_547, %c0_548] : memref<36x128xf32, #tpu.memory_space<vmem>>, vector<4x128xf32>
    %535 = arith.truncf %534 : vector<4x128xf32> to vector<4x128xbf16>
    %c19_549 = arith.constant 19 : index
    %c0_550 = arith.constant 0 : index
    %c0_551 = arith.constant 0 : index
    %536 = vector.load %arg2[%c19_549, %c0_550, %c0_551] : memref<21x128x128xbf16, #tpu.memory_space<vmem>>, vector<1x128x128xbf16>
    %537 = vector.shape_cast %536 : vector<1x128x128xbf16> to vector<128x128xbf16>
    %cst_552 = arith.constant dense<0.000000e+00> : vector<4x128xf32>
    %538 = tpu.matmul %535, %537, %cst_552 {dimension_numbers = #tpu.dot_dimension_numbers<[1], [0], [0], [1], [0, 0, 1, 1], [], []>} : vector<4x128xbf16>, vector<128x128xbf16>, vector<4x128xf32> -> vector<4x128xf32>
    %539 = arith.addf %533, %538 : vector<4x128xf32>
    %c2_553 = arith.constant 2 : index
    %c0_554 = arith.constant 0 : index
    %540 = vector.load %arg10[%c2_553, %c0_554] : memref<36x128xf32, #tpu.memory_space<vmem>>, vector<4x128xf32>
    %541 = arith.truncf %540 : vector<4x128xf32> to vector<4x128xbf16>
    %c20_555 = arith.constant 20 : index
    %c0_556 = arith.constant 0 : index
    %c0_557 = arith.constant 0 : index
    %542 = vector.load %arg2[%c20_555, %c0_556, %c0_557] : memref<21x128x128xbf16, #tpu.memory_space<vmem>>, vector<1x128x128xbf16>
    %543 = vector.shape_cast %542 : vector<1x128x128xbf16> to vector<128x128xbf16>
    %cst_558 = arith.constant dense<0.000000e+00> : vector<4x128xf32>
    %544 = tpu.matmul %541, %543, %cst_558 {dimension_numbers = #tpu.dot_dimension_numbers<[1], [0], [0], [1], [0, 0, 1, 1], [], []>} : vector<4x128xbf16>, vector<128x128xbf16>, vector<4x128xf32> -> vector<4x128xf32>
    %545 = arith.addf %539, %544 : vector<4x128xf32>
    %c0_559 = arith.constant 0 : index
    %c0_560 = arith.constant 0 : index
    %546 = vector.load %arg11[%c0_559, %c0_560] : memref<32x128xf32, #tpu.memory_space<vmem>>, vector<4x128xf32>
    tpu.vector_store %arg11[%c0_559, %c0_560], %545 {strides = array<i32>} : memref<32x128xf32, #tpu.memory_space<vmem>>, vector<4x128xf32>,
    %cst_561 = arith.constant 0.000000e+00 : f32
    %547 = vector.broadcast %cst_561 : f32 to vector<4x128xf32>
    %c6_562 = arith.constant 6 : index
    %c0_563 = arith.constant 0 : index
    %548 = vector.load %arg10[%c6_562, %c0_563] : memref<36x128xf32, #tpu.memory_space<vmem>>, vector<4x128xf32>
    %549 = arith.truncf %548 : vector<4x128xf32> to vector<4x128xbf16>
    %c18_564 = arith.constant 18 : index
    %c0_565 = arith.constant 0 : index
    %c0_566 = arith.constant 0 : index
    %550 = vector.load %arg2[%c18_564, %c0_565, %c0_566] : memref<21x128x128xbf16, #tpu.memory_space<vmem>>, vector<1x128x128xbf16>
    %551 = vector.shape_cast %550 : vector<1x128x128xbf16> to vector<128x128xbf16>
    %cst_567 = arith.constant dense<0.000000e+00> : vector<4x128xf32>
    %552 = tpu.matmul %549, %551, %cst_567 {dimension_numbers = #tpu.dot_dimension_numbers<[1], [0], [0], [1], [0, 0, 1, 1], [], []>} : vector<4x128xbf16>, vector<128x128xbf16>, vector<4x128xf32> -> vector<4x128xf32>
    %553 = arith.addf %547, %552 : vector<4x128xf32>
    %c7_568 = arith.constant 7 : index
    %c0_569 = arith.constant 0 : index
    %554 = vector.load %arg10[%c7_568, %c0_569] : memref<36x128xf32, #tpu.memory_space<vmem>>, vector<4x128xf32>
    %555 = arith.truncf %554 : vector<4x128xf32> to vector<4x128xbf16>
    %c19_570 = arith.constant 19 : index
    %c0_571 = arith.constant 0 : index
    %c0_572 = arith.constant 0 : index
    %556 = vector.load %arg2[%c19_570, %c0_571, %c0_572] : memref<21x128x128xbf16, #tpu.memory_space<vmem>>, vector<1x128x128xbf16>
    %557 = vector.shape_cast %556 : vector<1x128x128xbf16> to vector<128x128xbf16>
    %cst_573 = arith.constant dense<0.000000e+00> : vector<4x128xf32>
    %558 = tpu.matmul %555, %557, %cst_573 {dimension_numbers = #tpu.dot_dimension_numbers<[1], [0], [0], [1], [0, 0, 1, 1], [], []>} : vector<4x128xbf16>, vector<128x128xbf16>, vector<4x128xf32> -> vector<4x128xf32>
    %559 = arith.addf %553, %558 : vector<4x128xf32>
    %c8_574 = arith.constant 8 : index
    %c0_575 = arith.constant 0 : index
    %560 = vector.load %arg10[%c8_574, %c0_575] : memref<36x128xf32, #tpu.memory_space<vmem>>, vector<4x128xf32>
    %561 = arith.truncf %560 : vector<4x128xf32> to vector<4x128xbf16>
    %c20_576 = arith.constant 20 : index
    %c0_577 = arith.constant 0 : index
    %c0_578 = arith.constant 0 : index
    %562 = vector.load %arg2[%c20_576, %c0_577, %c0_578] : memref<21x128x128xbf16, #tpu.memory_space<vmem>>, vector<1x128x128xbf16>
    %563 = vector.shape_cast %562 : vector<1x128x128xbf16> to vector<128x128xbf16>
    %cst_579 = arith.constant dense<0.000000e+00> : vector<4x128xf32>
    %564 = tpu.matmul %561, %563, %cst_579 {dimension_numbers = #tpu.dot_dimension_numbers<[1], [0], [0], [1], [0, 0, 1, 1], [], []>} : vector<4x128xbf16>, vector<128x128xbf16>, vector<4x128xf32> -> vector<4x128xf32>
    %565 = arith.addf %559, %564 : vector<4x128xf32>
    %c4_580 = arith.constant 4 : index
    %c0_581 = arith.constant 0 : index
    %566 = vector.load %arg11[%c4_580, %c0_581] : memref<32x128xf32, #tpu.memory_space<vmem>>, vector<4x128xf32>
    tpu.vector_store %arg11[%c4_580, %c0_581], %565 {strides = array<i32>} : memref<32x128xf32, #tpu.memory_space<vmem>>, vector<4x128xf32>,
    %c0_582 = arith.constant 0 : index
    %c0_583 = arith.constant 0 : index
    %567 = vector.load %arg11[%c0_582, %c0_583] : memref<32x128xf32, #tpu.memory_space<vmem>>, vector<8x128xf32>
    %c17_584 = arith.constant 17 : index
    %c0_585 = arith.constant 0 : index
    %568 = vector.load %arg4[%c17_584, %c0_585] : memref<18x128xf32, #tpu.memory_space<vmem>>, vector<1x128xf32>
    %c17_586 = arith.constant 17 : index
    %c0_587 = arith.constant 0 : index
    %569 = vector.load %arg5[%c17_586, %c0_587] : memref<18x128xf32, #tpu.memory_space<vmem>>, vector<1x128xf32>
    %570 = vector.broadcast %568 : vector<1x128xf32> to vector<8x128xf32>
    %571 = arith.mulf %567, %570 : vector<8x128xf32>
    %572 = vector.broadcast %569 : vector<1x128xf32> to vector<8x128xf32>
    %573 = arith.addf %571, %572 : vector<8x128xf32>
    %cst_588 = arith.constant 0.000000e+00 : f32
    %574 = vector.broadcast %cst_588 : f32 to vector<8x128xf32>
    %575 = arith.maximumf %573, %574 : vector<8x128xf32>
    %576 = arith.truncf %575 : vector<8x128xf32> to vector<8x128xbf16>
    %c13_589 = arith.constant 13 : index
    %c0_590 = arith.constant 0 : index
    %c0_591 = arith.constant 0 : index
    %577 = vector.load %arg3[%c13_589, %c0_590, %c0_591] : memref<14x128x128xbf16, #tpu.memory_space<vmem>>, vector<1x128x128xbf16>
    %578 = vector.shape_cast %577 : vector<1x128x128xbf16> to vector<128x128xbf16>
    %cst_592 = arith.constant dense<0.000000e+00> : vector<8x128xf32>
    %579 = tpu.matmul %576, %578, %cst_592 {dimension_numbers = #tpu.dot_dimension_numbers<[1], [0], [0], [1], [0, 0, 1, 1], [], []>} : vector<8x128xbf16>, vector<128x128xbf16>, vector<8x128xf32> -> vector<8x128xf32>
    %c0_593 = arith.constant 0 : index
    %c0_594 = arith.constant 0 : index
    %580 = vector.load %arg11[%c0_593, %c0_594] : memref<32x128xf32, #tpu.memory_space<vmem>>, vector<8x128xf32>
    tpu.vector_store %arg11[%c0_593, %c0_594], %579 {strides = array<i32>} : memref<32x128xf32, #tpu.memory_space<vmem>>, vector<8x128xf32>,
    %c0_595 = arith.constant 0 : index
    %c0_596 = arith.constant 0 : index
    %581 = vector.load %arg11[%c0_595, %c0_596] : memref<32x128xf32, #tpu.memory_space<vmem>>, vector<4x128xf32>
    %cst_597 = arith.constant dense<0.000000e+00> : vector<128xf32>
    %582 = vector.multi_reduction <add>, %581, %cst_597 [0] : vector<4x128xf32> to vector<128xf32>
    %583 = vector.shape_cast %582 : vector<128xf32> to vector<1x128xf32>
    %cst_598 = arith.constant 2.500000e-01 : f32
    %584 = vector.broadcast %cst_598 : f32 to vector<1x128xf32>
    %585 = arith.mulf %583, %584 : vector<1x128xf32>
    %c0_599 = arith.constant 0 : index
    %c0_600 = arith.constant 0 : index
    %586 = vector.load %arg6[%c0_599, %c0_600] : memref<1x128xf32, #tpu.memory_space<vmem>>, vector<1x128xf32>
    %587 = arith.mulf %585, %586 : vector<1x128xf32>
    %cst_601 = arith.constant dense<0.000000e+00> : vector<1xf32>
    %588 = vector.multi_reduction <add>, %587, %cst_601 [1] : vector<1x128xf32> to vector<1xf32>
    %589 = vector.shape_cast %588 : vector<1xf32> to vector<1x1xf32>
    %c0_602 = arith.constant 0 : index
    %c0_603 = arith.constant 0 : index
    %590 = vector.load %arg7[%c0_602, %c0_603] : memref<1x1xf32, #tpu.memory_space<vmem>>, vector<1x1xf32>
    %591 = arith.addf %589, %590 : vector<1x1xf32>
    %c0_604 = arith.constant 0 : index
    %c0_605 = arith.constant 0 : index
    %592 = vector.load %arg8[%c0_604, %c0_605] : memref<2x1xf32, #tpu.memory_space<vmem>>, vector<1x1xf32>
    tpu.vector_store %arg8[%c0_604, %c0_605], %591 {strides = array<i32>} : memref<2x1xf32, #tpu.memory_space<vmem>>, vector<1x1xf32>,
    %c4_606 = arith.constant 4 : index
    %c0_607 = arith.constant 0 : index
    %593 = vector.load %arg11[%c4_606, %c0_607] : memref<32x128xf32, #tpu.memory_space<vmem>>, vector<4x128xf32>
    %cst_608 = arith.constant dense<0.000000e+00> : vector<128xf32>
    %594 = vector.multi_reduction <add>, %593, %cst_608 [0] : vector<4x128xf32> to vector<128xf32>
    %595 = vector.shape_cast %594 : vector<128xf32> to vector<1x128xf32>
    %cst_609 = arith.constant 2.500000e-01 : f32
    %596 = vector.broadcast %cst_609 : f32 to vector<1x128xf32>
    %597 = arith.mulf %595, %596 : vector<1x128xf32>
    %c0_610 = arith.constant 0 : index
    %c0_611 = arith.constant 0 : index
    %598 = vector.load %arg6[%c0_610, %c0_611] : memref<1x128xf32, #tpu.memory_space<vmem>>, vector<1x128xf32>
    %599 = arith.mulf %597, %598 : vector<1x128xf32>
    %cst_612 = arith.constant dense<0.000000e+00> : vector<1xf32>
    %600 = vector.multi_reduction <add>, %599, %cst_612 [1] : vector<1x128xf32> to vector<1xf32>
    %601 = vector.shape_cast %600 : vector<1xf32> to vector<1x1xf32>
    %c0_613 = arith.constant 0 : index
    %c0_614 = arith.constant 0 : index
    %602 = vector.load %arg7[%c0_613, %c0_614] : memref<1x1xf32, #tpu.memory_space<vmem>>, vector<1x1xf32>
    %603 = arith.addf %601, %602 : vector<1x1xf32>
    %c1_615 = arith.constant 1 : index
    %c0_616 = arith.constant 0 : index
    %604 = vector.load %arg8[%c1_615, %c0_616] : memref<2x1xf32, #tpu.memory_space<vmem>>, vector<1x1xf32>
    tpu.vector_store %arg8[%c1_615, %c0_616], %603 {strides = array<i32>} : memref<2x1xf32, #tpu.memory_space<vmem>>, vector<1x1xf32>,
    return
  }
  func.func @transform_0(%arg0: i32) -> (i32, i32) {
    %c0_i32 = arith.constant 0 : i32
    %c0_i32_0 = arith.constant 0 : i32
    return %arg0, %c0_i32 : i32, i32
  }
  func.func @transform_1(%arg0: i32) -> (i32, i32, i32) {
    %c0_i32 = arith.constant 0 : i32
    %c0_i32_0 = arith.constant 0 : i32
    %c0_i32_1 = arith.constant 0 : i32
    %c0_i32_2 = arith.constant 0 : i32
    return %c0_i32, %c0_i32_0, %c0_i32_1 : i32, i32, i32
  }
  func.func @transform_2(%arg0: i32) -> (i32, i32, i32) {
    %c0_i32 = arith.constant 0 : i32
    %c0_i32_0 = arith.constant 0 : i32
    %c0_i32_1 = arith.constant 0 : i32
    %c0_i32_2 = arith.constant 0 : i32
    return %c0_i32, %c0_i32_0, %c0_i32_1 : i32, i32, i32
  }
  func.func @transform_3(%arg0: i32) -> (i32, i32) {
    %c0_i32 = arith.constant 0 : i32
    %c0_i32_0 = arith.constant 0 : i32
    %c0_i32_1 = arith.constant 0 : i32
    return %c0_i32, %c0_i32_0 : i32, i32
  }
  func.func @transform_4(%arg0: i32) -> (i32, i32) {
    %c0_i32 = arith.constant 0 : i32
    %c0_i32_0 = arith.constant 0 : i32
    %c0_i32_1 = arith.constant 0 : i32
    return %c0_i32, %c0_i32_0 : i32, i32
  }
  func.func @transform_5(%arg0: i32) -> (i32, i32) {
    %c0_i32 = arith.constant 0 : i32
    %c0_i32_0 = arith.constant 0 : i32
    %c0_i32_1 = arith.constant 0 : i32
    return %c0_i32, %c0_i32_0 : i32, i32
  }
  func.func @transform_6(%arg0: i32) -> (i32, i32) {
    %c0_i32 = arith.constant 0 : i32
    %c0_i32_0 = arith.constant 0 : i32
    %c0_i32_1 = arith.constant 0 : i32
    return %c0_i32, %c0_i32_0 : i32, i32
  }
  func.func @transform_7(%arg0: i32) -> (i32, i32) {
    %c0_i32 = arith.constant 0 : i32
    %c0_i32_0 = arith.constant 0 : i32
    return %arg0, %c0_i32 : i32, i32
  }
}

</mosaic_0001>

<llo_original>
// kernel: tpu_custom_call.1
$region0: #{tpu_custom_call.1}
  #allocation0 [shape = 'u32[]', space=smem, size = 0x4, offset = 0x4, fixed_abs, tag = 'smem constant byte address 0x4 - core index']
  #allocation1 [shape = 'u32[144,128]{1,0:T(1,128)}', space=vmem, size = 0x12000, scoped, tag = 'internal scratch']
  #allocation2 [shape = 'f32[32,128]{1,0:T(8,128)}', space=vmem, size = 0x4000, scoped, tag = 'scratch operand']
  #allocation3 [shape = 'f32[36,128]{1,0:T(8,128)}', space=vmem, size = 0x5000, scoped, tag = 'scratch operand']
  #allocation4 [shape = 'f32[32,128]{1,0:T(8,128)}', space=vmem, size = 0x4000, scoped, tag = 'scratch operand']
  #allocation5 [shape = 'f32[32,128]{1,0:T(8,128)}', space=vmem, size = 0x4000, scoped, tag = 'scratch operand']
  #allocation6 [shape = 'f32[1,1]{1,0:T(1,128)S(1)}', space=vmem, size = 0x200, scoped, tag = 'scoped memory for tpu_custom_call.1']
  %s0 = inlined_call_operand.hbm [shape: f32[32,128], index: 0, kind: input, shape index: {}]
  %s1 = inlined_call_operand.hbm [shape: bf16[21,128,128], index: 1, kind: input, shape index: {}]
  %s2 = inlined_call_operand.hbm [shape: bf16[14,128,128], index: 2, kind: input, shape index: {}]
  %s3 = inlined_call_operand.hbm [shape: f32[18,128], index: 3, kind: input, shape index: {}]
  %s4 = inlined_call_operand.hbm [shape: f32[18,128], index: 4, kind: input, shape index: {}]
  %s5 = inlined_call_operand.vmem [shape: f32[1,128], index: 5, kind: input, shape index: {}]
  %s6 = inlined_call_operand.<no memory space> [shape: f32[1,1], index: 6, kind: input, shape index: {}]
  %s7 = inlined_call_operand.vmem [shape: f32[2,1], index: 7, kind: output, shape index: {}]
  %s8 = sld [smem:[#allocation0]]
  $region58: #{tpu_custom_call.1} parent=0
    _
  %s10 = ssub.s32 1, %s8
  %s11 = scalar_select 0, %s10, %s8
  %v12 = vstv %s6
  %13 = vst [vmem:[#allocation6] sm:$0x1] %v12
  $region1: #{tpu_custom_call.1} parent=0
    #allocation7 [shape = 'u8[16384]{0}', space=vmem, size = 0x4000, scoped, tag = 'input window, operand 0, single buffered']
    #allocation8 [shape = 's32[1]{0}', space=sflag, size = 0x4, scoped, tag = 'scoped memory for tpu_custom_call.1']
    #allocation9 [shape = 'u8[688128]{0}', space=vmem, size = 0xa8000, scoped, tag = 'input window, operand 1, single buffered']
    #allocation10 [shape = 's32[1]{0}', space=sflag, size = 0x4, scoped, tag = 'scoped memory for tpu_custom_call.1']
    #allocation11 [shape = 'u8[458752]{0}', space=vmem, size = 0x70000, scoped, tag = 'input window, operand 2, single buffered']
    #allocation12 [shape = 'u8[12288]{0}', space=vmem, size = 0x3000, scoped, tag = 'input window, operand 3, single buffered']
    #allocation13 [shape = 's32[1]{0}', space=sflag, size = 0x4, scoped, tag = 'scoped memory for tpu_custom_call.1']
    #allocation14 [shape = 'u8[12288]{0}', space=vmem, size = 0x3000, scoped, tag = 'input window, operand 4, single buffered']
    %14 = vsyncpa [#allocation8], 0
    %15 = vsyncpa [#allocation10], 0
    %16 = vsyncpa [#allocation13], 0
    // Predicated region
    $region2: #{tpu_custom_call.1} parent=1 // pred_check
      _
    $region3: #{tpu_custom_call.1} parent=1 // pred_check_branch
      %18 = sbr.rel (0) target = $region5
    $region4: #{tpu_custom_call.1} parent=1 // pred_region
      %s20 = ssub.s32 512, 512
      %21 = vsyncadd [#allocation8], %s20
      %s22 = sshll.u32 [#allocation7], 4
      %s23 = int_to_ptr.vmem [resolvable:$true] %s22
      %28 = dma.hbm_to_vmem [thread:$0]  %s0, 512, %s23, [#allocation8], 128, 128, 8
    $region5: #{tpu_custom_call.1} parent=1 // pred_fallthru
      _
    // Predicated region
    $region6: #{tpu_custom_call.1} parent=1 // pred_check
      _
    $region7: #{tpu_custom_call.1} parent=1 // pred_check_branch
      %30 = sbr.rel (0) target = $region9
    $region8: #{tpu_custom_call.1} parent=1 // pred_region
      %s32 = ssub.s32 21504, 21504
      %33 = vsyncadd [#allocation10], %s32
      %s34 = sshll.u32 [#allocation9], 4
      %s35 = int_to_ptr.vmem [resolvable:$true] %s34
      %40 = dma.hbm_to_vmem [thread:$0]  %s1, 21504, %s35, [#allocation10], 64, 64, 4
    $region9: #{tpu_custom_call.1} parent=1 // pred_fallthru
      _
    // Predicated region
    $region10: #{tpu_custom_call.1} parent=1 // pred_check
      _
    $region11: #{tpu_custom_call.1} parent=1 // pred_check_branch
      %42 = sbr.rel (0) target = $region13
    $region12: #{tpu_custom_call.1} parent=1 // pred_region
      %s44 = ssub.s32 14336, 14336
      %45 = vsyncadd [#allocation10], %s44
      %s46 = sshll.u32 [#allocation11], 4
      %s47 = int_to_ptr.vmem [resolvable:$true] %s46
      %52 = dma.hbm_to_vmem [thread:$0]  %s2, 14336, %s47, [#allocation10], 64, 64, 4
    $region13: #{tpu_custom_call.1} parent=1 // pred_fallthru
      _
    // Predicated region
    $region14: #{tpu_custom_call.1} parent=1 // pred_check
      _
    $region15: #{tpu_custom_call.1} parent=1 // pred_check_branch
      %54 = sbr.rel (0) target = $region17
    $region16: #{tpu_custom_call.1} parent=1 // pred_region
      %s56 = ssub.s32 384, 384
      %57 = vsyncadd [#allocation13], %s56
      %s58 = sshll.u32 [#allocation12], 4
      %s59 = int_to_ptr.vmem [resolvable:$true] %s58
      %64 = dma.hbm_to_vmem [thread:$0]  %s3, 384, %s59, [#allocation13], 128, 128, 8
    $region17: #{tpu_custom_call.1} parent=1 // pred_fallthru
      _
    // Predicated region
    $region18: #{tpu_custom_call.1} parent=1 // pred_check
      _
    $region19: #{tpu_custom_call.1} parent=1 // pred_check_branch
      %66 = sbr.rel (0) target = $region21
    $region20: #{tpu_custom_call.1} parent=1 // pred_region
      %s68 = ssub.s32 384, 384
      %69 = vsyncadd [#allocation13], %s68
      %s70 = sshll.u32 [#allocation14], 4
      %s71 = int_to_ptr.vmem [resolvable:$true] %s70
      %76 = dma.hbm_to_vmem [thread:$0]  %s4, 384, %s71, [#allocation13], 128, 128, 8
    $region21: #{tpu_custom_call.1} parent=1 // pred_fallthru
      _
    // Predicated region
    $region22: #{tpu_custom_call.1} parent=1 // pred_check
      _
    $region23: #{tpu_custom_call.1} parent=1 // pred_check_branch
      %78 = sbr.rel (0) target = $region25
    $region24: #{tpu_custom_call.1} parent=1 // pred_region
      _
    $region25: #{tpu_custom_call.1} parent=1 // pred_fallthru
      _
    // Predicated region
    $region26: #{tpu_custom_call.1} parent=1 // pred_check
      _
    $region27: #{tpu_custom_call.1} parent=1 // pred_check_branch
      %80 = sbr.rel (0) target = $region29
    $region28: #{tpu_custom_call.1} parent=1 // pred_region
      _
    $region29: #{tpu_custom_call.1} parent=1 // pred_fallthru
      _
    // Predicated region
    $region30: #{tpu_custom_call.1} parent=1 // pred_check
      _
    $region31: #{tpu_custom_call.1} parent=1 // pred_check_branch
      %82 = sbr.rel (0) target = $region33
    $region32: #{tpu_custom_call.1} parent=1 // pred_region
      %83 = dma.done [#allocation8], 512
    $region33: #{tpu_custom_call.1} parent=1 // pred_fallthru
      _
    // Predicated region
    $region34: #{tpu_custom_call.1} parent=1 // pred_check
      _
    $region35: #{tpu_custom_call.1} parent=1 // pred_check_branch
      %85 = sbr.rel (0) target = $region37
    $region36: #{tpu_custom_call.1} parent=1 // pred_region
      %86 = dma.done [#allocation10], 21504
    $region37: #{tpu_custom_call.1} parent=1 // pred_fallthru
      _
    // Predicated region
    $region38: #{tpu_custom_call.1} parent=1 // pred_check
      _
    $region39: #{tpu_custom_call.1} parent=1 // pred_check_branch
      %88 = sbr.rel (0) target = $region41
    $region40: #{tpu_custom_call.1} parent=1 // pred_region
      %89 = dma.done [#allocation10], 14336
    $region41: #{tpu_custom_call.1} parent=1 // pred_fallthru
      _
    // Predicated region
    $region42: #{tpu_custom_call.1} parent=1 // pred_check
      _
    $region43: #{tpu_custom_call.1} parent=1 // pred_check_branch
      %91 = sbr.rel (0) target = $region45
    $region44: #{tpu_custom_call.1} parent=1 // pred_region
      %92 = dma.done [#allocation13], 384
    $region45: #{tpu_custom_call.1} parent=1 // pred_fallthru
      _
    // Predicated region
    $region46: #{tpu_custom_call.1} parent=1 // pred_check
      _
    $region47: #{tpu_custom_call.1} parent=1 // pred_check_branch
      %94 = sbr.rel (0) target = $region49
    $region48: #{tpu_custom_call.1} parent=1 // pred_region
      %95 = dma.done [#allocation13], 384
    $region49: #{tpu_custom_call.1} parent=1 // pred_fallthru
      _
    %97 = vst [vmem:[#allocation3] sm:$0x1] 0.0
    %98 = vst [vmem:[#allocation3 + $0x11] sm:$0x1] 0.0
    %v99 = vld [vmem:[#allocation7] sm:$0xff]
    %v100 = vld [vmem:[#allocation7 + $0x8] sm:$0xff]
    %101 = vst [vmem:[#allocation3 + $0x1] sm:$0xff] %v99
    %102 = vst [vmem:[#allocation3 + $0x9] sm:$0xff] %v100
    %103 = vst [vmem:[#allocation3 + $0x12] sm:$0x1] 0.0
    %104 = vst [vmem:[#allocation3 + $0x23] sm:$0x1] 0.0
    %v105 = vld [vmem:[#allocation7 + $0x10] sm:$0xff]
    %v106 = vld [vmem:[#allocation7 + $0x18] sm:$0xff]
    %107 = vst [vmem:[#allocation3 + $0x13] sm:$0xff] %v105
    %108 = vst [vmem:[#allocation3 + $0x1b] sm:$0xff] %v106
    %v109 = vld [vmem:[#allocation3] sm:$0xff]
    %v110 = vld [vmem:[#allocation3 + $0x8] sm:$0xff]
    %v111 = vpack.c.bf16 %v110, %v109
    %v112 = vld [vmem:[#allocation9] sm:$0xf]
    %v113 = vld [vmem:[#allocation9 + $0x4] sm:$0xf]
    %v114 = vld [vmem:[#allocation9 + $0x8] sm:$0xf]
    %v115 = vld [vmem:[#allocation9 + $0xc] sm:$0xf]
    %v116 = vld [vmem:[#allocation9 + $0x10] sm:$0xf]
    %v117 = vld [vmem:[#allocation9 + $0x14] sm:$0xf]
    %v118 = vld [vmem:[#allocation9 + $0x18] sm:$0xf]
    %v119 = vld [vmem:[#allocation9 + $0x1c] sm:$0xf]
    %v120 = vld [vmem:[#allocation9 + $0x20] sm:$0xf]
    %v121 = vld [vmem:[#allocation9 + $0x24] sm:$0xf]
    %v122 = vld [vmem:[#allocation9 + $0x28] sm:$0xf]
    %v123 = vld [vmem:[#allocation9 + $0x2c] sm:$0xf]
    %v124 = vld [vmem:[#allocation9 + $0x30] sm:$0xf]
    %v125 = vld [vmem:[#allocation9 + $0x34] sm:$0xf]
    %v126 = vld [vmem:[#allocation9 + $0x38] sm:$0xf]
    %v127 = vld [vmem:[#allocation9 + $0x3c] sm:$0xf]
    %v128 = vld [vmem:[#allocation3 + $0x1] sm:$0xff]
    %v129 = vld [vmem:[#allocation3 + $0x9] sm:$0xff]
    %v130 = vpack.c.bf16 %v129, %v128
    %s131 = scalar_lea.vmem [#allocation9], 64
    %v132 = vld [vmem:[%s131] sm:$0xf]
    %v133 = vld [vmem:[%s131 + $0x4] sm:$0xf]
    %v134 = vld [vmem:[%s131 + $0x8] sm:$0xf]
    %v135 = vld [vmem:[%s131 + $0xc] sm:$0xf]
    %v136 = vld [vmem:[%s131 + $0x10] sm:$0xf]
    %v137 = vld [vmem:[%s131 + $0x14] sm:$0xf]
    %v138 = vld [vmem:[%s131 + $0x18] sm:$0xf]
    %v139 = vld [vmem:[%s131 + $0x1c] sm:$0xf]
    %v140 = vld [vmem:[%s131 + $0x20] sm:$0xf]
    %v141 = vld [vmem:[%s131 + $0x24] sm:$0xf]
    %v142 = vld [vmem:[%s131 + $0x28] sm:$0xf]
    %v143 = vld [vmem:[%s131 + $0x2c] sm:$0xf]
    %v144 = vld [vmem:[%s131 + $0x30] sm:$0xf]
    %v145 = vld [vmem:[%s131 + $0x34] sm:$0xf]
    %v146 = vld [vmem:[%s131 + $0x38] sm:$0xf]
    %v147 = vld [vmem:[%s131 + $0x3c] sm:$0xf]
    %v164 = vunpack.c.l.b16 %v132
    %v165 = vunpack.c.l.b16 %v133
    %v166 = vunpack.c.l.b16 %v134
    %v167 = vunpack.c.l.b16 %v135
    %v168 = vunpack.c.l.b16 %v136
    %v169 = vunpack.c.l.b16 %v137
    %v170 = vunpack.c.l.b16 %v138
    %v171 = vunpack.c.l.b16 %v139
    %v172 = vunpack.c.l.b16 %v140
    %v173 = vunpack.c.l.b16 %v141
    %v174 = vunpack.c.l.b16 %v142
    %v175 = vunpack.c.l.b16 %v143
    %v176 = vunpack.c.l.b16 %v144
    %v177 = vunpack.c.l.b16 %v145
    %v178 = vunpack.c.l.b16 %v146
    %v179 = vunpack.c.l.b16 %v147
    %v180 = vpack.c.b16 %v165, %v164
    %v181 = vpack.c.b16 %v167, %v166
    %v182 = vpack.c.b16 %v169, %v168
    %v183 = vpack.c.b16 %v171, %v170
    %v184 = vpack.c.b16 %v173, %v172
    %v185 = vpack.c.b16 %v175, %v174
    %v186 = vpack.c.b16 %v177, %v176
    %v187 = vpack.c.b16 %v179, %v178
    %196 = vmatprep.subr.bf16.mxu0 0
    %197 = vmatpush1.bf16.msra.mxu0 %v180
    %198 = vmatprep.subr.bf16.mxu0 0
    %199 = vmatpush1.bf16.msra.mxu0 %v181
    %200 = vmatprep.subr.bf16.mxu0 0
    %201 = vmatpush1.bf16.msra.mxu0 %v182
    %202 = vmatprep.subr.bf16.mxu0 0
    %203 = vmatpush1.bf16.msra.mxu0 %v183
    %204 = vmatprep.subr.bf16.mxu0 0
    %205 = vmatpush1.bf16.msra.mxu0 %v184
    %206 = vmatprep.subr.bf16.mxu0 0
    %207 = vmatpush1.bf16.msra.mxu0 %v185
    %208 = vmatprep.subr.bf16.mxu0 0
    %209 = vmatpush1.bf16.msra.mxu0 %v186
    %210 = vmatprep.subr.bf16.mxu0 0
    %211 = vmatpush1.bf16.msra.mxu0 %v187
    %212 = vmatprep.subr.bf16.mxu0 0
    %213 = vmatpush1.bf16.msra.mxu0 0
    %214 = vmatprep.subr.bf16.mxu0 0
    %215 = vmatpush1.bf16.msra.mxu0 0
    %216 = vmatprep.subr.bf16.mxu0 0
    %217 = vmatpush1.bf16.msra.mxu0 0
    %218 = vmatprep.subr.bf16.mxu0 0
    %219 = vmatpush1.bf16.msra.mxu0 0
    %220 = vmatprep.subr.bf16.mxu0 0
    %221 = vmatpush1.bf16.msra.mxu0 0
    %222 = vmatprep.subr.bf16.mxu0 0
    %223 = vmatpush1.bf16.msra.mxu0 0
    %224 = vmatprep.subr.bf16.mxu0 0
    %225 = vmatpush1.bf16.msra.mxu0 0
    %226 = vmatprep.subr.bf16.mxu0 0
    %227 = vmatpush1.bf16.msra.mxu0 0
    %228 = vmatprep.mubr.bf16.mxu0 0
    %229 = vmatmul.mubr.bf16.gmra.mrb[0].mxu0 %v130
    %v230 = vpop.f32.mrb[0].mxu0
    %v231 = vadd.f32 0.0, %v230
    %v232 = vpop.f32.mrb[0].mxu0
    %v233 = vpop.f32.mrb[0].mxu0
    %v234 = vadd.f32 0.0, %v233
    %v235 = vpop.f32.mrb[0].mxu0
    %236 = vdwg.mxu0
    %v253 = vunpack.c.l.b16 %v112
    %v254 = vunpack.c.l.b16 %v113
    %v255 = vunpack.c.l.b16 %v114
    %v256 = vunpack.c.l.b16 %v115
    %v257 = vunpack.c.l.b16 %v116
    %v258 = vunpack.c.l.b16 %v117
    %v259 = vunpack.c.l.b16 %v118
    %v260 = vunpack.c.l.b16 %v119
    %v261 = vunpack.c.l.b16 %v120
    %v262 = vunpack.c.l.b16 %v121
    %v263 = vunpack.c.l.b16 %v122
    %v264 = vunpack.c.l.b16 %v123
    %v265 = vunpack.c.l.b16 %v124
    %v266 = vunpack.c.l.b16 %v125
    %v267 = vunpack.c.l.b16 %v126
    %v268 = vunpack.c.l.b16 %v127
    %v269 = vpack.c.b16 %v254, %v253
    %v270 = vpack.c.b16 %v256, %v255
    %v271 = vpack.c.b16 %v258, %v257
    %v272 = vpack.c.b16 %v260, %v259
    %v273 = vpack.c.b16 %v262, %v261
    %v274 = vpack.c.b16 %v264, %v263
    %v275 = vpack.c.b16 %v266, %v265
    %v276 = vpack.c.b16 %v268, %v267
    %285 = vmatprep.subr.bf16.mxu0 0
    %286 = vmatpush1.bf16.msra.mxu0 %v269
    %287 = vmatprep.subr.bf16.mxu0 0
    %288 = vmatpush1.bf16.msra.mxu0 %v270
    %289 = vmatprep.subr.bf16.mxu0 0
    %290 = vmatpush1.bf16.msra.mxu0 %v271
    %291 = vmatprep.subr.bf16.mxu0 0
    %292 = vmatpush1.bf16.msra.mxu0 %v272
    %293 = vmatprep.subr.bf16.mxu0 0
    %294 = vmatpush1.bf16.msra.mxu0 %v273
    %295 = vmatprep.subr.bf16.mxu0 0
    %296 = vmatpush1.bf16.msra.mxu0 %v274
    %297 = vmatprep.subr.bf16.mxu0 0
    %298 = vmatpush1.bf16.msra.mxu0 %v275
    %299 = vmatprep.subr.bf16.mxu0 0
    %300 = vmatpush1.bf16.msra.mxu0 %v276
    %301 = vmatprep.subr.bf16.mxu0 0
    %302 = vmatpush1.bf16.msra.mxu0 0
    %303 = vmatprep.subr.bf16.mxu0 0
    %304 = vmatpush1.bf16.msra.mxu0 0
    %305 = vmatprep.subr.bf16.mxu0 0
    %306 = vmatpush1.bf16.msra.mxu0 0
    %307 = vmatprep.subr.bf16.mxu0 0
    %308 = vmatpush1.bf16.msra.mxu0 0
    %309 = vmatprep.subr.bf16.mxu0 0
    %310 = vmatpush1.bf16.msra.mxu0 0
    %311 = vmatprep.subr.bf16.mxu0 0
    %312 = vmatpush1.bf16.msra.mxu0 0
    %313 = vmatprep.subr.bf16.mxu0 0
    %314 = vmatpush1.bf16.msra.mxu0 0
    %315 = vmatprep.subr.bf16.mxu0 0
    %316 = vmatpush1.bf16.msra.mxu0 0
    %317 = vmatprep.mubr.bf16.mxu0 0
    %318 = vmatmul.mubr.bf16.gmra.mrb[0].mxu0 %v111
    %v319 = vpop.f32.mrb[0].mxu0
    %v320 = vadd.f32 %v231, %v319
    %v321 = vpop.f32.mrb[0].mxu0
    %v322 = vpop.f32.mrb[0].mxu0
    %v323 = vadd.f32 %v234, %v322
    %v324 = vpop.f32.mrb[0].mxu0
    %325 = vdwg.mxu0
    %v326 = vld [vmem:[#allocation3 + $0x2] sm:$0xff]
    %v327 = vld [vmem:[#allocation3 + $0xa] sm:$0xff]
    %v328 = vpack.c.bf16 %v327, %v326
    %s329 = scalar_lea.vmem [#allocation9], 128
    %v330 = vld [vmem:[%s329] sm:$0xf]
    %v331 = vld [vmem:[%s329 + $0x4] sm:$0xf]
    %v332 = vld [vmem:[%s329 + $0x8] sm:$0xf]
    %v333 = vld [vmem:[%s329 + $0xc] sm:$0xf]
    %v334 = vld [vmem:[%s329 + $0x10] sm:$0xf]
    %v335 = vld [vmem:[%s329 + $0x14] sm:$0xf]
    %v336 = vld [vmem:[%s329 + $0x18] sm:$0xf]
    %v337 = vld [vmem:[%s329 + $0x1c] sm:$0xf]
    %v338 = vld [vmem:[%s329 + $0x20] sm:$0xf]
    %v339 = vld [vmem:[%s329 + $0x24] sm:$0xf]
    %v340 = vld [vmem:[%s329 + $0x28] sm:$0xf]
    %v341 = vld [vmem:[%s329 + $0x2c] sm:$0xf]
    %v342 = vld [vmem:[%s329 + $0x30] sm:$0xf]
    %v343 = vld [vmem:[%s329 + $0x34] sm:$0xf]
    %v344 = vld [vmem:[%s329 + $0x38] sm:$0xf]
    %v345 = vld [vmem:[%s329 + $0x3c] sm:$0xf]
    %v362 = vunpack.c.l.b16 %v330
    %v363 = vunpack.c.l.b16 %v331
    %v364 = vunpack.c.l.b16 %v332
    %v365 = vunpack.c.l.b16 %v333
    %v366 = vunpack.c.l.b16 %v334
    %v367 = vunpack.c.l.b16 %v335
    %v368 = vunpack.c.l.b16 %v336
    %v369 = vunpack.c.l.b16 %v337
    %v370 = vunpack.c.l.b16 %v338
    %v371 = vunpack.c.l.b16 %v339
    %v372 = vunpack.c.l.b16 %v340
    %v373 = vunpack.c.l.b16 %v341
    %v374 = vunpack.c.l.b16 %v342
    %v375 = vunpack.c.l.b16 %v343
    %v376 = vunpack.c.l.b16 %v344
    %v377 = vunpack.c.l.b16 %v345
    %v378 = vpack.c.b16 %v363, %v362
    %v379 = vpack.c.b16 %v365, %v364
    %v380 = vpack.c.b16 %v367, %v366
    %v381 = vpack.c.b16 %v369, %v368
    %v382 = vpack.c.b16 %v371, %v370
    %v383 = vpack.c.b16 %v373, %v372
    %v384 = vpack.c.b16 %v375, %v374
    %v385 = vpack.c.b16 %v377, %v376
    %394 = vmatprep.subr.bf16.mxu0 0
    %395 = vmatpush1.bf16.msra.mxu0 %v378
    %396 = vmatprep.subr.bf16.mxu0 0
    %397 = vmatpush1.bf16.msra.mxu0 %v379
    %398 = vmatprep.subr.bf16.mxu0 0
    %399 = vmatpush1.bf16.msra.mxu0 %v380
    %400 = vmatprep.subr.bf16.mxu0 0
    %401 = vmatpush1.bf16.msra.mxu0 %v381
    %402 = vmatprep.subr.bf16.mxu0 0
    %403 = vmatpush1.bf16.msra.mxu0 %v382
    %404 = vmatprep.subr.bf16.mxu0 0
    %405 = vmatpush1.bf16.msra.mxu0 %v383
    %406 = vmatprep.subr.bf16.mxu0 0
    %407 = vmatpush1.bf16.msra.mxu0 %v384
    %408 = vmatprep.subr.bf16.mxu0 0
    %409 = vmatpush1.bf16.msra.mxu0 %v385
    %410 = vmatprep.subr.bf16.mxu0 0
    %411 = vmatpush1.bf16.msra.mxu0 0
    %412 = vmatprep.subr.bf16.mxu0 0
    %413 = vmatpush1.bf16.msra.mxu0 0
    %414 = vmatprep.subr.bf16.mxu0 0
    %415 = vmatpush1.bf16.msra.mxu0 0
    %416 = vmatprep.subr.bf16.mxu0 0
    %417 = vmatpush1.bf16.msra.mxu0 0
    %418 = vmatprep.subr.bf16.mxu0 0
    %419 = vmatpush1.bf16.msra.mxu0 0
    %420 = vmatprep.subr.bf16.mxu0 0
    %421 = vmatpush1.bf16.msra.mxu0 0
    %422 = vmatprep.subr.bf16.mxu0 0
    %423 = vmatpush1.bf16.msra.mxu0 0
    %424 = vmatprep.subr.bf16.mxu0 0
    %425 = vmatpush1.bf16.msra.mxu0 0
    %426 = vmatprep.mubr.bf16.mxu0 0
    %427 = vmatmul.mubr.bf16.gmra.mrb[0].mxu0 %v328
    %v428 = vpop.f32.mrb[0].mxu0
    %v429 = vadd.f32 0.0, %v428
    %v430 = vpop.f32.mrb[0].mxu0
    %v431 = vpop.f32.mrb[0].mxu0
    %v432 = vadd.f32 0.0, %v431
    %v433 = vpop.f32.mrb[0].mxu0
    %434 = vdwg.mxu0
    %v435 = vadd.f32 %v320, %v429
    %v436 = vadd.f32 %v323, %v432
    %437 = vst [vmem:[#allocation4] sm:$0xff] %v435
    %438 = vst [vmem:[#allocation4 + $0x8] sm:$0xff] %v436
    %v439 = vld [vmem:[#allocation3 + $0x12] sm:$0xff]
    %v440 = vld [vmem:[#allocation3 + $0x1a] sm:$0xff]
    %v441 = vpack.c.bf16 %v440, %v439
    %v442 = vld [vmem:[#allocation9] sm:$0xf]
    %v443 = vld [vmem:[#allocation9 + $0x4] sm:$0xf]
    %v444 = vld [vmem:[#allocation9 + $0x8] sm:$0xf]
    %v445 = vld [vmem:[#allocation9 + $0xc] sm:$0xf]
    %v446 = vld [vmem:[#allocation9 + $0x10] sm:$0xf]
    %v447 = vld [vmem:[#allocation9 + $0x14] sm:$0xf]
    %v448 = vld [vmem:[#allocation9 + $0x18] sm:$0xf]
    %v449 = vld [vmem:[#allocation9 + $0x1c] sm:$0xf]
    %v450 = vld [vmem:[#allocation9 + $0x20] sm:$0xf]
    %v451 = vld [vmem:[#allocation9 + $0x24] sm:$0xf]
    %v452 = vld [vmem:[#allocation9 + $0x28] sm:$0xf]
    %v453 = vld [vmem:[#allocation9 + $0x2c] sm:$0xf]
    %v454 = vld [vmem:[#allocation9 + $0x30] sm:$0xf]
    %v455 = vld [vmem:[#allocation9 + $0x34] sm:$0xf]
    %v456 = vld [vmem:[#allocation9 + $0x38] sm:$0xf]
    %v457 = vld [vmem:[#allocation9 + $0x3c] sm:$0xf]
    %v458 = vld [vmem:[#allocation3 + $0x13] sm:$0xff]
    %v459 = vld [vmem:[#allocation3 + $0x1b] sm:$0xff]
    %v460 = vpack.c.bf16 %v459, %v458
    %v461 = vld [vmem:[%s131] sm:$0xf]
    %v462 = vld [vmem:[%s131 + $0x4] sm:$0xf]
    %v463 = vld [vmem:[%s131 + $0x8] sm:$0xf]
    %v464 = vld [vmem:[%s131 + $0xc] sm:$0xf]
    %v465 = vld [vmem:[%s131 + $0x10] sm:$0xf]
    %v466 = vld [vmem:[%s131 + $0x14] sm:$0xf]
    %v467 = vld [vmem:[%s131 + $0x18] sm:$0xf]
    %v468 = vld [vmem:[%s131 + $0x1c] sm:$0xf]
    %v469 = vld [vmem:[%s131 + $0x20] sm:$0xf]
    %v470 = vld [vmem:[%s131 + $0x24] sm:$0xf]
    %v471 = vld [vmem:[%s131 + $0x28] sm:$0xf]
    %v472 = vld [vmem:[%s131 + $0x2c] sm:$0xf]
    %v473 = vld [vmem:[%s131 + $0x30] sm:$0xf]
    %v474 = vld [vmem:[%s131 + $0x34] sm:$0xf]
    %v475 = vld [vmem:[%s131 + $0x38] sm:$0xf]
    %v476 = vld [vmem:[%s131 + $0x3c] sm:$0xf]
    %v493 = vunpack.c.l.b16 %v461
    %v494 = vunpack.c.l.b16 %v462
    %v495 = vunpack.c.l.b16 %v463
    %v496 = vunpack.c.l.b16 %v464
    %v497 = vunpack.c.l.b16 %v465
    %v498 = vunpack.c.l.b16 %v466
    %v499 = vunpack.c.l.b16 %v467
    %v500 = vunpack.c.l.b16 %v468
    %v501 = vunpack.c.l.b16 %v469
    %v502 = vunpack.c.l.b16 %v470
    %v503 = vunpack.c.l.b16 %v471
    %v504 = vunpack.c.l.b16 %v472
    %v505 = vunpack.c.l.b16 %v473
    %v506 = vunpack.c.l.b16 %v474
    %v507 = vunpack.c.l.b16 %v475
    %v508 = vunpack.c.l.b16 %v476
    %v509 = vpack.c.b16 %v494, %v493
    %v510 = vpack.c.b16 %v496, %v495
    %v511 = vpack.c.b16 %v498, %v497
    %v512 = vpack.c.b16 %v500, %v499
    %v513 = vpack.c.b16 %v502, %v501
    %v514 = vpack.c.b16 %v504, %v503
    %v515 = vpack.c.b16 %v506, %v505
    %v516 = vpack.c.b16 %v508, %v507
    %525 = vmatprep.subr.bf16.mxu0 0
    %526 = vmatpush1.bf16.msra.mxu0 %v509
    %527 = vmatprep.subr.bf16.mxu0 0
    %528 = vmatpush1.bf16.msra.mxu0 %v510
    %529 = vmatprep.subr.bf16.mxu0 0
    %530 = vmatpush1.bf16.msra.mxu0 %v511
    %531 = vmatprep.subr.bf16.mxu0 0
    %532 = vmatpush1.bf16.msra.mxu0 %v512
    %533 = vmatprep.subr.bf16.mxu0 0
    %534 = vmatpush1.bf16.msra.mxu0 %v513
    %535 = vmatprep.subr.bf16.mxu0 0
    %536 = vmatpush1.bf16.msra.mxu0 %v514
    %537 = vmatprep.subr.bf16.mxu0 0
    %538 = vmatpush1.bf16.msra.mxu0 %v515
    %539 = vmatprep.subr.bf16.mxu0 0
    %540 = vmatpush1.bf16.msra.mxu0 %v516
    %541 = vmatprep.subr.bf16.mxu0 0
    %542 = vmatpush1.bf16.msra.mxu0 0
    %543 = vmatprep.subr.bf16.mxu0 0
    %544 = vmatpush1.bf16.msra.mxu0 0
    %545 = vmatprep.subr.bf16.mxu0 0
    %546 = vmatpush1.bf16.msra.mxu0 0
    %547 = vmatprep.subr.bf16.mxu0 0
    %548 = vmatpush1.bf16.msra.mxu0 0
    %549 = vmatprep.subr.bf16.mxu0 0
    %550 = vmatpush1.bf16.msra.mxu0 0
    %551 = vmatprep.subr.bf16.mxu0 0
    %552 = vmatpush1.bf16.msra.mxu0 0
    %553 = vmatprep.subr.bf16.mxu0 0
    %554 = vmatpush1.bf16.msra.mxu0 0
    %555 = vmatprep.subr.bf16.mxu0 0
    %556 = vmatpush1.bf16.msra.mxu0 0
    %557 = vmatprep.mubr.bf16.mxu0 0
    %558 = vmatmul.mubr.bf16.gmra.mrb[0].mxu0 %v460
    %v559 = vpop.f32.mrb[0].mxu0
    %v560 = vadd.f32 0.0, %v559
    %v561 = vpop.f32.mrb[0].mxu0
    %v562 = vpop.f32.mrb[0].mxu0
    %v563 = vadd.f32 0.0, %v562
    %v564 = vpop.f32.mrb[0].mxu0
    %565 = vdwg.mxu0
    %v582 = vunpack.c.l.b16 %v442
    %v583 = vunpack.c.l.b16 %v443
    %v584 = vunpack.c.l.b16 %v444
    %v585 = vunpack.c.l.b16 %v445
    %v586 = vunpack.c.l.b16 %v446
    %v587 = vunpack.c.l.b16 %v447
    %v588 = vunpack.c.l.b16 %v448
    %v589 = vunpack.c.l.b16 %v449
    %v590 = vunpack.c.l.b16 %v450
    %v591 = vunpack.c.l.b16 %v451
    %v592 = vunpack.c.l.b16 %v452
    %v593 = vunpack.c.l.b16 %v453
    %v594 = vunpack.c.l.b16 %v454
    %v595 = vunpack.c.l.b16 %v455
    %v596 = vunpack.c.l.b16 %v456
    %v597 = vunpack.c.l.b16 %v457
    %v598 = vpack.c.b16 %v583, %v582
    %v599 = vpack.c.b16 %v585, %v584
    %v600 = vpack.c.b16 %v587, %v586
    %v601 = vpack.c.b16 %v589, %v588
    %v602 = vpack.c.b16 %v591, %v590
    %v603 = vpack.c.b16 %v593, %v592
    %v604 = vpack.c.b16 %v595, %v594
    %v605 = vpack.c.b16 %v597, %v596
    %614 = vmatprep.subr.bf16.mxu0 0
    %615 = vmatpush1.bf16.msra.mxu0 %v598
    %616 = vmatprep.subr.bf16.mxu0 0
    %617 = vmatpush1.bf16.msra.mxu0 %v599
    %618 = vmatprep.subr.bf16.mxu0 0
    %619 = vmatpush1.bf16.msra.mxu0 %v600
    %620 = vmatprep.subr.bf16.mxu0 0
    %621 = vmatpush1.bf16.msra.mxu0 %v601
    %622 = vmatprep.subr.bf16.mxu0 0
    %623 = vmatpush1.bf16.msra.mxu0 %v602
    %624 = vmatprep.subr.bf16.mxu0 0
    %625 = vmatpush1.bf16.msra.mxu0 %v603
    %626 = vmatprep.subr.bf16.mxu0 0
    %627 = vmatpush1.bf16.msra.mxu0 %v604
    %628 = vmatprep.subr.bf16.mxu0 0
    %629 = vmatpush1.bf16.msra.mxu0 %v605
    %630 = vmatprep.subr.bf16.mxu0 0
    %631 = vmatpush1.bf16.msra.mxu0 0
    %632 = vmatprep.subr.bf16.mxu0 0
    %633 = vmatpush1.bf16.msra.mxu0 0
    %634 = vmatprep.subr.bf16.mxu0 0
    %635 = vmatpush1.bf16.msra.mxu0 0
    %636 = vmatprep.subr.bf16.mxu0 0
    %637 = vmatpush1.bf16.msra.mxu0 0
    %638 = vmatprep.subr.bf16.mxu0 0
    %639 = vmatpush1.bf16.msra.mxu0 0
    %640 = vmatprep.subr.bf16.mxu0 0
    %641 = vmatpush1.bf16.msra.mxu0 0
    %642 = vmatprep.subr.bf16.mxu0 0
    %643 = vmatpush1.bf16.msra.mxu0 0
    %644 = vmatprep.subr.bf16.mxu0 0
    %645 = vmatpush1.bf16.msra.mxu0 0
    %646 = vmatprep.mubr.bf16.mxu0 0
    %647 = vmatmul.mubr.bf16.gmra.mrb[0].mxu0 %v441
    %v648 = vpop.f32.mrb[0].mxu0
    %v649 = vadd.f32 %v560, %v648
    %v650 = vpop.f32.mrb[0].mxu0
    %v651 = vpop.f32.mrb[0].mxu0
    %v652 = vadd.f32 %v563, %v651
    %v653 = vpop.f32.mrb[0].mxu0
    %654 = vdwg.mxu0
    %v655 = vld [vmem:[#allocation3 + $0x14] sm:$0xff]
    %v656 = vld [vmem:[#allocation3 + $0x1c] sm:$0xff]
    %v657 = vpack.c.bf16 %v656, %v655
    %v658 = vld [vmem:[%s329] sm:$0xf]
    %v659 = vld [vmem:[%s329 + $0x4] sm:$0xf]
    %v660 = vld [vmem:[%s329 + $0x8] sm:$0xf]
    %v661 = vld [vmem:[%s329 + $0xc] sm:$0xf]
    %v662 = vld [vmem:[%s329 + $0x10] sm:$0xf]
    %v663 = vld [vmem:[%s329 + $0x14] sm:$0xf]
    %v664 = vld [vmem:[%s329 + $0x18] sm:$0xf]
    %v665 = vld [vmem:[%s329 + $0x1c] sm:$0xf]
    %v666 = vld [vmem:[%s329 + $0x20] sm:$0xf]
    %v667 = vld [vmem:[%s329 + $0x24] sm:$0xf]
    %v668 = vld [vmem:[%s329 + $0x28] sm:$0xf]
    %v669 = vld [vmem:[%s329 + $0x2c] sm:$0xf]
    %v670 = vld [vmem:[%s329 + $0x30] sm:$0xf]
    %v671 = vld [vmem:[%s329 + $0x34] sm:$0xf]
    %v672 = vld [vmem:[%s329 + $0x38] sm:$0xf]
    %v673 = vld [vmem:[%s329 + $0x3c] sm:$0xf]
    %v690 = vunpack.c.l.b16 %v658
    %v691 = vunpack.c.l.b16 %v659
    %v692 = vunpack.c.l.b16 %v660
    %v693 = vunpack.c.l.b16 %v661
    %v694 = vunpack.c.l.b16 %v662
    %v695 = vunpack.c.l.b16 %v663
    %v696 = vunpack.c.l.b16 %v664
    %v697 = vunpack.c.l.b16 %v665
    %v698 = vunpack.c.l.b16 %v666
    %v699 = vunpack.c.l.b16 %v667
    %v700 = vunpack.c.l.b16 %v668
    %v701 = vunpack.c.l.b16 %v669
    %v702 = vunpack.c.l.b16 %v670
    %v703 = vunpack.c.l.b16 %v671
    %v704 = vunpack.c.l.b16 %v672
    %v705 = vunpack.c.l.b16 %v673
    %v706 = vpack.c.b16 %v691, %v690
    %v707 = vpack.c.b16 %v693, %v692
    %v708 = vpack.c.b16 %v695, %v694
    %v709 = vpack.c.b16 %v697, %v696
    %v710 = vpack.c.b16 %v699, %v698
    %v711 = vpack.c.b16 %v701, %v700
    %v712 = vpack.c.b16 %v703, %v702
    %v713 = vpack.c.b16 %v705, %v704
    %722 = vmatprep.subr.bf16.mxu0 0
    %723 = vmatpush1.bf16.msra.mxu0 %v706
    %724 = vmatprep.subr.bf16.mxu0 0
    %725 = vmatpush1.bf16.msra.mxu0 %v707
    %726 = vmatprep.subr.bf16.mxu0 0
    %727 = vmatpush1.bf16.msra.mxu0 %v708
    %728 = vmatprep.subr.bf16.mxu0 0
    %729 = vmatpush1.bf16.msra.mxu0 %v709
    %730 = vmatprep.subr.bf16.mxu0 0
    %731 = vmatpush1.bf16.msra.mxu0 %v710
    %732 = vmatprep.subr.bf16.mxu0 0
    %733 = vmatpush1.bf16.msra.mxu0 %v711
    %734 = vmatprep.subr.bf16.mxu0 0
    %735 = vmatpush1.bf16.msra.mxu0 %v712
    %736 = vmatprep.subr.bf16.mxu0 0
    %737 = vmatpush1.bf16.msra.mxu0 %v713
    %738 = vmatprep.subr.bf16.mxu0 0
    %739 = vmatpush1.bf16.msra.mxu0 0
    %740 = vmatprep.subr.bf16.mxu0 0
    %741 = vmatpush1.bf16.msra.mxu0 0
    %742 = vmatprep.subr.bf16.mxu0 0
    %743 = vmatpush1.bf16.msra.mxu0 0
    %744 = vmatprep.subr.bf16.mxu0 0
    %745 = vmatpush1.bf16.msra.mxu0 0
    %746 = vmatprep.subr.bf16.mxu0 0
    %747 = vmatpush1.bf16.msra.mxu0 0
    %748 = vmatprep.subr.bf16.mxu0 0
    %749 = vmatpush1.bf16.msra.mxu0 0
    %750 = vmatprep.subr.bf16.mxu0 0
    %751 = vmatpush1.bf16.msra.mxu0 0
    %752 = vmatprep.subr.bf16.mxu0 0
    %753 = vmatpush1.bf16.msra.mxu0 0
    %754 = vmatprep.mubr.bf16.mxu0 0
    %755 = vmatmul.mubr.bf16.gmra.mrb[0].mxu0 %v657
    %v756 = vpop.f32.mrb[0].mxu0
    %v757 = vadd.f32 0.0, %v756
    %v758 = vpop.f32.mrb[0].mxu0
    %v759 = vpop.f32.mrb[0].mxu0
    %v760 = vadd.f32 0.0, %v759
    %v761 = vpop.f32.mrb[0].mxu0
    %762 = vdwg.mxu0
    %v763 = vadd.f32 %v649, %v757
    %v764 = vadd.f32 %v652, %v760
    %765 = vst [vmem:[#allocation4 + $0x10] sm:$0xff] %v763
    %766 = vst [vmem:[#allocation4 + $0x18] sm:$0xff] %v764
    %v767 = vld [vmem:[#allocation4] sm:$0xff]
    %v768 = vld [vmem:[#allocation4 + $0x8] sm:$0xff]
    %v769 = vld [vmem:[#allocation4 + $0x10] sm:$0xff]
    %v770 = vld [vmem:[#allocation4 + $0x18] sm:$0xff]
    %771 = vst [vmem:[#allocation2] sm:$0xff] %v767
    %772 = vst [vmem:[#allocation2 + $0x8] sm:$0xff] %v768
    %773 = vst [vmem:[#allocation2 + $0x10] sm:$0xff] %v769
    %774 = vst [vmem:[#allocation2 + $0x18] sm:$0xff] %v770
    %v775 = vld [vmem:[#allocation2] ss:$2 sm:$0xff]
    %v776 = vpack.c.bf16 %v775, %v775
    %s777 = scalar_lea.vmem [#allocation11], 128
    %v778 = vld [vmem:[%s777] sm:$0xf]
    %v779 = vld [vmem:[%s777 + $0x4] sm:$0xf]
    %v780 = vld [vmem:[%s777 + $0x8] sm:$0xf]
    %v781 = vld [vmem:[%s777 + $0xc] sm:$0xf]
    %v782 = vld [vmem:[%s777 + $0x10] sm:$0xf]
    %v783 = vld [vmem:[%s777 + $0x14] sm:$0xf]
    %v784 = vld [vmem:[%s777 + $0x18] sm:$0xf]
    %v785 = vld [vmem:[%s777 + $0x1c] sm:$0xf]
    %v786 = vld [vmem:[%s777 + $0x20] sm:$0xf]
    %v787 = vld [vmem:[%s777 + $0x24] sm:$0xf]
    %v788 = vld [vmem:[%s777 + $0x28] sm:$0xf]
    %v789 = vld [vmem:[%s777 + $0x2c] sm:$0xf]
    %v790 = vld [vmem:[%s777 + $0x30] sm:$0xf]
    %v791 = vld [vmem:[%s777 + $0x34] sm:$0xf]
    %v792 = vld [vmem:[%s777 + $0x38] sm:$0xf]
    %v793 = vld [vmem:[%s777 + $0x3c] sm:$0xf]
    %v810 = vunpack.c.l.b16 %v778
    %v811 = vunpack.c.l.b16 %v779
    %v812 = vunpack.c.l.b16 %v780
    %v813 = vunpack.c.l.b16 %v781
    %v814 = vunpack.c.l.b16 %v782
    %v815 = vunpack.c.l.b16 %v783
    %v816 = vunpack.c.l.b16 %v784
    %v817 = vunpack.c.l.b16 %v785
    %v818 = vunpack.c.l.b16 %v786
    %v819 = vunpack.c.l.b16 %v787
    %v820 = vunpack.c.l.b16 %v788
    %v821 = vunpack.c.l.b16 %v789
    %v822 = vunpack.c.l.b16 %v790
    %v823 = vunpack.c.l.b16 %v791
    %v824 = vunpack.c.l.b16 %v792
    %v825 = vunpack.c.l.b16 %v793
    %v826 = vpack.c.b16 %v811, %v810
    %v827 = vpack.c.b16 %v813, %v812
    %v828 = vpack.c.b16 %v815, %v814
    %v829 = vpack.c.b16 %v817, %v816
    %v830 = vpack.c.b16 %v819, %v818
    %v831 = vpack.c.b16 %v821, %v820
    %v832 = vpack.c.b16 %v823, %v822
    %v833 = vpack.c.b16 %v825, %v824
    %842 = vmatprep.subr.bf16.mxu0 0
    %843 = vmatpush1.bf16.msra.mxu0 %v826
    %844 = vmatprep.subr.bf16.mxu0 0
    %845 = vmatpush1.bf16.msra.mxu0 %v827
    %846 = vmatprep.subr.bf16.mxu0 0
    %847 = vmatpush1.bf16.msra.mxu0 %v828
    %848 = vmatprep.subr.bf16.mxu0 0
    %849 = vmatpush1.bf16.msra.mxu0 %v829
    %850 = vmatprep.subr.bf16.mxu0 0
    %851 = vmatpush1.bf16.msra.mxu0 %v830
    %852 = vmatprep.subr.bf16.mxu0 0
    %853 = vmatpush1.bf16.msra.mxu0 %v831
    %854 = vmatprep.subr.bf16.mxu0 0
    %855 = vmatpush1.bf16.msra.mxu0 %v832
    %856 = vmatprep.subr.bf16.mxu0 0
    %857 = vmatpush1.bf16.msra.mxu0 %v833
    %858 = vmatprep.subr.bf16.mxu0 0
    %859 = vmatpush1.bf16.msra.mxu0 0
    %860 = vmatprep.subr.bf16.mxu0 0
    %861 = vmatpush1.bf16.msra.mxu0 0
    %862 = vmatprep.subr.bf16.mxu0 0
    %863 = vmatpush1.bf16.msra.mxu0 0
    %864 = vmatprep.subr.bf16.mxu0 0
    %865 = vmatpush1.bf16.msra.mxu0 0
    %866 = vmatprep.subr.bf16.mxu0 0
    %867 = vmatpush1.bf16.msra.mxu0 0
    %868 = vmatprep.subr.bf16.mxu0 0
    %869 = vmatpush1.bf16.msra.mxu0 0
    %870 = vmatprep.subr.bf16.mxu0 0
    %871 = vmatpush1.bf16.msra.mxu0 0
    %872 = vmatprep.subr.bf16.mxu0 0
    %873 = vmatpush1.bf16.msra.mxu0 0
    %874 = vmatprep.mubr.bf16.mxu0 0
    %875 = vmatmul.mubr.bf16.gmra.mrb[0].mxu0 %v776
    %v876 = vpop.f32.mrb[0].mxu0
    %v877 = vadd.f32 0.0, %v876
    %v878 = vpop.f32.mrb[0].mxu0
    %v879 = vpop.f32.mrb[0].mxu0
    %v880 = vpop.f32.mrb[0].mxu0
    %881 = vdwg.mxu0
    %882 = vst [vmem:[#allocation5] sm:$0xff] %v877
    %s883 = scalar_lea.vmem [#allocation2], 16
    %v884 = vld [vmem:[%s883] ss:$2 sm:$0xff]
    %v885 = vpack.c.bf16 %v884, %v884
    %v886 = vld [vmem:[%s777] sm:$0xf]
    %v887 = vld [vmem:[%s777 + $0x4] sm:$0xf]
    %v888 = vld [vmem:[%s777 + $0x8] sm:$0xf]
    %v889 = vld [vmem:[%s777 + $0xc] sm:$0xf]
    %v890 = vld [vmem:[%s777 + $0x10] sm:$0xf]
    %v891 = vld [vmem:[%s777 + $0x14] sm:$0xf]
    %v892 = vld [vmem:[%s777 + $0x18] sm:$0xf]
    %v893 = vld [vmem:[%s777 + $0x1c] sm:$0xf]
    %v894 = vld [vmem:[%s777 + $0x20] sm:$0xf]
    %v895 = vld [vmem:[%s777 + $0x24] sm:$0xf]
    %v896 = vld [vmem:[%s777 + $0x28] sm:$0xf]
    %v897 = vld [vmem:[%s777 + $0x2c] sm:$0xf]
    %v898 = vld [vmem:[%s777 + $0x30] sm:$0xf]
    %v899 = vld [vmem:[%s777 + $0x34] sm:$0xf]
    %v900 = vld [vmem:[%s777 + $0x38] sm:$0xf]
    %v901 = vld [vmem:[%s777 + $0x3c] sm:$0xf]
    %v918 = vunpack.c.l.b16 %v886
    %v919 = vunpack.c.l.b16 %v887
    %v920 = vunpack.c.l.b16 %v888
    %v921 = vunpack.c.l.b16 %v889
    %v922 = vunpack.c.l.b16 %v890
    %v923 = vunpack.c.l.b16 %v891
    %v924 = vunpack.c.l.b16 %v892
    %v925 = vunpack.c.l.b16 %v893
    %v926 = vunpack.c.l.b16 %v894
    %v927 = vunpack.c.l.b16 %v895
    %v928 = vunpack.c.l.b16 %v896
    %v929 = vunpack.c.l.b16 %v897
    %v930 = vunpack.c.l.b16 %v898
    %v931 = vunpack.c.l.b16 %v899
    %v932 = vunpack.c.l.b16 %v900
    %v933 = vunpack.c.l.b16 %v901
    %v934 = vpack.c.b16 %v919, %v918
    %v935 = vpack.c.b16 %v921, %v920
    %v936 = vpack.c.b16 %v923, %v922
    %v937 = vpack.c.b16 %v925, %v924
    %v938 = vpack.c.b16 %v927, %v926
    %v939 = vpack.c.b16 %v929, %v928
    %v940 = vpack.c.b16 %v931, %v930
    %v941 = vpack.c.b16 %v933, %v932
    %950 = vmatprep.subr.bf16.mxu0 0
    %951 = vmatpush1.bf16.msra.mxu0 %v934
    %952 = vmatprep.subr.bf16.mxu0 0
    %953 = vmatpush1.bf16.msra.mxu0 %v935
    %954 = vmatprep.subr.bf16.mxu0 0
    %955 = vmatpush1.bf16.msra.mxu0 %v936
    %956 = vmatprep.subr.bf16.mxu0 0
    %957 = vmatpush1.bf16.msra.mxu0 %v937
    %958 = vmatprep.subr.bf16.mxu0 0
    %959 = vmatpush1.bf16.msra.mxu0 %v938
    %960 = vmatprep.subr.bf16.mxu0 0
    %961 = vmatpush1.bf16.msra.mxu0 %v939
    %962 = vmatprep.subr.bf16.mxu0 0
    %963 = vmatpush1.bf16.msra.mxu0 %v940
    %964 = vmatprep.subr.bf16.mxu0 0
    %965 = vmatpush1.bf16.msra.mxu0 %v941
    %966 = vmatprep.subr.bf16.mxu0 0
    %967 = vmatpush1.bf16.msra.mxu0 0
    %968 = vmatprep.subr.bf16.mxu0 0
    %969 = vmatpush1.bf16.msra.mxu0 0
    %970 = vmatprep.subr.bf16.mxu0 0
    %971 = vmatpush1.bf16.msra.mxu0 0
    %972 = vmatprep.subr.bf16.mxu0 0
    %973 = vmatpush1.bf16.msra.mxu0 0
    %974 = vmatprep.subr.bf16.mxu0 0
    %975 = vmatpush1.bf16.msra.mxu0 0
    %976 = vmatprep.subr.bf16.mxu0 0
    %977 = vmatpush1.bf16.msra.mxu0 0
    %978 = vmatprep.subr.bf16.mxu0 0
    %979 = vmatpush1.bf16.msra.mxu0 0
    %980 = vmatprep.subr.bf16.mxu0 0
    %981 = vmatpush1.bf16.msra.mxu0 0
    %982 = vmatprep.mubr.bf16.mxu0 0
    %983 = vmatmul.mubr.bf16.gmra.mrb[0].mxu0 %v885
    %v984 = vpop.f32.mrb[0].mxu0
    %v985 = vadd.f32 0.0, %v984
    %v986 = vpop.f32.mrb[0].mxu0
    %v987 = vpop.f32.mrb[0].mxu0
    %v988 = vpop.f32.mrb[0].mxu0
    %989 = vdwg.mxu0
    %990 = vst [vmem:[#allocation5 + $0x8] sm:$0xff] %v985
    %v991 = vld [vmem:[#allocation12] sm:$0x1]
    %v992 = vld [vmem:[#allocation14] sm:$0x1]
    %v993 = vlaneseq
    %v994 = vshrl.u32 %v993, 7
    %v995 = vsub.s32 0, %v994
    %v996 = vrot.slane %v991, %v995
    %v997 = vmul.f32 %v767, %v996
    %v998 = vmul.f32 %v768, %v996
    %v999 = vmul.f32 %v769, %v996
    %v1000 = vmul.f32 %v770, %v996
    %v1001 = vlaneseq
    %v1002 = vshrl.u32 %v1001, 7
    %v1003 = vsub.s32 0, %v1002
    %v1004 = vrot.slane %v992, %v1003
    %v1005 = vadd.f32 %v997, %v1004
    %v1006 = vadd.f32 %v998, %v1004
    %v1007 = vadd.f32 %v999, %v1004
    %v1008 = vadd.f32 %v1000, %v1004
    %v1009 = vmax.f32 %v1005, 0.0
    %v1010 = vmax.f32 %v1006, 0.0
    %v1011 = vmax.f32 %v1007, 0.0
    %v1012 = vmax.f32 %v1008, 0.0
    %v1013 = vpack.c.bf16 %v1010, %v1009
    %v1014 = vpack.c.bf16 %v1012, %v1011
    %v1015 = vld [vmem:[#allocation11] sm:$0xf]
    %v1016 = vld [vmem:[#allocation11 + $0x4] sm:$0xf]
    %v1017 = vld [vmem:[#allocation11 + $0x8] sm:$0xf]
    %v1018 = vld [vmem:[#allocation11 + $0xc] sm:$0xf]
    %v1019 = vld [vmem:[#allocation11 + $0x10] sm:$0xf]
    %v1020 = vld [vmem:[#allocation11 + $0x14] sm:$0xf]
    %v1021 = vld [vmem:[#allocation11 + $0x18] sm:$0xf]
    %v1022 = vld [vmem:[#allocation11 + $0x1c] sm:$0xf]
    %v1023 = vld [vmem:[#allocation11 + $0x20] sm:$0xf]
    %v1024 = vld [vmem:[#allocation11 + $0x24] sm:$0xf]
    %v1025 = vld [vmem:[#allocation11 + $0x28] sm:$0xf]
    %v1026 = vld [vmem:[#allocation11 + $0x2c] sm:$0xf]
    %v1027 = vld [vmem:[#allocation11 + $0x30] sm:$0xf]
    %v1028 = vld [vmem:[#allocation11 + $0x34] sm:$0xf]
    %v1029 = vld [vmem:[#allocation11 + $0x38] sm:$0xf]
    %v1030 = vld [vmem:[#allocation11 + $0x3c] sm:$0xf]
    %v1047 = vunpack.c.l.b16 %v1015
    %v1048 = vunpack.c.l.b16 %v1016
    %v1049 = vunpack.c.l.b16 %v1017
    %v1050 = vunpack.c.l.b16 %v1018
    %v1051 = vunpack.c.l.b16 %v1019
    %v1052 = vunpack.c.l.b16 %v1020
    %v1053 = vunpack.c.l.b16 %v1021
    %v1054 = vunpack.c.l.b16 %v1022
    %v1055 = vunpack.c.l.b16 %v1023
    %v1056 = vunpack.c.l.b16 %v1024
    %v1057 = vunpack.c.l.b16 %v1025
    %v1058 = vunpack.c.l.b16 %v1026
    %v1059 = vunpack.c.l.b16 %v1027
    %v1060 = vunpack.c.l.b16 %v1028
    %v1061 = vunpack.c.l.b16 %v1029
    %v1062 = vunpack.c.l.b16 %v1030
    %v1063 = vpack.c.b16 %v1048, %v1047
    %v1064 = vpack.c.b16 %v1050, %v1049
    %v1065 = vpack.c.b16 %v1052, %v1051
    %v1066 = vpack.c.b16 %v1054, %v1053
    %v1067 = vpack.c.b16 %v1056, %v1055
    %v1068 = vpack.c.b16 %v1058, %v1057
    %v1069 = vpack.c.b16 %v1060, %v1059
    %v1070 = vpack.c.b16 %v1062, %v1061
    %1079 = vmatprep.subr.bf16.mxu0 0
    %1080 = vmatpush1.bf16.msra.mxu0 %v1063
    %1081 = vmatprep.subr.bf16.mxu0 0
    %1082 = vmatpush1.bf16.msra.mxu0 %v1064
    %1083 = vmatprep.subr.bf16.mxu0 0
    %1084 = vmatpush1.bf16.msra.mxu0 %v1065
    %1085 = vmatprep.subr.bf16.mxu0 0
    %1086 = vmatpush1.bf16.msra.mxu0 %v1066
    %1087 = vmatprep.subr.bf16.mxu0 0
    %1088 = vmatpush1.bf16.msra.mxu0 %v1067
    %1089 = vmatprep.subr.bf16.mxu0 0
    %1090 = vmatpush1.bf16.msra.mxu0 %v1068
    %1091 = vmatprep.subr.bf16.mxu0 0
    %1092 = vmatpush1.bf16.msra.mxu0 %v1069
    %1093 = vmatprep.subr.bf16.mxu0 0
    %1094 = vmatpush1.bf16.msra.mxu0 %v1070
    %1095 = vmatprep.subr.bf16.mxu0 0
    %1096 = vmatpush1.bf16.msra.mxu0 0
    %1097 = vmatprep.subr.bf16.mxu0 0
    %1098 = vmatpush1.bf16.msra.mxu0 0
    %1099 = vmatprep.subr.bf16.mxu0 0
    %1100 = vmatpush1.bf16.msra.mxu0 0
    %1101 = vmatprep.subr.bf16.mxu0 0
    %1102 = vmatpush1.bf16.msra.mxu0 0
    %1103 = vmatprep.subr.bf16.mxu0 0
    %1104 = vmatpush1.bf16.msra.mxu0 0
    %1105 = vmatprep.subr.bf16.mxu0 0
    %1106 = vmatpush1.bf16.msra.mxu0 0
    %1107 = vmatprep.subr.bf16.mxu0 0
    %1108 = vmatpush1.bf16.msra.mxu0 0
    %1109 = vmatprep.subr.bf16.mxu0 0
    %1110 = vmatpush1.bf16.msra.mxu0 0
    %1111 = vmatprep.mubr.bf16.mxu0 0
    %1112 = vmatmul.mubr.bf16.gmra.mrb[0].mxu0 %v1013
    %v1113 = vpop.f32.mrb[0].mxu0
    %v1114 = vadd.f32 0.0, %v1113
    %v1115 = vpop.f32.mrb[0].mxu0
    %v1116 = vpop.f32.mrb[0].mxu0
    %v1117 = vadd.f32 0.0, %v1116
    %v1118 = vpop.f32.mrb[0].mxu0
    %1119 = vmatprep.mubr.bf16.mxu0 0
    %1120 = vmatmul.mubr.bf16.gmra.mrb[0].mxu0 %v1014
    %v1121 = vpop.f32.mrb[0].mxu0
    %v1122 = vadd.f32 0.0, %v1121
    %v1123 = vpop.f32.mrb[0].mxu0
    %v1124 = vpop.f32.mrb[0].mxu0
    %v1125 = vadd.f32 0.0, %v1124
    %v1126 = vpop.f32.mrb[0].mxu0
    %1127 = vdwg.mxu0
    %v1128 = vld [vmem:[#allocation12 + $0x1] sm:$0x1]
    %v1129 = vld [vmem:[#allocation14 + $0x1] sm:$0x1]
    %v1130 = vlaneseq
    %v1131 = vshrl.u32 %v1130, 7
    %v1132 = vsub.s32 0, %v1131
    %v1133 = vrot.slane %v1128, %v1132
    %v1134 = vmul.f32 %v1114, %v1133
    %v1135 = vmul.f32 %v1117, %v1133
    %v1136 = vmul.f32 %v1122, %v1133
    %v1137 = vmul.f32 %v1125, %v1133
    %v1138 = vlaneseq
    %v1139 = vshrl.u32 %v1138, 7
    %v1140 = vsub.s32 0, %v1139
    %v1141 = vrot.slane %v1129, %v1140
    %v1142 = vadd.f32 %v1134, %v1141
    %v1143 = vadd.f32 %v1135, %v1141
    %v1144 = vadd.f32 %v1136, %v1141
    %v1145 = vadd.f32 %v1137, %v1141
    %v1146 = vmax.f32 %v1142, 0.0
    %v1147 = vmax.f32 %v1143, 0.0
    %v1148 = vmax.f32 %v1144, 0.0
    %v1149 = vmax.f32 %v1145, 0.0
    %1150 = vst [vmem:[#allocation2] sm:$0xff] %v1146
    %1151 = vst [vmem:[#allocation2 + $0x8] sm:$0xff] %v1147
    %1152 = vst [vmem:[#allocation2 + $0x10] sm:$0xff] %v1148
    %1153 = vst [vmem:[#allocation2 + $0x18] sm:$0xff] %v1149
    %1154 = vst [vmem:[#allocation3] sm:$0x1] 0.0
    %1155 = vst [vmem:[#allocation3 + $0x11] sm:$0x1] 0.0
    %v1156 = vld [vmem:[#allocation2] sm:$0xff]
    %v1157 = vld [vmem:[#allocation2 + $0x8] sm:$0xff]
    %1158 = vst [vmem:[#allocation3 + $0x1] sm:$0xff] %v1156
    %1159 = vst [vmem:[#allocation3 + $0x9] sm:$0xff] %v1157
    %1160 = vst [vmem:[#allocation3 + $0x12] sm:$0x1] 0.0
    %1161 = vst [vmem:[#allocation3 + $0x23] sm:$0x1] 0.0
    %v1162 = vld [vmem:[#allocation2 + $0x10] sm:$0xff]
    %v1163 = vld [vmem:[#allocation2 + $0x18] sm:$0xff]
    %1164 = vst [vmem:[#allocation3 + $0x13] sm:$0xff] %v1162
    %1165 = vst [vmem:[#allocation3 + $0x1b] sm:$0xff] %v1163
    %v1166 = vld [vmem:[#allocation3] ss:$2 sm:$0xff]
    %v1167 = vpack.c.bf16 %v1166, %v1166
    %s1168 = scalar_lea.vmem [#allocation9], 192
    %v1169 = vld [vmem:[%s1168] sm:$0xf]
    %v1170 = vld [vmem:[%s1168 + $0x4] sm:$0xf]
    %v1171 = vld [vmem:[%s1168 + $0x8] sm:$0xf]
    %v1172 = vld [vmem:[%s1168 + $0xc] sm:$0xf]
    %v1173 = vld [vmem:[%s1168 + $0x10] sm:$0xf]
    %v1174 = vld [vmem:[%s1168 + $0x14] sm:$0xf]
    %v1175 = vld [vmem:[%s1168 + $0x18] sm:$0xf]
    %v1176 = vld [vmem:[%s1168 + $0x1c] sm:$0xf]
    %v1177 = vld [vmem:[%s1168 + $0x20] sm:$0xf]
    %v1178 = vld [vmem:[%s1168 + $0x24] sm:$0xf]
    %v1179 = vld [vmem:[%s1168 + $0x28] sm:$0xf]
    %v1180 = vld [vmem:[%s1168 + $0x2c] sm:$0xf]
    %v1181 = vld [vmem:[%s1168 + $0x30] sm:$0xf]
    %v1182 = vld [vmem:[%s1168 + $0x34] sm:$0xf]
    %v1183 = vld [vmem:[%s1168 + $0x38] sm:$0xf]
    %v1184 = vld [vmem:[%s1168 + $0x3c] sm:$0xf]
    %s1185 = scalar_lea.vmem [#allocation3], 1
    %v1186 = vld [vmem:[%s1185] ss:$2 sm:$0xff]
    %v1187 = vpack.c.bf16 %v1186, %v1186
    %s1188 = scalar_lea.vmem [#allocation9], 256
    %v1189 = vld [vmem:[%s1188] sm:$0xf]
    %v1190 = vld [vmem:[%s1188 + $0x4] sm:$0xf]
    %v1191 = vld [vmem:[%s1188 + $0x8] sm:$0xf]
    %v1192 = vld [vmem:[%s1188 + $0xc] sm:$0xf]
    %v1193 = vld [vmem:[%s1188 + $0x10] sm:$0xf]
    %v1194 = vld [vmem:[%s1188 + $0x14] sm:$0xf]
    %v1195 = vld [vmem:[%s1188 + $0x18] sm:$0xf]
    %v1196 = vld [vmem:[%s1188 + $0x1c] sm:$0xf]
    %v1197 = vld [vmem:[%s1188 + $0x20] sm:$0xf]
    %v1198 = vld [vmem:[%s1188 + $0x24] sm:$0xf]
    %v1199 = vld [vmem:[%s1188 + $0x28] sm:$0xf]
    %v1200 = vld [vmem:[%s1188 + $0x2c] sm:$0xf]
    %v1201 = vld [vmem:[%s1188 + $0x30] sm:$0xf]
    %v1202 = vld [vmem:[%s1188 + $0x34] sm:$0xf]
    %v1203 = vld [vmem:[%s1188 + $0x38] sm:$0xf]
    %v1204 = vld [vmem:[%s1188 + $0x3c] sm:$0xf]
    %v1221 = vunpack.c.l.b16 %v1189
    %v1222 = vunpack.c.l.b16 %v1190
    %v1223 = vunpack.c.l.b16 %v1191
    %v1224 = vunpack.c.l.b16 %v1192
    %v1225 = vunpack.c.l.b16 %v1193
    %v1226 = vunpack.c.l.b16 %v1194
    %v1227 = vunpack.c.l.b16 %v1195
    %v1228 = vunpack.c.l.b16 %v1196
    %v1229 = vunpack.c.l.b16 %v1197
    %v1230 = vunpack.c.l.b16 %v1198
    %v1231 = vunpack.c.l.b16 %v1199
    %v1232 = vunpack.c.l.b16 %v1200
    %v1233 = vunpack.c.l.b16 %v1201
    %v1234 = vunpack.c.l.b16 %v1202
    %v1235 = vunpack.c.l.b16 %v1203
    %v1236 = vunpack.c.l.b16 %v1204
    %v1237 = vpack.c.b16 %v1222, %v1221
    %v1238 = vpack.c.b16 %v1224, %v1223
    %v1239 = vpack.c.b16 %v1226, %v1225
    %v1240 = vpack.c.b16 %v1228, %v1227
    %v1241 = vpack.c.b16 %v1230, %v1229
    %v1242 = vpack.c.b16 %v1232, %v1231
    %v1243 = vpack.c.b16 %v1234, %v1233
    %v1244 = vpack.c.b16 %v1236, %v1235
    %1253 = vmatprep.subr.bf16.mxu0 0
    %1254 = vmatpush1.bf16.msra.mxu0 %v1237
    %1255 = vmatprep.subr.bf16.mxu0 0
    %1256 = vmatpush1.bf16.msra.mxu0 %v1238
    %1257 = vmatprep.subr.bf16.mxu0 0
    %1258 = vmatpush1.bf16.msra.mxu0 %v1239
    %1259 = vmatprep.subr.bf16.mxu0 0
    %1260 = vmatpush1.bf16.msra.mxu0 %v1240
    %1261 = vmatprep.subr.bf16.mxu0 0
    %1262 = vmatpush1.bf16.msra.mxu0 %v1241
    %1263 = vmatprep.subr.bf16.mxu0 0
    %1264 = vmatpush1.bf16.msra.mxu0 %v1242
    %1265 = vmatprep.subr.bf16.mxu0 0
    %1266 = vmatpush1.bf16.msra.mxu0 %v1243
    %1267 = vmatprep.subr.bf16.mxu0 0
    %1268 = vmatpush1.bf16.msra.mxu0 %v1244
    %1269 = vmatprep.subr.bf16.mxu0 0
    %1270 = vmatpush1.bf16.msra.mxu0 0
    %1271 = vmatprep.subr.bf16.mxu0 0
    %1272 = vmatpush1.bf16.msra.mxu0 0
    %1273 = vmatprep.subr.bf16.mxu0 0
    %1274 = vmatpush1.bf16.msra.mxu0 0
    %1275 = vmatprep.subr.bf16.mxu0 0
    %1276 = vmatpush1.bf16.msra.mxu0 0
    %1277 = vmatprep.subr.bf16.mxu0 0
    %1278 = vmatpush1.bf16.msra.mxu0 0
    %1279 = vmatprep.subr.bf16.mxu0 0
    %1280 = vmatpush1.bf16.msra.mxu0 0
    %1281 = vmatprep.subr.bf16.mxu0 0
    %1282 = vmatpush1.bf16.msra.mxu0 0
    %1283 = vmatprep.subr.bf16.mxu0 0
    %1284 = vmatpush1.bf16.msra.mxu0 0
    %1285 = vmatprep.mubr.bf16.mxu0 0
    %1286 = vmatmul.mubr.bf16.gmra.mrb[0].mxu0 %v1187
    %v1287 = vpop.f32.mrb[0].mxu0
    %v1288 = vadd.f32 0.0, %v1287
    %v1289 = vpop.f32.mrb[0].mxu0
    %v1290 = vpop.f32.mrb[0].mxu0
    %v1291 = vpop.f32.mrb[0].mxu0
    %1292 = vdwg.mxu0
    %v1309 = vunpack.c.l.b16 %v1169
    %v1310 = vunpack.c.l.b16 %v1170
    %v1311 = vunpack.c.l.b16 %v1171
    %v1312 = vunpack.c.l.b16 %v1172
    %v1313 = vunpack.c.l.b16 %v1173
    %v1314 = vunpack.c.l.b16 %v1174
    %v1315 = vunpack.c.l.b16 %v1175
    %v1316 = vunpack.c.l.b16 %v1176
    %v1317 = vunpack.c.l.b16 %v1177
    %v1318 = vunpack.c.l.b16 %v1178
    %v1319 = vunpack.c.l.b16 %v1179
    %v1320 = vunpack.c.l.b16 %v1180
    %v1321 = vunpack.c.l.b16 %v1181
    %v1322 = vunpack.c.l.b16 %v1182
    %v1323 = vunpack.c.l.b16 %v1183
    %v1324 = vunpack.c.l.b16 %v1184
    %v1325 = vpack.c.b16 %v1310, %v1309
    %v1326 = vpack.c.b16 %v1312, %v1311
    %v1327 = vpack.c.b16 %v1314, %v1313
    %v1328 = vpack.c.b16 %v1316, %v1315
    %v1329 = vpack.c.b16 %v1318, %v1317
    %v1330 = vpack.c.b16 %v1320, %v1319
    %v1331 = vpack.c.b16 %v1322, %v1321
    %v1332 = vpack.c.b16 %v1324, %v1323
    %1341 = vmatprep.subr.bf16.mxu0 0
    %1342 = vmatpush1.bf16.msra.mxu0 %v1325
    %1343 = vmatprep.subr.bf16.mxu0 0
    %1344 = vmatpush1.bf16.msra.mxu0 %v1326
    %1345 = vmatprep.subr.bf16.mxu0 0
    %1346 = vmatpush1.bf16.msra.mxu0 %v1327
    %1347 = vmatprep.subr.bf16.mxu0 0
    %1348 = vmatpush1.bf16.msra.mxu0 %v1328
    %1349 = vmatprep.subr.bf16.mxu0 0
    %1350 = vmatpush1.bf16.msra.mxu0 %v1329
    %1351 = vmatprep.subr.bf16.mxu0 0
    %1352 = vmatpush1.bf16.msra.mxu0 %v1330
    %1353 = vmatprep.subr.bf16.mxu0 0
    %1354 = vmatpush1.bf16.msra.mxu0 %v1331
    %1355 = vmatprep.subr.bf16.mxu0 0
    %1356 = vmatpush1.bf16.msra.mxu0 %v1332
    %1357 = vmatprep.subr.bf16.mxu0 0
    %1358 = vmatpush1.bf16.msra.mxu0 0
    %1359 = vmatprep.subr.bf16.mxu0 0
    %1360 = vmatpush1.bf16.msra.mxu0 0
    %1361 = vmatprep.subr.bf16.mxu0 0
    %1362 = vmatpush1.bf16.msra.mxu0 0
    %1363 = vmatprep.subr.bf16.mxu0 0
    %1364 = vmatpush1.bf16.msra.mxu0 0
    %1365 = vmatprep.subr.bf16.mxu0 0
    %1366 = vmatpush1.bf16.msra.mxu0 0
    %1367 = vmatprep.subr.bf16.mxu0 0
    %1368 = vmatpush1.bf16.msra.mxu0 0
    %1369 = vmatprep.subr.bf16.mxu0 0
    %1370 = vmatpush1.bf16.msra.mxu0 0
    %1371 = vmatprep.subr.bf16.mxu0 0
    %1372 = vmatpush1.bf16.msra.mxu0 0
    %1373 = vmatprep.mubr.bf16.mxu0 0
    %1374 = vmatmul.mubr.bf16.gmra.mrb[0].mxu0 %v1167
    %v1375 = vpop.f32.mrb[0].mxu0
    %v1376 = vadd.f32 %v1288, %v1375
    %v1377 = vpop.f32.mrb[0].mxu0
    %v1378 = vpop.f32.mrb[0].mxu0
    %v1379 = vpop.f32.mrb[0].mxu0
    %1380 = vdwg.mxu0
    %s1381 = scalar_lea.vmem [#allocation3], 2
    %v1382 = vld [vmem:[%s1381] ss:$2 sm:$0xff]
    %v1383 = vpack.c.bf16 %v1382, %v1382
    %s1384 = scalar_lea.vmem [#allocation9], 320
    %v1385 = vld [vmem:[%s1384] sm:$0xf]
    %v1386 = vld [vmem:[%s1384 + $0x4] sm:$0xf]
    %v1387 = vld [vmem:[%s1384 + $0x8] sm:$0xf]
    %v1388 = vld [vmem:[%s1384 + $0xc] sm:$0xf]
    %v1389 = vld [vmem:[%s1384 + $0x10] sm:$0xf]
    %v1390 = vld [vmem:[%s1384 + $0x14] sm:$0xf]
    %v1391 = vld [vmem:[%s1384 + $0x18] sm:$0xf]
    %v1392 = vld [vmem:[%s1384 + $0x1c] sm:$0xf]
    %v1393 = vld [vmem:[%s1384 + $0x20] sm:$0xf]
    %v1394 = vld [vmem:[%s1384 + $0x24] sm:$0xf]
    %v1395 = vld [vmem:[%s1384 + $0x28] sm:$0xf]
    %v1396 = vld [vmem:[%s1384 + $0x2c] sm:$0xf]
    %v1397 = vld [vmem:[%s1384 + $0x30] sm:$0xf]
    %v1398 = vld [vmem:[%s1384 + $0x34] sm:$0xf]
    %v1399 = vld [vmem:[%s1384 + $0x38] sm:$0xf]
    %v1400 = vld [vmem:[%s1384 + $0x3c] sm:$0xf]
    %v1417 = vunpack.c.l.b16 %v1385
    %v1418 = vunpack.c.l.b16 %v1386
    %v1419 = vunpack.c.l.b16 %v1387
    %v1420 = vunpack.c.l.b16 %v1388
    %v1421 = vunpack.c.l.b16 %v1389
    %v1422 = vunpack.c.l.b16 %v1390
    %v1423 = vunpack.c.l.b16 %v1391
    %v1424 = vunpack.c.l.b16 %v1392
    %v1425 = vunpack.c.l.b16 %v1393
    %v1426 = vunpack.c.l.b16 %v1394
    %v1427 = vunpack.c.l.b16 %v1395
    %v1428 = vunpack.c.l.b16 %v1396
    %v1429 = vunpack.c.l.b16 %v1397
    %v1430 = vunpack.c.l.b16 %v1398
    %v1431 = vunpack.c.l.b16 %v1399
    %v1432 = vunpack.c.l.b16 %v1400
    %v1433 = vpack.c.b16 %v1418, %v1417
    %v1434 = vpack.c.b16 %v1420, %v1419
    %v1435 = vpack.c.b16 %v1422, %v1421
    %v1436 = vpack.c.b16 %v1424, %v1423
    %v1437 = vpack.c.b16 %v1426, %v1425
    %v1438 = vpack.c.b16 %v1428, %v1427
    %v1439 = vpack.c.b16 %v1430, %v1429
    %v1440 = vpack.c.b16 %v1432, %v1431
    %1449 = vmatprep.subr.bf16.mxu0 0
    %1450 = vmatpush1.bf16.msra.mxu0 %v1433
    %1451 = vmatprep.subr.bf16.mxu0 0
    %1452 = vmatpush1.bf16.msra.mxu0 %v1434
    %1453 = vmatprep.subr.bf16.mxu0 0
    %1454 = vmatpush1.bf16.msra.mxu0 %v1435
    %1455 = vmatprep.subr.bf16.mxu0 0
    %1456 = vmatpush1.bf16.msra.mxu0 %v1436
    %1457 = vmatprep.subr.bf16.mxu0 0
    %1458 = vmatpush1.bf16.msra.mxu0 %v1437
    %1459 = vmatprep.subr.bf16.mxu0 0
    %1460 = vmatpush1.bf16.msra.mxu0 %v1438
    %1461 = vmatprep.subr.bf16.mxu0 0
    %1462 = vmatpush1.bf16.msra.mxu0 %v1439
    %1463 = vmatprep.subr.bf16.mxu0 0
    %1464 = vmatpush1.bf16.msra.mxu0 %v1440
    %1465 = vmatprep.subr.bf16.mxu0 0
    %1466 = vmatpush1.bf16.msra.mxu0 0
    %1467 = vmatprep.subr.bf16.mxu0 0
    %1468 = vmatpush1.bf16.msra.mxu0 0
    %1469 = vmatprep.subr.bf16.mxu0 0
    %1470 = vmatpush1.bf16.msra.mxu0 0
    %1471 = vmatprep.subr.bf16.mxu0 0
    %1472 = vmatpush1.bf16.msra.mxu0 0
    %1473 = vmatprep.subr.bf16.mxu0 0
    %1474 = vmatpush1.bf16.msra.mxu0 0
    %1475 = vmatprep.subr.bf16.mxu0 0
    %1476 = vmatpush1.bf16.msra.mxu0 0
    %1477 = vmatprep.subr.bf16.mxu0 0
    %1478 = vmatpush1.bf16.msra.mxu0 0
    %1479 = vmatprep.subr.bf16.mxu0 0
    %1480 = vmatpush1.bf16.msra.mxu0 0
    %1481 = vmatprep.mubr.bf16.mxu0 0
    %1482 = vmatmul.mubr.bf16.gmra.mrb[0].mxu0 %v1383
    %v1483 = vpop.f32.mrb[0].mxu0
    %v1484 = vadd.f32 0.0, %v1483
    %v1485 = vpop.f32.mrb[0].mxu0
    %v1486 = vpop.f32.mrb[0].mxu0
    %v1487 = vpop.f32.mrb[0].mxu0
    %1488 = vdwg.mxu0
    %v1489 = vadd.f32 %v1376, %v1484
    %1490 = vst [vmem:[#allocation4] sm:$0xff] %v1489
    %s1491 = scalar_lea.vmem [#allocation3], 18
    %v1492 = vld [vmem:[%s1491] ss:$2 sm:$0xff]
    %v1493 = vpack.c.bf16 %v1492, %v1492
    %v1494 = vld [vmem:[%s1168] sm:$0xf]
    %v1495 = vld [vmem:[%s1168 + $0x4] sm:$0xf]
    %v1496 = vld [vmem:[%s1168 + $0x8] sm:$0xf]
    %v1497 = vld [vmem:[%s1168 + $0xc] sm:$0xf]
    %v1498 = vld [vmem:[%s1168 + $0x10] sm:$0xf]
    %v1499 = vld [vmem:[%s1168 + $0x14] sm:$0xf]
    %v1500 = vld [vmem:[%s1168 + $0x18] sm:$0xf]
    %v1501 = vld [vmem:[%s1168 + $0x1c] sm:$0xf]
    %v1502 = vld [vmem:[%s1168 + $0x20] sm:$0xf]
    %v1503 = vld [vmem:[%s1168 + $0x24] sm:$0xf]
    %v1504 = vld [vmem:[%s1168 + $0x28] sm:$0xf]
    %v1505 = vld [vmem:[%s1168 + $0x2c] sm:$0xf]
    %v1506 = vld [vmem:[%s1168 + $0x30] sm:$0xf]
    %v1507 = vld [vmem:[%s1168 + $0x34] sm:$0xf]
    %v1508 = vld [vmem:[%s1168 + $0x38] sm:$0xf]
    %v1509 = vld [vmem:[%s1168 + $0x3c] sm:$0xf]
    %s1510 = scalar_lea.vmem [#allocation3], 19
    %v1511 = vld [vmem:[%s1510] ss:$2 sm:$0xff]
    %v1512 = vpack.c.bf16 %v1511, %v1511
    %v1513 = vld [vmem:[%s1188] sm:$0xf]
    %v1514 = vld [vmem:[%s1188 + $0x4] sm:$0xf]
    %v1515 = vld [vmem:[%s1188 + $0x8] sm:$0xf]
    %v1516 = vld [vmem:[%s1188 + $0xc] sm:$0xf]
    %v1517 = vld [vmem:[%s1188 + $0x10] sm:$0xf]
    %v1518 = vld [vmem:[%s1188 + $0x14] sm:$0xf]
    %v1519 = vld [vmem:[%s1188 + $0x18] sm:$0xf]
    %v1520 = vld [vmem:[%s1188 + $0x1c] sm:$0xf]
    %v1521 = vld [vmem:[%s1188 + $0x20] sm:$0xf]
    %v1522 = vld [vmem:[%s1188 + $0x24] sm:$0xf]
    %v1523 = vld [vmem:[%s1188 + $0x28] sm:$0xf]
    %v1524 = vld [vmem:[%s1188 + $0x2c] sm:$0xf]
    %v1525 = vld [vmem:[%s1188 + $0x30] sm:$0xf]
    %v1526 = vld [vmem:[%s1188 + $0x34] sm:$0xf]
    %v1527 = vld [vmem:[%s1188 + $0x38] sm:$0xf]
    %v1528 = vld [vmem:[%s1188 + $0x3c] sm:$0xf]
    %v1545 = vunpack.c.l.b16 %v1513
    %v1546 = vunpack.c.l.b16 %v1514
    %v1547 = vunpack.c.l.b16 %v1515
    %v1548 = vunpack.c.l.b16 %v1516
    %v1549 = vunpack.c.l.b16 %v1517
    %v1550 = vunpack.c.l.b16 %v1518
    %v1551 = vunpack.c.l.b16 %v1519
    %v1552 = vunpack.c.l.b16 %v1520
    %v1553 = vunpack.c.l.b16 %v1521
    %v1554 = vunpack.c.l.b16 %v1522
    %v1555 = vunpack.c.l.b16 %v1523
    %v1556 = vunpack.c.l.b16 %v1524
    %v1557 = vunpack.c.l.b16 %v1525
    %v1558 = vunpack.c.l.b16 %v1526
    %v1559 = vunpack.c.l.b16 %v1527
    %v1560 = vunpack.c.l.b16 %v1528
    %v1561 = vpack.c.b16 %v1546, %v1545
    %v1562 = vpack.c.b16 %v1548, %v1547
    %v1563 = vpack.c.b16 %v1550, %v1549
    %v1564 = vpack.c.b16 %v1552, %v1551
    %v1565 = vpack.c.b16 %v1554, %v1553
    %v1566 = vpack.c.b16 %v1556, %v1555
    %v1567 = vpack.c.b16 %v1558, %v1557
    %v1568 = vpack.c.b16 %v1560, %v1559
    %1577 = vmatprep.subr.bf16.mxu0 0
    %1578 = vmatpush1.bf16.msra.mxu0 %v1561
    %1579 = vmatprep.subr.bf16.mxu0 0
    %1580 = vmatpush1.bf16.msra.mxu0 %v1562
    %1581 = vmatprep.subr.bf16.mxu0 0
    %1582 = vmatpush1.bf16.msra.mxu0 %v1563
    %1583 = vmatprep.subr.bf16.mxu0 0
    %1584 = vmatpush1.bf16.msra.mxu0 %v1564
    %1585 = vmatprep.subr.bf16.mxu0 0
    %1586 = vmatpush1.bf16.msra.mxu0 %v1565
    %1587 = vmatprep.subr.bf16.mxu0 0
    %1588 = vmatpush1.bf16.msra.mxu0 %v1566
    %1589 = vmatprep.subr.bf16.mxu0 0
    %1590 = vmatpush1.bf16.msra.mxu0 %v1567
    %1591 = vmatprep.subr.bf16.mxu0 0
    %1592 = vmatpush1.bf16.msra.mxu0 %v1568
    %1593 = vmatprep.subr.bf16.mxu0 0
    %1594 = vmatpush1.bf16.msra.mxu0 0
    %1595 = vmatprep.subr.bf16.mxu0 0
    %1596 = vmatpush1.bf16.msra.mxu0 0
    %1597 = vmatprep.subr.bf16.mxu0 0
    %1598 = vmatpush1.bf16.msra.mxu0 0
    %1599 = vmatprep.subr.bf16.mxu0 0
    %1600 = vmatpush1.bf16.msra.mxu0 0
    %1601 = vmatprep.subr.bf16.mxu0 0
    %1602 = vmatpush1.bf16.msra.mxu0 0
    %1603 = vmatprep.subr.bf16.mxu0 0
    %1604 = vmatpush1.bf16.msra.mxu0 0
    %1605 = vmatprep.subr.bf16.mxu0 0
    %1606 = vmatpush1.bf16.msra.mxu0 0
    %1607 = vmatprep.subr.bf16.mxu0 0
    %1608 = vmatpush1.bf16.msra.mxu0 0
    %1609 = vmatprep.mubr.bf16.mxu0 0
    %1610 = vmatmul.mubr.bf16.gmra.mrb[0].mxu0 %v1512
    %v1611 = vpop.f32.mrb[0].mxu0
    %v1612 = vadd.f32 0.0, %v1611
    %v1613 = vpop.f32.mrb[0].mxu0
    %v1614 = vpop.f32.mrb[0].mxu0
    %v1615 = vpop.f32.mrb[0].mxu0
    %1616 = vdwg.mxu0
    %v1633 = vunpack.c.l.b16 %v1494
    %v1634 = vunpack.c.l.b16 %v1495
    %v1635 = vunpack.c.l.b16 %v1496
    %v1636 = vunpack.c.l.b16 %v1497
    %v1637 = vunpack.c.l.b16 %v1498
    %v1638 = vunpack.c.l.b16 %v1499
    %v1639 = vunpack.c.l.b16 %v1500
    %v1640 = vunpack.c.l.b16 %v1501
    %v1641 = vunpack.c.l.b16 %v1502
    %v1642 = vunpack.c.l.b16 %v1503
    %v1643 = vunpack.c.l.b16 %v1504
    %v1644 = vunpack.c.l.b16 %v1505
    %v1645 = vunpack.c.l.b16 %v1506
    %v1646 = vunpack.c.l.b16 %v1507
    %v1647 = vunpack.c.l.b16 %v1508
    %v1648 = vunpack.c.l.b16 %v1509
    %v1649 = vpack.c.b16 %v1634, %v1633
    %v1650 = vpack.c.b16 %v1636, %v1635
    %v1651 = vpack.c.b16 %v1638, %v1637
    %v1652 = vpack.c.b16 %v1640, %v1639
    %v1653 = vpack.c.b16 %v1642, %v1641
    %v1654 = vpack.c.b16 %v1644, %v1643
    %v1655 = vpack.c.b16 %v1646, %v1645
    %v1656 = vpack.c.b16 %v1648, %v1647
    %1665 = vmatprep.subr.bf16.mxu0 0
    %1666 = vmatpush1.bf16.msra.mxu0 %v1649
    %1667 = vmatprep.subr.bf16.mxu0 0
    %1668 = vmatpush1.bf16.msra.mxu0 %v1650
    %1669 = vmatprep.subr.bf16.mxu0 0
    %1670 = vmatpush1.bf16.msra.mxu0 %v1651
    %1671 = vmatprep.subr.bf16.mxu0 0
    %1672 = vmatpush1.bf16.msra.mxu0 %v1652
    %1673 = vmatprep.subr.bf16.mxu0 0
    %1674 = vmatpush1.bf16.msra.mxu0 %v1653
    %1675 = vmatprep.subr.bf16.mxu0 0
    %1676 = vmatpush1.bf16.msra.mxu0 %v1654
    %1677 = vmatprep.subr.bf16.mxu0 0
    %1678 = vmatpush1.bf16.msra.mxu0 %v1655
    %1679 = vmatprep.subr.bf16.mxu0 0
    %1680 = vmatpush1.bf16.msra.mxu0 %v1656
    %1681 = vmatprep.subr.bf16.mxu0 0
    %1682 = vmatpush1.bf16.msra.mxu0 0
    %1683 = vmatprep.subr.bf16.mxu0 0
    %1684 = vmatpush1.bf16.msra.mxu0 0
    %1685 = vmatprep.subr.bf16.mxu0 0
    %1686 = vmatpush1.bf16.msra.mxu0 0
    %1687 = vmatprep.subr.bf16.mxu0 0
    %1688 = vmatpush1.bf16.msra.mxu0 0
    %1689 = vmatprep.subr.bf16.mxu0 0
    %1690 = vmatpush1.bf16.msra.mxu0 0
    %1691 = vmatprep.subr.bf16.mxu0 0
    %1692 = vmatpush1.bf16.msra.mxu0 0
    %1693 = vmatprep.subr.bf16.mxu0 0
    %1694 = vmatpush1.bf16.msra.mxu0 0
    %1695 = vmatprep.subr.bf16.mxu0 0
    %1696 = vmatpush1.bf16.msra.mxu0 0
    %1697 = vmatprep.mubr.bf16.mxu0 0
    %1698 = vmatmul.mubr.bf16.gmra.mrb[0].mxu0 %v1493
    %v1699 = vpop.f32.mrb[0].mxu0
    %v1700 = vadd.f32 %v1612, %v1699
    %v1701 = vpop.f32.mrb[0].mxu0
    %v1702 = vpop.f32.mrb[0].mxu0
    %v1703 = vpop.f32.mrb[0].mxu0
    %1704 = vdwg.mxu0
    %s1705 = scalar_lea.vmem [#allocation3], 20
    %v1706 = vld [vmem:[%s1705] ss:$2 sm:$0xff]
    %v1707 = vpack.c.bf16 %v1706, %v1706
    %v1708 = vld [vmem:[%s1384] sm:$0xf]
    %v1709 = vld [vmem:[%s1384 + $0x4] sm:$0xf]
    %v1710 = vld [vmem:[%s1384 + $0x8] sm:$0xf]
    %v1711 = vld [vmem:[%s1384 + $0xc] sm:$0xf]
    %v1712 = vld [vmem:[%s1384 + $0x10] sm:$0xf]
    %v1713 = vld [vmem:[%s1384 + $0x14] sm:$0xf]
    %v1714 = vld [vmem:[%s1384 + $0x18] sm:$0xf]
    %v1715 = vld [vmem:[%s1384 + $0x1c] sm:$0xf]
    %v1716 = vld [vmem:[%s1384 + $0x20] sm:$0xf]
    %v1717 = vld [vmem:[%s1384 + $0x24] sm:$0xf]
    %v1718 = vld [vmem:[%s1384 + $0x28] sm:$0xf]
    %v1719 = vld [vmem:[%s1384 + $0x2c] sm:$0xf]
    %v1720 = vld [vmem:[%s1384 + $0x30] sm:$0xf]
    %v1721 = vld [vmem:[%s1384 + $0x34] sm:$0xf]
    %v1722 = vld [vmem:[%s1384 + $0x38] sm:$0xf]
    %v1723 = vld [vmem:[%s1384 + $0x3c] sm:$0xf]
    %v1740 = vunpack.c.l.b16 %v1708
    %v1741 = vunpack.c.l.b16 %v1709
    %v1742 = vunpack.c.l.b16 %v1710
    %v1743 = vunpack.c.l.b16 %v1711
    %v1744 = vunpack.c.l.b16 %v1712
    %v1745 = vunpack.c.l.b16 %v1713
    %v1746 = vunpack.c.l.b16 %v1714
    %v1747 = vunpack.c.l.b16 %v1715
    %v1748 = vunpack.c.l.b16 %v1716
    %v1749 = vunpack.c.l.b16 %v1717
    %v1750 = vunpack.c.l.b16 %v1718
    %v1751 = vunpack.c.l.b16 %v1719
    %v1752 = vunpack.c.l.b16 %v1720
    %v1753 = vunpack.c.l.b16 %v1721
    %v1754 = vunpack.c.l.b16 %v1722
    %v1755 = vunpack.c.l.b16 %v1723
    %v1756 = vpack.c.b16 %v1741, %v1740
    %v1757 = vpack.c.b16 %v1743, %v1742
    %v1758 = vpack.c.b16 %v1745, %v1744
    %v1759 = vpack.c.b16 %v1747, %v1746
    %v1760 = vpack.c.b16 %v1749, %v1748
    %v1761 = vpack.c.b16 %v1751, %v1750
    %v1762 = vpack.c.b16 %v1753, %v1752
    %v1763 = vpack.c.b16 %v1755, %v1754
    %1772 = vmatprep.subr.bf16.mxu0 0
    %1773 = vmatpush1.bf16.msra.mxu0 %v1756
    %1774 = vmatprep.subr.bf16.mxu0 0
    %1775 = vmatpush1.bf16.msra.mxu0 %v1757
    %1776 = vmatprep.subr.bf16.mxu0 0
    %1777 = vmatpush1.bf16.msra.mxu0 %v1758
    %1778 = vmatprep.subr.bf16.mxu0 0
    %1779 = vmatpush1.bf16.msra.mxu0 %v1759
    %1780 = vmatprep.subr.bf16.mxu0 0
    %1781 = vmatpush1.bf16.msra.mxu0 %v1760
    %1782 = vmatprep.subr.bf16.mxu0 0
    %1783 = vmatpush1.bf16.msra.mxu0 %v1761
    %1784 = vmatprep.subr.bf16.mxu0 0
    %1785 = vmatpush1.bf16.msra.mxu0 %v1762
    %1786 = vmatprep.subr.bf16.mxu0 0
    %1787 = vmatpush1.bf16.msra.mxu0 %v1763
    %1788 = vmatprep.subr.bf16.mxu0 0
    %1789 = vmatpush1.bf16.msra.mxu0 0
    %1790 = vmatprep.subr.bf16.mxu0 0
    %1791 = vmatpush1.bf16.msra.mxu0 0
    %1792 = vmatprep.subr.bf16.mxu0 0
    %1793 = vmatpush1.bf16.msra.mxu0 0
    %1794 = vmatprep.subr.bf16.mxu0 0
    %1795 = vmatpush1.bf16.msra.mxu0 0
    %1796 = vmatprep.subr.bf16.mxu0 0
    %1797 = vmatpush1.bf16.msra.mxu0 0
    %1798 = vmatprep.subr.bf16.mxu0 0
    %1799 = vmatpush1.bf16.msra.mxu0 0
    %1800 = vmatprep.subr.bf16.mxu0 0
    %1801 = vmatpush1.bf16.msra.mxu0 0
    %1802 = vmatprep.subr.bf16.mxu0 0
    %1803 = vmatpush1.bf16.msra.mxu0 0
    %1804 = vmatprep.mubr.bf16.mxu0 0
    %1805 = vmatmul.mubr.bf16.gmra.mrb[0].mxu0 %v1707
    %v1806 = vpop.f32.mrb[0].mxu0
    %v1807 = vadd.f32 0.0, %v1806
    %v1808 = vpop.f32.mrb[0].mxu0
    %v1809 = vpop.f32.mrb[0].mxu0
    %v1810 = vpop.f32.mrb[0].mxu0
    %1811 = vdwg.mxu0
    %v1812 = vadd.f32 %v1700, %v1807
    %1813 = vst [vmem:[#allocation4 + $0x8] sm:$0xff] %v1812
    %v1814 = vld [vmem:[#allocation4] sm:$0xff]
    %v1815 = vld [vmem:[#allocation4 + $0x8] sm:$0xff]
    %v1816 = vld [vmem:[#allocation12 + $0x2] sm:$0x1]
    %v1817 = vld [vmem:[#allocation14 + $0x2] sm:$0x1]
    %v1818 = vlaneseq
    %v1819 = vshrl.u32 %v1818, 7
    %v1820 = vsub.s32 0, %v1819
    %v1821 = vrot.slane %v1816, %v1820
    %v1822 = vmul.f32 %v1814, %v1821
    %v1823 = vmul.f32 %v1815, %v1821
    %v1824 = vlaneseq
    %v1825 = vshrl.u32 %v1824, 7
    %v1826 = vsub.s32 0, %v1825
    %v1827 = vrot.slane %v1817, %v1826
    %v1828 = vadd.f32 %v1822, %v1827
    %v1829 = vadd.f32 %v1823, %v1827
    %v1830 = vmax.f32 %v1828, 0.0
    %v1831 = vmax.f32 %v1829, 0.0
    %v1832 = vpack.c.bf16 %v1831, %v1830
    %s1833 = scalar_lea.vmem [#allocation11], 64
    %v1834 = vld [vmem:[%s1833] sm:$0xf]
    %v1835 = vld [vmem:[%s1833 + $0x4] sm:$0xf]
    %v1836 = vld [vmem:[%s1833 + $0x8] sm:$0xf]
    %v1837 = vld [vmem:[%s1833 + $0xc] sm:$0xf]
    %v1838 = vld [vmem:[%s1833 + $0x10] sm:$0xf]
    %v1839 = vld [vmem:[%s1833 + $0x14] sm:$0xf]
    %v1840 = vld [vmem:[%s1833 + $0x18] sm:$0xf]
    %v1841 = vld [vmem:[%s1833 + $0x1c] sm:$0xf]
    %v1842 = vld [vmem:[%s1833 + $0x20] sm:$0xf]
    %v1843 = vld [vmem:[%s1833 + $0x24] sm:$0xf]
    %v1844 = vld [vmem:[%s1833 + $0x28] sm:$0xf]
    %v1845 = vld [vmem:[%s1833 + $0x2c] sm:$0xf]
    %v1846 = vld [vmem:[%s1833 + $0x30] sm:$0xf]
    %v1847 = vld [vmem:[%s1833 + $0x34] sm:$0xf]
    %v1848 = vld [vmem:[%s1833 + $0x38] sm:$0xf]
    %v1849 = vld [vmem:[%s1833 + $0x3c] sm:$0xf]
    %v1850 = vld [vmem:[#allocation5] sm:$0xff]
    %v1851 = vld [vmem:[#allocation5 + $0x8] sm:$0xff]
    %v1868 = vunpack.c.l.b16 %v1834
    %v1869 = vunpack.c.l.b16 %v1835
    %v1870 = vunpack.c.l.b16 %v1836
    %v1871 = vunpack.c.l.b16 %v1837
    %v1872 = vunpack.c.l.b16 %v1838
    %v1873 = vunpack.c.l.b16 %v1839
    %v1874 = vunpack.c.l.b16 %v1840
    %v1875 = vunpack.c.l.b16 %v1841
    %v1876 = vunpack.c.l.b16 %v1842
    %v1877 = vunpack.c.l.b16 %v1843
    %v1878 = vunpack.c.l.b16 %v1844
    %v1879 = vunpack.c.l.b16 %v1845
    %v1880 = vunpack.c.l.b16 %v1846
    %v1881 = vunpack.c.l.b16 %v1847
    %v1882 = vunpack.c.l.b16 %v1848
    %v1883 = vunpack.c.l.b16 %v1849
    %v1884 = vpack.c.b16 %v1869, %v1868
    %v1885 = vpack.c.b16 %v1871, %v1870
    %v1886 = vpack.c.b16 %v1873, %v1872
    %v1887 = vpack.c.b16 %v1875, %v1874
    %v1888 = vpack.c.b16 %v1877, %v1876
    %v1889 = vpack.c.b16 %v1879, %v1878
    %v1890 = vpack.c.b16 %v1881, %v1880
    %v1891 = vpack.c.b16 %v1883, %v1882
    %1900 = vmatprep.subr.bf16.mxu0 0
    %1901 = vmatpush1.bf16.msra.mxu0 %v1884
    %1902 = vmatprep.subr.bf16.mxu0 0
    %1903 = vmatpush1.bf16.msra.mxu0 %v1885
    %1904 = vmatprep.subr.bf16.mxu0 0
    %1905 = vmatpush1.bf16.msra.mxu0 %v1886
    %1906 = vmatprep.subr.bf16.mxu0 0
    %1907 = vmatpush1.bf16.msra.mxu0 %v1887
    %1908 = vmatprep.subr.bf16.mxu0 0
    %1909 = vmatpush1.bf16.msra.mxu0 %v1888
    %1910 = vmatprep.subr.bf16.mxu0 0
    %1911 = vmatpush1.bf16.msra.mxu0 %v1889
    %1912 = vmatprep.subr.bf16.mxu0 0
    %1913 = vmatpush1.bf16.msra.mxu0 %v1890
    %1914 = vmatprep.subr.bf16.mxu0 0
    %1915 = vmatpush1.bf16.msra.mxu0 %v1891
    %1916 = vmatprep.subr.bf16.mxu0 0
    %1917 = vmatpush1.bf16.msra.mxu0 0
    %1918 = vmatprep.subr.bf16.mxu0 0
    %1919 = vmatpush1.bf16.msra.mxu0 0
    %1920 = vmatprep.subr.bf16.mxu0 0
    %1921 = vmatpush1.bf16.msra.mxu0 0
    %1922 = vmatprep.subr.bf16.mxu0 0
    %1923 = vmatpush1.bf16.msra.mxu0 0
    %1924 = vmatprep.subr.bf16.mxu0 0
    %1925 = vmatpush1.bf16.msra.mxu0 0
    %1926 = vmatprep.subr.bf16.mxu0 0
    %1927 = vmatpush1.bf16.msra.mxu0 0
    %1928 = vmatprep.subr.bf16.mxu0 0
    %1929 = vmatpush1.bf16.msra.mxu0 0
    %1930 = vmatprep.subr.bf16.mxu0 0
    %1931 = vmatpush1.bf16.msra.mxu0 0
    %1932 = vmatprep.mubr.bf16.mxu0 0
    %1933 = vmatmul.mubr.bf16.gmra.mrb[0].mxu0 %v1832
    %v1934 = vpop.f32.mrb[0].mxu0
    %v1935 = vadd.f32 %v1850, %v1934
    %v1936 = vpop.f32.mrb[0].mxu0
    %v1937 = vpop.f32.mrb[0].mxu0
    %v1938 = vadd.f32 %v1851, %v1937
    %v1939 = vpop.f32.mrb[0].mxu0
    %1940 = vdwg.mxu0
    %v1941 = vld [vmem:[#allocation12 + $0x3] sm:$0x1]
    %v1942 = vld [vmem:[#allocation14 + $0x3] sm:$0x1]
    %v1943 = vlaneseq
    %v1944 = vshrl.u32 %v1943, 7
    %v1945 = vsub.s32 0, %v1944
    %v1946 = vrot.slane %v1941, %v1945
    %v1947 = vmul.f32 %v1935, %v1946
    %v1948 = vmul.f32 %v1938, %v1946
    %v1949 = vlaneseq
    %v1950 = vshrl.u32 %v1949, 7
    %v1951 = vsub.s32 0, %v1950
    %v1952 = vrot.slane %v1942, %v1951
    %v1953 = vadd.f32 %v1947, %v1952
    %v1954 = vadd.f32 %v1948, %v1952
    %v1955 = vmax.f32 %v1953, 0.0
    %v1956 = vmax.f32 %v1954, 0.0
    %v1957 = vpack.c.bf16 %v1956, %v1955
    %s1958 = scalar_lea.vmem [#allocation11], 192
    %v1959 = vld [vmem:[%s1958] sm:$0xf]
    %v1960 = vld [vmem:[%s1958 + $0x4] sm:$0xf]
    %v1961 = vld [vmem:[%s1958 + $0x8] sm:$0xf]
    %v1962 = vld [vmem:[%s1958 + $0xc] sm:$0xf]
    %v1963 = vld [vmem:[%s1958 + $0x10] sm:$0xf]
    %v1964 = vld [vmem:[%s1958 + $0x14] sm:$0xf]
    %v1965 = vld [vmem:[%s1958 + $0x18] sm:$0xf]
    %v1966 = vld [vmem:[%s1958 + $0x1c] sm:$0xf]
    %v1967 = vld [vmem:[%s1958 + $0x20] sm:$0xf]
    %v1968 = vld [vmem:[%s1958 + $0x24] sm:$0xf]
    %v1969 = vld [vmem:[%s1958 + $0x28] sm:$0xf]
    %v1970 = vld [vmem:[%s1958 + $0x2c] sm:$0xf]
    %v1971 = vld [vmem:[%s1958 + $0x30] sm:$0xf]
    %v1972 = vld [vmem:[%s1958 + $0x34] sm:$0xf]
    %v1973 = vld [vmem:[%s1958 + $0x38] sm:$0xf]
    %v1974 = vld [vmem:[%s1958 + $0x3c] sm:$0xf]
    %v1991 = vunpack.c.l.b16 %v1959
    %v1992 = vunpack.c.l.b16 %v1960
    %v1993 = vunpack.c.l.b16 %v1961
    %v1994 = vunpack.c.l.b16 %v1962
    %v1995 = vunpack.c.l.b16 %v1963
    %v1996 = vunpack.c.l.b16 %v1964
    %v1997 = vunpack.c.l.b16 %v1965
    %v1998 = vunpack.c.l.b16 %v1966
    %v1999 = vunpack.c.l.b16 %v1967
    %v2000 = vunpack.c.l.b16 %v1968
    %v2001 = vunpack.c.l.b16 %v1969
    %v2002 = vunpack.c.l.b16 %v1970
    %v2003 = vunpack.c.l.b16 %v1971
    %v2004 = vunpack.c.l.b16 %v1972
    %v2005 = vunpack.c.l.b16 %v1973
    %v2006 = vunpack.c.l.b16 %v1974
    %v2007 = vpack.c.b16 %v1992, %v1991
    %v2008 = vpack.c.b16 %v1994, %v1993
    %v2009 = vpack.c.b16 %v1996, %v1995
    %v2010 = vpack.c.b16 %v1998, %v1997
    %v2011 = vpack.c.b16 %v2000, %v1999
    %v2012 = vpack.c.b16 %v2002, %v2001
    %v2013 = vpack.c.b16 %v2004, %v2003
    %v2014 = vpack.c.b16 %v2006, %v2005
    %2023 = vmatprep.subr.bf16.mxu0 0
    %2024 = vmatpush1.bf16.msra.mxu0 %v2007
    %2025 = vmatprep.subr.bf16.mxu0 0
    %2026 = vmatpush1.bf16.msra.mxu0 %v2008
    %2027 = vmatprep.subr.bf16.mxu0 0
    %2028 = vmatpush1.bf16.msra.mxu0 %v2009
    %2029 = vmatprep.subr.bf16.mxu0 0
    %2030 = vmatpush1.bf16.msra.mxu0 %v2010
    %2031 = vmatprep.subr.bf16.mxu0 0
    %2032 = vmatpush1.bf16.msra.mxu0 %v2011
    %2033 = vmatprep.subr.bf16.mxu0 0
    %2034 = vmatpush1.bf16.msra.mxu0 %v2012
    %2035 = vmatprep.subr.bf16.mxu0 0
    %2036 = vmatpush1.bf16.msra.mxu0 %v2013
    %2037 = vmatprep.subr.bf16.mxu0 0
    %2038 = vmatpush1.bf16.msra.mxu0 %v2014
    %2039 = vmatprep.subr.bf16.mxu0 0
    %2040 = vmatpush1.bf16.msra.mxu0 0
    %2041 = vmatprep.subr.bf16.mxu0 0
    %2042 = vmatpush1.bf16.msra.mxu0 0
    %2043 = vmatprep.subr.bf16.mxu0 0
    %2044 = vmatpush1.bf16.msra.mxu0 0
    %2045 = vmatprep.subr.bf16.mxu0 0
    %2046 = vmatpush1.bf16.msra.mxu0 0
    %2047 = vmatprep.subr.bf16.mxu0 0
    %2048 = vmatpush1.bf16.msra.mxu0 0
    %2049 = vmatprep.subr.bf16.mxu0 0
    %2050 = vmatpush1.bf16.msra.mxu0 0
    %2051 = vmatprep.subr.bf16.mxu0 0
    %2052 = vmatpush1.bf16.msra.mxu0 0
    %2053 = vmatprep.subr.bf16.mxu0 0
    %2054 = vmatpush1.bf16.msra.mxu0 0
    %2055 = vmatprep.mubr.bf16.mxu0 0
    %2056 = vmatmul.mubr.bf16.gmra.mrb[0].mxu0 %v1957
    %v2057 = vpop.f32.mrb[0].mxu0
    %v2058 = vadd.f32 0.0, %v2057
    %v2059 = vpop.f32.mrb[0].mxu0
    %v2060 = vpop.f32.mrb[0].mxu0
    %v2061 = vadd.f32 0.0, %v2060
    %v2062 = vpop.f32.mrb[0].mxu0
    %2063 = vdwg.mxu0
    %v2064 = vld [vmem:[#allocation12 + $0x4] sm:$0x1]
    %v2065 = vld [vmem:[#allocation14 + $0x4] sm:$0x1]
    %v2066 = vlaneseq
    %v2067 = vshrl.u32 %v2066, 7
    %v2068 = vsub.s32 0, %v2067
    %v2069 = vrot.slane %v2064, %v2068
    %v2070 = vmul.f32 %v2058, %v2069
    %v2071 = vmul.f32 %v2061, %v2069
    %v2072 = vlaneseq
    %v2073 = vshrl.u32 %v2072, 7
    %v2074 = vsub.s32 0, %v2073
    %v2075 = vrot.slane %v2065, %v2074
    %v2076 = vadd.f32 %v2070, %v2075
    %v2077 = vadd.f32 %v2071, %v2075
    %v2078 = vmax.f32 %v2076, 0.0
    %v2079 = vmax.f32 %v2077, 0.0
    %2080 = vst [vmem:[#allocation2] sm:$0xff] %v2078
    %2081 = vst [vmem:[#allocation2 + $0x8] sm:$0xff] %v2079
    %2082 = vst [vmem:[#allocation3] sm:$0x1] 0.0
    %2083 = vst [vmem:[#allocation3 + $0x9] sm:$0x1] 0.0
    %v2084 = vld [vmem:[#allocation2] sm:$0xff]
    %2085 = vst [vmem:[#allocation3 + $0x1] sm:$0xff] %v2084
    %2086 = vst [vmem:[#allocation3 + $0xa] sm:$0x1] 0.0
    %2087 = vst [vmem:[#allocation3 + $0x13] sm:$0x1] 0.0
    %v2088 = vld [vmem:[#allocation2 + $0x8] sm:$0xff]
    %2089 = vst [vmem:[#allocation3 + $0xb] sm:$0xff] %v2088
    %v2090 = vld [vmem:[#allocation3] sm:$0xff]
    %v2091 = vpack.c.bf16 %v2090, %v2090
    %s2092 = scalar_lea.vmem [#allocation9], 384
    %v2093 = vld [vmem:[%s2092] sm:$0xf]
    %v2094 = vld [vmem:[%s2092 + $0x4] sm:$0xf]
    %v2095 = vld [vmem:[%s2092 + $0x8] sm:$0xf]
    %v2096 = vld [vmem:[%s2092 + $0xc] sm:$0xf]
    %v2097 = vld [vmem:[%s2092 + $0x10] sm:$0xf]
    %v2098 = vld [vmem:[%s2092 + $0x14] sm:$0xf]
    %v2099 = vld [vmem:[%s2092 + $0x18] sm:$0xf]
    %v2100 = vld [vmem:[%s2092 + $0x1c] sm:$0xf]
    %v2101 = vld [vmem:[%s2092 + $0x20] sm:$0xf]
    %v2102 = vld [vmem:[%s2092 + $0x24] sm:$0xf]
    %v2103 = vld [vmem:[%s2092 + $0x28] sm:$0xf]
    %v2104 = vld [vmem:[%s2092 + $0x2c] sm:$0xf]
    %v2105 = vld [vmem:[%s2092 + $0x30] sm:$0xf]
    %v2106 = vld [vmem:[%s2092 + $0x34] sm:$0xf]
    %v2107 = vld [vmem:[%s2092 + $0x38] sm:$0xf]
    %v2108 = vld [vmem:[%s2092 + $0x3c] sm:$0xf]
    %v2109 = vld [vmem:[#allocation3 + $0x1] sm:$0xff]
    %v2110 = vpack.c.bf16 %v2109, %v2109
    %s2111 = scalar_lea.vmem [#allocation9], 448
    %v2112 = vld [vmem:[%s2111] sm:$0xf]
    %v2113 = vld [vmem:[%s2111 + $0x4] sm:$0xf]
    %v2114 = vld [vmem:[%s2111 + $0x8] sm:$0xf]
    %v2115 = vld [vmem:[%s2111 + $0xc] sm:$0xf]
    %v2116 = vld [vmem:[%s2111 + $0x10] sm:$0xf]
    %v2117 = vld [vmem:[%s2111 + $0x14] sm:$0xf]
    %v2118 = vld [vmem:[%s2111 + $0x18] sm:$0xf]
    %v2119 = vld [vmem:[%s2111 + $0x1c] sm:$0xf]
    %v2120 = vld [vmem:[%s2111 + $0x20] sm:$0xf]
    %v2121 = vld [vmem:[%s2111 + $0x24] sm:$0xf]
    %v2122 = vld [vmem:[%s2111 + $0x28] sm:$0xf]
    %v2123 = vld [vmem:[%s2111 + $0x2c] sm:$0xf]
    %v2124 = vld [vmem:[%s2111 + $0x30] sm:$0xf]
    %v2125 = vld [vmem:[%s2111 + $0x34] sm:$0xf]
    %v2126 = vld [vmem:[%s2111 + $0x38] sm:$0xf]
    %v2127 = vld [vmem:[%s2111 + $0x3c] sm:$0xf]
    %v2144 = vunpack.c.l.b16 %v2112
    %v2145 = vunpack.c.l.b16 %v2113
    %v2146 = vunpack.c.l.b16 %v2114
    %v2147 = vunpack.c.l.b16 %v2115
    %v2148 = vunpack.c.l.b16 %v2116
    %v2149 = vunpack.c.l.b16 %v2117
    %v2150 = vunpack.c.l.b16 %v2118
    %v2151 = vunpack.c.l.b16 %v2119
    %v2152 = vunpack.c.l.b16 %v2120
    %v2153 = vunpack.c.l.b16 %v2121
    %v2154 = vunpack.c.l.b16 %v2122
    %v2155 = vunpack.c.l.b16 %v2123
    %v2156 = vunpack.c.l.b16 %v2124
    %v2157 = vunpack.c.l.b16 %v2125
    %v2158 = vunpack.c.l.b16 %v2126
    %v2159 = vunpack.c.l.b16 %v2127
    %v2160 = vpack.c.b16 %v2145, %v2144
    %v2161 = vpack.c.b16 %v2147, %v2146
    %v2162 = vpack.c.b16 %v2149, %v2148
    %v2163 = vpack.c.b16 %v2151, %v2150
    %v2164 = vpack.c.b16 %v2153, %v2152
    %v2165 = vpack.c.b16 %v2155, %v2154
    %v2166 = vpack.c.b16 %v2157, %v2156
    %v2167 = vpack.c.b16 %v2159, %v2158
    %2176 = vmatprep.subr.bf16.mxu0 0
    %2177 = vmatpush1.bf16.msra.mxu0 %v2160
    %2178 = vmatprep.subr.bf16.mxu0 0
    %2179 = vmatpush1.bf16.msra.mxu0 %v2161
    %2180 = vmatprep.subr.bf16.mxu0 0
    %2181 = vmatpush1.bf16.msra.mxu0 %v2162
    %2182 = vmatprep.subr.bf16.mxu0 0
    %2183 = vmatpush1.bf16.msra.mxu0 %v2163
    %2184 = vmatprep.subr.bf16.mxu0 0
    %2185 = vmatpush1.bf16.msra.mxu0 %v2164
    %2186 = vmatprep.subr.bf16.mxu0 0
    %2187 = vmatpush1.bf16.msra.mxu0 %v2165
    %2188 = vmatprep.subr.bf16.mxu0 0
    %2189 = vmatpush1.bf16.msra.mxu0 %v2166
    %2190 = vmatprep.subr.bf16.mxu0 0
    %2191 = vmatpush1.bf16.msra.mxu0 %v2167
    %2192 = vmatprep.subr.bf16.mxu0 0
    %2193 = vmatpush1.bf16.msra.mxu0 0
    %2194 = vmatprep.subr.bf16.mxu0 0
    %2195 = vmatpush1.bf16.msra.mxu0 0
    %2196 = vmatprep.subr.bf16.mxu0 0
    %2197 = vmatpush1.bf16.msra.mxu0 0
    %2198 = vmatprep.subr.bf16.mxu0 0
    %2199 = vmatpush1.bf16.msra.mxu0 0
    %2200 = vmatprep.subr.bf16.mxu0 0
    %2201 = vmatpush1.bf16.msra.mxu0 0
    %2202 = vmatprep.subr.bf16.mxu0 0
    %2203 = vmatpush1.bf16.msra.mxu0 0
    %2204 = vmatprep.subr.bf16.mxu0 0
    %2205 = vmatpush1.bf16.msra.mxu0 0
    %2206 = vmatprep.subr.bf16.mxu0 0
    %2207 = vmatpush1.bf16.msra.mxu0 0
    %2208 = vmatprep.mubr.bf16.mxu0 0
    %2209 = vmatmul.mubr.bf16.gmra.mrb[0].mxu0 %v2110
    %v2210 = vpop.f32.mrb[0].mxu0
    %v2211 = vadd.f32 0.0, %v2210
    %v2212 = vpop.f32.mrb[0].mxu0
    %v2213 = vpop.f32.mrb[0].mxu0
    %v2214 = vpop.f32.mrb[0].mxu0
    %2215 = vdwg.mxu0
    %v2232 = vunpack.c.l.b16 %v2093
    %v2233 = vunpack.c.l.b16 %v2094
    %v2234 = vunpack.c.l.b16 %v2095
    %v2235 = vunpack.c.l.b16 %v2096
    %v2236 = vunpack.c.l.b16 %v2097
    %v2237 = vunpack.c.l.b16 %v2098
    %v2238 = vunpack.c.l.b16 %v2099
    %v2239 = vunpack.c.l.b16 %v2100
    %v2240 = vunpack.c.l.b16 %v2101
    %v2241 = vunpack.c.l.b16 %v2102
    %v2242 = vunpack.c.l.b16 %v2103
    %v2243 = vunpack.c.l.b16 %v2104
    %v2244 = vunpack.c.l.b16 %v2105
    %v2245 = vunpack.c.l.b16 %v2106
    %v2246 = vunpack.c.l.b16 %v2107
    %v2247 = vunpack.c.l.b16 %v2108
    %v2248 = vpack.c.b16 %v2233, %v2232
    %v2249 = vpack.c.b16 %v2235, %v2234
    %v2250 = vpack.c.b16 %v2237, %v2236
    %v2251 = vpack.c.b16 %v2239, %v2238
    %v2252 = vpack.c.b16 %v2241, %v2240
    %v2253 = vpack.c.b16 %v2243, %v2242
    %v2254 = vpack.c.b16 %v2245, %v2244
    %v2255 = vpack.c.b16 %v2247, %v2246
    %2264 = vmatprep.subr.bf16.mxu0 0
    %2265 = vmatpush1.bf16.msra.mxu0 %v2248
    %2266 = vmatprep.subr.bf16.mxu0 0
    %2267 = vmatpush1.bf16.msra.mxu0 %v2249
    %2268 = vmatprep.subr.bf16.mxu0 0
    %2269 = vmatpush1.bf16.msra.mxu0 %v2250
    %2270 = vmatprep.subr.bf16.mxu0 0
    %2271 = vmatpush1.bf16.msra.mxu0 %v2251
    %2272 = vmatprep.subr.bf16.mxu0 0
    %2273 = vmatpush1.bf16.msra.mxu0 %v2252
    %2274 = vmatprep.subr.bf16.mxu0 0
    %2275 = vmatpush1.bf16.msra.mxu0 %v2253
    %2276 = vmatprep.subr.bf16.mxu0 0
    %2277 = vmatpush1.bf16.msra.mxu0 %v2254
    %2278 = vmatprep.subr.bf16.mxu0 0
    %2279 = vmatpush1.bf16.msra.mxu0 %v2255
    %2280 = vmatprep.subr.bf16.mxu0 0
    %2281 = vmatpush1.bf16.msra.mxu0 0
    %2282 = vmatprep.subr.bf16.mxu0 0
    %2283 = vmatpush1.bf16.msra.mxu0 0
    %2284 = vmatprep.subr.bf16.mxu0 0
    %2285 = vmatpush1.bf16.msra.mxu0 0
    %2286 = vmatprep.subr.bf16.mxu0 0
    %2287 = vmatpush1.bf16.msra.mxu0 0
    %2288 = vmatprep.subr.bf16.mxu0 0
    %2289 = vmatpush1.bf16.msra.mxu0 0
    %2290 = vmatprep.subr.bf16.mxu0 0
    %2291 = vmatpush1.bf16.msra.mxu0 0
    %2292 = vmatprep.subr.bf16.mxu0 0
    %2293 = vmatpush1.bf16.msra.mxu0 0
    %2294 = vmatprep.subr.bf16.mxu0 0
    %2295 = vmatpush1.bf16.msra.mxu0 0
    %2296 = vmatprep.mubr.bf16.mxu0 0
    %2297 = vmatmul.mubr.bf16.gmra.mrb[0].mxu0 %v2091
    %v2298 = vpop.f32.mrb[0].mxu0
    %v2299 = vadd.f32 %v2211, %v2298
    %v2300 = vpop.f32.mrb[0].mxu0
    %v2301 = vpop.f32.mrb[0].mxu0
    %v2302 = vpop.f32.mrb[0].mxu0
    %2303 = vdwg.mxu0
    %v2304 = vld [vmem:[#allocation3 + $0x2] sm:$0xff]
    %v2305 = vpack.c.bf16 %v2304, %v2304
    %s2306 = scalar_lea.vmem [#allocation9], 512
    %v2307 = vld [vmem:[%s2306] sm:$0xf]
    %v2308 = vld [vmem:[%s2306 + $0x4] sm:$0xf]
    %v2309 = vld [vmem:[%s2306 + $0x8] sm:$0xf]
    %v2310 = vld [vmem:[%s2306 + $0xc] sm:$0xf]
    %v2311 = vld [vmem:[%s2306 + $0x10] sm:$0xf]
    %v2312 = vld [vmem:[%s2306 + $0x14] sm:$0xf]
    %v2313 = vld [vmem:[%s2306 + $0x18] sm:$0xf]
    %v2314 = vld [vmem:[%s2306 + $0x1c] sm:$0xf]
    %v2315 = vld [vmem:[%s2306 + $0x20] sm:$0xf]
    %v2316 = vld [vmem:[%s2306 + $0x24] sm:$0xf]
    %v2317 = vld [vmem:[%s2306 + $0x28] sm:$0xf]
    %v2318 = vld [vmem:[%s2306 + $0x2c] sm:$0xf]
    %v2319 = vld [vmem:[%s2306 + $0x30] sm:$0xf]
    %v2320 = vld [vmem:[%s2306 + $0x34] sm:$0xf]
    %v2321 = vld [vmem:[%s2306 + $0x38] sm:$0xf]
    %v2322 = vld [vmem:[%s2306 + $0x3c] sm:$0xf]
    %v2339 = vunpack.c.l.b16 %v2307
    %v2340 = vunpack.c.l.b16 %v2308
    %v2341 = vunpack.c.l.b16 %v2309
    %v2342 = vunpack.c.l.b16 %v2310
    %v2343 = vunpack.c.l.b16 %v2311
    %v2344 = vunpack.c.l.b16 %v2312
    %v2345 = vunpack.c.l.b16 %v2313
    %v2346 = vunpack.c.l.b16 %v2314
    %v2347 = vunpack.c.l.b16 %v2315
    %v2348 = vunpack.c.l.b16 %v2316
    %v2349 = vunpack.c.l.b16 %v2317
    %v2350 = vunpack.c.l.b16 %v2318
    %v2351 = vunpack.c.l.b16 %v2319
    %v2352 = vunpack.c.l.b16 %v2320
    %v2353 = vunpack.c.l.b16 %v2321
    %v2354 = vunpack.c.l.b16 %v2322
    %v2355 = vpack.c.b16 %v2340, %v2339
    %v2356 = vpack.c.b16 %v2342, %v2341
    %v2357 = vpack.c.b16 %v2344, %v2343
    %v2358 = vpack.c.b16 %v2346, %v2345
    %v2359 = vpack.c.b16 %v2348, %v2347
    %v2360 = vpack.c.b16 %v2350, %v2349
    %v2361 = vpack.c.b16 %v2352, %v2351
    %v2362 = vpack.c.b16 %v2354, %v2353
    %2371 = vmatprep.subr.bf16.mxu0 0
    %2372 = vmatpush1.bf16.msra.mxu0 %v2355
    %2373 = vmatprep.subr.bf16.mxu0 0
    %2374 = vmatpush1.bf16.msra.mxu0 %v2356
    %2375 = vmatprep.subr.bf16.mxu0 0
    %2376 = vmatpush1.bf16.msra.mxu0 %v2357
    %2377 = vmatprep.subr.bf16.mxu0 0
    %2378 = vmatpush1.bf16.msra.mxu0 %v2358
    %2379 = vmatprep.subr.bf16.mxu0 0
    %2380 = vmatpush1.bf16.msra.mxu0 %v2359
    %2381 = vmatprep.subr.bf16.mxu0 0
    %2382 = vmatpush1.bf16.msra.mxu0 %v2360
    %2383 = vmatprep.subr.bf16.mxu0 0
    %2384 = vmatpush1.bf16.msra.mxu0 %v2361
    %2385 = vmatprep.subr.bf16.mxu0 0
    %2386 = vmatpush1.bf16.msra.mxu0 %v2362
    %2387 = vmatprep.subr.bf16.mxu0 0
    %2388 = vmatpush1.bf16.msra.mxu0 0
    %2389 = vmatprep.subr.bf16.mxu0 0
    %2390 = vmatpush1.bf16.msra.mxu0 0
    %2391 = vmatprep.subr.bf16.mxu0 0
    %2392 = vmatpush1.bf16.msra.mxu0 0
    %2393 = vmatprep.subr.bf16.mxu0 0
    %2394 = vmatpush1.bf16.msra.mxu0 0
    %2395 = vmatprep.subr.bf16.mxu0 0
    %2396 = vmatpush1.bf16.msra.mxu0 0
    %2397 = vmatprep.subr.bf16.mxu0 0
    %2398 = vmatpush1.bf16.msra.mxu0 0
    %2399 = vmatprep.subr.bf16.mxu0 0
    %2400 = vmatpush1.bf16.msra.mxu0 0
    %2401 = vmatprep.subr.bf16.mxu0 0
    %2402 = vmatpush1.bf16.msra.mxu0 0
    %2403 = vmatprep.mubr.bf16.mxu0 0
    %2404 = vmatmul.mubr.bf16.gmra.mrb[0].mxu0 %v2305
    %v2405 = vpop.f32.mrb[0].mxu0
    %v2406 = vadd.f32 0.0, %v2405
    %v2407 = vpop.f32.mrb[0].mxu0
    %v2408 = vpop.f32.mrb[0].mxu0
    %v2409 = vpop.f32.mrb[0].mxu0
    %2410 = vdwg.mxu0
    %v2411 = vadd.f32 %v2299, %v2406
    %2412 = vst [vmem:[#allocation4] sm:$0xff] %v2411
    %v2413 = vld [vmem:[#allocation3 + $0xa] sm:$0xff]
    %v2414 = vpack.c.bf16 %v2413, %v2413
    %v2415 = vld [vmem:[%s2092] sm:$0xf]
    %v2416 = vld [vmem:[%s2092 + $0x4] sm:$0xf]
    %v2417 = vld [vmem:[%s2092 + $0x8] sm:$0xf]
    %v2418 = vld [vmem:[%s2092 + $0xc] sm:$0xf]
    %v2419 = vld [vmem:[%s2092 + $0x10] sm:$0xf]
    %v2420 = vld [vmem:[%s2092 + $0x14] sm:$0xf]
    %v2421 = vld [vmem:[%s2092 + $0x18] sm:$0xf]
    %v2422 = vld [vmem:[%s2092 + $0x1c] sm:$0xf]
    %v2423 = vld [vmem:[%s2092 + $0x20] sm:$0xf]
    %v2424 = vld [vmem:[%s2092 + $0x24] sm:$0xf]
    %v2425 = vld [vmem:[%s2092 + $0x28] sm:$0xf]
    %v2426 = vld [vmem:[%s2092 + $0x2c] sm:$0xf]
    %v2427 = vld [vmem:[%s2092 + $0x30] sm:$0xf]
    %v2428 = vld [vmem:[%s2092 + $0x34] sm:$0xf]
    %v2429 = vld [vmem:[%s2092 + $0x38] sm:$0xf]
    %v2430 = vld [vmem:[%s2092 + $0x3c] sm:$0xf]
    %v2431 = vld [vmem:[#allocation3 + $0xb] sm:$0xff]
    %v2432 = vpack.c.bf16 %v2431, %v2431
    %v2433 = vld [vmem:[%s2111] sm:$0xf]
    %v2434 = vld [vmem:[%s2111 + $0x4] sm:$0xf]
    %v2435 = vld [vmem:[%s2111 + $0x8] sm:$0xf]
    %v2436 = vld [vmem:[%s2111 + $0xc] sm:$0xf]
    %v2437 = vld [vmem:[%s2111 + $0x10] sm:$0xf]
    %v2438 = vld [vmem:[%s2111 + $0x14] sm:$0xf]
    %v2439 = vld [vmem:[%s2111 + $0x18] sm:$0xf]
    %v2440 = vld [vmem:[%s2111 + $0x1c] sm:$0xf]
    %v2441 = vld [vmem:[%s2111 + $0x20] sm:$0xf]
    %v2442 = vld [vmem:[%s2111 + $0x24] sm:$0xf]
    %v2443 = vld [vmem:[%s2111 + $0x28] sm:$0xf]
    %v2444 = vld [vmem:[%s2111 + $0x2c] sm:$0xf]
    %v2445 = vld [vmem:[%s2111 + $0x30] sm:$0xf]
    %v2446 = vld [vmem:[%s2111 + $0x34] sm:$0xf]
    %v2447 = vld [vmem:[%s2111 + $0x38] sm:$0xf]
    %v2448 = vld [vmem:[%s2111 + $0x3c] sm:$0xf]
    %v2465 = vunpack.c.l.b16 %v2433
    %v2466 = vunpack.c.l.b16 %v2434
    %v2467 = vunpack.c.l.b16 %v2435
    %v2468 = vunpack.c.l.b16 %v2436
    %v2469 = vunpack.c.l.b16 %v2437
    %v2470 = vunpack.c.l.b16 %v2438
    %v2471 = vunpack.c.l.b16 %v2439
    %v2472 = vunpack.c.l.b16 %v2440
    %v2473 = vunpack.c.l.b16 %v2441
    %v2474 = vunpack.c.l.b16 %v2442
    %v2475 = vunpack.c.l.b16 %v2443
    %v2476 = vunpack.c.l.b16 %v2444
    %v2477 = vunpack.c.l.b16 %v2445
    %v2478 = vunpack.c.l.b16 %v2446
    %v2479 = vunpack.c.l.b16 %v2447
    %v2480 = vunpack.c.l.b16 %v2448
    %v2481 = vpack.c.b16 %v2466, %v2465
    %v2482 = vpack.c.b16 %v2468, %v2467
    %v2483 = vpack.c.b16 %v2470, %v2469
    %v2484 = vpack.c.b16 %v2472, %v2471
    %v2485 = vpack.c.b16 %v2474, %v2473
    %v2486 = vpack.c.b16 %v2476, %v2475
    %v2487 = vpack.c.b16 %v2478, %v2477
    %v2488 = vpack.c.b16 %v2480, %v2479
    %2497 = vmatprep.subr.bf16.mxu0 0
    %2498 = vmatpush1.bf16.msra.mxu0 %v2481
    %2499 = vmatprep.subr.bf16.mxu0 0
    %2500 = vmatpush1.bf16.msra.mxu0 %v2482
    %2501 = vmatprep.subr.bf16.mxu0 0
    %2502 = vmatpush1.bf16.msra.mxu0 %v2483
    %2503 = vmatprep.subr.bf16.mxu0 0
    %2504 = vmatpush1.bf16.msra.mxu0 %v2484
    %2505 = vmatprep.subr.bf16.mxu0 0
    %2506 = vmatpush1.bf16.msra.mxu0 %v2485
    %2507 = vmatprep.subr.bf16.mxu0 0
    %2508 = vmatpush1.bf16.msra.mxu0 %v2486
    %2509 = vmatprep.subr.bf16.mxu0 0
    %2510 = vmatpush1.bf16.msra.mxu0 %v2487
    %2511 = vmatprep.subr.bf16.mxu0 0
    %2512 = vmatpush1.bf16.msra.mxu0 %v2488
    %2513 = vmatprep.subr.bf16.mxu0 0
    %2514 = vmatpush1.bf16.msra.mxu0 0
    %2515 = vmatprep.subr.bf16.mxu0 0
    %2516 = vmatpush1.bf16.msra.mxu0 0
    %2517 = vmatprep.subr.bf16.mxu0 0
    %2518 = vmatpush1.bf16.msra.mxu0 0
    %2519 = vmatprep.subr.bf16.mxu0 0
    %2520 = vmatpush1.bf16.msra.mxu0 0
    %2521 = vmatprep.subr.bf16.mxu0 0
    %2522 = vmatpush1.bf16.msra.mxu0 0
    %2523 = vmatprep.subr.bf16.mxu0 0
    %2524 = vmatpush1.bf16.msra.mxu0 0
    %2525 = vmatprep.subr.bf16.mxu0 0
    %2526 = vmatpush1.bf16.msra.mxu0 0
    %2527 = vmatprep.subr.bf16.mxu0 0
    %2528 = vmatpush1.bf16.msra.mxu0 0
    %2529 = vmatprep.mubr.bf16.mxu0 0
    %2530 = vmatmul.mubr.bf16.gmra.mrb[0].mxu0 %v2432
    %v2531 = vpop.f32.mrb[0].mxu0
    %v2532 = vadd.f32 0.0, %v2531
    %v2533 = vpop.f32.mrb[0].mxu0
    %v2534 = vpop.f32.mrb[0].mxu0
    %v2535 = vpop.f32.mrb[0].mxu0
    %2536 = vdwg.mxu0
    %v2553 = vunpack.c.l.b16 %v2415
    %v2554 = vunpack.c.l.b16 %v2416
    %v2555 = vunpack.c.l.b16 %v2417
    %v2556 = vunpack.c.l.b16 %v2418
    %v2557 = vunpack.c.l.b16 %v2419
    %v2558 = vunpack.c.l.b16 %v2420
    %v2559 = vunpack.c.l.b16 %v2421
    %v2560 = vunpack.c.l.b16 %v2422
    %v2561 = vunpack.c.l.b16 %v2423
    %v2562 = vunpack.c.l.b16 %v2424
    %v2563 = vunpack.c.l.b16 %v2425
    %v2564 = vunpack.c.l.b16 %v2426
    %v2565 = vunpack.c.l.b16 %v2427
    %v2566 = vunpack.c.l.b16 %v2428
    %v2567 = vunpack.c.l.b16 %v2429
    %v2568 = vunpack.c.l.b16 %v2430
    %v2569 = vpack.c.b16 %v2554, %v2553
    %v2570 = vpack.c.b16 %v2556, %v2555
    %v2571 = vpack.c.b16 %v2558, %v2557
    %v2572 = vpack.c.b16 %v2560, %v2559
    %v2573 = vpack.c.b16 %v2562, %v2561
    %v2574 = vpack.c.b16 %v2564, %v2563
    %v2575 = vpack.c.b16 %v2566, %v2565
    %v2576 = vpack.c.b16 %v2568, %v2567
    %2585 = vmatprep.subr.bf16.mxu0 0
    %2586 = vmatpush1.bf16.msra.mxu0 %v2569
    %2587 = vmatprep.subr.bf16.mxu0 0
    %2588 = vmatpush1.bf16.msra.mxu0 %v2570
    %2589 = vmatprep.subr.bf16.mxu0 0
    %2590 = vmatpush1.bf16.msra.mxu0 %v2571
    %2591 = vmatprep.subr.bf16.mxu0 0
    %2592 = vmatpush1.bf16.msra.mxu0 %v2572
    %2593 = vmatprep.subr.bf16.mxu0 0
    %2594 = vmatpush1.bf16.msra.mxu0 %v2573
    %2595 = vmatprep.subr.bf16.mxu0 0
    %2596 = vmatpush1.bf16.msra.mxu0 %v2574
    %2597 = vmatprep.subr.bf16.mxu0 0
    %2598 = vmatpush1.bf16.msra.mxu0 %v2575
    %2599 = vmatprep.subr.bf16.mxu0 0
    %2600 = vmatpush1.bf16.msra.mxu0 %v2576
    %2601 = vmatprep.subr.bf16.mxu0 0
    %2602 = vmatpush1.bf16.msra.mxu0 0
    %2603 = vmatprep.subr.bf16.mxu0 0
    %2604 = vmatpush1.bf16.msra.mxu0 0
    %2605 = vmatprep.subr.bf16.mxu0 0
    %2606 = vmatpush1.bf16.msra.mxu0 0
    %2607 = vmatprep.subr.bf16.mxu0 0
    %2608 = vmatpush1.bf16.msra.mxu0 0
    %2609 = vmatprep.subr.bf16.mxu0 0
    %2610 = vmatpush1.bf16.msra.mxu0 0
    %2611 = vmatprep.subr.bf16.mxu0 0
    %2612 = vmatpush1.bf16.msra.mxu0 0
    %2613 = vmatprep.subr.bf16.mxu0 0
    %2614 = vmatpush1.bf16.msra.mxu0 0
    %2615 = vmatprep.subr.bf16.mxu0 0
    %2616 = vmatpush1.bf16.msra.mxu0 0
    %2617 = vmatprep.mubr.bf16.mxu0 0
    %2618 = vmatmul.mubr.bf16.gmra.mrb[0].mxu0 %v2414
    %v2619 = vpop.f32.mrb[0].mxu0
    %v2620 = vadd.f32 %v2532, %v2619
    %v2621 = vpop.f32.mrb[0].mxu0
    %v2622 = vpop.f32.mrb[0].mxu0
    %v2623 = vpop.f32.mrb[0].mxu0
    %2624 = vdwg.mxu0
    %v2625 = vld [vmem:[#allocation3 + $0xc] sm:$0xff]
    %v2626 = vpack.c.bf16 %v2625, %v2625
    %v2627 = vld [vmem:[%s2306] sm:$0xf]
    %v2628 = vld [vmem:[%s2306 + $0x4] sm:$0xf]
    %v2629 = vld [vmem:[%s2306 + $0x8] sm:$0xf]
    %v2630 = vld [vmem:[%s2306 + $0xc] sm:$0xf]
    %v2631 = vld [vmem:[%s2306 + $0x10] sm:$0xf]
    %v2632 = vld [vmem:[%s2306 + $0x14] sm:$0xf]
    %v2633 = vld [vmem:[%s2306 + $0x18] sm:$0xf]
    %v2634 = vld [vmem:[%s2306 + $0x1c] sm:$0xf]
    %v2635 = vld [vmem:[%s2306 + $0x20] sm:$0xf]
    %v2636 = vld [vmem:[%s2306 + $0x24] sm:$0xf]
    %v2637 = vld [vmem:[%s2306 + $0x28] sm:$0xf]
    %v2638 = vld [vmem:[%s2306 + $0x2c] sm:$0xf]
    %v2639 = vld [vmem:[%s2306 + $0x30] sm:$0xf]
    %v2640 = vld [vmem:[%s2306 + $0x34] sm:$0xf]
    %v2641 = vld [vmem:[%s2306 + $0x38] sm:$0xf]
    %v2642 = vld [vmem:[%s2306 + $0x3c] sm:$0xf]
    %v2659 = vunpack.c.l.b16 %v2627
    %v2660 = vunpack.c.l.b16 %v2628
    %v2661 = vunpack.c.l.b16 %v2629
    %v2662 = vunpack.c.l.b16 %v2630
    %v2663 = vunpack.c.l.b16 %v2631
    %v2664 = vunpack.c.l.b16 %v2632
    %v2665 = vunpack.c.l.b16 %v2633
    %v2666 = vunpack.c.l.b16 %v2634
    %v2667 = vunpack.c.l.b16 %v2635
    %v2668 = vunpack.c.l.b16 %v2636
    %v2669 = vunpack.c.l.b16 %v2637
    %v2670 = vunpack.c.l.b16 %v2638
    %v2671 = vunpack.c.l.b16 %v2639
    %v2672 = vunpack.c.l.b16 %v2640
    %v2673 = vunpack.c.l.b16 %v2641
    %v2674 = vunpack.c.l.b16 %v2642
    %v2675 = vpack.c.b16 %v2660, %v2659
    %v2676 = vpack.c.b16 %v2662, %v2661
    %v2677 = vpack.c.b16 %v2664, %v2663
    %v2678 = vpack.c.b16 %v2666, %v2665
    %v2679 = vpack.c.b16 %v2668, %v2667
    %v2680 = vpack.c.b16 %v2670, %v2669
    %v2681 = vpack.c.b16 %v2672, %v2671
    %v2682 = vpack.c.b16 %v2674, %v2673
    %2691 = vmatprep.subr.bf16.mxu0 0
    %2692 = vmatpush1.bf16.msra.mxu0 %v2675
    %2693 = vmatprep.subr.bf16.mxu0 0
    %2694 = vmatpush1.bf16.msra.mxu0 %v2676
    %2695 = vmatprep.subr.bf16.mxu0 0
    %2696 = vmatpush1.bf16.msra.mxu0 %v2677
    %2697 = vmatprep.subr.bf16.mxu0 0
    %2698 = vmatpush1.bf16.msra.mxu0 %v2678
    %2699 = vmatprep.subr.bf16.mxu0 0
    %2700 = vmatpush1.bf16.msra.mxu0 %v2679
    %2701 = vmatprep.subr.bf16.mxu0 0
    %2702 = vmatpush1.bf16.msra.mxu0 %v2680
    %2703 = vmatprep.subr.bf16.mxu0 0
    %2704 = vmatpush1.bf16.msra.mxu0 %v2681
    %2705 = vmatprep.subr.bf16.mxu0 0
    %2706 = vmatpush1.bf16.msra.mxu0 %v2682
    %2707 = vmatprep.subr.bf16.mxu0 0
    %2708 = vmatpush1.bf16.msra.mxu0 0
    %2709 = vmatprep.subr.bf16.mxu0 0
    %2710 = vmatpush1.bf16.msra.mxu0 0
    %2711 = vmatprep.subr.bf16.mxu0 0
    %2712 = vmatpush1.bf16.msra.mxu0 0
    %2713 = vmatprep.subr.bf16.mxu0 0
    %2714 = vmatpush1.bf16.msra.mxu0 0
    %2715 = vmatprep.subr.bf16.mxu0 0
    %2716 = vmatpush1.bf16.msra.mxu0 0
    %2717 = vmatprep.subr.bf16.mxu0 0
    %2718 = vmatpush1.bf16.msra.mxu0 0
    %2719 = vmatprep.subr.bf16.mxu0 0
    %2720 = vmatpush1.bf16.msra.mxu0 0
    %2721 = vmatprep.subr.bf16.mxu0 0
    %2722 = vmatpush1.bf16.msra.mxu0 0
    %2723 = vmatprep.mubr.bf16.mxu0 0
    %2724 = vmatmul.mubr.bf16.gmra.mrb[0].mxu0 %v2626
    %v2725 = vpop.f32.mrb[0].mxu0
    %v2726 = vadd.f32 0.0, %v2725
    %v2727 = vpop.f32.mrb[0].mxu0
    %v2728 = vpop.f32.mrb[0].mxu0
    %v2729 = vpop.f32.mrb[0].mxu0
    %2730 = vdwg.mxu0
    %v2731 = vadd.f32 %v2620, %v2726
    %2732 = vst [vmem:[#allocation4 + $0x8] sm:$0xff] %v2731
    %v2733 = vld [vmem:[#allocation4] sm:$0xff]
    %v2734 = vld [vmem:[#allocation4 + $0x8] sm:$0xff]
    %v2735 = vld [vmem:[#allocation12 + $0x5] sm:$0x1]
    %v2736 = vld [vmem:[#allocation14 + $0x5] sm:$0x1]
    %v2737 = vlaneseq
    %v2738 = vshrl.u32 %v2737, 7
    %v2739 = vsub.s32 0, %v2738
    %v2740 = vrot.slane %v2735, %v2739
    %v2741 = vmul.f32 %v2733, %v2740
    %v2742 = vmul.f32 %v2734, %v2740
    %v2743 = vlaneseq
    %v2744 = vshrl.u32 %v2743, 7
    %v2745 = vsub.s32 0, %v2744
    %v2746 = vrot.slane %v2736, %v2745
    %v2747 = vadd.f32 %v2741, %v2746
    %v2748 = vadd.f32 %v2742, %v2746
    %v2749 = vmax.f32 %v2747, 0.0
    %v2750 = vmax.f32 %v2748, 0.0
    %v2751 = vpack.c.bf16 %v2750, %v2749
    %s2752 = scalar_lea.vmem [#allocation11], 256
    %v2753 = vld [vmem:[%s2752] sm:$0xf]
    %v2754 = vld [vmem:[%s2752 + $0x4] sm:$0xf]
    %v2755 = vld [vmem:[%s2752 + $0x8] sm:$0xf]
    %v2756 = vld [vmem:[%s2752 + $0xc] sm:$0xf]
    %v2757 = vld [vmem:[%s2752 + $0x10] sm:$0xf]
    %v2758 = vld [vmem:[%s2752 + $0x14] sm:$0xf]
    %v2759 = vld [vmem:[%s2752 + $0x18] sm:$0xf]
    %v2760 = vld [vmem:[%s2752 + $0x1c] sm:$0xf]
    %v2761 = vld [vmem:[%s2752 + $0x20] sm:$0xf]
    %v2762 = vld [vmem:[%s2752 + $0x24] sm:$0xf]
    %v2763 = vld [vmem:[%s2752 + $0x28] sm:$0xf]
    %v2764 = vld [vmem:[%s2752 + $0x2c] sm:$0xf]
    %v2765 = vld [vmem:[%s2752 + $0x30] sm:$0xf]
    %v2766 = vld [vmem:[%s2752 + $0x34] sm:$0xf]
    %v2767 = vld [vmem:[%s2752 + $0x38] sm:$0xf]
    %v2768 = vld [vmem:[%s2752 + $0x3c] sm:$0xf]
    %v2785 = vunpack.c.l.b16 %v2753
    %v2786 = vunpack.c.l.b16 %v2754
    %v2787 = vunpack.c.l.b16 %v2755
    %v2788 = vunpack.c.l.b16 %v2756
    %v2789 = vunpack.c.l.b16 %v2757
    %v2790 = vunpack.c.l.b16 %v2758
    %v2791 = vunpack.c.l.b16 %v2759
    %v2792 = vunpack.c.l.b16 %v2760
    %v2793 = vunpack.c.l.b16 %v2761
    %v2794 = vunpack.c.l.b16 %v2762
    %v2795 = vunpack.c.l.b16 %v2763
    %v2796 = vunpack.c.l.b16 %v2764
    %v2797 = vunpack.c.l.b16 %v2765
    %v2798 = vunpack.c.l.b16 %v2766
    %v2799 = vunpack.c.l.b16 %v2767
    %v2800 = vunpack.c.l.b16 %v2768
    %v2801 = vpack.c.b16 %v2786, %v2785
    %v2802 = vpack.c.b16 %v2788, %v2787
    %v2803 = vpack.c.b16 %v2790, %v2789
    %v2804 = vpack.c.b16 %v2792, %v2791
    %v2805 = vpack.c.b16 %v2794, %v2793
    %v2806 = vpack.c.b16 %v2796, %v2795
    %v2807 = vpack.c.b16 %v2798, %v2797
    %v2808 = vpack.c.b16 %v2800, %v2799
    %2817 = vmatprep.subr.bf16.mxu0 0
    %2818 = vmatpush1.bf16.msra.mxu0 %v2801
    %2819 = vmatprep.subr.bf16.mxu0 0
    %2820 = vmatpush1.bf16.msra.mxu0 %v2802
    %2821 = vmatprep.subr.bf16.mxu0 0
    %2822 = vmatpush1.bf16.msra.mxu0 %v2803
    %2823 = vmatprep.subr.bf16.mxu0 0
    %2824 = vmatpush1.bf16.msra.mxu0 %v2804
    %2825 = vmatprep.subr.bf16.mxu0 0
    %2826 = vmatpush1.bf16.msra.mxu0 %v2805
    %2827 = vmatprep.subr.bf16.mxu0 0
    %2828 = vmatpush1.bf16.msra.mxu0 %v2806
    %2829 = vmatprep.subr.bf16.mxu0 0
    %2830 = vmatpush1.bf16.msra.mxu0 %v2807
    %2831 = vmatprep.subr.bf16.mxu0 0
    %2832 = vmatpush1.bf16.msra.mxu0 %v2808
    %2833 = vmatprep.subr.bf16.mxu0 0
    %2834 = vmatpush1.bf16.msra.mxu0 0
    %2835 = vmatprep.subr.bf16.mxu0 0
    %2836 = vmatpush1.bf16.msra.mxu0 0
    %2837 = vmatprep.subr.bf16.mxu0 0
    %2838 = vmatpush1.bf16.msra.mxu0 0
    %2839 = vmatprep.subr.bf16.mxu0 0
    %2840 = vmatpush1.bf16.msra.mxu0 0
    %2841 = vmatprep.subr.bf16.mxu0 0
    %2842 = vmatpush1.bf16.msra.mxu0 0
    %2843 = vmatprep.subr.bf16.mxu0 0
    %2844 = vmatpush1.bf16.msra.mxu0 0
    %2845 = vmatprep.subr.bf16.mxu0 0
    %2846 = vmatpush1.bf16.msra.mxu0 0
    %2847 = vmatprep.subr.bf16.mxu0 0
    %2848 = vmatpush1.bf16.msra.mxu0 0
    %2849 = vmatprep.mubr.bf16.mxu0 0
    %2850 = vmatmul.mubr.bf16.gmra.mrb[0].mxu0 %v2751
    %v2851 = vpop.f32.mrb[0].mxu0
    %v2852 = vadd.f32 %v1935, %v2851
    %v2853 = vpop.f32.mrb[0].mxu0
    %v2854 = vpop.f32.mrb[0].mxu0
    %v2855 = vadd.f32 %v1938, %v2854
    %v2856 = vpop.f32.mrb[0].mxu0
    %2857 = vdwg.mxu0
    %2858 = vst [vmem:[#allocation2] sm:$0xff] %v2852
    %2859 = vst [vmem:[#allocation2 + $0x8] sm:$0xff] %v2855
    %v2860 = vld [vmem:[#allocation2] ss:$2 sm:$0xf]
    %v2861 = vpack.c.bf16 %v2860, %v2860
    %s2862 = scalar_lea.vmem [#allocation11], 448
    %v2863 = vld [vmem:[%s2862] sm:$0xf]
    %v2864 = vld [vmem:[%s2862 + $0x4] sm:$0xf]
    %v2865 = vld [vmem:[%s2862 + $0x8] sm:$0xf]
    %v2866 = vld [vmem:[%s2862 + $0xc] sm:$0xf]
    %v2867 = vld [vmem:[%s2862 + $0x10] sm:$0xf]
    %v2868 = vld [vmem:[%s2862 + $0x14] sm:$0xf]
    %v2869 = vld [vmem:[%s2862 + $0x18] sm:$0xf]
    %v2870 = vld [vmem:[%s2862 + $0x1c] sm:$0xf]
    %v2871 = vld [vmem:[%s2862 + $0x20] sm:$0xf]
    %v2872 = vld [vmem:[%s2862 + $0x24] sm:$0xf]
    %v2873 = vld [vmem:[%s2862 + $0x28] sm:$0xf]
    %v2874 = vld [vmem:[%s2862 + $0x2c] sm:$0xf]
    %v2875 = vld [vmem:[%s2862 + $0x30] sm:$0xf]
    %v2876 = vld [vmem:[%s2862 + $0x34] sm:$0xf]
    %v2877 = vld [vmem:[%s2862 + $0x38] sm:$0xf]
    %v2878 = vld [vmem:[%s2862 + $0x3c] sm:$0xf]
    %v2895 = vunpack.c.l.b16 %v2863
    %v2896 = vunpack.c.l.b16 %v2864
    %v2897 = vunpack.c.l.b16 %v2865
    %v2898 = vunpack.c.l.b16 %v2866
    %v2899 = vunpack.c.l.b16 %v2867
    %v2900 = vunpack.c.l.b16 %v2868
    %v2901 = vunpack.c.l.b16 %v2869
    %v2902 = vunpack.c.l.b16 %v2870
    %v2903 = vunpack.c.l.b16 %v2871
    %v2904 = vunpack.c.l.b16 %v2872
    %v2905 = vunpack.c.l.b16 %v2873
    %v2906 = vunpack.c.l.b16 %v2874
    %v2907 = vunpack.c.l.b16 %v2875
    %v2908 = vunpack.c.l.b16 %v2876
    %v2909 = vunpack.c.l.b16 %v2877
    %v2910 = vunpack.c.l.b16 %v2878
    %v2911 = vpack.c.b16 %v2896, %v2895
    %v2912 = vpack.c.b16 %v2898, %v2897
    %v2913 = vpack.c.b16 %v2900, %v2899
    %v2914 = vpack.c.b16 %v2902, %v2901
    %v2915 = vpack.c.b16 %v2904, %v2903
    %v2916 = vpack.c.b16 %v2906, %v2905
    %v2917 = vpack.c.b16 %v2908, %v2907
    %v2918 = vpack.c.b16 %v2910, %v2909
    %2927 = vmatprep.subr.bf16.mxu0 0
    %2928 = vmatpush1.bf16.msra.mxu0 %v2911
    %2929 = vmatprep.subr.bf16.mxu0 0
    %2930 = vmatpush1.bf16.msra.mxu0 %v2912
    %2931 = vmatprep.subr.bf16.mxu0 0
    %2932 = vmatpush1.bf16.msra.mxu0 %v2913
    %2933 = vmatprep.subr.bf16.mxu0 0
    %2934 = vmatpush1.bf16.msra.mxu0 %v2914
    %2935 = vmatprep.subr.bf16.mxu0 0
    %2936 = vmatpush1.bf16.msra.mxu0 %v2915
    %2937 = vmatprep.subr.bf16.mxu0 0
    %2938 = vmatpush1.bf16.msra.mxu0 %v2916
    %2939 = vmatprep.subr.bf16.mxu0 0
    %2940 = vmatpush1.bf16.msra.mxu0 %v2917
    %2941 = vmatprep.subr.bf16.mxu0 0
    %2942 = vmatpush1.bf16.msra.mxu0 %v2918
    %2943 = vmatprep.subr.bf16.mxu0 0
    %2944 = vmatpush1.bf16.msra.mxu0 0
    %2945 = vmatprep.subr.bf16.mxu0 0
    %2946 = vmatpush1.bf16.msra.mxu0 0
    %2947 = vmatprep.subr.bf16.mxu0 0
    %2948 = vmatpush1.bf16.msra.mxu0 0
    %2949 = vmatprep.subr.bf16.mxu0 0
    %2950 = vmatpush1.bf16.msra.mxu0 0
    %2951 = vmatprep.subr.bf16.mxu0 0
    %2952 = vmatpush1.bf16.msra.mxu0 0
    %2953 = vmatprep.subr.bf16.mxu0 0
    %2954 = vmatpush1.bf16.msra.mxu0 0
    %2955 = vmatprep.subr.bf16.mxu0 0
    %2956 = vmatpush1.bf16.msra.mxu0 0
    %2957 = vmatprep.subr.bf16.mxu0 0
    %2958 = vmatpush1.bf16.msra.mxu0 0
    %2959 = vmatprep.mubr.bf16.mxu0 0
    %2960 = vmatmul.mubr.bf16.gmra.mrb[0].mxu0 %v2861
    %v2961 = vpop.f32.mrb[0].mxu0
    %v2962 = vadd.f32 0.0, %v2961
    %v2963 = vpop.f32.mrb[0].mxu0
    %v2964 = vpop.f32.mrb[0].mxu0
    %v2965 = vpop.f32.mrb[0].mxu0
    %2966 = vdwg.mxu0
    %2967 = vst [vmem:[#allocation5] sm:$0xf] %v2962
    %s2968 = scalar_lea.vmem [#allocation2], 8
    %v2969 = vld [vmem:[%s2968] ss:$2 sm:$0xf]
    %v2970 = vpack.c.bf16 %v2969, %v2969
    %v2971 = vld [vmem:[%s2862] sm:$0xf]
    %v2972 = vld [vmem:[%s2862 + $0x4] sm:$0xf]
    %v2973 = vld [vmem:[%s2862 + $0x8] sm:$0xf]
    %v2974 = vld [vmem:[%s2862 + $0xc] sm:$0xf]
    %v2975 = vld [vmem:[%s2862 + $0x10] sm:$0xf]
    %v2976 = vld [vmem:[%s2862 + $0x14] sm:$0xf]
    %v2977 = vld [vmem:[%s2862 + $0x18] sm:$0xf]
    %v2978 = vld [vmem:[%s2862 + $0x1c] sm:$0xf]
    %v2979 = vld [vmem:[%s2862 + $0x20] sm:$0xf]
    %v2980 = vld [vmem:[%s2862 + $0x24] sm:$0xf]
    %v2981 = vld [vmem:[%s2862 + $0x28] sm:$0xf]
    %v2982 = vld [vmem:[%s2862 + $0x2c] sm:$0xf]
    %v2983 = vld [vmem:[%s2862 + $0x30] sm:$0xf]
    %v2984 = vld [vmem:[%s2862 + $0x34] sm:$0xf]
    %v2985 = vld [vmem:[%s2862 + $0x38] sm:$0xf]
    %v2986 = vld [vmem:[%s2862 + $0x3c] sm:$0xf]
    %v3003 = vunpack.c.l.b16 %v2971
    %v3004 = vunpack.c.l.b16 %v2972
    %v3005 = vunpack.c.l.b16 %v2973
    %v3006 = vunpack.c.l.b16 %v2974
    %v3007 = vunpack.c.l.b16 %v2975
    %v3008 = vunpack.c.l.b16 %v2976
    %v3009 = vunpack.c.l.b16 %v2977
    %v3010 = vunpack.c.l.b16 %v2978
    %v3011 = vunpack.c.l.b16 %v2979
    %v3012 = vunpack.c.l.b16 %v2980
    %v3013 = vunpack.c.l.b16 %v2981
    %v3014 = vunpack.c.l.b16 %v2982
    %v3015 = vunpack.c.l.b16 %v2983
    %v3016 = vunpack.c.l.b16 %v2984
    %v3017 = vunpack.c.l.b16 %v2985
    %v3018 = vunpack.c.l.b16 %v2986
    %v3019 = vpack.c.b16 %v3004, %v3003
    %v3020 = vpack.c.b16 %v3006, %v3005
    %v3021 = vpack.c.b16 %v3008, %v3007
    %v3022 = vpack.c.b16 %v3010, %v3009
    %v3023 = vpack.c.b16 %v3012, %v3011
    %v3024 = vpack.c.b16 %v3014, %v3013
    %v3025 = vpack.c.b16 %v3016, %v3015
    %v3026 = vpack.c.b16 %v3018, %v3017
    %3035 = vmatprep.subr.bf16.mxu0 0
    %3036 = vmatpush1.bf16.msra.mxu0 %v3019
    %3037 = vmatprep.subr.bf16.mxu0 0
    %3038 = vmatpush1.bf16.msra.mxu0 %v3020
    %3039 = vmatprep.subr.bf16.mxu0 0
    %3040 = vmatpush1.bf16.msra.mxu0 %v3021
    %3041 = vmatprep.subr.bf16.mxu0 0
    %3042 = vmatpush1.bf16.msra.mxu0 %v3022
    %3043 = vmatprep.subr.bf16.mxu0 0
    %3044 = vmatpush1.bf16.msra.mxu0 %v3023
    %3045 = vmatprep.subr.bf16.mxu0 0
    %3046 = vmatpush1.bf16.msra.mxu0 %v3024
    %3047 = vmatprep.subr.bf16.mxu0 0
    %3048 = vmatpush1.bf16.msra.mxu0 %v3025
    %3049 = vmatprep.subr.bf16.mxu0 0
    %3050 = vmatpush1.bf16.msra.mxu0 %v3026
    %3051 = vmatprep.subr.bf16.mxu0 0
    %3052 = vmatpush1.bf16.msra.mxu0 0
    %3053 = vmatprep.subr.bf16.mxu0 0
    %3054 = vmatpush1.bf16.msra.mxu0 0
    %3055 = vmatprep.subr.bf16.mxu0 0
    %3056 = vmatpush1.bf16.msra.mxu0 0
    %3057 = vmatprep.subr.bf16.mxu0 0
    %3058 = vmatpush1.bf16.msra.mxu0 0
    %3059 = vmatprep.subr.bf16.mxu0 0
    %3060 = vmatpush1.bf16.msra.mxu0 0
    %3061 = vmatprep.subr.bf16.mxu0 0
    %3062 = vmatpush1.bf16.msra.mxu0 0
    %3063 = vmatprep.subr.bf16.mxu0 0
    %3064 = vmatpush1.bf16.msra.mxu0 0
    %3065 = vmatprep.subr.bf16.mxu0 0
    %3066 = vmatpush1.bf16.msra.mxu0 0
    %3067 = vmatprep.mubr.bf16.mxu0 0
    %3068 = vmatmul.mubr.bf16.gmra.mrb[0].mxu0 %v2970
    %v3069 = vpop.f32.mrb[0].mxu0
    %v3070 = vadd.f32 0.0, %v3069
    %v3071 = vpop.f32.mrb[0].mxu0
    %v3072 = vpop.f32.mrb[0].mxu0
    %v3073 = vpop.f32.mrb[0].mxu0
    %3074 = vdwg.mxu0
    %3075 = vst [vmem:[#allocation5 + $0x4] sm:$0xf] %v3070
    %v3076 = vld [vmem:[#allocation12 + $0x6] sm:$0x1]
    %v3077 = vld [vmem:[#allocation14 + $0x6] sm:$0x1]
    %v3078 = vlaneseq
    %v3079 = vshrl.u32 %v3078, 7
    %v3080 = vsub.s32 0, %v3079
    %v3081 = vrot.slane %v3076, %v3080
    %v3082 = vmul.f32 %v2852, %v3081
    %v3083 = vmul.f32 %v2855, %v3081
    %v3084 = vlaneseq
    %v3085 = vshrl.u32 %v3084, 7
    %v3086 = vsub.s32 0, %v3085
    %v3087 = vrot.slane %v3077, %v3086
    %v3088 = vadd.f32 %v3082, %v3087
    %v3089 = vadd.f32 %v3083, %v3087
    %v3090 = vmax.f32 %v3088, 0.0
    %v3091 = vmax.f32 %v3089, 0.0
    %v3092 = vpack.c.bf16 %v3091, %v3090
    %s3093 = scalar_lea.vmem [#allocation11], 320
    %v3094 = vld [vmem:[%s3093] sm:$0xf]
    %v3095 = vld [vmem:[%s3093 + $0x4] sm:$0xf]
    %v3096 = vld [vmem:[%s3093 + $0x8] sm:$0xf]
    %v3097 = vld [vmem:[%s3093 + $0xc] sm:$0xf]
    %v3098 = vld [vmem:[%s3093 + $0x10] sm:$0xf]
    %v3099 = vld [vmem:[%s3093 + $0x14] sm:$0xf]
    %v3100 = vld [vmem:[%s3093 + $0x18] sm:$0xf]
    %v3101 = vld [vmem:[%s3093 + $0x1c] sm:$0xf]
    %v3102 = vld [vmem:[%s3093 + $0x20] sm:$0xf]
    %v3103 = vld [vmem:[%s3093 + $0x24] sm:$0xf]
    %v3104 = vld [vmem:[%s3093 + $0x28] sm:$0xf]
    %v3105 = vld [vmem:[%s3093 + $0x2c] sm:$0xf]
    %v3106 = vld [vmem:[%s3093 + $0x30] sm:$0xf]
    %v3107 = vld [vmem:[%s3093 + $0x34] sm:$0xf]
    %v3108 = vld [vmem:[%s3093 + $0x38] sm:$0xf]
    %v3109 = vld [vmem:[%s3093 + $0x3c] sm:$0xf]
    %v3126 = vunpack.c.l.b16 %v3094
    %v3127 = vunpack.c.l.b16 %v3095
    %v3128 = vunpack.c.l.b16 %v3096
    %v3129 = vunpack.c.l.b16 %v3097
    %v3130 = vunpack.c.l.b16 %v3098
    %v3131 = vunpack.c.l.b16 %v3099
    %v3132 = vunpack.c.l.b16 %v3100
    %v3133 = vunpack.c.l.b16 %v3101
    %v3134 = vunpack.c.l.b16 %v3102
    %v3135 = vunpack.c.l.b16 %v3103
    %v3136 = vunpack.c.l.b16 %v3104
    %v3137 = vunpack.c.l.b16 %v3105
    %v3138 = vunpack.c.l.b16 %v3106
    %v3139 = vunpack.c.l.b16 %v3107
    %v3140 = vunpack.c.l.b16 %v3108
    %v3141 = vunpack.c.l.b16 %v3109
    %v3142 = vpack.c.b16 %v3127, %v3126
    %v3143 = vpack.c.b16 %v3129, %v3128
    %v3144 = vpack.c.b16 %v3131, %v3130
    %v3145 = vpack.c.b16 %v3133, %v3132
    %v3146 = vpack.c.b16 %v3135, %v3134
    %v3147 = vpack.c.b16 %v3137, %v3136
    %v3148 = vpack.c.b16 %v3139, %v3138
    %v3149 = vpack.c.b16 %v3141, %v3140
    %3158 = vmatprep.subr.bf16.mxu0 0
    %3159 = vmatpush1.bf16.msra.mxu0 %v3142
    %3160 = vmatprep.subr.bf16.mxu0 0
    %3161 = vmatpush1.bf16.msra.mxu0 %v3143
    %3162 = vmatprep.subr.bf16.mxu0 0
    %3163 = vmatpush1.bf16.msra.mxu0 %v3144
    %3164 = vmatprep.subr.bf16.mxu0 0
    %3165 = vmatpush1.bf16.msra.mxu0 %v3145
    %3166 = vmatprep.subr.bf16.mxu0 0
    %3167 = vmatpush1.bf16.msra.mxu0 %v3146
    %3168 = vmatprep.subr.bf16.mxu0 0
    %3169 = vmatpush1.bf16.msra.mxu0 %v3147
    %3170 = vmatprep.subr.bf16.mxu0 0
    %3171 = vmatpush1.bf16.msra.mxu0 %v3148
    %3172 = vmatprep.subr.bf16.mxu0 0
    %3173 = vmatpush1.bf16.msra.mxu0 %v3149
    %3174 = vmatprep.subr.bf16.mxu0 0
    %3175 = vmatpush1.bf16.msra.mxu0 0
    %3176 = vmatprep.subr.bf16.mxu0 0
    %3177 = vmatpush1.bf16.msra.mxu0 0
    %3178 = vmatprep.subr.bf16.mxu0 0
    %3179 = vmatpush1.bf16.msra.mxu0 0
    %3180 = vmatprep.subr.bf16.mxu0 0
    %3181 = vmatpush1.bf16.msra.mxu0 0
    %3182 = vmatprep.subr.bf16.mxu0 0
    %3183 = vmatpush1.bf16.msra.mxu0 0
    %3184 = vmatprep.subr.bf16.mxu0 0
    %3185 = vmatpush1.bf16.msra.mxu0 0
    %3186 = vmatprep.subr.bf16.mxu0 0
    %3187 = vmatpush1.bf16.msra.mxu0 0
    %3188 = vmatprep.subr.bf16.mxu0 0
    %3189 = vmatpush1.bf16.msra.mxu0 0
    %3190 = vmatprep.mubr.bf16.mxu0 0
    %3191 = vmatmul.mubr.bf16.gmra.mrb[0].mxu0 %v3092
    %v3192 = vpop.f32.mrb[0].mxu0
    %v3193 = vadd.f32 0.0, %v3192
    %v3194 = vpop.f32.mrb[0].mxu0
    %v3195 = vpop.f32.mrb[0].mxu0
    %v3196 = vadd.f32 0.0, %v3195
    %v3197 = vpop.f32.mrb[0].mxu0
    %3198 = vdwg.mxu0
    %v3199 = vld [vmem:[#allocation12 + $0x7] sm:$0x1]
    %v3200 = vld [vmem:[#allocation14 + $0x7] sm:$0x1]
    %v3201 = vlaneseq
    %v3202 = vshrl.u32 %v3201, 7
    %v3203 = vsub.s32 0, %v3202
    %v3204 = vrot.slane %v3199, %v3203
    %v3205 = vmul.f32 %v3193, %v3204
    %v3206 = vmul.f32 %v3196, %v3204
    %v3207 = vlaneseq
    %v3208 = vshrl.u32 %v3207, 7
    %v3209 = vsub.s32 0, %v3208
    %v3210 = vrot.slane %v3200, %v3209
    %v3211 = vadd.f32 %v3205, %v3210
    %v3212 = vadd.f32 %v3206, %v3210
    %v3213 = vmax.f32 %v3211, 0.0
    %v3214 = vmax.f32 %v3212, 0.0
    %3215 = vst [vmem:[#allocation2] sm:$0xff] %v3213
    %3216 = vst [vmem:[#allocation2 + $0x8] sm:$0xff] %v3214
    %3217 = vst [vmem:[#allocation3] sm:$0x3] 0.0
    %3218 = vst [vmem:[#allocation3 + $0xa] sm:$0x3] 0.0
    %v3219 = vld [vmem:[#allocation2] sm:$0xff]
    %3220 = vst [vmem:[#allocation3 + $0x2] sm:$0xff] %v3219
    %3221 = vst [vmem:[#allocation3 + $0xc] sm:$0x3] 0.0
    %3222 = vst [vmem:[#allocation3 + $0x16] sm:$0x3] 0.0
    %v3223 = vld [vmem:[#allocation2 + $0x8] sm:$0xff]
    %3224 = vst [vmem:[#allocation3 + $0xe] sm:$0xff] %v3223
    %v3225 = vld [vmem:[#allocation3] ss:$2 sm:$0xf]
    %v3226 = vpack.c.bf16 %v3225, %v3225
    %s3227 = scalar_lea.vmem [#allocation9], 576
    %v3228 = vld [vmem:[%s3227] sm:$0xf]
    %v3229 = vld [vmem:[%s3227 + $0x4] sm:$0xf]
    %v3230 = vld [vmem:[%s3227 + $0x8] sm:$0xf]
    %v3231 = vld [vmem:[%s3227 + $0xc] sm:$0xf]
    %v3232 = vld [vmem:[%s3227 + $0x10] sm:$0xf]
    %v3233 = vld [vmem:[%s3227 + $0x14] sm:$0xf]
    %v3234 = vld [vmem:[%s3227 + $0x18] sm:$0xf]
    %v3235 = vld [vmem:[%s3227 + $0x1c] sm:$0xf]
    %v3236 = vld [vmem:[%s3227 + $0x20] sm:$0xf]
    %v3237 = vld [vmem:[%s3227 + $0x24] sm:$0xf]
    %v3238 = vld [vmem:[%s3227 + $0x28] sm:$0xf]
    %v3239 = vld [vmem:[%s3227 + $0x2c] sm:$0xf]
    %v3240 = vld [vmem:[%s3227 + $0x30] sm:$0xf]
    %v3241 = vld [vmem:[%s3227 + $0x34] sm:$0xf]
    %v3242 = vld [vmem:[%s3227 + $0x38] sm:$0xf]
    %v3243 = vld [vmem:[%s3227 + $0x3c] sm:$0xf]
    %v3244 = vld [vmem:[%s1381] ss:$2 sm:$0xf]
    %v3245 = vpack.c.bf16 %v3244, %v3244
    %s3246 = scalar_lea.vmem [#allocation9], 640
    %v3247 = vld [vmem:[%s3246] sm:$0xf]
    %v3248 = vld [vmem:[%s3246 + $0x4] sm:$0xf]
    %v3249 = vld [vmem:[%s3246 + $0x8] sm:$0xf]
    %v3250 = vld [vmem:[%s3246 + $0xc] sm:$0xf]
    %v3251 = vld [vmem:[%s3246 + $0x10] sm:$0xf]
    %v3252 = vld [vmem:[%s3246 + $0x14] sm:$0xf]
    %v3253 = vld [vmem:[%s3246 + $0x18] sm:$0xf]
    %v3254 = vld [vmem:[%s3246 + $0x1c] sm:$0xf]
    %v3255 = vld [vmem:[%s3246 + $0x20] sm:$0xf]
    %v3256 = vld [vmem:[%s3246 + $0x24] sm:$0xf]
    %v3257 = vld [vmem:[%s3246 + $0x28] sm:$0xf]
    %v3258 = vld [vmem:[%s3246 + $0x2c] sm:$0xf]
    %v3259 = vld [vmem:[%s3246 + $0x30] sm:$0xf]
    %v3260 = vld [vmem:[%s3246 + $0x34] sm:$0xf]
    %v3261 = vld [vmem:[%s3246 + $0x38] sm:$0xf]
    %v3262 = vld [vmem:[%s3246 + $0x3c] sm:$0xf]
    %v3279 = vunpack.c.l.b16 %v3247
    %v3280 = vunpack.c.l.b16 %v3248
    %v3281 = vunpack.c.l.b16 %v3249
    %v3282 = vunpack.c.l.b16 %v3250
    %v3283 = vunpack.c.l.b16 %v3251
    %v3284 = vunpack.c.l.b16 %v3252
    %v3285 = vunpack.c.l.b16 %v3253
    %v3286 = vunpack.c.l.b16 %v3254
    %v3287 = vunpack.c.l.b16 %v3255
    %v3288 = vunpack.c.l.b16 %v3256
    %v3289 = vunpack.c.l.b16 %v3257
    %v3290 = vunpack.c.l.b16 %v3258
    %v3291 = vunpack.c.l.b16 %v3259
    %v3292 = vunpack.c.l.b16 %v3260
    %v3293 = vunpack.c.l.b16 %v3261
    %v3294 = vunpack.c.l.b16 %v3262
    %v3295 = vpack.c.b16 %v3280, %v3279
    %v3296 = vpack.c.b16 %v3282, %v3281
    %v3297 = vpack.c.b16 %v3284, %v3283
    %v3298 = vpack.c.b16 %v3286, %v3285
    %v3299 = vpack.c.b16 %v3288, %v3287
    %v3300 = vpack.c.b16 %v3290, %v3289
    %v3301 = vpack.c.b16 %v3292, %v3291
    %v3302 = vpack.c.b16 %v3294, %v3293
    %3311 = vmatprep.subr.bf16.mxu0 0
    %3312 = vmatpush1.bf16.msra.mxu0 %v3295
    %3313 = vmatprep.subr.bf16.mxu0 0
    %3314 = vmatpush1.bf16.msra.mxu0 %v3296
    %3315 = vmatprep.subr.bf16.mxu0 0
    %3316 = vmatpush1.bf16.msra.mxu0 %v3297
    %3317 = vmatprep.subr.bf16.mxu0 0
    %3318 = vmatpush1.bf16.msra.mxu0 %v3298
    %3319 = vmatprep.subr.bf16.mxu0 0
    %3320 = vmatpush1.bf16.msra.mxu0 %v3299
    %3321 = vmatprep.subr.bf16.mxu0 0
    %3322 = vmatpush1.bf16.msra.mxu0 %v3300
    %3323 = vmatprep.subr.bf16.mxu0 0
    %3324 = vmatpush1.bf16.msra.mxu0 %v3301
    %3325 = vmatprep.subr.bf16.mxu0 0
    %3326 = vmatpush1.bf16.msra.mxu0 %v3302
    %3327 = vmatprep.subr.bf16.mxu0 0
    %3328 = vmatpush1.bf16.msra.mxu0 0
    %3329 = vmatprep.subr.bf16.mxu0 0
    %3330 = vmatpush1.bf16.msra.mxu0 0
    %3331 = vmatprep.subr.bf16.mxu0 0
    %3332 = vmatpush1.bf16.msra.mxu0 0
    %3333 = vmatprep.subr.bf16.mxu0 0
    %3334 = vmatpush1.bf16.msra.mxu0 0
    %3335 = vmatprep.subr.bf16.mxu0 0
    %3336 = vmatpush1.bf16.msra.mxu0 0
    %3337 = vmatprep.subr.bf16.mxu0 0
    %3338 = vmatpush1.bf16.msra.mxu0 0
    %3339 = vmatprep.subr.bf16.mxu0 0
    %3340 = vmatpush1.bf16.msra.mxu0 0
    %3341 = vmatprep.subr.bf16.mxu0 0
    %3342 = vmatpush1.bf16.msra.mxu0 0
    %3343 = vmatprep.mubr.bf16.mxu0 0
    %3344 = vmatmul.mubr.bf16.gmra.mrb[0].mxu0 %v3245
    %v3345 = vpop.f32.mrb[0].mxu0
    %v3346 = vadd.f32 0.0, %v3345
    %v3347 = vpop.f32.mrb[0].mxu0
    %v3348 = vpop.f32.mrb[0].mxu0
    %v3349 = vpop.f32.mrb[0].mxu0
    %3350 = vdwg.mxu0
    %v3367 = vunpack.c.l.b16 %v3228
    %v3368 = vunpack.c.l.b16 %v3229
    %v3369 = vunpack.c.l.b16 %v3230
    %v3370 = vunpack.c.l.b16 %v3231
    %v3371 = vunpack.c.l.b16 %v3232
    %v3372 = vunpack.c.l.b16 %v3233
    %v3373 = vunpack.c.l.b16 %v3234
    %v3374 = vunpack.c.l.b16 %v3235
    %v3375 = vunpack.c.l.b16 %v3236
    %v3376 = vunpack.c.l.b16 %v3237
    %v3377 = vunpack.c.l.b16 %v3238
    %v3378 = vunpack.c.l.b16 %v3239
    %v3379 = vunpack.c.l.b16 %v3240
    %v3380 = vunpack.c.l.b16 %v3241
    %v3381 = vunpack.c.l.b16 %v3242
    %v3382 = vunpack.c.l.b16 %v3243
    %v3383 = vpack.c.b16 %v3368, %v3367
    %v3384 = vpack.c.b16 %v3370, %v3369
    %v3385 = vpack.c.b16 %v3372, %v3371
    %v3386 = vpack.c.b16 %v3374, %v3373
    %v3387 = vpack.c.b16 %v3376, %v3375
    %v3388 = vpack.c.b16 %v3378, %v3377
    %v3389 = vpack.c.b16 %v3380, %v3379
    %v3390 = vpack.c.b16 %v3382, %v3381
    %3399 = vmatprep.subr.bf16.mxu0 0
    %3400 = vmatpush1.bf16.msra.mxu0 %v3383
    %3401 = vmatprep.subr.bf16.mxu0 0
    %3402 = vmatpush1.bf16.msra.mxu0 %v3384
    %3403 = vmatprep.subr.bf16.mxu0 0
    %3404 = vmatpush1.bf16.msra.mxu0 %v3385
    %3405 = vmatprep.subr.bf16.mxu0 0
    %3406 = vmatpush1.bf16.msra.mxu0 %v3386
    %3407 = vmatprep.subr.bf16.mxu0 0
    %3408 = vmatpush1.bf16.msra.mxu0 %v3387
    %3409 = vmatprep.subr.bf16.mxu0 0
    %3410 = vmatpush1.bf16.msra.mxu0 %v3388
    %3411 = vmatprep.subr.bf16.mxu0 0
    %3412 = vmatpush1.bf16.msra.mxu0 %v3389
    %3413 = vmatprep.subr.bf16.mxu0 0
    %3414 = vmatpush1.bf16.msra.mxu0 %v3390
    %3415 = vmatprep.subr.bf16.mxu0 0
    %3416 = vmatpush1.bf16.msra.mxu0 0
    %3417 = vmatprep.subr.bf16.mxu0 0
    %3418 = vmatpush1.bf16.msra.mxu0 0
    %3419 = vmatprep.subr.bf16.mxu0 0
    %3420 = vmatpush1.bf16.msra.mxu0 0
    %3421 = vmatprep.subr.bf16.mxu0 0
    %3422 = vmatpush1.bf16.msra.mxu0 0
    %3423 = vmatprep.subr.bf16.mxu0 0
    %3424 = vmatpush1.bf16.msra.mxu0 0
    %3425 = vmatprep.subr.bf16.mxu0 0
    %3426 = vmatpush1.bf16.msra.mxu0 0
    %3427 = vmatprep.subr.bf16.mxu0 0
    %3428 = vmatpush1.bf16.msra.mxu0 0
    %3429 = vmatprep.subr.bf16.mxu0 0
    %3430 = vmatpush1.bf16.msra.mxu0 0
    %3431 = vmatprep.mubr.bf16.mxu0 0
    %3432 = vmatmul.mubr.bf16.gmra.mrb[0].mxu0 %v3226
    %v3433 = vpop.f32.mrb[0].mxu0
    %v3434 = vadd.f32 %v3346, %v3433
    %v3435 = vpop.f32.mrb[0].mxu0
    %v3436 = vpop.f32.mrb[0].mxu0
    %v3437 = vpop.f32.mrb[0].mxu0
    %3438 = vdwg.mxu0
    %s3439 = scalar_lea.vmem [#allocation3], 4
    %v3440 = vld [vmem:[%s3439] ss:$2 sm:$0xf]
    %v3441 = vpack.c.bf16 %v3440, %v3440
    %s3442 = scalar_lea.vmem [#allocation9], 704
    %v3443 = vld [vmem:[%s3442] sm:$0xf]
    %v3444 = vld [vmem:[%s3442 + $0x4] sm:$0xf]
    %v3445 = vld [vmem:[%s3442 + $0x8] sm:$0xf]
    %v3446 = vld [vmem:[%s3442 + $0xc] sm:$0xf]
    %v3447 = vld [vmem:[%s3442 + $0x10] sm:$0xf]
    %v3448 = vld [vmem:[%s3442 + $0x14] sm:$0xf]
    %v3449 = vld [vmem:[%s3442 + $0x18] sm:$0xf]
    %v3450 = vld [vmem:[%s3442 + $0x1c] sm:$0xf]
    %v3451 = vld [vmem:[%s3442 + $0x20] sm:$0xf]
    %v3452 = vld [vmem:[%s3442 + $0x24] sm:$0xf]
    %v3453 = vld [vmem:[%s3442 + $0x28] sm:$0xf]
    %v3454 = vld [vmem:[%s3442 + $0x2c] sm:$0xf]
    %v3455 = vld [vmem:[%s3442 + $0x30] sm:$0xf]
    %v3456 = vld [vmem:[%s3442 + $0x34] sm:$0xf]
    %v3457 = vld [vmem:[%s3442 + $0x38] sm:$0xf]
    %v3458 = vld [vmem:[%s3442 + $0x3c] sm:$0xf]
    %v3475 = vunpack.c.l.b16 %v3443
    %v3476 = vunpack.c.l.b16 %v3444
    %v3477 = vunpack.c.l.b16 %v3445
    %v3478 = vunpack.c.l.b16 %v3446
    %v3479 = vunpack.c.l.b16 %v3447
    %v3480 = vunpack.c.l.b16 %v3448
    %v3481 = vunpack.c.l.b16 %v3449
    %v3482 = vunpack.c.l.b16 %v3450
    %v3483 = vunpack.c.l.b16 %v3451
    %v3484 = vunpack.c.l.b16 %v3452
    %v3485 = vunpack.c.l.b16 %v3453
    %v3486 = vunpack.c.l.b16 %v3454
    %v3487 = vunpack.c.l.b16 %v3455
    %v3488 = vunpack.c.l.b16 %v3456
    %v3489 = vunpack.c.l.b16 %v3457
    %v3490 = vunpack.c.l.b16 %v3458
    %v3491 = vpack.c.b16 %v3476, %v3475
    %v3492 = vpack.c.b16 %v3478, %v3477
    %v3493 = vpack.c.b16 %v3480, %v3479
    %v3494 = vpack.c.b16 %v3482, %v3481
    %v3495 = vpack.c.b16 %v3484, %v3483
    %v3496 = vpack.c.b16 %v3486, %v3485
    %v3497 = vpack.c.b16 %v3488, %v3487
    %v3498 = vpack.c.b16 %v3490, %v3489
    %3507 = vmatprep.subr.bf16.mxu0 0
    %3508 = vmatpush1.bf16.msra.mxu0 %v3491
    %3509 = vmatprep.subr.bf16.mxu0 0
    %3510 = vmatpush1.bf16.msra.mxu0 %v3492
    %3511 = vmatprep.subr.bf16.mxu0 0
    %3512 = vmatpush1.bf16.msra.mxu0 %v3493
    %3513 = vmatprep.subr.bf16.mxu0 0
    %3514 = vmatpush1.bf16.msra.mxu0 %v3494
    %3515 = vmatprep.subr.bf16.mxu0 0
    %3516 = vmatpush1.bf16.msra.mxu0 %v3495
    %3517 = vmatprep.subr.bf16.mxu0 0
    %3518 = vmatpush1.bf16.msra.mxu0 %v3496
    %3519 = vmatprep.subr.bf16.mxu0 0
    %3520 = vmatpush1.bf16.msra.mxu0 %v3497
    %3521 = vmatprep.subr.bf16.mxu0 0
    %3522 = vmatpush1.bf16.msra.mxu0 %v3498
    %3523 = vmatprep.subr.bf16.mxu0 0
    %3524 = vmatpush1.bf16.msra.mxu0 0
    %3525 = vmatprep.subr.bf16.mxu0 0
    %3526 = vmatpush1.bf16.msra.mxu0 0
    %3527 = vmatprep.subr.bf16.mxu0 0
    %3528 = vmatpush1.bf16.msra.mxu0 0
    %3529 = vmatprep.subr.bf16.mxu0 0
    %3530 = vmatpush1.bf16.msra.mxu0 0
    %3531 = vmatprep.subr.bf16.mxu0 0
    %3532 = vmatpush1.bf16.msra.mxu0 0
    %3533 = vmatprep.subr.bf16.mxu0 0
    %3534 = vmatpush1.bf16.msra.mxu0 0
    %3535 = vmatprep.subr.bf16.mxu0 0
    %3536 = vmatpush1.bf16.msra.mxu0 0
    %3537 = vmatprep.subr.bf16.mxu0 0
    %3538 = vmatpush1.bf16.msra.mxu0 0
    %3539 = vmatprep.mubr.bf16.mxu0 0
    %3540 = vmatmul.mubr.bf16.gmra.mrb[0].mxu0 %v3441
    %v3541 = vpop.f32.mrb[0].mxu0
    %v3542 = vadd.f32 0.0, %v3541
    %v3543 = vpop.f32.mrb[0].mxu0
    %v3544 = vpop.f32.mrb[0].mxu0
    %v3545 = vpop.f32.mrb[0].mxu0
    %3546 = vdwg.mxu0
    %v3547 = vadd.f32 %v3434, %v3542
    %3548 = vst [vmem:[#allocation4] sm:$0xf] %v3547
    %s3549 = scalar_lea.vmem [#allocation3], 12
    %v3550 = vld [vmem:[%s3549] ss:$2 sm:$0xf]
    %v3551 = vpack.c.bf16 %v3550, %v3550
    %v3552 = vld [vmem:[%s3227] sm:$0xf]
    %v3553 = vld [vmem:[%s3227 + $0x4] sm:$0xf]
    %v3554 = vld [vmem:[%s3227 + $0x8] sm:$0xf]
    %v3555 = vld [vmem:[%s3227 + $0xc] sm:$0xf]
    %v3556 = vld [vmem:[%s3227 + $0x10] sm:$0xf]
    %v3557 = vld [vmem:[%s3227 + $0x14] sm:$0xf]
    %v3558 = vld [vmem:[%s3227 + $0x18] sm:$0xf]
    %v3559 = vld [vmem:[%s3227 + $0x1c] sm:$0xf]
    %v3560 = vld [vmem:[%s3227 + $0x20] sm:$0xf]
    %v3561 = vld [vmem:[%s3227 + $0x24] sm:$0xf]
    %v3562 = vld [vmem:[%s3227 + $0x28] sm:$0xf]
    %v3563 = vld [vmem:[%s3227 + $0x2c] sm:$0xf]
    %v3564 = vld [vmem:[%s3227 + $0x30] sm:$0xf]
    %v3565 = vld [vmem:[%s3227 + $0x34] sm:$0xf]
    %v3566 = vld [vmem:[%s3227 + $0x38] sm:$0xf]
    %v3567 = vld [vmem:[%s3227 + $0x3c] sm:$0xf]
    %s3568 = scalar_lea.vmem [#allocation3], 14
    %v3569 = vld [vmem:[%s3568] ss:$2 sm:$0xf]
    %v3570 = vpack.c.bf16 %v3569, %v3569
    %v3571 = vld [vmem:[%s3246] sm:$0xf]
    %v3572 = vld [vmem:[%s3246 + $0x4] sm:$0xf]
    %v3573 = vld [vmem:[%s3246 + $0x8] sm:$0xf]
    %v3574 = vld [vmem:[%s3246 + $0xc] sm:$0xf]
    %v3575 = vld [vmem:[%s3246 + $0x10] sm:$0xf]
    %v3576 = vld [vmem:[%s3246 + $0x14] sm:$0xf]
    %v3577 = vld [vmem:[%s3246 + $0x18] sm:$0xf]
    %v3578 = vld [vmem:[%s3246 + $0x1c] sm:$0xf]
    %v3579 = vld [vmem:[%s3246 + $0x20] sm:$0xf]
    %v3580 = vld [vmem:[%s3246 + $0x24] sm:$0xf]
    %v3581 = vld [vmem:[%s3246 + $0x28] sm:$0xf]
    %v3582 = vld [vmem:[%s3246 + $0x2c] sm:$0xf]
    %v3583 = vld [vmem:[%s3246 + $0x30] sm:$0xf]
    %v3584 = vld [vmem:[%s3246 + $0x34] sm:$0xf]
    %v3585 = vld [vmem:[%s3246 + $0x38] sm:$0xf]
    %v3586 = vld [vmem:[%s3246 + $0x3c] sm:$0xf]
    %v3603 = vunpack.c.l.b16 %v3571
    %v3604 = vunpack.c.l.b16 %v3572
    %v3605 = vunpack.c.l.b16 %v3573
    %v3606 = vunpack.c.l.b16 %v3574
    %v3607 = vunpack.c.l.b16 %v3575
    %v3608 = vunpack.c.l.b16 %v3576
    %v3609 = vunpack.c.l.b16 %v3577
    %v3610 = vunpack.c.l.b16 %v3578
    %v3611 = vunpack.c.l.b16 %v3579
    %v3612 = vunpack.c.l.b16 %v3580
    %v3613 = vunpack.c.l.b16 %v3581
    %v3614 = vunpack.c.l.b16 %v3582
    %v3615 = vunpack.c.l.b16 %v3583
    %v3616 = vunpack.c.l.b16 %v3584
    %v3617 = vunpack.c.l.b16 %v3585
    %v3618 = vunpack.c.l.b16 %v3586
    %v3619 = vpack.c.b16 %v3604, %v3603
    %v3620 = vpack.c.b16 %v3606, %v3605
    %v3621 = vpack.c.b16 %v3608, %v3607
    %v3622 = vpack.c.b16 %v3610, %v3609
    %v3623 = vpack.c.b16 %v3612, %v3611
    %v3624 = vpack.c.b16 %v3614, %v3613
    %v3625 = vpack.c.b16 %v3616, %v3615
    %v3626 = vpack.c.b16 %v3618, %v3617
    %3635 = vmatprep.subr.bf16.mxu0 0
    %3636 = vmatpush1.bf16.msra.mxu0 %v3619
    %3637 = vmatprep.subr.bf16.mxu0 0
    %3638 = vmatpush1.bf16.msra.mxu0 %v3620
    %3639 = vmatprep.subr.bf16.mxu0 0
    %3640 = vmatpush1.bf16.msra.mxu0 %v3621
    %3641 = vmatprep.subr.bf16.mxu0 0
    %3642 = vmatpush1.bf16.msra.mxu0 %v3622
    %3643 = vmatprep.subr.bf16.mxu0 0
    %3644 = vmatpush1.bf16.msra.mxu0 %v3623
    %3645 = vmatprep.subr.bf16.mxu0 0
    %3646 = vmatpush1.bf16.msra.mxu0 %v3624
    %3647 = vmatprep.subr.bf16.mxu0 0
    %3648 = vmatpush1.bf16.msra.mxu0 %v3625
    %3649 = vmatprep.subr.bf16.mxu0 0
    %3650 = vmatpush1.bf16.msra.mxu0 %v3626
    %3651 = vmatprep.subr.bf16.mxu0 0
    %3652 = vmatpush1.bf16.msra.mxu0 0
    %3653 = vmatprep.subr.bf16.mxu0 0
    %3654 = vmatpush1.bf16.msra.mxu0 0
    %3655 = vmatprep.subr.bf16.mxu0 0
    %3656 = vmatpush1.bf16.msra.mxu0 0
    %3657 = vmatprep.subr.bf16.mxu0 0
    %3658 = vmatpush1.bf16.msra.mxu0 0
    %3659 = vmatprep.subr.bf16.mxu0 0
    %3660 = vmatpush1.bf16.msra.mxu0 0
    %3661 = vmatprep.subr.bf16.mxu0 0
    %3662 = vmatpush1.bf16.msra.mxu0 0
    %3663 = vmatprep.subr.bf16.mxu0 0
    %3664 = vmatpush1.bf16.msra.mxu0 0
    %3665 = vmatprep.subr.bf16.mxu0 0
    %3666 = vmatpush1.bf16.msra.mxu0 0
    %3667 = vmatprep.mubr.bf16.mxu0 0
    %3668 = vmatmul.mubr.bf16.gmra.mrb[0].mxu0 %v3570
    %v3669 = vpop.f32.mrb[0].mxu0
    %v3670 = vadd.f32 0.0, %v3669
    %v3671 = vpop.f32.mrb[0].mxu0
    %v3672 = vpop.f32.mrb[0].mxu0
    %v3673 = vpop.f32.mrb[0].mxu0
    %3674 = vdwg.mxu0
    %v3691 = vunpack.c.l.b16 %v3552
    %v3692 = vunpack.c.l.b16 %v3553
    %v3693 = vunpack.c.l.b16 %v3554
    %v3694 = vunpack.c.l.b16 %v3555
    %v3695 = vunpack.c.l.b16 %v3556
    %v3696 = vunpack.c.l.b16 %v3557
    %v3697 = vunpack.c.l.b16 %v3558
    %v3698 = vunpack.c.l.b16 %v3559
    %v3699 = vunpack.c.l.b16 %v3560
    %v3700 = vunpack.c.l.b16 %v3561
    %v3701 = vunpack.c.l.b16 %v3562
    %v3702 = vunpack.c.l.b16 %v3563
    %v3703 = vunpack.c.l.b16 %v3564
    %v3704 = vunpack.c.l.b16 %v3565
    %v3705 = vunpack.c.l.b16 %v3566
    %v3706 = vunpack.c.l.b16 %v3567
    %v3707 = vpack.c.b16 %v3692, %v3691
    %v3708 = vpack.c.b16 %v3694, %v3693
    %v3709 = vpack.c.b16 %v3696, %v3695
    %v3710 = vpack.c.b16 %v3698, %v3697
    %v3711 = vpack.c.b16 %v3700, %v3699
    %v3712 = vpack.c.b16 %v3702, %v3701
    %v3713 = vpack.c.b16 %v3704, %v3703
    %v3714 = vpack.c.b16 %v3706, %v3705
    %3723 = vmatprep.subr.bf16.mxu0 0
    %3724 = vmatpush1.bf16.msra.mxu0 %v3707
    %3725 = vmatprep.subr.bf16.mxu0 0
    %3726 = vmatpush1.bf16.msra.mxu0 %v3708
    %3727 = vmatprep.subr.bf16.mxu0 0
    %3728 = vmatpush1.bf16.msra.mxu0 %v3709
    %3729 = vmatprep.subr.bf16.mxu0 0
    %3730 = vmatpush1.bf16.msra.mxu0 %v3710
    %3731 = vmatprep.subr.bf16.mxu0 0
    %3732 = vmatpush1.bf16.msra.mxu0 %v3711
    %3733 = vmatprep.subr.bf16.mxu0 0
    %3734 = vmatpush1.bf16.msra.mxu0 %v3712
    %3735 = vmatprep.subr.bf16.mxu0 0
    %3736 = vmatpush1.bf16.msra.mxu0 %v3713
    %3737 = vmatprep.subr.bf16.mxu0 0
    %3738 = vmatpush1.bf16.msra.mxu0 %v3714
    %3739 = vmatprep.subr.bf16.mxu0 0
    %3740 = vmatpush1.bf16.msra.mxu0 0
    %3741 = vmatprep.subr.bf16.mxu0 0
    %3742 = vmatpush1.bf16.msra.mxu0 0
    %3743 = vmatprep.subr.bf16.mxu0 0
    %3744 = vmatpush1.bf16.msra.mxu0 0
    %3745 = vmatprep.subr.bf16.mxu0 0
    %3746 = vmatpush1.bf16.msra.mxu0 0
    %3747 = vmatprep.subr.bf16.mxu0 0
    %3748 = vmatpush1.bf16.msra.mxu0 0
    %3749 = vmatprep.subr.bf16.mxu0 0
    %3750 = vmatpush1.bf16.msra.mxu0 0
    %3751 = vmatprep.subr.bf16.mxu0 0
    %3752 = vmatpush1.bf16.msra.mxu0 0
    %3753 = vmatprep.subr.bf16.mxu0 0
    %3754 = vmatpush1.bf16.msra.mxu0 0
    %3755 = vmatprep.mubr.bf16.mxu0 0
    %3756 = vmatmul.mubr.bf16.gmra.mrb[0].mxu0 %v3551
    %v3757 = vpop.f32.mrb[0].mxu0
    %v3758 = vadd.f32 %v3670, %v3757
    %v3759 = vpop.f32.mrb[0].mxu0
    %v3760 = vpop.f32.mrb[0].mxu0
    %v3761 = vpop.f32.mrb[0].mxu0
    %3762 = vdwg.mxu0
    %s3763 = scalar_lea.vmem [#allocation3], 16
    %v3764 = vld [vmem:[%s3763] ss:$2 sm:$0xf]
    %v3765 = vpack.c.bf16 %v3764, %v3764
    %v3766 = vld [vmem:[%s3442] sm:$0xf]
    %v3767 = vld [vmem:[%s3442 + $0x4] sm:$0xf]
    %v3768 = vld [vmem:[%s3442 + $0x8] sm:$0xf]
    %v3769 = vld [vmem:[%s3442 + $0xc] sm:$0xf]
    %v3770 = vld [vmem:[%s3442 + $0x10] sm:$0xf]
    %v3771 = vld [vmem:[%s3442 + $0x14] sm:$0xf]
    %v3772 = vld [vmem:[%s3442 + $0x18] sm:$0xf]
    %v3773 = vld [vmem:[%s3442 + $0x1c] sm:$0xf]
    %v3774 = vld [vmem:[%s3442 + $0x20] sm:$0xf]
    %v3775 = vld [vmem:[%s3442 + $0x24] sm:$0xf]
    %v3776 = vld [vmem:[%s3442 + $0x28] sm:$0xf]
    %v3777 = vld [vmem:[%s3442 + $0x2c] sm:$0xf]
    %v3778 = vld [vmem:[%s3442 + $0x30] sm:$0xf]
    %v3779 = vld [vmem:[%s3442 + $0x34] sm:$0xf]
    %v3780 = vld [vmem:[%s3442 + $0x38] sm:$0xf]
    %v3781 = vld [vmem:[%s3442 + $0x3c] sm:$0xf]
    %v3798 = vunpack.c.l.b16 %v3766
    %v3799 = vunpack.c.l.b16 %v3767
    %v3800 = vunpack.c.l.b16 %v3768
    %v3801 = vunpack.c.l.b16 %v3769
    %v3802 = vunpack.c.l.b16 %v3770
    %v3803 = vunpack.c.l.b16 %v3771
    %v3804 = vunpack.c.l.b16 %v3772
    %v3805 = vunpack.c.l.b16 %v3773
    %v3806 = vunpack.c.l.b16 %v3774
    %v3807 = vunpack.c.l.b16 %v3775
    %v3808 = vunpack.c.l.b16 %v3776
    %v3809 = vunpack.c.l.b16 %v3777
    %v3810 = vunpack.c.l.b16 %v3778
    %v3811 = vunpack.c.l.b16 %v3779
    %v3812 = vunpack.c.l.b16 %v3780
    %v3813 = vunpack.c.l.b16 %v3781
    %v3814 = vpack.c.b16 %v3799, %v3798
    %v3815 = vpack.c.b16 %v3801, %v3800
    %v3816 = vpack.c.b16 %v3803, %v3802
    %v3817 = vpack.c.b16 %v3805, %v3804
    %v3818 = vpack.c.b16 %v3807, %v3806
    %v3819 = vpack.c.b16 %v3809, %v3808
    %v3820 = vpack.c.b16 %v3811, %v3810
    %v3821 = vpack.c.b16 %v3813, %v3812
    %3830 = vmatprep.subr.bf16.mxu0 0
    %3831 = vmatpush1.bf16.msra.mxu0 %v3814
    %3832 = vmatprep.subr.bf16.mxu0 0
    %3833 = vmatpush1.bf16.msra.mxu0 %v3815
    %3834 = vmatprep.subr.bf16.mxu0 0
    %3835 = vmatpush1.bf16.msra.mxu0 %v3816
    %3836 = vmatprep.subr.bf16.mxu0 0
    %3837 = vmatpush1.bf16.msra.mxu0 %v3817
    %3838 = vmatprep.subr.bf16.mxu0 0
    %3839 = vmatpush1.bf16.msra.mxu0 %v3818
    %3840 = vmatprep.subr.bf16.mxu0 0
    %3841 = vmatpush1.bf16.msra.mxu0 %v3819
    %3842 = vmatprep.subr.bf16.mxu0 0
    %3843 = vmatpush1.bf16.msra.mxu0 %v3820
    %3844 = vmatprep.subr.bf16.mxu0 0
    %3845 = vmatpush1.bf16.msra.mxu0 %v3821
    %3846 = vmatprep.subr.bf16.mxu0 0
    %3847 = vmatpush1.bf16.msra.mxu0 0
    %3848 = vmatprep.subr.bf16.mxu0 0
    %3849 = vmatpush1.bf16.msra.mxu0 0
    %3850 = vmatprep.subr.bf16.mxu0 0
    %3851 = vmatpush1.bf16.msra.mxu0 0
    %3852 = vmatprep.subr.bf16.mxu0 0
    %3853 = vmatpush1.bf16.msra.mxu0 0
    %3854 = vmatprep.subr.bf16.mxu0 0
    %3855 = vmatpush1.bf16.msra.mxu0 0
    %3856 = vmatprep.subr.bf16.mxu0 0
    %3857 = vmatpush1.bf16.msra.mxu0 0
    %3858 = vmatprep.subr.bf16.mxu0 0
    %3859 = vmatpush1.bf16.msra.mxu0 0
    %3860 = vmatprep.subr.bf16.mxu0 0
    %3861 = vmatpush1.bf16.msra.mxu0 0
    %3862 = vmatprep.mubr.bf16.mxu0 0
    %3863 = vmatmul.mubr.bf16.gmra.mrb[0].mxu0 %v3765
    %v3864 = vpop.f32.mrb[0].mxu0
    %v3865 = vadd.f32 0.0, %v3864
    %v3866 = vpop.f32.mrb[0].mxu0
    %v3867 = vpop.f32.mrb[0].mxu0
    %v3868 = vpop.f32.mrb[0].mxu0
    %3869 = vdwg.mxu0
    %v3870 = vadd.f32 %v3758, %v3865
    %3871 = vst [vmem:[#allocation4 + $0x4] sm:$0xf] %v3870
    %v3872 = vld [vmem:[#allocation4] sm:$0xff]
    %v3873 = vld [vmem:[#allocation12 + $0x8] sm:$0x1]
    %v3874 = vld [vmem:[#allocation14 + $0x8] sm:$0x1]
    %v3875 = vlaneseq
    %v3876 = vshrl.u32 %v3875, 7
    %v3877 = vsub.s32 0, %v3876
    %v3878 = vrot.slane %v3873, %v3877
    %v3879 = vmul.f32 %v3872, %v3878
    %v3880 = vlaneseq
    %v3881 = vshrl.u32 %v3880, 7
    %v3882 = vsub.s32 0, %v3881
    %v3883 = vrot.slane %v3874, %v3882
    %v3884 = vadd.f32 %v3879, %v3883
    %v3885 = vmax.f32 %v3884, 0.0
    %v3886 = vpack.c.bf16 %v3885, %v3885
    %s3887 = scalar_lea.vmem [#allocation11], 384
    %v3888 = vld [vmem:[%s3887] sm:$0xf]
    %v3889 = vld [vmem:[%s3887 + $0x4] sm:$0xf]
    %v3890 = vld [vmem:[%s3887 + $0x8] sm:$0xf]
    %v3891 = vld [vmem:[%s3887 + $0xc] sm:$0xf]
    %v3892 = vld [vmem:[%s3887 + $0x10] sm:$0xf]
    %v3893 = vld [vmem:[%s3887 + $0x14] sm:$0xf]
    %v3894 = vld [vmem:[%s3887 + $0x18] sm:$0xf]
    %v3895 = vld [vmem:[%s3887 + $0x1c] sm:$0xf]
    %v3896 = vld [vmem:[%s3887 + $0x20] sm:$0xf]
    %v3897 = vld [vmem:[%s3887 + $0x24] sm:$0xf]
    %v3898 = vld [vmem:[%s3887 + $0x28] sm:$0xf]
    %v3899 = vld [vmem:[%s3887 + $0x2c] sm:$0xf]
    %v3900 = vld [vmem:[%s3887 + $0x30] sm:$0xf]
    %v3901 = vld [vmem:[%s3887 + $0x34] sm:$0xf]
    %v3902 = vld [vmem:[%s3887 + $0x38] sm:$0xf]
    %v3903 = vld [vmem:[%s3887 + $0x3c] sm:$0xf]
    %v3904 = vld [vmem:[#allocation5] sm:$0xff]
    %v3921 = vunpack.c.l.b16 %v3888
    %v3922 = vunpack.c.l.b16 %v3889
    %v3923 = vunpack.c.l.b16 %v3890
    %v3924 = vunpack.c.l.b16 %v3891
    %v3925 = vunpack.c.l.b16 %v3892
    %v3926 = vunpack.c.l.b16 %v3893
    %v3927 = vunpack.c.l.b16 %v3894
    %v3928 = vunpack.c.l.b16 %v3895
    %v3929 = vunpack.c.l.b16 %v3896
    %v3930 = vunpack.c.l.b16 %v3897
    %v3931 = vunpack.c.l.b16 %v3898
    %v3932 = vunpack.c.l.b16 %v3899
    %v3933 = vunpack.c.l.b16 %v3900
    %v3934 = vunpack.c.l.b16 %v3901
    %v3935 = vunpack.c.l.b16 %v3902
    %v3936 = vunpack.c.l.b16 %v3903
    %v3937 = vpack.c.b16 %v3922, %v3921
    %v3938 = vpack.c.b16 %v3924, %v3923
    %v3939 = vpack.c.b16 %v3926, %v3925
    %v3940 = vpack.c.b16 %v3928, %v3927
    %v3941 = vpack.c.b16 %v3930, %v3929
    %v3942 = vpack.c.b16 %v3932, %v3931
    %v3943 = vpack.c.b16 %v3934, %v3933
    %v3944 = vpack.c.b16 %v3936, %v3935
    %3953 = vmatprep.subr.bf16.mxu0 0
    %3954 = vmatpush1.bf16.msra.mxu0 %v3937
    %3955 = vmatprep.subr.bf16.mxu0 0
    %3956 = vmatpush1.bf16.msra.mxu0 %v3938
    %3957 = vmatprep.subr.bf16.mxu0 0
    %3958 = vmatpush1.bf16.msra.mxu0 %v3939
    %3959 = vmatprep.subr.bf16.mxu0 0
    %3960 = vmatpush1.bf16.msra.mxu0 %v3940
    %3961 = vmatprep.subr.bf16.mxu0 0
    %3962 = vmatpush1.bf16.msra.mxu0 %v3941
    %3963 = vmatprep.subr.bf16.mxu0 0
    %3964 = vmatpush1.bf16.msra.mxu0 %v3942
    %3965 = vmatprep.subr.bf16.mxu0 0
    %3966 = vmatpush1.bf16.msra.mxu0 %v3943
    %3967 = vmatprep.subr.bf16.mxu0 0
    %3968 = vmatpush1.bf16.msra.mxu0 %v3944
    %3969 = vmatprep.subr.bf16.mxu0 0
    %3970 = vmatpush1.bf16.msra.mxu0 0
    %3971 = vmatprep.subr.bf16.mxu0 0
    %3972 = vmatpush1.bf16.msra.mxu0 0
    %3973 = vmatprep.subr.bf16.mxu0 0
    %3974 = vmatpush1.bf16.msra.mxu0 0
    %3975 = vmatprep.subr.bf16.mxu0 0
    %3976 = vmatpush1.bf16.msra.mxu0 0
    %3977 = vmatprep.subr.bf16.mxu0 0
    %3978 = vmatpush1.bf16.msra.mxu0 0
    %3979 = vmatprep.subr.bf16.mxu0 0
    %3980 = vmatpush1.bf16.msra.mxu0 0
    %3981 = vmatprep.subr.bf16.mxu0 0
    %3982 = vmatpush1.bf16.msra.mxu0 0
    %3983 = vmatprep.subr.bf16.mxu0 0
    %3984 = vmatpush1.bf16.msra.mxu0 0
    %3985 = vmatprep.mubr.bf16.mxu0 0
    %3986 = vmatmul.mubr.bf16.gmra.mrb[0].mxu0 %v3886
    %v3987 = vpop.f32.mrb[0].mxu0
    %v3988 = vadd.f32 %v3904, %v3987
    %v3989 = vpop.f32.mrb[0].mxu0
    %v3990 = vpop.f32.mrb[0].mxu0
    %v3991 = vpop.f32.mrb[0].mxu0
    %3992 = vdwg.mxu0
    %v3993 = vld [vmem:[#allocation12 + $0x9] sm:$0x1]
    %v3994 = vld [vmem:[#allocation14 + $0x9] sm:$0x1]
    %v3995 = vlaneseq
    %v3996 = vshrl.u32 %v3995, 7
    %v3997 = vsub.s32 0, %v3996
    %v3998 = vrot.slane %v3993, %v3997
    %v3999 = vmul.f32 %v3988, %v3998
    %v4000 = vlaneseq
    %v4001 = vshrl.u32 %v4000, 7
    %v4002 = vsub.s32 0, %v4001
    %v4003 = vrot.slane %v3994, %v4002
    %v4004 = vadd.f32 %v3999, %v4003
    %v4005 = vmax.f32 %v4004, 0.0
    %v4006 = vpack.c.bf16 %v4005, %v4005
    %s4007 = scalar_lea.vmem [#allocation11], 512
    %v4008 = vld [vmem:[%s4007] sm:$0xf]
    %v4009 = vld [vmem:[%s4007 + $0x4] sm:$0xf]
    %v4010 = vld [vmem:[%s4007 + $0x8] sm:$0xf]
    %v4011 = vld [vmem:[%s4007 + $0xc] sm:$0xf]
    %v4012 = vld [vmem:[%s4007 + $0x10] sm:$0xf]
    %v4013 = vld [vmem:[%s4007 + $0x14] sm:$0xf]
    %v4014 = vld [vmem:[%s4007 + $0x18] sm:$0xf]
    %v4015 = vld [vmem:[%s4007 + $0x1c] sm:$0xf]
    %v4016 = vld [vmem:[%s4007 + $0x20] sm:$0xf]
    %v4017 = vld [vmem:[%s4007 + $0x24] sm:$0xf]
    %v4018 = vld [vmem:[%s4007 + $0x28] sm:$0xf]
    %v4019 = vld [vmem:[%s4007 + $0x2c] sm:$0xf]
    %v4020 = vld [vmem:[%s4007 + $0x30] sm:$0xf]
    %v4021 = vld [vmem:[%s4007 + $0x34] sm:$0xf]
    %v4022 = vld [vmem:[%s4007 + $0x38] sm:$0xf]
    %v4023 = vld [vmem:[%s4007 + $0x3c] sm:$0xf]
    %v4040 = vunpack.c.l.b16 %v4008
    %v4041 = vunpack.c.l.b16 %v4009
    %v4042 = vunpack.c.l.b16 %v4010
    %v4043 = vunpack.c.l.b16 %v4011
    %v4044 = vunpack.c.l.b16 %v4012
    %v4045 = vunpack.c.l.b16 %v4013
    %v4046 = vunpack.c.l.b16 %v4014
    %v4047 = vunpack.c.l.b16 %v4015
    %v4048 = vunpack.c.l.b16 %v4016
    %v4049 = vunpack.c.l.b16 %v4017
    %v4050 = vunpack.c.l.b16 %v4018
    %v4051 = vunpack.c.l.b16 %v4019
    %v4052 = vunpack.c.l.b16 %v4020
    %v4053 = vunpack.c.l.b16 %v4021
    %v4054 = vunpack.c.l.b16 %v4022
    %v4055 = vunpack.c.l.b16 %v4023
    %v4056 = vpack.c.b16 %v4041, %v4040
    %v4057 = vpack.c.b16 %v4043, %v4042
    %v4058 = vpack.c.b16 %v4045, %v4044
    %v4059 = vpack.c.b16 %v4047, %v4046
    %v4060 = vpack.c.b16 %v4049, %v4048
    %v4061 = vpack.c.b16 %v4051, %v4050
    %v4062 = vpack.c.b16 %v4053, %v4052
    %v4063 = vpack.c.b16 %v4055, %v4054
    %4072 = vmatprep.subr.bf16.mxu0 0
    %4073 = vmatpush1.bf16.msra.mxu0 %v4056
    %4074 = vmatprep.subr.bf16.mxu0 0
    %4075 = vmatpush1.bf16.msra.mxu0 %v4057
    %4076 = vmatprep.subr.bf16.mxu0 0
    %4077 = vmatpush1.bf16.msra.mxu0 %v4058
    %4078 = vmatprep.subr.bf16.mxu0 0
    %4079 = vmatpush1.bf16.msra.mxu0 %v4059
    %4080 = vmatprep.subr.bf16.mxu0 0
    %4081 = vmatpush1.bf16.msra.mxu0 %v4060
    %4082 = vmatprep.subr.bf16.mxu0 0
    %4083 = vmatpush1.bf16.msra.mxu0 %v4061
    %4084 = vmatprep.subr.bf16.mxu0 0
    %4085 = vmatpush1.bf16.msra.mxu0 %v4062
    %4086 = vmatprep.subr.bf16.mxu0 0
    %4087 = vmatpush1.bf16.msra.mxu0 %v4063
    %4088 = vmatprep.subr.bf16.mxu0 0
    %4089 = vmatpush1.bf16.msra.mxu0 0
    %4090 = vmatprep.subr.bf16.mxu0 0
    %4091 = vmatpush1.bf16.msra.mxu0 0
    %4092 = vmatprep.subr.bf16.mxu0 0
    %4093 = vmatpush1.bf16.msra.mxu0 0
    %4094 = vmatprep.subr.bf16.mxu0 0
    %4095 = vmatpush1.bf16.msra.mxu0 0
    %4096 = vmatprep.subr.bf16.mxu0 0
    %4097 = vmatpush1.bf16.msra.mxu0 0
    %4098 = vmatprep.subr.bf16.mxu0 0
    %4099 = vmatpush1.bf16.msra.mxu0 0
    %4100 = vmatprep.subr.bf16.mxu0 0
    %4101 = vmatpush1.bf16.msra.mxu0 0
    %4102 = vmatprep.subr.bf16.mxu0 0
    %4103 = vmatpush1.bf16.msra.mxu0 0
    %4104 = vmatprep.mubr.bf16.mxu0 0
    %4105 = vmatmul.mubr.bf16.gmra.mrb[0].mxu0 %v4006
    %v4106 = vpop.f32.mrb[0].mxu0
    %v4107 = vadd.f32 0.0, %v4106
    %v4108 = vpop.f32.mrb[0].mxu0
    %v4109 = vpop.f32.mrb[0].mxu0
    %v4110 = vpop.f32.mrb[0].mxu0
    %4111 = vdwg.mxu0
    %v4112 = vld [vmem:[#allocation12 + $0xa] sm:$0x1]
    %v4113 = vld [vmem:[#allocation14 + $0xa] sm:$0x1]
    %v4114 = vlaneseq
    %v4115 = vshrl.u32 %v4114, 7
    %v4116 = vsub.s32 0, %v4115
    %v4117 = vrot.slane %v4112, %v4116
    %v4118 = vmul.f32 %v4107, %v4117
    %v4119 = vlaneseq
    %v4120 = vshrl.u32 %v4119, 7
    %v4121 = vsub.s32 0, %v4120
    %v4122 = vrot.slane %v4113, %v4121
    %v4123 = vadd.f32 %v4118, %v4122
    %v4124 = vmax.f32 %v4123, 0.0
    %4125 = vst [vmem:[#allocation2] sm:$0xff] %v4124
    %4126 = vst [vmem:[#allocation3] sm:$0x3] 0.0
    %4127 = vst [vmem:[#allocation3 + $0x6] sm:$0x3] 0.0
    %v4128 = vld [vmem:[#allocation2] sm:$0xf]
    %4129 = vst [vmem:[#allocation3 + $0x2] sm:$0xf] %v4128
    %4130 = vst [vmem:[#allocation3 + $0x8] sm:$0x3] 0.0
    %4131 = vst [vmem:[#allocation3 + $0xe] sm:$0x3] 0.0
    %v4132 = vld [vmem:[#allocation2 + $0x4] sm:$0xf]
    %4133 = vst [vmem:[#allocation3 + $0xa] sm:$0xf] %v4132
    %v4134 = vld [vmem:[#allocation3] sm:$0xf]
    %v4135 = vpack.c.bf16 %v4134, %v4134
    %s4136 = scalar_lea.vmem [#allocation9], 768
    %v4137 = vld [vmem:[%s4136] sm:$0xf]
    %v4138 = vld [vmem:[%s4136 + $0x4] sm:$0xf]
    %v4139 = vld [vmem:[%s4136 + $0x8] sm:$0xf]
    %v4140 = vld [vmem:[%s4136 + $0xc] sm:$0xf]
    %v4141 = vld [vmem:[%s4136 + $0x10] sm:$0xf]
    %v4142 = vld [vmem:[%s4136 + $0x14] sm:$0xf]
    %v4143 = vld [vmem:[%s4136 + $0x18] sm:$0xf]
    %v4144 = vld [vmem:[%s4136 + $0x1c] sm:$0xf]
    %v4145 = vld [vmem:[%s4136 + $0x20] sm:$0xf]
    %v4146 = vld [vmem:[%s4136 + $0x24] sm:$0xf]
    %v4147 = vld [vmem:[%s4136 + $0x28] sm:$0xf]
    %v4148 = vld [vmem:[%s4136 + $0x2c] sm:$0xf]
    %v4149 = vld [vmem:[%s4136 + $0x30] sm:$0xf]
    %v4150 = vld [vmem:[%s4136 + $0x34] sm:$0xf]
    %v4151 = vld [vmem:[%s4136 + $0x38] sm:$0xf]
    %v4152 = vld [vmem:[%s4136 + $0x3c] sm:$0xf]
    %v4153 = vld [vmem:[#allocation3 + $0x2] sm:$0xf]
    %v4154 = vpack.c.bf16 %v4153, %v4153
    %s4155 = scalar_lea.vmem [#allocation9], 832
    %v4156 = vld [vmem:[%s4155] sm:$0xf]
    %v4157 = vld [vmem:[%s4155 + $0x4] sm:$0xf]
    %v4158 = vld [vmem:[%s4155 + $0x8] sm:$0xf]
    %v4159 = vld [vmem:[%s4155 + $0xc] sm:$0xf]
    %v4160 = vld [vmem:[%s4155 + $0x10] sm:$0xf]
    %v4161 = vld [vmem:[%s4155 + $0x14] sm:$0xf]
    %v4162 = vld [vmem:[%s4155 + $0x18] sm:$0xf]
    %v4163 = vld [vmem:[%s4155 + $0x1c] sm:$0xf]
    %v4164 = vld [vmem:[%s4155 + $0x20] sm:$0xf]
    %v4165 = vld [vmem:[%s4155 + $0x24] sm:$0xf]
    %v4166 = vld [vmem:[%s4155 + $0x28] sm:$0xf]
    %v4167 = vld [vmem:[%s4155 + $0x2c] sm:$0xf]
    %v4168 = vld [vmem:[%s4155 + $0x30] sm:$0xf]
    %v4169 = vld [vmem:[%s4155 + $0x34] sm:$0xf]
    %v4170 = vld [vmem:[%s4155 + $0x38] sm:$0xf]
    %v4171 = vld [vmem:[%s4155 + $0x3c] sm:$0xf]
    %v4188 = vunpack.c.l.b16 %v4156
    %v4189 = vunpack.c.l.b16 %v4157
    %v4190 = vunpack.c.l.b16 %v4158
    %v4191 = vunpack.c.l.b16 %v4159
    %v4192 = vunpack.c.l.b16 %v4160
    %v4193 = vunpack.c.l.b16 %v4161
    %v4194 = vunpack.c.l.b16 %v4162
    %v4195 = vunpack.c.l.b16 %v4163
    %v4196 = vunpack.c.l.b16 %v4164
    %v4197 = vunpack.c.l.b16 %v4165
    %v4198 = vunpack.c.l.b16 %v4166
    %v4199 = vunpack.c.l.b16 %v4167
    %v4200 = vunpack.c.l.b16 %v4168
    %v4201 = vunpack.c.l.b16 %v4169
    %v4202 = vunpack.c.l.b16 %v4170
    %v4203 = vunpack.c.l.b16 %v4171
    %v4204 = vpack.c.b16 %v4189, %v4188
    %v4205 = vpack.c.b16 %v4191, %v4190
    %v4206 = vpack.c.b16 %v4193, %v4192
    %v4207 = vpack.c.b16 %v4195, %v4194
    %v4208 = vpack.c.b16 %v4197, %v4196
    %v4209 = vpack.c.b16 %v4199, %v4198
    %v4210 = vpack.c.b16 %v4201, %v4200
    %v4211 = vpack.c.b16 %v4203, %v4202
    %4220 = vmatprep.subr.bf16.mxu0 0
    %4221 = vmatpush1.bf16.msra.mxu0 %v4204
    %4222 = vmatprep.subr.bf16.mxu0 0
    %4223 = vmatpush1.bf16.msra.mxu0 %v4205
    %4224 = vmatprep.subr.bf16.mxu0 0
    %4225 = vmatpush1.bf16.msra.mxu0 %v4206
    %4226 = vmatprep.subr.bf16.mxu0 0
    %4227 = vmatpush1.bf16.msra.mxu0 %v4207
    %4228 = vmatprep.subr.bf16.mxu0 0
    %4229 = vmatpush1.bf16.msra.mxu0 %v4208
    %4230 = vmatprep.subr.bf16.mxu0 0
    %4231 = vmatpush1.bf16.msra.mxu0 %v4209
    %4232 = vmatprep.subr.bf16.mxu0 0
    %4233 = vmatpush1.bf16.msra.mxu0 %v4210
    %4234 = vmatprep.subr.bf16.mxu0 0
    %4235 = vmatpush1.bf16.msra.mxu0 %v4211
    %4236 = vmatprep.subr.bf16.mxu0 0
    %4237 = vmatpush1.bf16.msra.mxu0 0
    %4238 = vmatprep.subr.bf16.mxu0 0
    %4239 = vmatpush1.bf16.msra.mxu0 0
    %4240 = vmatprep.subr.bf16.mxu0 0
    %4241 = vmatpush1.bf16.msra.mxu0 0
    %4242 = vmatprep.subr.bf16.mxu0 0
    %4243 = vmatpush1.bf16.msra.mxu0 0
    %4244 = vmatprep.subr.bf16.mxu0 0
    %4245 = vmatpush1.bf16.msra.mxu0 0
    %4246 = vmatprep.subr.bf16.mxu0 0
    %4247 = vmatpush1.bf16.msra.mxu0 0
    %4248 = vmatprep.subr.bf16.mxu0 0
    %4249 = vmatpush1.bf16.msra.mxu0 0
    %4250 = vmatprep.subr.bf16.mxu0 0
    %4251 = vmatpush1.bf16.msra.mxu0 0
    %4252 = vmatprep.mubr.bf16.mxu0 0
    %4253 = vmatmul.mubr.bf16.gmra.mrb[0].mxu0 %v4154
    %v4254 = vpop.f32.mrb[0].mxu0
    %v4255 = vadd.f32 0.0, %v4254
    %v4256 = vpop.f32.mrb[0].mxu0
    %v4257 = vpop.f32.mrb[0].mxu0
    %v4258 = vpop.f32.mrb[0].mxu0
    %4259 = vdwg.mxu0
    %v4276 = vunpack.c.l.b16 %v4137
    %v4277 = vunpack.c.l.b16 %v4138
    %v4278 = vunpack.c.l.b16 %v4139
    %v4279 = vunpack.c.l.b16 %v4140
    %v4280 = vunpack.c.l.b16 %v4141
    %v4281 = vunpack.c.l.b16 %v4142
    %v4282 = vunpack.c.l.b16 %v4143
    %v4283 = vunpack.c.l.b16 %v4144
    %v4284 = vunpack.c.l.b16 %v4145
    %v4285 = vunpack.c.l.b16 %v4146
    %v4286 = vunpack.c.l.b16 %v4147
    %v4287 = vunpack.c.l.b16 %v4148
    %v4288 = vunpack.c.l.b16 %v4149
    %v4289 = vunpack.c.l.b16 %v4150
    %v4290 = vunpack.c.l.b16 %v4151
    %v4291 = vunpack.c.l.b16 %v4152
    %v4292 = vpack.c.b16 %v4277, %v4276
    %v4293 = vpack.c.b16 %v4279, %v4278
    %v4294 = vpack.c.b16 %v4281, %v4280
    %v4295 = vpack.c.b16 %v4283, %v4282
    %v4296 = vpack.c.b16 %v4285, %v4284
    %v4297 = vpack.c.b16 %v4287, %v4286
    %v4298 = vpack.c.b16 %v4289, %v4288
    %v4299 = vpack.c.b16 %v4291, %v4290
    %4308 = vmatprep.subr.bf16.mxu0 0
    %4309 = vmatpush1.bf16.msra.mxu0 %v4292
    %4310 = vmatprep.subr.bf16.mxu0 0
    %4311 = vmatpush1.bf16.msra.mxu0 %v4293
    %4312 = vmatprep.subr.bf16.mxu0 0
    %4313 = vmatpush1.bf16.msra.mxu0 %v4294
    %4314 = vmatprep.subr.bf16.mxu0 0
    %4315 = vmatpush1.bf16.msra.mxu0 %v4295
    %4316 = vmatprep.subr.bf16.mxu0 0
    %4317 = vmatpush1.bf16.msra.mxu0 %v4296
    %4318 = vmatprep.subr.bf16.mxu0 0
    %4319 = vmatpush1.bf16.msra.mxu0 %v4297
    %4320 = vmatprep.subr.bf16.mxu0 0
    %4321 = vmatpush1.bf16.msra.mxu0 %v4298
    %4322 = vmatprep.subr.bf16.mxu0 0
    %4323 = vmatpush1.bf16.msra.mxu0 %v4299
    %4324 = vmatprep.subr.bf16.mxu0 0
    %4325 = vmatpush1.bf16.msra.mxu0 0
    %4326 = vmatprep.subr.bf16.mxu0 0
    %4327 = vmatpush1.bf16.msra.mxu0 0
    %4328 = vmatprep.subr.bf16.mxu0 0
    %4329 = vmatpush1.bf16.msra.mxu0 0
    %4330 = vmatprep.subr.bf16.mxu0 0
    %4331 = vmatpush1.bf16.msra.mxu0 0
    %4332 = vmatprep.subr.bf16.mxu0 0
    %4333 = vmatpush1.bf16.msra.mxu0 0
    %4334 = vmatprep.subr.bf16.mxu0 0
    %4335 = vmatpush1.bf16.msra.mxu0 0
    %4336 = vmatprep.subr.bf16.mxu0 0
    %4337 = vmatpush1.bf16.msra.mxu0 0
    %4338 = vmatprep.subr.bf16.mxu0 0
    %4339 = vmatpush1.bf16.msra.mxu0 0
    %4340 = vmatprep.mubr.bf16.mxu0 0
    %4341 = vmatmul.mubr.bf16.gmra.mrb[0].mxu0 %v4135
    %v4342 = vpop.f32.mrb[0].mxu0
    %v4343 = vadd.f32 %v4255, %v4342
    %v4344 = vpop.f32.mrb[0].mxu0
    %v4345 = vpop.f32.mrb[0].mxu0
    %v4346 = vpop.f32.mrb[0].mxu0
    %4347 = vdwg.mxu0
    %v4348 = vld [vmem:[#allocation3 + $0x4] sm:$0xf]
    %v4349 = vpack.c.bf16 %v4348, %v4348
    %s4350 = scalar_lea.vmem [#allocation9], 896
    %v4351 = vld [vmem:[%s4350] sm:$0xf]
    %v4352 = vld [vmem:[%s4350 + $0x4] sm:$0xf]
    %v4353 = vld [vmem:[%s4350 + $0x8] sm:$0xf]
    %v4354 = vld [vmem:[%s4350 + $0xc] sm:$0xf]
    %v4355 = vld [vmem:[%s4350 + $0x10] sm:$0xf]
    %v4356 = vld [vmem:[%s4350 + $0x14] sm:$0xf]
    %v4357 = vld [vmem:[%s4350 + $0x18] sm:$0xf]
    %v4358 = vld [vmem:[%s4350 + $0x1c] sm:$0xf]
    %v4359 = vld [vmem:[%s4350 + $0x20] sm:$0xf]
    %v4360 = vld [vmem:[%s4350 + $0x24] sm:$0xf]
    %v4361 = vld [vmem:[%s4350 + $0x28] sm:$0xf]
    %v4362 = vld [vmem:[%s4350 + $0x2c] sm:$0xf]
    %v4363 = vld [vmem:[%s4350 + $0x30] sm:$0xf]
    %v4364 = vld [vmem:[%s4350 + $0x34] sm:$0xf]
    %v4365 = vld [vmem:[%s4350 + $0x38] sm:$0xf]
    %v4366 = vld [vmem:[%s4350 + $0x3c] sm:$0xf]
    %v4383 = vunpack.c.l.b16 %v4351
    %v4384 = vunpack.c.l.b16 %v4352
    %v4385 = vunpack.c.l.b16 %v4353
    %v4386 = vunpack.c.l.b16 %v4354
    %v4387 = vunpack.c.l.b16 %v4355
    %v4388 = vunpack.c.l.b16 %v4356
    %v4389 = vunpack.c.l.b16 %v4357
    %v4390 = vunpack.c.l.b16 %v4358
    %v4391 = vunpack.c.l.b16 %v4359
    %v4392 = vunpack.c.l.b16 %v4360
    %v4393 = vunpack.c.l.b16 %v4361
    %v4394 = vunpack.c.l.b16 %v4362
    %v4395 = vunpack.c.l.b16 %v4363
    %v4396 = vunpack.c.l.b16 %v4364
    %v4397 = vunpack.c.l.b16 %v4365
    %v4398 = vunpack.c.l.b16 %v4366
    %v4399 = vpack.c.b16 %v4384, %v4383
    %v4400 = vpack.c.b16 %v4386, %v4385
    %v4401 = vpack.c.b16 %v4388, %v4387
    %v4402 = vpack.c.b16 %v4390, %v4389
    %v4403 = vpack.c.b16 %v4392, %v4391
    %v4404 = vpack.c.b16 %v4394, %v4393
    %v4405 = vpack.c.b16 %v4396, %v4395
    %v4406 = vpack.c.b16 %v4398, %v4397
    %4415 = vmatprep.subr.bf16.mxu0 0
    %4416 = vmatpush1.bf16.msra.mxu0 %v4399
    %4417 = vmatprep.subr.bf16.mxu0 0
    %4418 = vmatpush1.bf16.msra.mxu0 %v4400
    %4419 = vmatprep.subr.bf16.mxu0 0
    %4420 = vmatpush1.bf16.msra.mxu0 %v4401
    %4421 = vmatprep.subr.bf16.mxu0 0
    %4422 = vmatpush1.bf16.msra.mxu0 %v4402
    %4423 = vmatprep.subr.bf16.mxu0 0
    %4424 = vmatpush1.bf16.msra.mxu0 %v4403
    %4425 = vmatprep.subr.bf16.mxu0 0
    %4426 = vmatpush1.bf16.msra.mxu0 %v4404
    %4427 = vmatprep.subr.bf16.mxu0 0
    %4428 = vmatpush1.bf16.msra.mxu0 %v4405
    %4429 = vmatprep.subr.bf16.mxu0 0
    %4430 = vmatpush1.bf16.msra.mxu0 %v4406
    %4431 = vmatprep.subr.bf16.mxu0 0
    %4432 = vmatpush1.bf16.msra.mxu0 0
    %4433 = vmatprep.subr.bf16.mxu0 0
    %4434 = vmatpush1.bf16.msra.mxu0 0
    %4435 = vmatprep.subr.bf16.mxu0 0
    %4436 = vmatpush1.bf16.msra.mxu0 0
    %4437 = vmatprep.subr.bf16.mxu0 0
    %4438 = vmatpush1.bf16.msra.mxu0 0
    %4439 = vmatprep.subr.bf16.mxu0 0
    %4440 = vmatpush1.bf16.msra.mxu0 0
    %4441 = vmatprep.subr.bf16.mxu0 0
    %4442 = vmatpush1.bf16.msra.mxu0 0
    %4443 = vmatprep.subr.bf16.mxu0 0
    %4444 = vmatpush1.bf16.msra.mxu0 0
    %4445 = vmatprep.subr.bf16.mxu0 0
    %4446 = vmatpush1.bf16.msra.mxu0 0
    %4447 = vmatprep.mubr.bf16.mxu0 0
    %4448 = vmatmul.mubr.bf16.gmra.mrb[0].mxu0 %v4349
    %v4449 = vpop.f32.mrb[0].mxu0
    %v4450 = vadd.f32 0.0, %v4449
    %v4451 = vpop.f32.mrb[0].mxu0
    %v4452 = vpop.f32.mrb[0].mxu0
    %v4453 = vpop.f32.mrb[0].mxu0
    %4454 = vdwg.mxu0
    %v4455 = vadd.f32 %v4343, %v4450
    %4456 = vst [vmem:[#allocation4] sm:$0xf] %v4455
    %v4457 = vld [vmem:[#allocation3 + $0x8] sm:$0xf]
    %v4458 = vpack.c.bf16 %v4457, %v4457
    %v4459 = vld [vmem:[%s4136] sm:$0xf]
    %v4460 = vld [vmem:[%s4136 + $0x4] sm:$0xf]
    %v4461 = vld [vmem:[%s4136 + $0x8] sm:$0xf]
    %v4462 = vld [vmem:[%s4136 + $0xc] sm:$0xf]
    %v4463 = vld [vmem:[%s4136 + $0x10] sm:$0xf]
    %v4464 = vld [vmem:[%s4136 + $0x14] sm:$0xf]
    %v4465 = vld [vmem:[%s4136 + $0x18] sm:$0xf]
    %v4466 = vld [vmem:[%s4136 + $0x1c] sm:$0xf]
    %v4467 = vld [vmem:[%s4136 + $0x20] sm:$0xf]
    %v4468 = vld [vmem:[%s4136 + $0x24] sm:$0xf]
    %v4469 = vld [vmem:[%s4136 + $0x28] sm:$0xf]
    %v4470 = vld [vmem:[%s4136 + $0x2c] sm:$0xf]
    %v4471 = vld [vmem:[%s4136 + $0x30] sm:$0xf]
    %v4472 = vld [vmem:[%s4136 + $0x34] sm:$0xf]
    %v4473 = vld [vmem:[%s4136 + $0x38] sm:$0xf]
    %v4474 = vld [vmem:[%s4136 + $0x3c] sm:$0xf]
    %v4475 = vld [vmem:[#allocation3 + $0xa] sm:$0xf]
    %v4476 = vpack.c.bf16 %v4475, %v4475
    %v4477 = vld [vmem:[%s4155] sm:$0xf]
    %v4478 = vld [vmem:[%s4155 + $0x4] sm:$0xf]
    %v4479 = vld [vmem:[%s4155 + $0x8] sm:$0xf]
    %v4480 = vld [vmem:[%s4155 + $0xc] sm:$0xf]
    %v4481 = vld [vmem:[%s4155 + $0x10] sm:$0xf]
    %v4482 = vld [vmem:[%s4155 + $0x14] sm:$0xf]
    %v4483 = vld [vmem:[%s4155 + $0x18] sm:$0xf]
    %v4484 = vld [vmem:[%s4155 + $0x1c] sm:$0xf]
    %v4485 = vld [vmem:[%s4155 + $0x20] sm:$0xf]
    %v4486 = vld [vmem:[%s4155 + $0x24] sm:$0xf]
    %v4487 = vld [vmem:[%s4155 + $0x28] sm:$0xf]
    %v4488 = vld [vmem:[%s4155 + $0x2c] sm:$0xf]
    %v4489 = vld [vmem:[%s4155 + $0x30] sm:$0xf]
    %v4490 = vld [vmem:[%s4155 + $0x34] sm:$0xf]
    %v4491 = vld [vmem:[%s4155 + $0x38] sm:$0xf]
    %v4492 = vld [vmem:[%s4155 + $0x3c] sm:$0xf]
    %v4509 = vunpack.c.l.b16 %v4477
    %v4510 = vunpack.c.l.b16 %v4478
    %v4511 = vunpack.c.l.b16 %v4479
    %v4512 = vunpack.c.l.b16 %v4480
    %v4513 = vunpack.c.l.b16 %v4481
    %v4514 = vunpack.c.l.b16 %v4482
    %v4515 = vunpack.c.l.b16 %v4483
    %v4516 = vunpack.c.l.b16 %v4484
    %v4517 = vunpack.c.l.b16 %v4485
    %v4518 = vunpack.c.l.b16 %v4486
    %v4519 = vunpack.c.l.b16 %v4487
    %v4520 = vunpack.c.l.b16 %v4488
    %v4521 = vunpack.c.l.b16 %v4489
    %v4522 = vunpack.c.l.b16 %v4490
    %v4523 = vunpack.c.l.b16 %v4491
    %v4524 = vunpack.c.l.b16 %v4492
    %v4525 = vpack.c.b16 %v4510, %v4509
    %v4526 = vpack.c.b16 %v4512, %v4511
    %v4527 = vpack.c.b16 %v4514, %v4513
    %v4528 = vpack.c.b16 %v4516, %v4515
    %v4529 = vpack.c.b16 %v4518, %v4517
    %v4530 = vpack.c.b16 %v4520, %v4519
    %v4531 = vpack.c.b16 %v4522, %v4521
    %v4532 = vpack.c.b16 %v4524, %v4523
    %4541 = vmatprep.subr.bf16.mxu0 0
    %4542 = vmatpush1.bf16.msra.mxu0 %v4525
    %4543 = vmatprep.subr.bf16.mxu0 0
    %4544 = vmatpush1.bf16.msra.mxu0 %v4526
    %4545 = vmatprep.subr.bf16.mxu0 0
    %4546 = vmatpush1.bf16.msra.mxu0 %v4527
    %4547 = vmatprep.subr.bf16.mxu0 0
    %4548 = vmatpush1.bf16.msra.mxu0 %v4528
    %4549 = vmatprep.subr.bf16.mxu0 0
    %4550 = vmatpush1.bf16.msra.mxu0 %v4529
    %4551 = vmatprep.subr.bf16.mxu0 0
    %4552 = vmatpush1.bf16.msra.mxu0 %v4530
    %4553 = vmatprep.subr.bf16.mxu0 0
    %4554 = vmatpush1.bf16.msra.mxu0 %v4531
    %4555 = vmatprep.subr.bf16.mxu0 0
    %4556 = vmatpush1.bf16.msra.mxu0 %v4532
    %4557 = vmatprep.subr.bf16.mxu0 0
    %4558 = vmatpush1.bf16.msra.mxu0 0
    %4559 = vmatprep.subr.bf16.mxu0 0
    %4560 = vmatpush1.bf16.msra.mxu0 0
    %4561 = vmatprep.subr.bf16.mxu0 0
    %4562 = vmatpush1.bf16.msra.mxu0 0
    %4563 = vmatprep.subr.bf16.mxu0 0
    %4564 = vmatpush1.bf16.msra.mxu0 0
    %4565 = vmatprep.subr.bf16.mxu0 0
    %4566 = vmatpush1.bf16.msra.mxu0 0
    %4567 = vmatprep.subr.bf16.mxu0 0
    %4568 = vmatpush1.bf16.msra.mxu0 0
    %4569 = vmatprep.subr.bf16.mxu0 0
    %4570 = vmatpush1.bf16.msra.mxu0 0
    %4571 = vmatprep.subr.bf16.mxu0 0
    %4572 = vmatpush1.bf16.msra.mxu0 0
    %4573 = vmatprep.mubr.bf16.mxu0 0
    %4574 = vmatmul.mubr.bf16.gmra.mrb[0].mxu0 %v4476
    %v4575 = vpop.f32.mrb[0].mxu0
    %v4576 = vadd.f32 0.0, %v4575
    %v4577 = vpop.f32.mrb[0].mxu0
    %v4578 = vpop.f32.mrb[0].mxu0
    %v4579 = vpop.f32.mrb[0].mxu0
    %4580 = vdwg.mxu0
    %v4597 = vunpack.c.l.b16 %v4459
    %v4598 = vunpack.c.l.b16 %v4460
    %v4599 = vunpack.c.l.b16 %v4461
    %v4600 = vunpack.c.l.b16 %v4462
    %v4601 = vunpack.c.l.b16 %v4463
    %v4602 = vunpack.c.l.b16 %v4464
    %v4603 = vunpack.c.l.b16 %v4465
    %v4604 = vunpack.c.l.b16 %v4466
    %v4605 = vunpack.c.l.b16 %v4467
    %v4606 = vunpack.c.l.b16 %v4468
    %v4607 = vunpack.c.l.b16 %v4469
    %v4608 = vunpack.c.l.b16 %v4470
    %v4609 = vunpack.c.l.b16 %v4471
    %v4610 = vunpack.c.l.b16 %v4472
    %v4611 = vunpack.c.l.b16 %v4473
    %v4612 = vunpack.c.l.b16 %v4474
    %v4613 = vpack.c.b16 %v4598, %v4597
    %v4614 = vpack.c.b16 %v4600, %v4599
    %v4615 = vpack.c.b16 %v4602, %v4601
    %v4616 = vpack.c.b16 %v4604, %v4603
    %v4617 = vpack.c.b16 %v4606, %v4605
    %v4618 = vpack.c.b16 %v4608, %v4607
    %v4619 = vpack.c.b16 %v4610, %v4609
    %v4620 = vpack.c.b16 %v4612, %v4611
    %4629 = vmatprep.subr.bf16.mxu0 0
    %4630 = vmatpush1.bf16.msra.mxu0 %v4613
    %4631 = vmatprep.subr.bf16.mxu0 0
    %4632 = vmatpush1.bf16.msra.mxu0 %v4614
    %4633 = vmatprep.subr.bf16.mxu0 0
    %4634 = vmatpush1.bf16.msra.mxu0 %v4615
    %4635 = vmatprep.subr.bf16.mxu0 0
    %4636 = vmatpush1.bf16.msra.mxu0 %v4616
    %4637 = vmatprep.subr.bf16.mxu0 0
    %4638 = vmatpush1.bf16.msra.mxu0 %v4617
    %4639 = vmatprep.subr.bf16.mxu0 0
    %4640 = vmatpush1.bf16.msra.mxu0 %v4618
    %4641 = vmatprep.subr.bf16.mxu0 0
    %4642 = vmatpush1.bf16.msra.mxu0 %v4619
    %4643 = vmatprep.subr.bf16.mxu0 0
    %4644 = vmatpush1.bf16.msra.mxu0 %v4620
    %4645 = vmatprep.subr.bf16.mxu0 0
    %4646 = vmatpush1.bf16.msra.mxu0 0
    %4647 = vmatprep.subr.bf16.mxu0 0
    %4648 = vmatpush1.bf16.msra.mxu0 0
    %4649 = vmatprep.subr.bf16.mxu0 0
    %4650 = vmatpush1.bf16.msra.mxu0 0
    %4651 = vmatprep.subr.bf16.mxu0 0
    %4652 = vmatpush1.bf16.msra.mxu0 0
    %4653 = vmatprep.subr.bf16.mxu0 0
    %4654 = vmatpush1.bf16.msra.mxu0 0
    %4655 = vmatprep.subr.bf16.mxu0 0
    %4656 = vmatpush1.bf16.msra.mxu0 0
    %4657 = vmatprep.subr.bf16.mxu0 0
    %4658 = vmatpush1.bf16.msra.mxu0 0
    %4659 = vmatprep.subr.bf16.mxu0 0
    %4660 = vmatpush1.bf16.msra.mxu0 0
    %4661 = vmatprep.mubr.bf16.mxu0 0
    %4662 = vmatmul.mubr.bf16.gmra.mrb[0].mxu0 %v4458
    %v4663 = vpop.f32.mrb[0].mxu0
    %v4664 = vadd.f32 %v4576, %v4663
    %v4665 = vpop.f32.mrb[0].mxu0
    %v4666 = vpop.f32.mrb[0].mxu0
    %v4667 = vpop.f32.mrb[0].mxu0
    %4668 = vdwg.mxu0
    %v4669 = vld [vmem:[#allocation3 + $0xc] sm:$0xf]
    %v4670 = vpack.c.bf16 %v4669, %v4669
    %v4671 = vld [vmem:[%s4350] sm:$0xf]
    %v4672 = vld [vmem:[%s4350 + $0x4] sm:$0xf]
    %v4673 = vld [vmem:[%s4350 + $0x8] sm:$0xf]
    %v4674 = vld [vmem:[%s4350 + $0xc] sm:$0xf]
    %v4675 = vld [vmem:[%s4350 + $0x10] sm:$0xf]
    %v4676 = vld [vmem:[%s4350 + $0x14] sm:$0xf]
    %v4677 = vld [vmem:[%s4350 + $0x18] sm:$0xf]
    %v4678 = vld [vmem:[%s4350 + $0x1c] sm:$0xf]
    %v4679 = vld [vmem:[%s4350 + $0x20] sm:$0xf]
    %v4680 = vld [vmem:[%s4350 + $0x24] sm:$0xf]
    %v4681 = vld [vmem:[%s4350 + $0x28] sm:$0xf]
    %v4682 = vld [vmem:[%s4350 + $0x2c] sm:$0xf]
    %v4683 = vld [vmem:[%s4350 + $0x30] sm:$0xf]
    %v4684 = vld [vmem:[%s4350 + $0x34] sm:$0xf]
    %v4685 = vld [vmem:[%s4350 + $0x38] sm:$0xf]
    %v4686 = vld [vmem:[%s4350 + $0x3c] sm:$0xf]
    %v4703 = vunpack.c.l.b16 %v4671
    %v4704 = vunpack.c.l.b16 %v4672
    %v4705 = vunpack.c.l.b16 %v4673
    %v4706 = vunpack.c.l.b16 %v4674
    %v4707 = vunpack.c.l.b16 %v4675
    %v4708 = vunpack.c.l.b16 %v4676
    %v4709 = vunpack.c.l.b16 %v4677
    %v4710 = vunpack.c.l.b16 %v4678
    %v4711 = vunpack.c.l.b16 %v4679
    %v4712 = vunpack.c.l.b16 %v4680
    %v4713 = vunpack.c.l.b16 %v4681
    %v4714 = vunpack.c.l.b16 %v4682
    %v4715 = vunpack.c.l.b16 %v4683
    %v4716 = vunpack.c.l.b16 %v4684
    %v4717 = vunpack.c.l.b16 %v4685
    %v4718 = vunpack.c.l.b16 %v4686
    %v4719 = vpack.c.b16 %v4704, %v4703
    %v4720 = vpack.c.b16 %v4706, %v4705
    %v4721 = vpack.c.b16 %v4708, %v4707
    %v4722 = vpack.c.b16 %v4710, %v4709
    %v4723 = vpack.c.b16 %v4712, %v4711
    %v4724 = vpack.c.b16 %v4714, %v4713
    %v4725 = vpack.c.b16 %v4716, %v4715
    %v4726 = vpack.c.b16 %v4718, %v4717
    %4735 = vmatprep.subr.bf16.mxu0 0
    %4736 = vmatpush1.bf16.msra.mxu0 %v4719
    %4737 = vmatprep.subr.bf16.mxu0 0
    %4738 = vmatpush1.bf16.msra.mxu0 %v4720
    %4739 = vmatprep.subr.bf16.mxu0 0
    %4740 = vmatpush1.bf16.msra.mxu0 %v4721
    %4741 = vmatprep.subr.bf16.mxu0 0
    %4742 = vmatpush1.bf16.msra.mxu0 %v4722
    %4743 = vmatprep.subr.bf16.mxu0 0
    %4744 = vmatpush1.bf16.msra.mxu0 %v4723
    %4745 = vmatprep.subr.bf16.mxu0 0
    %4746 = vmatpush1.bf16.msra.mxu0 %v4724
    %4747 = vmatprep.subr.bf16.mxu0 0
    %4748 = vmatpush1.bf16.msra.mxu0 %v4725
    %4749 = vmatprep.subr.bf16.mxu0 0
    %4750 = vmatpush1.bf16.msra.mxu0 %v4726
    %4751 = vmatprep.subr.bf16.mxu0 0
    %4752 = vmatpush1.bf16.msra.mxu0 0
    %4753 = vmatprep.subr.bf16.mxu0 0
    %4754 = vmatpush1.bf16.msra.mxu0 0
    %4755 = vmatprep.subr.bf16.mxu0 0
    %4756 = vmatpush1.bf16.msra.mxu0 0
    %4757 = vmatprep.subr.bf16.mxu0 0
    %4758 = vmatpush1.bf16.msra.mxu0 0
    %4759 = vmatprep.subr.bf16.mxu0 0
    %4760 = vmatpush1.bf16.msra.mxu0 0
    %4761 = vmatprep.subr.bf16.mxu0 0
    %4762 = vmatpush1.bf16.msra.mxu0 0
    %4763 = vmatprep.subr.bf16.mxu0 0
    %4764 = vmatpush1.bf16.msra.mxu0 0
    %4765 = vmatprep.subr.bf16.mxu0 0
    %4766 = vmatpush1.bf16.msra.mxu0 0
    %4767 = vmatprep.mubr.bf16.mxu0 0
    %4768 = vmatmul.mubr.bf16.gmra.mrb[0].mxu0 %v4670
    %v4769 = vpop.f32.mrb[0].mxu0
    %v4770 = vadd.f32 0.0, %v4769
    %v4771 = vpop.f32.mrb[0].mxu0
    %v4772 = vpop.f32.mrb[0].mxu0
    %v4773 = vpop.f32.mrb[0].mxu0
    %4774 = vdwg.mxu0
    %v4775 = vadd.f32 %v4664, %v4770
    %4776 = vst [vmem:[#allocation4 + $0x4] sm:$0xf] %v4775
    %v4777 = vld [vmem:[#allocation4] sm:$0xff]
    %v4778 = vld [vmem:[#allocation12 + $0xb] sm:$0x1]
    %v4779 = vld [vmem:[#allocation14 + $0xb] sm:$0x1]
    %v4780 = vlaneseq
    %v4781 = vshrl.u32 %v4780, 7
    %v4782 = vsub.s32 0, %v4781
    %v4783 = vrot.slane %v4778, %v4782
    %v4784 = vmul.f32 %v4777, %v4783
    %v4785 = vlaneseq
    %v4786 = vshrl.u32 %v4785, 7
    %v4787 = vsub.s32 0, %v4786
    %v4788 = vrot.slane %v4779, %v4787
    %v4789 = vadd.f32 %v4784, %v4788
    %v4790 = vmax.f32 %v4789, 0.0
    %v4791 = vpack.c.bf16 %v4790, %v4790
    %s4792 = scalar_lea.vmem [#allocation11], 576
    %v4793 = vld [vmem:[%s4792] sm:$0xf]
    %v4794 = vld [vmem:[%s4792 + $0x4] sm:$0xf]
    %v4795 = vld [vmem:[%s4792 + $0x8] sm:$0xf]
    %v4796 = vld [vmem:[%s4792 + $0xc] sm:$0xf]
    %v4797 = vld [vmem:[%s4792 + $0x10] sm:$0xf]
    %v4798 = vld [vmem:[%s4792 + $0x14] sm:$0xf]
    %v4799 = vld [vmem:[%s4792 + $0x18] sm:$0xf]
    %v4800 = vld [vmem:[%s4792 + $0x1c] sm:$0xf]
    %v4801 = vld [vmem:[%s4792 + $0x20] sm:$0xf]
    %v4802 = vld [vmem:[%s4792 + $0x24] sm:$0xf]
    %v4803 = vld [vmem:[%s4792 + $0x28] sm:$0xf]
    %v4804 = vld [vmem:[%s4792 + $0x2c] sm:$0xf]
    %v4805 = vld [vmem:[%s4792 + $0x30] sm:$0xf]
    %v4806 = vld [vmem:[%s4792 + $0x34] sm:$0xf]
    %v4807 = vld [vmem:[%s4792 + $0x38] sm:$0xf]
    %v4808 = vld [vmem:[%s4792 + $0x3c] sm:$0xf]
    %v4825 = vunpack.c.l.b16 %v4793
    %v4826 = vunpack.c.l.b16 %v4794
    %v4827 = vunpack.c.l.b16 %v4795
    %v4828 = vunpack.c.l.b16 %v4796
    %v4829 = vunpack.c.l.b16 %v4797
    %v4830 = vunpack.c.l.b16 %v4798
    %v4831 = vunpack.c.l.b16 %v4799
    %v4832 = vunpack.c.l.b16 %v4800
    %v4833 = vunpack.c.l.b16 %v4801
    %v4834 = vunpack.c.l.b16 %v4802
    %v4835 = vunpack.c.l.b16 %v4803
    %v4836 = vunpack.c.l.b16 %v4804
    %v4837 = vunpack.c.l.b16 %v4805
    %v4838 = vunpack.c.l.b16 %v4806
    %v4839 = vunpack.c.l.b16 %v4807
    %v4840 = vunpack.c.l.b16 %v4808
    %v4841 = vpack.c.b16 %v4826, %v4825
    %v4842 = vpack.c.b16 %v4828, %v4827
    %v4843 = vpack.c.b16 %v4830, %v4829
    %v4844 = vpack.c.b16 %v4832, %v4831
    %v4845 = vpack.c.b16 %v4834, %v4833
    %v4846 = vpack.c.b16 %v4836, %v4835
    %v4847 = vpack.c.b16 %v4838, %v4837
    %v4848 = vpack.c.b16 %v4840, %v4839
    %4857 = vmatprep.subr.bf16.mxu0 0
    %4858 = vmatpush1.bf16.msra.mxu0 %v4841
    %4859 = vmatprep.subr.bf16.mxu0 0
    %4860 = vmatpush1.bf16.msra.mxu0 %v4842
    %4861 = vmatprep.subr.bf16.mxu0 0
    %4862 = vmatpush1.bf16.msra.mxu0 %v4843
    %4863 = vmatprep.subr.bf16.mxu0 0
    %4864 = vmatpush1.bf16.msra.mxu0 %v4844
    %4865 = vmatprep.subr.bf16.mxu0 0
    %4866 = vmatpush1.bf16.msra.mxu0 %v4845
    %4867 = vmatprep.subr.bf16.mxu0 0
    %4868 = vmatpush1.bf16.msra.mxu0 %v4846
    %4869 = vmatprep.subr.bf16.mxu0 0
    %4870 = vmatpush1.bf16.msra.mxu0 %v4847
    %4871 = vmatprep.subr.bf16.mxu0 0
    %4872 = vmatpush1.bf16.msra.mxu0 %v4848
    %4873 = vmatprep.subr.bf16.mxu0 0
    %4874 = vmatpush1.bf16.msra.mxu0 0
    %4875 = vmatprep.subr.bf16.mxu0 0
    %4876 = vmatpush1.bf16.msra.mxu0 0
    %4877 = vmatprep.subr.bf16.mxu0 0
    %4878 = vmatpush1.bf16.msra.mxu0 0
    %4879 = vmatprep.subr.bf16.mxu0 0
    %4880 = vmatpush1.bf16.msra.mxu0 0
    %4881 = vmatprep.subr.bf16.mxu0 0
    %4882 = vmatpush1.bf16.msra.mxu0 0
    %4883 = vmatprep.subr.bf16.mxu0 0
    %4884 = vmatpush1.bf16.msra.mxu0 0
    %4885 = vmatprep.subr.bf16.mxu0 0
    %4886 = vmatpush1.bf16.msra.mxu0 0
    %4887 = vmatprep.subr.bf16.mxu0 0
    %4888 = vmatpush1.bf16.msra.mxu0 0
    %4889 = vmatprep.mubr.bf16.mxu0 0
    %4890 = vmatmul.mubr.bf16.gmra.mrb[0].mxu0 %v4791
    %v4891 = vpop.f32.mrb[0].mxu0
    %v4892 = vadd.f32 %v3988, %v4891
    %v4893 = vpop.f32.mrb[0].mxu0
    %v4894 = vpop.f32.mrb[0].mxu0
    %v4895 = vpop.f32.mrb[0].mxu0
    %4896 = vdwg.mxu0
    %v4897 = vld [vmem:[#allocation12 + $0xc] sm:$0x1]
    %v4898 = vld [vmem:[#allocation14 + $0xc] sm:$0x1]
    %v4899 = vlaneseq
    %v4900 = vshrl.u32 %v4899, 7
    %v4901 = vsub.s32 0, %v4900
    %v4902 = vrot.slane %v4897, %v4901
    %v4903 = vmul.f32 %v4892, %v4902
    %v4904 = vlaneseq
    %v4905 = vshrl.u32 %v4904, 7
    %v4906 = vsub.s32 0, %v4905
    %v4907 = vrot.slane %v4898, %v4906
    %v4908 = vadd.f32 %v4903, %v4907
    %v4909 = vmax.f32 %v4908, 0.0
    %v4910 = vpack.c.bf16 %v4909, %v4909
    %s4911 = scalar_lea.vmem [#allocation11], 640
    %v4912 = vld [vmem:[%s4911] sm:$0xf]
    %v4913 = vld [vmem:[%s4911 + $0x4] sm:$0xf]
    %v4914 = vld [vmem:[%s4911 + $0x8] sm:$0xf]
    %v4915 = vld [vmem:[%s4911 + $0xc] sm:$0xf]
    %v4916 = vld [vmem:[%s4911 + $0x10] sm:$0xf]
    %v4917 = vld [vmem:[%s4911 + $0x14] sm:$0xf]
    %v4918 = vld [vmem:[%s4911 + $0x18] sm:$0xf]
    %v4919 = vld [vmem:[%s4911 + $0x1c] sm:$0xf]
    %v4920 = vld [vmem:[%s4911 + $0x20] sm:$0xf]
    %v4921 = vld [vmem:[%s4911 + $0x24] sm:$0xf]
    %v4922 = vld [vmem:[%s4911 + $0x28] sm:$0xf]
    %v4923 = vld [vmem:[%s4911 + $0x2c] sm:$0xf]
    %v4924 = vld [vmem:[%s4911 + $0x30] sm:$0xf]
    %v4925 = vld [vmem:[%s4911 + $0x34] sm:$0xf]
    %v4926 = vld [vmem:[%s4911 + $0x38] sm:$0xf]
    %v4927 = vld [vmem:[%s4911 + $0x3c] sm:$0xf]
    %v4944 = vunpack.c.l.b16 %v4912
    %v4945 = vunpack.c.l.b16 %v4913
    %v4946 = vunpack.c.l.b16 %v4914
    %v4947 = vunpack.c.l.b16 %v4915
    %v4948 = vunpack.c.l.b16 %v4916
    %v4949 = vunpack.c.l.b16 %v4917
    %v4950 = vunpack.c.l.b16 %v4918
    %v4951 = vunpack.c.l.b16 %v4919
    %v4952 = vunpack.c.l.b16 %v4920
    %v4953 = vunpack.c.l.b16 %v4921
    %v4954 = vunpack.c.l.b16 %v4922
    %v4955 = vunpack.c.l.b16 %v4923
    %v4956 = vunpack.c.l.b16 %v4924
    %v4957 = vunpack.c.l.b16 %v4925
    %v4958 = vunpack.c.l.b16 %v4926
    %v4959 = vunpack.c.l.b16 %v4927
    %v4960 = vpack.c.b16 %v4945, %v4944
    %v4961 = vpack.c.b16 %v4947, %v4946
    %v4962 = vpack.c.b16 %v4949, %v4948
    %v4963 = vpack.c.b16 %v4951, %v4950
    %v4964 = vpack.c.b16 %v4953, %v4952
    %v4965 = vpack.c.b16 %v4955, %v4954
    %v4966 = vpack.c.b16 %v4957, %v4956
    %v4967 = vpack.c.b16 %v4959, %v4958
    %4976 = vmatprep.subr.bf16.mxu0 0
    %4977 = vmatpush1.bf16.msra.mxu0 %v4960
    %4978 = vmatprep.subr.bf16.mxu0 0
    %4979 = vmatpush1.bf16.msra.mxu0 %v4961
    %4980 = vmatprep.subr.bf16.mxu0 0
    %4981 = vmatpush1.bf16.msra.mxu0 %v4962
    %4982 = vmatprep.subr.bf16.mxu0 0
    %4983 = vmatpush1.bf16.msra.mxu0 %v4963
    %4984 = vmatprep.subr.bf16.mxu0 0
    %4985 = vmatpush1.bf16.msra.mxu0 %v4964
    %4986 = vmatprep.subr.bf16.mxu0 0
    %4987 = vmatpush1.bf16.msra.mxu0 %v4965
    %4988 = vmatprep.subr.bf16.mxu0 0
    %4989 = vmatpush1.bf16.msra.mxu0 %v4966
    %4990 = vmatprep.subr.bf16.mxu0 0
    %4991 = vmatpush1.bf16.msra.mxu0 %v4967
    %4992 = vmatprep.subr.bf16.mxu0 0
    %4993 = vmatpush1.bf16.msra.mxu0 0
    %4994 = vmatprep.subr.bf16.mxu0 0
    %4995 = vmatpush1.bf16.msra.mxu0 0
    %4996 = vmatprep.subr.bf16.mxu0 0
    %4997 = vmatpush1.bf16.msra.mxu0 0
    %4998 = vmatprep.subr.bf16.mxu0 0
    %4999 = vmatpush1.bf16.msra.mxu0 0
    %5000 = vmatprep.subr.bf16.mxu0 0
    %5001 = vmatpush1.bf16.msra.mxu0 0
    %5002 = vmatprep.subr.bf16.mxu0 0
    %5003 = vmatpush1.bf16.msra.mxu0 0
    %5004 = vmatprep.subr.bf16.mxu0 0
    %5005 = vmatpush1.bf16.msra.mxu0 0
    %5006 = vmatprep.subr.bf16.mxu0 0
    %5007 = vmatpush1.bf16.msra.mxu0 0
    %5008 = vmatprep.mubr.bf16.mxu0 0
    %5009 = vmatmul.mubr.bf16.gmra.mrb[0].mxu0 %v4910
    %v5010 = vpop.f32.mrb[0].mxu0
    %v5011 = vadd.f32 0.0, %v5010
    %v5012 = vpop.f32.mrb[0].mxu0
    %v5013 = vpop.f32.mrb[0].mxu0
    %v5014 = vpop.f32.mrb[0].mxu0
    %5015 = vdwg.mxu0
    %v5016 = vld [vmem:[#allocation12 + $0xd] sm:$0x1]
    %v5017 = vld [vmem:[#allocation14 + $0xd] sm:$0x1]
    %v5018 = vlaneseq
    %v5019 = vshrl.u32 %v5018, 7
    %v5020 = vsub.s32 0, %v5019
    %v5021 = vrot.slane %v5016, %v5020
    %v5022 = vmul.f32 %v5011, %v5021
    %v5023 = vlaneseq
    %v5024 = vshrl.u32 %v5023, 7
    %v5025 = vsub.s32 0, %v5024
    %v5026 = vrot.slane %v5017, %v5025
    %v5027 = vadd.f32 %v5022, %v5026
    %v5028 = vmax.f32 %v5027, 0.0
    %5029 = vst [vmem:[#allocation2] sm:$0xff] %v5028
    %5030 = vst [vmem:[#allocation3] sm:$0x1] 0.0
    %5031 = vst [vmem:[#allocation3 + $0x5] sm:$0x1] 0.0
    %v5032 = vld [vmem:[#allocation2] sm:$0xf]
    %5033 = vst [vmem:[#allocation3 + $0x1] sm:$0xf] %v5032
    %5034 = vst [vmem:[#allocation3 + $0x6] sm:$0x1] 0.0
    %5035 = vst [vmem:[#allocation3 + $0xb] sm:$0x1] 0.0
    %v5036 = vld [vmem:[#allocation2 + $0x4] sm:$0xf]
    %5037 = vst [vmem:[#allocation3 + $0x7] sm:$0xf] %v5036
    %v5038 = vld [vmem:[#allocation3] sm:$0xf]
    %v5039 = vpack.c.bf16 %v5038, %v5038
    %s5040 = scalar_lea.vmem [#allocation9], 960
    %v5041 = vld [vmem:[%s5040] sm:$0xf]
    %v5042 = vld [vmem:[%s5040 + $0x4] sm:$0xf]
    %v5043 = vld [vmem:[%s5040 + $0x8] sm:$0xf]
    %v5044 = vld [vmem:[%s5040 + $0xc] sm:$0xf]
    %v5045 = vld [vmem:[%s5040 + $0x10] sm:$0xf]
    %v5046 = vld [vmem:[%s5040 + $0x14] sm:$0xf]
    %v5047 = vld [vmem:[%s5040 + $0x18] sm:$0xf]
    %v5048 = vld [vmem:[%s5040 + $0x1c] sm:$0xf]
    %v5049 = vld [vmem:[%s5040 + $0x20] sm:$0xf]
    %v5050 = vld [vmem:[%s5040 + $0x24] sm:$0xf]
    %v5051 = vld [vmem:[%s5040 + $0x28] sm:$0xf]
    %v5052 = vld [vmem:[%s5040 + $0x2c] sm:$0xf]
    %v5053 = vld [vmem:[%s5040 + $0x30] sm:$0xf]
    %v5054 = vld [vmem:[%s5040 + $0x34] sm:$0xf]
    %v5055 = vld [vmem:[%s5040 + $0x38] sm:$0xf]
    %v5056 = vld [vmem:[%s5040 + $0x3c] sm:$0xf]
    %v5057 = vld [vmem:[#allocation3 + $0x1] sm:$0xf]
    %v5058 = vpack.c.bf16 %v5057, %v5057
    %s5059 = scalar_lea.vmem [#allocation9], 1024
    %v5060 = vld [vmem:[%s5059] sm:$0xf]
    %v5061 = vld [vmem:[%s5059 + $0x4] sm:$0xf]
    %v5062 = vld [vmem:[%s5059 + $0x8] sm:$0xf]
    %v5063 = vld [vmem:[%s5059 + $0xc] sm:$0xf]
    %v5064 = vld [vmem:[%s5059 + $0x10] sm:$0xf]
    %v5065 = vld [vmem:[%s5059 + $0x14] sm:$0xf]
    %v5066 = vld [vmem:[%s5059 + $0x18] sm:$0xf]
    %v5067 = vld [vmem:[%s5059 + $0x1c] sm:$0xf]
    %v5068 = vld [vmem:[%s5059 + $0x20] sm:$0xf]
    %v5069 = vld [vmem:[%s5059 + $0x24] sm:$0xf]
    %v5070 = vld [vmem:[%s5059 + $0x28] sm:$0xf]
    %v5071 = vld [vmem:[%s5059 + $0x2c] sm:$0xf]
    %v5072 = vld [vmem:[%s5059 + $0x30] sm:$0xf]
    %v5073 = vld [vmem:[%s5059 + $0x34] sm:$0xf]
    %v5074 = vld [vmem:[%s5059 + $0x38] sm:$0xf]
    %v5075 = vld [vmem:[%s5059 + $0x3c] sm:$0xf]
    %v5092 = vunpack.c.l.b16 %v5060
    %v5093 = vunpack.c.l.b16 %v5061
    %v5094 = vunpack.c.l.b16 %v5062
    %v5095 = vunpack.c.l.b16 %v5063
    %v5096 = vunpack.c.l.b16 %v5064
    %v5097 = vunpack.c.l.b16 %v5065
    %v5098 = vunpack.c.l.b16 %v5066
    %v5099 = vunpack.c.l.b16 %v5067
    %v5100 = vunpack.c.l.b16 %v5068
    %v5101 = vunpack.c.l.b16 %v5069
    %v5102 = vunpack.c.l.b16 %v5070
    %v5103 = vunpack.c.l.b16 %v5071
    %v5104 = vunpack.c.l.b16 %v5072
    %v5105 = vunpack.c.l.b16 %v5073
    %v5106 = vunpack.c.l.b16 %v5074
    %v5107 = vunpack.c.l.b16 %v5075
    %v5108 = vpack.c.b16 %v5093, %v5092
    %v5109 = vpack.c.b16 %v5095, %v5094
    %v5110 = vpack.c.b16 %v5097, %v5096
    %v5111 = vpack.c.b16 %v5099, %v5098
    %v5112 = vpack.c.b16 %v5101, %v5100
    %v5113 = vpack.c.b16 %v5103, %v5102
    %v5114 = vpack.c.b16 %v5105, %v5104
    %v5115 = vpack.c.b16 %v5107, %v5106
    %5124 = vmatprep.subr.bf16.mxu0 0
    %5125 = vmatpush1.bf16.msra.mxu0 %v5108
    %5126 = vmatprep.subr.bf16.mxu0 0
    %5127 = vmatpush1.bf16.msra.mxu0 %v5109
    %5128 = vmatprep.subr.bf16.mxu0 0
    %5129 = vmatpush1.bf16.msra.mxu0 %v5110
    %5130 = vmatprep.subr.bf16.mxu0 0
    %5131 = vmatpush1.bf16.msra.mxu0 %v5111
    %5132 = vmatprep.subr.bf16.mxu0 0
    %5133 = vmatpush1.bf16.msra.mxu0 %v5112
    %5134 = vmatprep.subr.bf16.mxu0 0
    %5135 = vmatpush1.bf16.msra.mxu0 %v5113
    %5136 = vmatprep.subr.bf16.mxu0 0
    %5137 = vmatpush1.bf16.msra.mxu0 %v5114
    %5138 = vmatprep.subr.bf16.mxu0 0
    %5139 = vmatpush1.bf16.msra.mxu0 %v5115
    %5140 = vmatprep.subr.bf16.mxu0 0
    %5141 = vmatpush1.bf16.msra.mxu0 0
    %5142 = vmatprep.subr.bf16.mxu0 0
    %5143 = vmatpush1.bf16.msra.mxu0 0
    %5144 = vmatprep.subr.bf16.mxu0 0
    %5145 = vmatpush1.bf16.msra.mxu0 0
    %5146 = vmatprep.subr.bf16.mxu0 0
    %5147 = vmatpush1.bf16.msra.mxu0 0
    %5148 = vmatprep.subr.bf16.mxu0 0
    %5149 = vmatpush1.bf16.msra.mxu0 0
    %5150 = vmatprep.subr.bf16.mxu0 0
    %5151 = vmatpush1.bf16.msra.mxu0 0
    %5152 = vmatprep.subr.bf16.mxu0 0
    %5153 = vmatpush1.bf16.msra.mxu0 0
    %5154 = vmatprep.subr.bf16.mxu0 0
    %5155 = vmatpush1.bf16.msra.mxu0 0
    %5156 = vmatprep.mubr.bf16.mxu0 0
    %5157 = vmatmul.mubr.bf16.gmra.mrb[0].mxu0 %v5058
    %v5158 = vpop.f32.mrb[0].mxu0
    %v5159 = vadd.f32 0.0, %v5158
    %v5160 = vpop.f32.mrb[0].mxu0
    %v5161 = vpop.f32.mrb[0].mxu0
    %v5162 = vpop.f32.mrb[0].mxu0
    %5163 = vdwg.mxu0
    %v5180 = vunpack.c.l.b16 %v5041
    %v5181 = vunpack.c.l.b16 %v5042
    %v5182 = vunpack.c.l.b16 %v5043
    %v5183 = vunpack.c.l.b16 %v5044
    %v5184 = vunpack.c.l.b16 %v5045
    %v5185 = vunpack.c.l.b16 %v5046
    %v5186 = vunpack.c.l.b16 %v5047
    %v5187 = vunpack.c.l.b16 %v5048
    %v5188 = vunpack.c.l.b16 %v5049
    %v5189 = vunpack.c.l.b16 %v5050
    %v5190 = vunpack.c.l.b16 %v5051
    %v5191 = vunpack.c.l.b16 %v5052
    %v5192 = vunpack.c.l.b16 %v5053
    %v5193 = vunpack.c.l.b16 %v5054
    %v5194 = vunpack.c.l.b16 %v5055
    %v5195 = vunpack.c.l.b16 %v5056
    %v5196 = vpack.c.b16 %v5181, %v5180
    %v5197 = vpack.c.b16 %v5183, %v5182
    %v5198 = vpack.c.b16 %v5185, %v5184
    %v5199 = vpack.c.b16 %v5187, %v5186
    %v5200 = vpack.c.b16 %v5189, %v5188
    %v5201 = vpack.c.b16 %v5191, %v5190
    %v5202 = vpack.c.b16 %v5193, %v5192
    %v5203 = vpack.c.b16 %v5195, %v5194
    %5212 = vmatprep.subr.bf16.mxu0 0
    %5213 = vmatpush1.bf16.msra.mxu0 %v5196
    %5214 = vmatprep.subr.bf16.mxu0 0
    %5215 = vmatpush1.bf16.msra.mxu0 %v5197
    %5216 = vmatprep.subr.bf16.mxu0 0
    %5217 = vmatpush1.bf16.msra.mxu0 %v5198
    %5218 = vmatprep.subr.bf16.mxu0 0
    %5219 = vmatpush1.bf16.msra.mxu0 %v5199
    %5220 = vmatprep.subr.bf16.mxu0 0
    %5221 = vmatpush1.bf16.msra.mxu0 %v5200
    %5222 = vmatprep.subr.bf16.mxu0 0
    %5223 = vmatpush1.bf16.msra.mxu0 %v5201
    %5224 = vmatprep.subr.bf16.mxu0 0
    %5225 = vmatpush1.bf16.msra.mxu0 %v5202
    %5226 = vmatprep.subr.bf16.mxu0 0
    %5227 = vmatpush1.bf16.msra.mxu0 %v5203
    %5228 = vmatprep.subr.bf16.mxu0 0
    %5229 = vmatpush1.bf16.msra.mxu0 0
    %5230 = vmatprep.subr.bf16.mxu0 0
    %5231 = vmatpush1.bf16.msra.mxu0 0
    %5232 = vmatprep.subr.bf16.mxu0 0
    %5233 = vmatpush1.bf16.msra.mxu0 0
    %5234 = vmatprep.subr.bf16.mxu0 0
    %5235 = vmatpush1.bf16.msra.mxu0 0
    %5236 = vmatprep.subr.bf16.mxu0 0
    %5237 = vmatpush1.bf16.msra.mxu0 0
    %5238 = vmatprep.subr.bf16.mxu0 0
    %5239 = vmatpush1.bf16.msra.mxu0 0
    %5240 = vmatprep.subr.bf16.mxu0 0
    %5241 = vmatpush1.bf16.msra.mxu0 0
    %5242 = vmatprep.subr.bf16.mxu0 0
    %5243 = vmatpush1.bf16.msra.mxu0 0
    %5244 = vmatprep.mubr.bf16.mxu0 0
    %5245 = vmatmul.mubr.bf16.gmra.mrb[0].mxu0 %v5039
    %v5246 = vpop.f32.mrb[0].mxu0
    %v5247 = vadd.f32 %v5159, %v5246
    %v5248 = vpop.f32.mrb[0].mxu0
    %v5249 = vpop.f32.mrb[0].mxu0
    %v5250 = vpop.f32.mrb[0].mxu0
    %5251 = vdwg.mxu0
    %v5252 = vld [vmem:[#allocation3 + $0x2] sm:$0xf]
    %v5253 = vpack.c.bf16 %v5252, %v5252
    %s5254 = scalar_lea.vmem [#allocation9], 1088
    %v5255 = vld [vmem:[%s5254] sm:$0xf]
    %v5256 = vld [vmem:[%s5254 + $0x4] sm:$0xf]
    %v5257 = vld [vmem:[%s5254 + $0x8] sm:$0xf]
    %v5258 = vld [vmem:[%s5254 + $0xc] sm:$0xf]
    %v5259 = vld [vmem:[%s5254 + $0x10] sm:$0xf]
    %v5260 = vld [vmem:[%s5254 + $0x14] sm:$0xf]
    %v5261 = vld [vmem:[%s5254 + $0x18] sm:$0xf]
    %v5262 = vld [vmem:[%s5254 + $0x1c] sm:$0xf]
    %v5263 = vld [vmem:[%s5254 + $0x20] sm:$0xf]
    %v5264 = vld [vmem:[%s5254 + $0x24] sm:$0xf]
    %v5265 = vld [vmem:[%s5254 + $0x28] sm:$0xf]
    %v5266 = vld [vmem:[%s5254 + $0x2c] sm:$0xf]
    %v5267 = vld [vmem:[%s5254 + $0x30] sm:$0xf]
    %v5268 = vld [vmem:[%s5254 + $0x34] sm:$0xf]
    %v5269 = vld [vmem:[%s5254 + $0x38] sm:$0xf]
    %v5270 = vld [vmem:[%s5254 + $0x3c] sm:$0xf]
    %v5287 = vunpack.c.l.b16 %v5255
    %v5288 = vunpack.c.l.b16 %v5256
    %v5289 = vunpack.c.l.b16 %v5257
    %v5290 = vunpack.c.l.b16 %v5258
    %v5291 = vunpack.c.l.b16 %v5259
    %v5292 = vunpack.c.l.b16 %v5260
    %v5293 = vunpack.c.l.b16 %v5261
    %v5294 = vunpack.c.l.b16 %v5262
    %v5295 = vunpack.c.l.b16 %v5263
    %v5296 = vunpack.c.l.b16 %v5264
    %v5297 = vunpack.c.l.b16 %v5265
    %v5298 = vunpack.c.l.b16 %v5266
    %v5299 = vunpack.c.l.b16 %v5267
    %v5300 = vunpack.c.l.b16 %v5268
    %v5301 = vunpack.c.l.b16 %v5269
    %v5302 = vunpack.c.l.b16 %v5270
    %v5303 = vpack.c.b16 %v5288, %v5287
    %v5304 = vpack.c.b16 %v5290, %v5289
    %v5305 = vpack.c.b16 %v5292, %v5291
    %v5306 = vpack.c.b16 %v5294, %v5293
    %v5307 = vpack.c.b16 %v5296, %v5295
    %v5308 = vpack.c.b16 %v5298, %v5297
    %v5309 = vpack.c.b16 %v5300, %v5299
    %v5310 = vpack.c.b16 %v5302, %v5301
    %5319 = vmatprep.subr.bf16.mxu0 0
    %5320 = vmatpush1.bf16.msra.mxu0 %v5303
    %5321 = vmatprep.subr.bf16.mxu0 0
    %5322 = vmatpush1.bf16.msra.mxu0 %v5304
    %5323 = vmatprep.subr.bf16.mxu0 0
    %5324 = vmatpush1.bf16.msra.mxu0 %v5305
    %5325 = vmatprep.subr.bf16.mxu0 0
    %5326 = vmatpush1.bf16.msra.mxu0 %v5306
    %5327 = vmatprep.subr.bf16.mxu0 0
    %5328 = vmatpush1.bf16.msra.mxu0 %v5307
    %5329 = vmatprep.subr.bf16.mxu0 0
    %5330 = vmatpush1.bf16.msra.mxu0 %v5308
    %5331 = vmatprep.subr.bf16.mxu0 0
    %5332 = vmatpush1.bf16.msra.mxu0 %v5309
    %5333 = vmatprep.subr.bf16.mxu0 0
    %5334 = vmatpush1.bf16.msra.mxu0 %v5310
    %5335 = vmatprep.subr.bf16.mxu0 0
    %5336 = vmatpush1.bf16.msra.mxu0 0
    %5337 = vmatprep.subr.bf16.mxu0 0
    %5338 = vmatpush1.bf16.msra.mxu0 0
    %5339 = vmatprep.subr.bf16.mxu0 0
    %5340 = vmatpush1.bf16.msra.mxu0 0
    %5341 = vmatprep.subr.bf16.mxu0 0
    %5342 = vmatpush1.bf16.msra.mxu0 0
    %5343 = vmatprep.subr.bf16.mxu0 0
    %5344 = vmatpush1.bf16.msra.mxu0 0
    %5345 = vmatprep.subr.bf16.mxu0 0
    %5346 = vmatpush1.bf16.msra.mxu0 0
    %5347 = vmatprep.subr.bf16.mxu0 0
    %5348 = vmatpush1.bf16.msra.mxu0 0
    %5349 = vmatprep.subr.bf16.mxu0 0
    %5350 = vmatpush1.bf16.msra.mxu0 0
    %5351 = vmatprep.mubr.bf16.mxu0 0
    %5352 = vmatmul.mubr.bf16.gmra.mrb[0].mxu0 %v5253
    %v5353 = vpop.f32.mrb[0].mxu0
    %v5354 = vadd.f32 0.0, %v5353
    %v5355 = vpop.f32.mrb[0].mxu0
    %v5356 = vpop.f32.mrb[0].mxu0
    %v5357 = vpop.f32.mrb[0].mxu0
    %5358 = vdwg.mxu0
    %v5359 = vadd.f32 %v5247, %v5354
    %5360 = vst [vmem:[#allocation4] sm:$0xf] %v5359
    %v5361 = vld [vmem:[#allocation3 + $0x6] sm:$0xf]
    %v5362 = vpack.c.bf16 %v5361, %v5361
    %v5363 = vld [vmem:[%s5040] sm:$0xf]
    %v5364 = vld [vmem:[%s5040 + $0x4] sm:$0xf]
    %v5365 = vld [vmem:[%s5040 + $0x8] sm:$0xf]
    %v5366 = vld [vmem:[%s5040 + $0xc] sm:$0xf]
    %v5367 = vld [vmem:[%s5040 + $0x10] sm:$0xf]
    %v5368 = vld [vmem:[%s5040 + $0x14] sm:$0xf]
    %v5369 = vld [vmem:[%s5040 + $0x18] sm:$0xf]
    %v5370 = vld [vmem:[%s5040 + $0x1c] sm:$0xf]
    %v5371 = vld [vmem:[%s5040 + $0x20] sm:$0xf]
    %v5372 = vld [vmem:[%s5040 + $0x24] sm:$0xf]
    %v5373 = vld [vmem:[%s5040 + $0x28] sm:$0xf]
    %v5374 = vld [vmem:[%s5040 + $0x2c] sm:$0xf]
    %v5375 = vld [vmem:[%s5040 + $0x30] sm:$0xf]
    %v5376 = vld [vmem:[%s5040 + $0x34] sm:$0xf]
    %v5377 = vld [vmem:[%s5040 + $0x38] sm:$0xf]
    %v5378 = vld [vmem:[%s5040 + $0x3c] sm:$0xf]
    %v5379 = vld [vmem:[#allocation3 + $0x7] sm:$0xf]
    %v5380 = vpack.c.bf16 %v5379, %v5379
    %v5381 = vld [vmem:[%s5059] sm:$0xf]
    %v5382 = vld [vmem:[%s5059 + $0x4] sm:$0xf]
    %v5383 = vld [vmem:[%s5059 + $0x8] sm:$0xf]
    %v5384 = vld [vmem:[%s5059 + $0xc] sm:$0xf]
    %v5385 = vld [vmem:[%s5059 + $0x10] sm:$0xf]
    %v5386 = vld [vmem:[%s5059 + $0x14] sm:$0xf]
    %v5387 = vld [vmem:[%s5059 + $0x18] sm:$0xf]
    %v5388 = vld [vmem:[%s5059 + $0x1c] sm:$0xf]
    %v5389 = vld [vmem:[%s5059 + $0x20] sm:$0xf]
    %v5390 = vld [vmem:[%s5059 + $0x24] sm:$0xf]
    %v5391 = vld [vmem:[%s5059 + $0x28] sm:$0xf]
    %v5392 = vld [vmem:[%s5059 + $0x2c] sm:$0xf]
    %v5393 = vld [vmem:[%s5059 + $0x30] sm:$0xf]
    %v5394 = vld [vmem:[%s5059 + $0x34] sm:$0xf]
    %v5395 = vld [vmem:[%s5059 + $0x38] sm:$0xf]
    %v5396 = vld [vmem:[%s5059 + $0x3c] sm:$0xf]
    %v5413 = vunpack.c.l.b16 %v5381
    %v5414 = vunpack.c.l.b16 %v5382
    %v5415 = vunpack.c.l.b16 %v5383
    %v5416 = vunpack.c.l.b16 %v5384
    %v5417 = vunpack.c.l.b16 %v5385
    %v5418 = vunpack.c.l.b16 %v5386
    %v5419 = vunpack.c.l.b16 %v5387
    %v5420 = vunpack.c.l.b16 %v5388
    %v5421 = vunpack.c.l.b16 %v5389
    %v5422 = vunpack.c.l.b16 %v5390
    %v5423 = vunpack.c.l.b16 %v5391
    %v5424 = vunpack.c.l.b16 %v5392
    %v5425 = vunpack.c.l.b16 %v5393
    %v5426 = vunpack.c.l.b16 %v5394
    %v5427 = vunpack.c.l.b16 %v5395
    %v5428 = vunpack.c.l.b16 %v5396
    %v5429 = vpack.c.b16 %v5414, %v5413
    %v5430 = vpack.c.b16 %v5416, %v5415
    %v5431 = vpack.c.b16 %v5418, %v5417
    %v5432 = vpack.c.b16 %v5420, %v5419
    %v5433 = vpack.c.b16 %v5422, %v5421
    %v5434 = vpack.c.b16 %v5424, %v5423
    %v5435 = vpack.c.b16 %v5426, %v5425
    %v5436 = vpack.c.b16 %v5428, %v5427
    %5445 = vmatprep.subr.bf16.mxu0 0
    %5446 = vmatpush1.bf16.msra.mxu0 %v5429
    %5447 = vmatprep.subr.bf16.mxu0 0
    %5448 = vmatpush1.bf16.msra.mxu0 %v5430
    %5449 = vmatprep.subr.bf16.mxu0 0
    %5450 = vmatpush1.bf16.msra.mxu0 %v5431
    %5451 = vmatprep.subr.bf16.mxu0 0
    %5452 = vmatpush1.bf16.msra.mxu0 %v5432
    %5453 = vmatprep.subr.bf16.mxu0 0
    %5454 = vmatpush1.bf16.msra.mxu0 %v5433
    %5455 = vmatprep.subr.bf16.mxu0 0
    %5456 = vmatpush1.bf16.msra.mxu0 %v5434
    %5457 = vmatprep.subr.bf16.mxu0 0
    %5458 = vmatpush1.bf16.msra.mxu0 %v5435
    %5459 = vmatprep.subr.bf16.mxu0 0
    %5460 = vmatpush1.bf16.msra.mxu0 %v5436
    %5461 = vmatprep.subr.bf16.mxu0 0
    %5462 = vmatpush1.bf16.msra.mxu0 0
    %5463 = vmatprep.subr.bf16.mxu0 0
    %5464 = vmatpush1.bf16.msra.mxu0 0
    %5465 = vmatprep.subr.bf16.mxu0 0
    %5466 = vmatpush1.bf16.msra.mxu0 0
    %5467 = vmatprep.subr.bf16.mxu0 0
    %5468 = vmatpush1.bf16.msra.mxu0 0
    %5469 = vmatprep.subr.bf16.mxu0 0
    %5470 = vmatpush1.bf16.msra.mxu0 0
    %5471 = vmatprep.subr.bf16.mxu0 0
    %5472 = vmatpush1.bf16.msra.mxu0 0
    %5473 = vmatprep.subr.bf16.mxu0 0
    %5474 = vmatpush1.bf16.msra.mxu0 0
    %5475 = vmatprep.subr.bf16.mxu0 0
    %5476 = vmatpush1.bf16.msra.mxu0 0
    %5477 = vmatprep.mubr.bf16.mxu0 0
    %5478 = vmatmul.mubr.bf16.gmra.mrb[0].mxu0 %v5380
    %v5479 = vpop.f32.mrb[0].mxu0
    %v5480 = vadd.f32 0.0, %v5479
    %v5481 = vpop.f32.mrb[0].mxu0
    %v5482 = vpop.f32.mrb[0].mxu0
    %v5483 = vpop.f32.mrb[0].mxu0
    %5484 = vdwg.mxu0
    %v5501 = vunpack.c.l.b16 %v5363
    %v5502 = vunpack.c.l.b16 %v5364
    %v5503 = vunpack.c.l.b16 %v5365
    %v5504 = vunpack.c.l.b16 %v5366
    %v5505 = vunpack.c.l.b16 %v5367
    %v5506 = vunpack.c.l.b16 %v5368
    %v5507 = vunpack.c.l.b16 %v5369
    %v5508 = vunpack.c.l.b16 %v5370
    %v5509 = vunpack.c.l.b16 %v5371
    %v5510 = vunpack.c.l.b16 %v5372
    %v5511 = vunpack.c.l.b16 %v5373
    %v5512 = vunpack.c.l.b16 %v5374
    %v5513 = vunpack.c.l.b16 %v5375
    %v5514 = vunpack.c.l.b16 %v5376
    %v5515 = vunpack.c.l.b16 %v5377
    %v5516 = vunpack.c.l.b16 %v5378
    %v5517 = vpack.c.b16 %v5502, %v5501
    %v5518 = vpack.c.b16 %v5504, %v5503
    %v5519 = vpack.c.b16 %v5506, %v5505
    %v5520 = vpack.c.b16 %v5508, %v5507
    %v5521 = vpack.c.b16 %v5510, %v5509
    %v5522 = vpack.c.b16 %v5512, %v5511
    %v5523 = vpack.c.b16 %v5514, %v5513
    %v5524 = vpack.c.b16 %v5516, %v5515
    %5533 = vmatprep.subr.bf16.mxu0 0
    %5534 = vmatpush1.bf16.msra.mxu0 %v5517
    %5535 = vmatprep.subr.bf16.mxu0 0
    %5536 = vmatpush1.bf16.msra.mxu0 %v5518
    %5537 = vmatprep.subr.bf16.mxu0 0
    %5538 = vmatpush1.bf16.msra.mxu0 %v5519
    %5539 = vmatprep.subr.bf16.mxu0 0
    %5540 = vmatpush1.bf16.msra.mxu0 %v5520
    %5541 = vmatprep.subr.bf16.mxu0 0
    %5542 = vmatpush1.bf16.msra.mxu0 %v5521
    %5543 = vmatprep.subr.bf16.mxu0 0
    %5544 = vmatpush1.bf16.msra.mxu0 %v5522
    %5545 = vmatprep.subr.bf16.mxu0 0
    %5546 = vmatpush1.bf16.msra.mxu0 %v5523
    %5547 = vmatprep.subr.bf16.mxu0 0
    %5548 = vmatpush1.bf16.msra.mxu0 %v5524
    %5549 = vmatprep.subr.bf16.mxu0 0
    %5550 = vmatpush1.bf16.msra.mxu0 0
    %5551 = vmatprep.subr.bf16.mxu0 0
    %5552 = vmatpush1.bf16.msra.mxu0 0
    %5553 = vmatprep.subr.bf16.mxu0 0
    %5554 = vmatpush1.bf16.msra.mxu0 0
    %5555 = vmatprep.subr.bf16.mxu0 0
    %5556 = vmatpush1.bf16.msra.mxu0 0
    %5557 = vmatprep.subr.bf16.mxu0 0
    %5558 = vmatpush1.bf16.msra.mxu0 0
    %5559 = vmatprep.subr.bf16.mxu0 0
    %5560 = vmatpush1.bf16.msra.mxu0 0
    %5561 = vmatprep.subr.bf16.mxu0 0
    %5562 = vmatpush1.bf16.msra.mxu0 0
    %5563 = vmatprep.subr.bf16.mxu0 0
    %5564 = vmatpush1.bf16.msra.mxu0 0
    %5565 = vmatprep.mubr.bf16.mxu0 0
    %5566 = vmatmul.mubr.bf16.gmra.mrb[0].mxu0 %v5362
    %v5567 = vpop.f32.mrb[0].mxu0
    %v5568 = vadd.f32 %v5480, %v5567
    %v5569 = vpop.f32.mrb[0].mxu0
    %v5570 = vpop.f32.mrb[0].mxu0
    %v5571 = vpop.f32.mrb[0].mxu0
    %5572 = vdwg.mxu0
    %v5573 = vld [vmem:[#allocation3 + $0x8] sm:$0xf]
    %v5574 = vpack.c.bf16 %v5573, %v5573
    %v5575 = vld [vmem:[%s5254] sm:$0xf]
    %v5576 = vld [vmem:[%s5254 + $0x4] sm:$0xf]
    %v5577 = vld [vmem:[%s5254 + $0x8] sm:$0xf]
    %v5578 = vld [vmem:[%s5254 + $0xc] sm:$0xf]
    %v5579 = vld [vmem:[%s5254 + $0x10] sm:$0xf]
    %v5580 = vld [vmem:[%s5254 + $0x14] sm:$0xf]
    %v5581 = vld [vmem:[%s5254 + $0x18] sm:$0xf]
    %v5582 = vld [vmem:[%s5254 + $0x1c] sm:$0xf]
    %v5583 = vld [vmem:[%s5254 + $0x20] sm:$0xf]
    %v5584 = vld [vmem:[%s5254 + $0x24] sm:$0xf]
    %v5585 = vld [vmem:[%s5254 + $0x28] sm:$0xf]
    %v5586 = vld [vmem:[%s5254 + $0x2c] sm:$0xf]
    %v5587 = vld [vmem:[%s5254 + $0x30] sm:$0xf]
    %v5588 = vld [vmem:[%s5254 + $0x34] sm:$0xf]
    %v5589 = vld [vmem:[%s5254 + $0x38] sm:$0xf]
    %v5590 = vld [vmem:[%s5254 + $0x3c] sm:$0xf]
    %v5607 = vunpack.c.l.b16 %v5575
    %v5608 = vunpack.c.l.b16 %v5576
    %v5609 = vunpack.c.l.b16 %v5577
    %v5610 = vunpack.c.l.b16 %v5578
    %v5611 = vunpack.c.l.b16 %v5579
    %v5612 = vunpack.c.l.b16 %v5580
    %v5613 = vunpack.c.l.b16 %v5581
    %v5614 = vunpack.c.l.b16 %v5582
    %v5615 = vunpack.c.l.b16 %v5583
    %v5616 = vunpack.c.l.b16 %v5584
    %v5617 = vunpack.c.l.b16 %v5585
    %v5618 = vunpack.c.l.b16 %v5586
    %v5619 = vunpack.c.l.b16 %v5587
    %v5620 = vunpack.c.l.b16 %v5588
    %v5621 = vunpack.c.l.b16 %v5589
    %v5622 = vunpack.c.l.b16 %v5590
    %v5623 = vpack.c.b16 %v5608, %v5607
    %v5624 = vpack.c.b16 %v5610, %v5609
    %v5625 = vpack.c.b16 %v5612, %v5611
    %v5626 = vpack.c.b16 %v5614, %v5613
    %v5627 = vpack.c.b16 %v5616, %v5615
    %v5628 = vpack.c.b16 %v5618, %v5617
    %v5629 = vpack.c.b16 %v5620, %v5619
    %v5630 = vpack.c.b16 %v5622, %v5621
    %5639 = vmatprep.subr.bf16.mxu0 0
    %5640 = vmatpush1.bf16.msra.mxu0 %v5623
    %5641 = vmatprep.subr.bf16.mxu0 0
    %5642 = vmatpush1.bf16.msra.mxu0 %v5624
    %5643 = vmatprep.subr.bf16.mxu0 0
    %5644 = vmatpush1.bf16.msra.mxu0 %v5625
    %5645 = vmatprep.subr.bf16.mxu0 0
    %5646 = vmatpush1.bf16.msra.mxu0 %v5626
    %5647 = vmatprep.subr.bf16.mxu0 0
    %5648 = vmatpush1.bf16.msra.mxu0 %v5627
    %5649 = vmatprep.subr.bf16.mxu0 0
    %5650 = vmatpush1.bf16.msra.mxu0 %v5628
    %5651 = vmatprep.subr.bf16.mxu0 0
    %5652 = vmatpush1.bf16.msra.mxu0 %v5629
    %5653 = vmatprep.subr.bf16.mxu0 0
    %5654 = vmatpush1.bf16.msra.mxu0 %v5630
    %5655 = vmatprep.subr.bf16.mxu0 0
    %5656 = vmatpush1.bf16.msra.mxu0 0
    %5657 = vmatprep.subr.bf16.mxu0 0
    %5658 = vmatpush1.bf16.msra.mxu0 0
    %5659 = vmatprep.subr.bf16.mxu0 0
    %5660 = vmatpush1.bf16.msra.mxu0 0
    %5661 = vmatprep.subr.bf16.mxu0 0
    %5662 = vmatpush1.bf16.msra.mxu0 0
    %5663 = vmatprep.subr.bf16.mxu0 0
    %5664 = vmatpush1.bf16.msra.mxu0 0
    %5665 = vmatprep.subr.bf16.mxu0 0
    %5666 = vmatpush1.bf16.msra.mxu0 0
    %5667 = vmatprep.subr.bf16.mxu0 0
    %5668 = vmatpush1.bf16.msra.mxu0 0
    %5669 = vmatprep.subr.bf16.mxu0 0
    %5670 = vmatpush1.bf16.msra.mxu0 0
    %5671 = vmatprep.mubr.bf16.mxu0 0
    %5672 = vmatmul.mubr.bf16.gmra.mrb[0].mxu0 %v5574
    %v5673 = vpop.f32.mrb[0].mxu0
    %v5674 = vadd.f32 0.0, %v5673
    %v5675 = vpop.f32.mrb[0].mxu0
    %v5676 = vpop.f32.mrb[0].mxu0
    %v5677 = vpop.f32.mrb[0].mxu0
    %5678 = vdwg.mxu0
    %v5679 = vadd.f32 %v5568, %v5674
    %5680 = vst [vmem:[#allocation4 + $0x4] sm:$0xf] %v5679
    %v5681 = vld [vmem:[#allocation4] sm:$0xff]
    %v5682 = vld [vmem:[#allocation12 + $0xe] sm:$0x1]
    %v5683 = vld [vmem:[#allocation14 + $0xe] sm:$0x1]
    %v5684 = vlaneseq
    %v5685 = vshrl.u32 %v5684, 7
    %v5686 = vsub.s32 0, %v5685
    %v5687 = vrot.slane %v5682, %v5686
    %v5688 = vmul.f32 %v5681, %v5687
    %v5689 = vlaneseq
    %v5690 = vshrl.u32 %v5689, 7
    %v5691 = vsub.s32 0, %v5690
    %v5692 = vrot.slane %v5683, %v5691
    %v5693 = vadd.f32 %v5688, %v5692
    %v5694 = vmax.f32 %v5693, 0.0
    %v5695 = vpack.c.bf16 %v5694, %v5694
    %s5696 = scalar_lea.vmem [#allocation11], 704
    %v5697 = vld [vmem:[%s5696] sm:$0xf]
    %v5698 = vld [vmem:[%s5696 + $0x4] sm:$0xf]
    %v5699 = vld [vmem:[%s5696 + $0x8] sm:$0xf]
    %v5700 = vld [vmem:[%s5696 + $0xc] sm:$0xf]
    %v5701 = vld [vmem:[%s5696 + $0x10] sm:$0xf]
    %v5702 = vld [vmem:[%s5696 + $0x14] sm:$0xf]
    %v5703 = vld [vmem:[%s5696 + $0x18] sm:$0xf]
    %v5704 = vld [vmem:[%s5696 + $0x1c] sm:$0xf]
    %v5705 = vld [vmem:[%s5696 + $0x20] sm:$0xf]
    %v5706 = vld [vmem:[%s5696 + $0x24] sm:$0xf]
    %v5707 = vld [vmem:[%s5696 + $0x28] sm:$0xf]
    %v5708 = vld [vmem:[%s5696 + $0x2c] sm:$0xf]
    %v5709 = vld [vmem:[%s5696 + $0x30] sm:$0xf]
    %v5710 = vld [vmem:[%s5696 + $0x34] sm:$0xf]
    %v5711 = vld [vmem:[%s5696 + $0x38] sm:$0xf]
    %v5712 = vld [vmem:[%s5696 + $0x3c] sm:$0xf]
    %v5729 = vunpack.c.l.b16 %v5697
    %v5730 = vunpack.c.l.b16 %v5698
    %v5731 = vunpack.c.l.b16 %v5699
    %v5732 = vunpack.c.l.b16 %v5700
    %v5733 = vunpack.c.l.b16 %v5701
    %v5734 = vunpack.c.l.b16 %v5702
    %v5735 = vunpack.c.l.b16 %v5703
    %v5736 = vunpack.c.l.b16 %v5704
    %v5737 = vunpack.c.l.b16 %v5705
    %v5738 = vunpack.c.l.b16 %v5706
    %v5739 = vunpack.c.l.b16 %v5707
    %v5740 = vunpack.c.l.b16 %v5708
    %v5741 = vunpack.c.l.b16 %v5709
    %v5742 = vunpack.c.l.b16 %v5710
    %v5743 = vunpack.c.l.b16 %v5711
    %v5744 = vunpack.c.l.b16 %v5712
    %v5745 = vpack.c.b16 %v5730, %v5729
    %v5746 = vpack.c.b16 %v5732, %v5731
    %v5747 = vpack.c.b16 %v5734, %v5733
    %v5748 = vpack.c.b16 %v5736, %v5735
    %v5749 = vpack.c.b16 %v5738, %v5737
    %v5750 = vpack.c.b16 %v5740, %v5739
    %v5751 = vpack.c.b16 %v5742, %v5741
    %v5752 = vpack.c.b16 %v5744, %v5743
    %5761 = vmatprep.subr.bf16.mxu0 0
    %5762 = vmatpush1.bf16.msra.mxu0 %v5745
    %5763 = vmatprep.subr.bf16.mxu0 0
    %5764 = vmatpush1.bf16.msra.mxu0 %v5746
    %5765 = vmatprep.subr.bf16.mxu0 0
    %5766 = vmatpush1.bf16.msra.mxu0 %v5747
    %5767 = vmatprep.subr.bf16.mxu0 0
    %5768 = vmatpush1.bf16.msra.mxu0 %v5748
    %5769 = vmatprep.subr.bf16.mxu0 0
    %5770 = vmatpush1.bf16.msra.mxu0 %v5749
    %5771 = vmatprep.subr.bf16.mxu0 0
    %5772 = vmatpush1.bf16.msra.mxu0 %v5750
    %5773 = vmatprep.subr.bf16.mxu0 0
    %5774 = vmatpush1.bf16.msra.mxu0 %v5751
    %5775 = vmatprep.subr.bf16.mxu0 0
    %5776 = vmatpush1.bf16.msra.mxu0 %v5752
    %5777 = vmatprep.subr.bf16.mxu0 0
    %5778 = vmatpush1.bf16.msra.mxu0 0
    %5779 = vmatprep.subr.bf16.mxu0 0
    %5780 = vmatpush1.bf16.msra.mxu0 0
    %5781 = vmatprep.subr.bf16.mxu0 0
    %5782 = vmatpush1.bf16.msra.mxu0 0
    %5783 = vmatprep.subr.bf16.mxu0 0
    %5784 = vmatpush1.bf16.msra.mxu0 0
    %5785 = vmatprep.subr.bf16.mxu0 0
    %5786 = vmatpush1.bf16.msra.mxu0 0
    %5787 = vmatprep.subr.bf16.mxu0 0
    %5788 = vmatpush1.bf16.msra.mxu0 0
    %5789 = vmatprep.subr.bf16.mxu0 0
    %5790 = vmatpush1.bf16.msra.mxu0 0
    %5791 = vmatprep.subr.bf16.mxu0 0
    %5792 = vmatpush1.bf16.msra.mxu0 0
    %5793 = vmatprep.mubr.bf16.mxu0 0
    %5794 = vmatmul.mubr.bf16.gmra.mrb[0].mxu0 %v5695
    %v5795 = vpop.f32.mrb[0].mxu0
    %v5796 = vadd.f32 0.0, %v5795
    %v5797 = vpop.f32.mrb[0].mxu0
    %v5798 = vpop.f32.mrb[0].mxu0
    %v5799 = vpop.f32.mrb[0].mxu0
    %5800 = vdwg.mxu0
    %v5801 = vld [vmem:[#allocation12 + $0xf] sm:$0x1]
    %v5802 = vld [vmem:[#allocation14 + $0xf] sm:$0x1]
    %v5803 = vlaneseq
    %v5804 = vshrl.u32 %v5803, 7
    %v5805 = vsub.s32 0, %v5804
    %v5806 = vrot.slane %v5801, %v5805
    %v5807 = vmul.f32 %v5796, %v5806
    %v5808 = vlaneseq
    %v5809 = vshrl.u32 %v5808, 7
    %v5810 = vsub.s32 0, %v5809
    %v5811 = vrot.slane %v5802, %v5810
    %v5812 = vadd.f32 %v5807, %v5811
    %v5813 = vmax.f32 %v5812, 0.0
    %v5814 = vpack.c.bf16 %v5813, %v5813
    %s5815 = scalar_lea.vmem [#allocation11], 768
    %v5816 = vld [vmem:[%s5815] sm:$0xf]
    %v5817 = vld [vmem:[%s5815 + $0x4] sm:$0xf]
    %v5818 = vld [vmem:[%s5815 + $0x8] sm:$0xf]
    %v5819 = vld [vmem:[%s5815 + $0xc] sm:$0xf]
    %v5820 = vld [vmem:[%s5815 + $0x10] sm:$0xf]
    %v5821 = vld [vmem:[%s5815 + $0x14] sm:$0xf]
    %v5822 = vld [vmem:[%s5815 + $0x18] sm:$0xf]
    %v5823 = vld [vmem:[%s5815 + $0x1c] sm:$0xf]
    %v5824 = vld [vmem:[%s5815 + $0x20] sm:$0xf]
    %v5825 = vld [vmem:[%s5815 + $0x24] sm:$0xf]
    %v5826 = vld [vmem:[%s5815 + $0x28] sm:$0xf]
    %v5827 = vld [vmem:[%s5815 + $0x2c] sm:$0xf]
    %v5828 = vld [vmem:[%s5815 + $0x30] sm:$0xf]
    %v5829 = vld [vmem:[%s5815 + $0x34] sm:$0xf]
    %v5830 = vld [vmem:[%s5815 + $0x38] sm:$0xf]
    %v5831 = vld [vmem:[%s5815 + $0x3c] sm:$0xf]
    %v5848 = vunpack.c.l.b16 %v5816
    %v5849 = vunpack.c.l.b16 %v5817
    %v5850 = vunpack.c.l.b16 %v5818
    %v5851 = vunpack.c.l.b16 %v5819
    %v5852 = vunpack.c.l.b16 %v5820
    %v5853 = vunpack.c.l.b16 %v5821
    %v5854 = vunpack.c.l.b16 %v5822
    %v5855 = vunpack.c.l.b16 %v5823
    %v5856 = vunpack.c.l.b16 %v5824
    %v5857 = vunpack.c.l.b16 %v5825
    %v5858 = vunpack.c.l.b16 %v5826
    %v5859 = vunpack.c.l.b16 %v5827
    %v5860 = vunpack.c.l.b16 %v5828
    %v5861 = vunpack.c.l.b16 %v5829
    %v5862 = vunpack.c.l.b16 %v5830
    %v5863 = vunpack.c.l.b16 %v5831
    %v5864 = vpack.c.b16 %v5849, %v5848
    %v5865 = vpack.c.b16 %v5851, %v5850
    %v5866 = vpack.c.b16 %v5853, %v5852
    %v5867 = vpack.c.b16 %v5855, %v5854
    %v5868 = vpack.c.b16 %v5857, %v5856
    %v5869 = vpack.c.b16 %v5859, %v5858
    %v5870 = vpack.c.b16 %v5861, %v5860
    %v5871 = vpack.c.b16 %v5863, %v5862
    %5880 = vmatprep.subr.bf16.mxu0 0
    %5881 = vmatpush1.bf16.msra.mxu0 %v5864
    %5882 = vmatprep.subr.bf16.mxu0 0
    %5883 = vmatpush1.bf16.msra.mxu0 %v5865
    %5884 = vmatprep.subr.bf16.mxu0 0
    %5885 = vmatpush1.bf16.msra.mxu0 %v5866
    %5886 = vmatprep.subr.bf16.mxu0 0
    %5887 = vmatpush1.bf16.msra.mxu0 %v5867
    %5888 = vmatprep.subr.bf16.mxu0 0
    %5889 = vmatpush1.bf16.msra.mxu0 %v5868
    %5890 = vmatprep.subr.bf16.mxu0 0
    %5891 = vmatpush1.bf16.msra.mxu0 %v5869
    %5892 = vmatprep.subr.bf16.mxu0 0
    %5893 = vmatpush1.bf16.msra.mxu0 %v5870
    %5894 = vmatprep.subr.bf16.mxu0 0
    %5895 = vmatpush1.bf16.msra.mxu0 %v5871
    %5896 = vmatprep.subr.bf16.mxu0 0
    %5897 = vmatpush1.bf16.msra.mxu0 0
    %5898 = vmatprep.subr.bf16.mxu0 0
    %5899 = vmatpush1.bf16.msra.mxu0 0
    %5900 = vmatprep.subr.bf16.mxu0 0
    %5901 = vmatpush1.bf16.msra.mxu0 0
    %5902 = vmatprep.subr.bf16.mxu0 0
    %5903 = vmatpush1.bf16.msra.mxu0 0
    %5904 = vmatprep.subr.bf16.mxu0 0
    %5905 = vmatpush1.bf16.msra.mxu0 0
    %5906 = vmatprep.subr.bf16.mxu0 0
    %5907 = vmatpush1.bf16.msra.mxu0 0
    %5908 = vmatprep.subr.bf16.mxu0 0
    %5909 = vmatpush1.bf16.msra.mxu0 0
    %5910 = vmatprep.subr.bf16.mxu0 0
    %5911 = vmatpush1.bf16.msra.mxu0 0
    %5912 = vmatprep.mubr.bf16.mxu0 0
    %5913 = vmatmul.mubr.bf16.gmra.mrb[0].mxu0 %v5814
    %v5914 = vpop.f32.mrb[0].mxu0
    %v5915 = vadd.f32 0.0, %v5914
    %v5916 = vpop.f32.mrb[0].mxu0
    %v5917 = vpop.f32.mrb[0].mxu0
    %v5918 = vpop.f32.mrb[0].mxu0
    %5919 = vdwg.mxu0
    %v5920 = vld [vmem:[#allocation12 + $0x10] sm:$0x1]
    %v5921 = vld [vmem:[#allocation14 + $0x10] sm:$0x1]
    %v5922 = vlaneseq
    %v5923 = vshrl.u32 %v5922, 7
    %v5924 = vsub.s32 0, %v5923
    %v5925 = vrot.slane %v5920, %v5924
    %v5926 = vmul.f32 %v5915, %v5925
    %v5927 = vlaneseq
    %v5928 = vshrl.u32 %v5927, 7
    %v5929 = vsub.s32 0, %v5928
    %v5930 = vrot.slane %v5921, %v5929
    %v5931 = vadd.f32 %v5926, %v5930
    %v5932 = vmax.f32 %v5931, 0.0
    %5933 = vst [vmem:[#allocation2] sm:$0xff] %v5932
    %5934 = vst [vmem:[#allocation3] sm:$0x1] 0.0
    %5935 = vst [vmem:[#allocation3 + $0x5] sm:$0x1] 0.0
    %v5936 = vld [vmem:[#allocation2] sm:$0xf]
    %5937 = vst [vmem:[#allocation3 + $0x1] sm:$0xf] %v5936
    %5938 = vst [vmem:[#allocation3 + $0x6] sm:$0x1] 0.0
    %5939 = vst [vmem:[#allocation3 + $0xb] sm:$0x1] 0.0
    %v5940 = vld [vmem:[#allocation2 + $0x4] sm:$0xf]
    %5941 = vst [vmem:[#allocation3 + $0x7] sm:$0xf] %v5940
    %v5942 = vld [vmem:[#allocation3] sm:$0xf]
    %v5943 = vpack.c.bf16 %v5942, %v5942
    %s5944 = scalar_lea.vmem [#allocation9], 1152
    %v5945 = vld [vmem:[%s5944] sm:$0xf]
    %v5946 = vld [vmem:[%s5944 + $0x4] sm:$0xf]
    %v5947 = vld [vmem:[%s5944 + $0x8] sm:$0xf]
    %v5948 = vld [vmem:[%s5944 + $0xc] sm:$0xf]
    %v5949 = vld [vmem:[%s5944 + $0x10] sm:$0xf]
    %v5950 = vld [vmem:[%s5944 + $0x14] sm:$0xf]
    %v5951 = vld [vmem:[%s5944 + $0x18] sm:$0xf]
    %v5952 = vld [vmem:[%s5944 + $0x1c] sm:$0xf]
    %v5953 = vld [vmem:[%s5944 + $0x20] sm:$0xf]
    %v5954 = vld [vmem:[%s5944 + $0x24] sm:$0xf]
    %v5955 = vld [vmem:[%s5944 + $0x28] sm:$0xf]
    %v5956 = vld [vmem:[%s5944 + $0x2c] sm:$0xf]
    %v5957 = vld [vmem:[%s5944 + $0x30] sm:$0xf]
    %v5958 = vld [vmem:[%s5944 + $0x34] sm:$0xf]
    %v5959 = vld [vmem:[%s5944 + $0x38] sm:$0xf]
    %v5960 = vld [vmem:[%s5944 + $0x3c] sm:$0xf]
    %v5961 = vld [vmem:[#allocation3 + $0x1] sm:$0xf]
    %v5962 = vpack.c.bf16 %v5961, %v5961
    %s5963 = scalar_lea.vmem [#allocation9], 1216
    %v5964 = vld [vmem:[%s5963] sm:$0xf]
    %v5965 = vld [vmem:[%s5963 + $0x4] sm:$0xf]
    %v5966 = vld [vmem:[%s5963 + $0x8] sm:$0xf]
    %v5967 = vld [vmem:[%s5963 + $0xc] sm:$0xf]
    %v5968 = vld [vmem:[%s5963 + $0x10] sm:$0xf]
    %v5969 = vld [vmem:[%s5963 + $0x14] sm:$0xf]
    %v5970 = vld [vmem:[%s5963 + $0x18] sm:$0xf]
    %v5971 = vld [vmem:[%s5963 + $0x1c] sm:$0xf]
    %v5972 = vld [vmem:[%s5963 + $0x20] sm:$0xf]
    %v5973 = vld [vmem:[%s5963 + $0x24] sm:$0xf]
    %v5974 = vld [vmem:[%s5963 + $0x28] sm:$0xf]
    %v5975 = vld [vmem:[%s5963 + $0x2c] sm:$0xf]
    %v5976 = vld [vmem:[%s5963 + $0x30] sm:$0xf]
    %v5977 = vld [vmem:[%s5963 + $0x34] sm:$0xf]
    %v5978 = vld [vmem:[%s5963 + $0x38] sm:$0xf]
    %v5979 = vld [vmem:[%s5963 + $0x3c] sm:$0xf]
    %v5996 = vunpack.c.l.b16 %v5964
    %v5997 = vunpack.c.l.b16 %v5965
    %v5998 = vunpack.c.l.b16 %v5966
    %v5999 = vunpack.c.l.b16 %v5967
    %v6000 = vunpack.c.l.b16 %v5968
    %v6001 = vunpack.c.l.b16 %v5969
    %v6002 = vunpack.c.l.b16 %v5970
    %v6003 = vunpack.c.l.b16 %v5971
    %v6004 = vunpack.c.l.b16 %v5972
    %v6005 = vunpack.c.l.b16 %v5973
    %v6006 = vunpack.c.l.b16 %v5974
    %v6007 = vunpack.c.l.b16 %v5975
    %v6008 = vunpack.c.l.b16 %v5976
    %v6009 = vunpack.c.l.b16 %v5977
    %v6010 = vunpack.c.l.b16 %v5978
    %v6011 = vunpack.c.l.b16 %v5979
    %v6012 = vpack.c.b16 %v5997, %v5996
    %v6013 = vpack.c.b16 %v5999, %v5998
    %v6014 = vpack.c.b16 %v6001, %v6000
    %v6015 = vpack.c.b16 %v6003, %v6002
    %v6016 = vpack.c.b16 %v6005, %v6004
    %v6017 = vpack.c.b16 %v6007, %v6006
    %v6018 = vpack.c.b16 %v6009, %v6008
    %v6019 = vpack.c.b16 %v6011, %v6010
    %6028 = vmatprep.subr.bf16.mxu0 0
    %6029 = vmatpush1.bf16.msra.mxu0 %v6012
    %6030 = vmatprep.subr.bf16.mxu0 0
    %6031 = vmatpush1.bf16.msra.mxu0 %v6013
    %6032 = vmatprep.subr.bf16.mxu0 0
    %6033 = vmatpush1.bf16.msra.mxu0 %v6014
    %6034 = vmatprep.subr.bf16.mxu0 0
    %6035 = vmatpush1.bf16.msra.mxu0 %v6015
    %6036 = vmatprep.subr.bf16.mxu0 0
    %6037 = vmatpush1.bf16.msra.mxu0 %v6016
    %6038 = vmatprep.subr.bf16.mxu0 0
    %6039 = vmatpush1.bf16.msra.mxu0 %v6017
    %6040 = vmatprep.subr.bf16.mxu0 0
    %6041 = vmatpush1.bf16.msra.mxu0 %v6018
    %6042 = vmatprep.subr.bf16.mxu0 0
    %6043 = vmatpush1.bf16.msra.mxu0 %v6019
    %6044 = vmatprep.subr.bf16.mxu0 0
    %6045 = vmatpush1.bf16.msra.mxu0 0
    %6046 = vmatprep.subr.bf16.mxu0 0
    %6047 = vmatpush1.bf16.msra.mxu0 0
    %6048 = vmatprep.subr.bf16.mxu0 0
    %6049 = vmatpush1.bf16.msra.mxu0 0
    %6050 = vmatprep.subr.bf16.mxu0 0
    %6051 = vmatpush1.bf16.msra.mxu0 0
    %6052 = vmatprep.subr.bf16.mxu0 0
    %6053 = vmatpush1.bf16.msra.mxu0 0
    %6054 = vmatprep.subr.bf16.mxu0 0
    %6055 = vmatpush1.bf16.msra.mxu0 0
    %6056 = vmatprep.subr.bf16.mxu0 0
    %6057 = vmatpush1.bf16.msra.mxu0 0
    %6058 = vmatprep.subr.bf16.mxu0 0
    %6059 = vmatpush1.bf16.msra.mxu0 0
    %6060 = vmatprep.mubr.bf16.mxu0 0
    %6061 = vmatmul.mubr.bf16.gmra.mrb[0].mxu0 %v5962
    %v6062 = vpop.f32.mrb[0].mxu0
    %v6063 = vadd.f32 0.0, %v6062
    %v6064 = vpop.f32.mrb[0].mxu0
    %v6065 = vpop.f32.mrb[0].mxu0
    %v6066 = vpop.f32.mrb[0].mxu0
    %6067 = vdwg.mxu0
    %v6084 = vunpack.c.l.b16 %v5945
    %v6085 = vunpack.c.l.b16 %v5946
    %v6086 = vunpack.c.l.b16 %v5947
    %v6087 = vunpack.c.l.b16 %v5948
    %v6088 = vunpack.c.l.b16 %v5949
    %v6089 = vunpack.c.l.b16 %v5950
    %v6090 = vunpack.c.l.b16 %v5951
    %v6091 = vunpack.c.l.b16 %v5952
    %v6092 = vunpack.c.l.b16 %v5953
    %v6093 = vunpack.c.l.b16 %v5954
    %v6094 = vunpack.c.l.b16 %v5955
    %v6095 = vunpack.c.l.b16 %v5956
    %v6096 = vunpack.c.l.b16 %v5957
    %v6097 = vunpack.c.l.b16 %v5958
    %v6098 = vunpack.c.l.b16 %v5959
    %v6099 = vunpack.c.l.b16 %v5960
    %v6100 = vpack.c.b16 %v6085, %v6084
    %v6101 = vpack.c.b16 %v6087, %v6086
    %v6102 = vpack.c.b16 %v6089, %v6088
    %v6103 = vpack.c.b16 %v6091, %v6090
    %v6104 = vpack.c.b16 %v6093, %v6092
    %v6105 = vpack.c.b16 %v6095, %v6094
    %v6106 = vpack.c.b16 %v6097, %v6096
    %v6107 = vpack.c.b16 %v6099, %v6098
    %6116 = vmatprep.subr.bf16.mxu0 0
    %6117 = vmatpush1.bf16.msra.mxu0 %v6100
    %6118 = vmatprep.subr.bf16.mxu0 0
    %6119 = vmatpush1.bf16.msra.mxu0 %v6101
    %6120 = vmatprep.subr.bf16.mxu0 0
    %6121 = vmatpush1.bf16.msra.mxu0 %v6102
    %6122 = vmatprep.subr.bf16.mxu0 0
    %6123 = vmatpush1.bf16.msra.mxu0 %v6103
    %6124 = vmatprep.subr.bf16.mxu0 0
    %6125 = vmatpush1.bf16.msra.mxu0 %v6104
    %6126 = vmatprep.subr.bf16.mxu0 0
    %6127 = vmatpush1.bf16.msra.mxu0 %v6105
    %6128 = vmatprep.subr.bf16.mxu0 0
    %6129 = vmatpush1.bf16.msra.mxu0 %v6106
    %6130 = vmatprep.subr.bf16.mxu0 0
    %6131 = vmatpush1.bf16.msra.mxu0 %v6107
    %6132 = vmatprep.subr.bf16.mxu0 0
    %6133 = vmatpush1.bf16.msra.mxu0 0
    %6134 = vmatprep.subr.bf16.mxu0 0
    %6135 = vmatpush1.bf16.msra.mxu0 0
    %6136 = vmatprep.subr.bf16.mxu0 0
    %6137 = vmatpush1.bf16.msra.mxu0 0
    %6138 = vmatprep.subr.bf16.mxu0 0
    %6139 = vmatpush1.bf16.msra.mxu0 0
    %6140 = vmatprep.subr.bf16.mxu0 0
    %6141 = vmatpush1.bf16.msra.mxu0 0
    %6142 = vmatprep.subr.bf16.mxu0 0
    %6143 = vmatpush1.bf16.msra.mxu0 0
    %6144 = vmatprep.subr.bf16.mxu0 0
    %6145 = vmatpush1.bf16.msra.mxu0 0
    %6146 = vmatprep.subr.bf16.mxu0 0
    %6147 = vmatpush1.bf16.msra.mxu0 0
    %6148 = vmatprep.mubr.bf16.mxu0 0
    %6149 = vmatmul.mubr.bf16.gmra.mrb[0].mxu0 %v5943
    %v6150 = vpop.f32.mrb[0].mxu0
    %v6151 = vadd.f32 %v6063, %v6150
    %v6152 = vpop.f32.mrb[0].mxu0
    %v6153 = vpop.f32.mrb[0].mxu0
    %v6154 = vpop.f32.mrb[0].mxu0
    %6155 = vdwg.mxu0
    %v6156 = vld [vmem:[#allocation3 + $0x2] sm:$0xf]
    %v6157 = vpack.c.bf16 %v6156, %v6156
    %s6158 = scalar_lea.vmem [#allocation9], 1280
    %v6159 = vld [vmem:[%s6158] sm:$0xf]
    %v6160 = vld [vmem:[%s6158 + $0x4] sm:$0xf]
    %v6161 = vld [vmem:[%s6158 + $0x8] sm:$0xf]
    %v6162 = vld [vmem:[%s6158 + $0xc] sm:$0xf]
    %v6163 = vld [vmem:[%s6158 + $0x10] sm:$0xf]
    %v6164 = vld [vmem:[%s6158 + $0x14] sm:$0xf]
    %v6165 = vld [vmem:[%s6158 + $0x18] sm:$0xf]
    %v6166 = vld [vmem:[%s6158 + $0x1c] sm:$0xf]
    %v6167 = vld [vmem:[%s6158 + $0x20] sm:$0xf]
    %v6168 = vld [vmem:[%s6158 + $0x24] sm:$0xf]
    %v6169 = vld [vmem:[%s6158 + $0x28] sm:$0xf]
    %v6170 = vld [vmem:[%s6158 + $0x2c] sm:$0xf]
    %v6171 = vld [vmem:[%s6158 + $0x30] sm:$0xf]
    %v6172 = vld [vmem:[%s6158 + $0x34] sm:$0xf]
    %v6173 = vld [vmem:[%s6158 + $0x38] sm:$0xf]
    %v6174 = vld [vmem:[%s6158 + $0x3c] sm:$0xf]
    %v6191 = vunpack.c.l.b16 %v6159
    %v6192 = vunpack.c.l.b16 %v6160
    %v6193 = vunpack.c.l.b16 %v6161
    %v6194 = vunpack.c.l.b16 %v6162
    %v6195 = vunpack.c.l.b16 %v6163
    %v6196 = vunpack.c.l.b16 %v6164
    %v6197 = vunpack.c.l.b16 %v6165
    %v6198 = vunpack.c.l.b16 %v6166
    %v6199 = vunpack.c.l.b16 %v6167
    %v6200 = vunpack.c.l.b16 %v6168
    %v6201 = vunpack.c.l.b16 %v6169
    %v6202 = vunpack.c.l.b16 %v6170
    %v6203 = vunpack.c.l.b16 %v6171
    %v6204 = vunpack.c.l.b16 %v6172
    %v6205 = vunpack.c.l.b16 %v6173
    %v6206 = vunpack.c.l.b16 %v6174
    %v6207 = vpack.c.b16 %v6192, %v6191
    %v6208 = vpack.c.b16 %v6194, %v6193
    %v6209 = vpack.c.b16 %v6196, %v6195
    %v6210 = vpack.c.b16 %v6198, %v6197
    %v6211 = vpack.c.b16 %v6200, %v6199
    %v6212 = vpack.c.b16 %v6202, %v6201
    %v6213 = vpack.c.b16 %v6204, %v6203
    %v6214 = vpack.c.b16 %v6206, %v6205
    %6223 = vmatprep.subr.bf16.mxu0 0
    %6224 = vmatpush1.bf16.msra.mxu0 %v6207
    %6225 = vmatprep.subr.bf16.mxu0 0
    %6226 = vmatpush1.bf16.msra.mxu0 %v6208
    %6227 = vmatprep.subr.bf16.mxu0 0
    %6228 = vmatpush1.bf16.msra.mxu0 %v6209
    %6229 = vmatprep.subr.bf16.mxu0 0
    %6230 = vmatpush1.bf16.msra.mxu0 %v6210
    %6231 = vmatprep.subr.bf16.mxu0 0
    %6232 = vmatpush1.bf16.msra.mxu0 %v6211
    %6233 = vmatprep.subr.bf16.mxu0 0
    %6234 = vmatpush1.bf16.msra.mxu0 %v6212
    %6235 = vmatprep.subr.bf16.mxu0 0
    %6236 = vmatpush1.bf16.msra.mxu0 %v6213
    %6237 = vmatprep.subr.bf16.mxu0 0
    %6238 = vmatpush1.bf16.msra.mxu0 %v6214
    %6239 = vmatprep.subr.bf16.mxu0 0
    %6240 = vmatpush1.bf16.msra.mxu0 0
    %6241 = vmatprep.subr.bf16.mxu0 0
    %6242 = vmatpush1.bf16.msra.mxu0 0
    %6243 = vmatprep.subr.bf16.mxu0 0
    %6244 = vmatpush1.bf16.msra.mxu0 0
    %6245 = vmatprep.subr.bf16.mxu0 0
    %6246 = vmatpush1.bf16.msra.mxu0 0
    %6247 = vmatprep.subr.bf16.mxu0 0
    %6248 = vmatpush1.bf16.msra.mxu0 0
    %6249 = vmatprep.subr.bf16.mxu0 0
    %6250 = vmatpush1.bf16.msra.mxu0 0
    %6251 = vmatprep.subr.bf16.mxu0 0
    %6252 = vmatpush1.bf16.msra.mxu0 0
    %6253 = vmatprep.subr.bf16.mxu0 0
    %6254 = vmatpush1.bf16.msra.mxu0 0
    %6255 = vmatprep.mubr.bf16.mxu0 0
    %6256 = vmatmul.mubr.bf16.gmra.mrb[0].mxu0 %v6157
    %v6257 = vpop.f32.mrb[0].mxu0
    %v6258 = vadd.f32 0.0, %v6257
    %v6259 = vpop.f32.mrb[0].mxu0
    %v6260 = vpop.f32.mrb[0].mxu0
    %v6261 = vpop.f32.mrb[0].mxu0
    %6262 = vdwg.mxu0
    %v6263 = vadd.f32 %v6151, %v6258
    %6264 = vst [vmem:[#allocation4] sm:$0xf] %v6263
    %v6265 = vld [vmem:[#allocation3 + $0x6] sm:$0xf]
    %v6266 = vpack.c.bf16 %v6265, %v6265
    %v6267 = vld [vmem:[%s5944] sm:$0xf]
    %v6268 = vld [vmem:[%s5944 + $0x4] sm:$0xf]
    %v6269 = vld [vmem:[%s5944 + $0x8] sm:$0xf]
    %v6270 = vld [vmem:[%s5944 + $0xc] sm:$0xf]
    %v6271 = vld [vmem:[%s5944 + $0x10] sm:$0xf]
    %v6272 = vld [vmem:[%s5944 + $0x14] sm:$0xf]
    %v6273 = vld [vmem:[%s5944 + $0x18] sm:$0xf]
    %v6274 = vld [vmem:[%s5944 + $0x1c] sm:$0xf]
    %v6275 = vld [vmem:[%s5944 + $0x20] sm:$0xf]
    %v6276 = vld [vmem:[%s5944 + $0x24] sm:$0xf]
    %v6277 = vld [vmem:[%s5944 + $0x28] sm:$0xf]
    %v6278 = vld [vmem:[%s5944 + $0x2c] sm:$0xf]
    %v6279 = vld [vmem:[%s5944 + $0x30] sm:$0xf]
    %v6280 = vld [vmem:[%s5944 + $0x34] sm:$0xf]
    %v6281 = vld [vmem:[%s5944 + $0x38] sm:$0xf]
    %v6282 = vld [vmem:[%s5944 + $0x3c] sm:$0xf]
    %v6283 = vld [vmem:[#allocation3 + $0x7] sm:$0xf]
    %v6284 = vpack.c.bf16 %v6283, %v6283
    %v6285 = vld [vmem:[%s5963] sm:$0xf]
    %v6286 = vld [vmem:[%s5963 + $0x4] sm:$0xf]
    %v6287 = vld [vmem:[%s5963 + $0x8] sm:$0xf]
    %v6288 = vld [vmem:[%s5963 + $0xc] sm:$0xf]
    %v6289 = vld [vmem:[%s5963 + $0x10] sm:$0xf]
    %v6290 = vld [vmem:[%s5963 + $0x14] sm:$0xf]
    %v6291 = vld [vmem:[%s5963 + $0x18] sm:$0xf]
    %v6292 = vld [vmem:[%s5963 + $0x1c] sm:$0xf]
    %v6293 = vld [vmem:[%s5963 + $0x20] sm:$0xf]
    %v6294 = vld [vmem:[%s5963 + $0x24] sm:$0xf]
    %v6295 = vld [vmem:[%s5963 + $0x28] sm:$0xf]
    %v6296 = vld [vmem:[%s5963 + $0x2c] sm:$0xf]
    %v6297 = vld [vmem:[%s5963 + $0x30] sm:$0xf]
    %v6298 = vld [vmem:[%s5963 + $0x34] sm:$0xf]
    %v6299 = vld [vmem:[%s5963 + $0x38] sm:$0xf]
    %v6300 = vld [vmem:[%s5963 + $0x3c] sm:$0xf]
    %v6317 = vunpack.c.l.b16 %v6285
    %v6318 = vunpack.c.l.b16 %v6286
    %v6319 = vunpack.c.l.b16 %v6287
    %v6320 = vunpack.c.l.b16 %v6288
    %v6321 = vunpack.c.l.b16 %v6289
    %v6322 = vunpack.c.l.b16 %v6290
    %v6323 = vunpack.c.l.b16 %v6291
    %v6324 = vunpack.c.l.b16 %v6292
    %v6325 = vunpack.c.l.b16 %v6293
    %v6326 = vunpack.c.l.b16 %v6294
    %v6327 = vunpack.c.l.b16 %v6295
    %v6328 = vunpack.c.l.b16 %v6296
    %v6329 = vunpack.c.l.b16 %v6297
    %v6330 = vunpack.c.l.b16 %v6298
    %v6331 = vunpack.c.l.b16 %v6299
    %v6332 = vunpack.c.l.b16 %v6300
    %v6333 = vpack.c.b16 %v6318, %v6317
    %v6334 = vpack.c.b16 %v6320, %v6319
    %v6335 = vpack.c.b16 %v6322, %v6321
    %v6336 = vpack.c.b16 %v6324, %v6323
    %v6337 = vpack.c.b16 %v6326, %v6325
    %v6338 = vpack.c.b16 %v6328, %v6327
    %v6339 = vpack.c.b16 %v6330, %v6329
    %v6340 = vpack.c.b16 %v6332, %v6331
    %6349 = vmatprep.subr.bf16.mxu0 0
    %6350 = vmatpush1.bf16.msra.mxu0 %v6333
    %6351 = vmatprep.subr.bf16.mxu0 0
    %6352 = vmatpush1.bf16.msra.mxu0 %v6334
    %6353 = vmatprep.subr.bf16.mxu0 0
    %6354 = vmatpush1.bf16.msra.mxu0 %v6335
    %6355 = vmatprep.subr.bf16.mxu0 0
    %6356 = vmatpush1.bf16.msra.mxu0 %v6336
    %6357 = vmatprep.subr.bf16.mxu0 0
    %6358 = vmatpush1.bf16.msra.mxu0 %v6337
    %6359 = vmatprep.subr.bf16.mxu0 0
    %6360 = vmatpush1.bf16.msra.mxu0 %v6338
    %6361 = vmatprep.subr.bf16.mxu0 0
    %6362 = vmatpush1.bf16.msra.mxu0 %v6339
    %6363 = vmatprep.subr.bf16.mxu0 0
    %6364 = vmatpush1.bf16.msra.mxu0 %v6340
    %6365 = vmatprep.subr.bf16.mxu0 0
    %6366 = vmatpush1.bf16.msra.mxu0 0
    %6367 = vmatprep.subr.bf16.mxu0 0
    %6368 = vmatpush1.bf16.msra.mxu0 0
    %6369 = vmatprep.subr.bf16.mxu0 0
    %6370 = vmatpush1.bf16.msra.mxu0 0
    %6371 = vmatprep.subr.bf16.mxu0 0
    %6372 = vmatpush1.bf16.msra.mxu0 0
    %6373 = vmatprep.subr.bf16.mxu0 0
    %6374 = vmatpush1.bf16.msra.mxu0 0
    %6375 = vmatprep.subr.bf16.mxu0 0
    %6376 = vmatpush1.bf16.msra.mxu0 0
    %6377 = vmatprep.subr.bf16.mxu0 0
    %6378 = vmatpush1.bf16.msra.mxu0 0
    %6379 = vmatprep.subr.bf16.mxu0 0
    %6380 = vmatpush1.bf16.msra.mxu0 0
    %6381 = vmatprep.mubr.bf16.mxu0 0
    %6382 = vmatmul.mubr.bf16.gmra.mrb[0].mxu0 %v6284
    %v6383 = vpop.f32.mrb[0].mxu0
    %v6384 = vadd.f32 0.0, %v6383
    %v6385 = vpop.f32.mrb[0].mxu0
    %v6386 = vpop.f32.mrb[0].mxu0
    %v6387 = vpop.f32.mrb[0].mxu0
    %6388 = vdwg.mxu0
    %v6405 = vunpack.c.l.b16 %v6267
    %v6406 = vunpack.c.l.b16 %v6268
    %v6407 = vunpack.c.l.b16 %v6269
    %v6408 = vunpack.c.l.b16 %v6270
    %v6409 = vunpack.c.l.b16 %v6271
    %v6410 = vunpack.c.l.b16 %v6272
    %v6411 = vunpack.c.l.b16 %v6273
    %v6412 = vunpack.c.l.b16 %v6274
    %v6413 = vunpack.c.l.b16 %v6275
    %v6414 = vunpack.c.l.b16 %v6276
    %v6415 = vunpack.c.l.b16 %v6277
    %v6416 = vunpack.c.l.b16 %v6278
    %v6417 = vunpack.c.l.b16 %v6279
    %v6418 = vunpack.c.l.b16 %v6280
    %v6419 = vunpack.c.l.b16 %v6281
    %v6420 = vunpack.c.l.b16 %v6282
    %v6421 = vpack.c.b16 %v6406, %v6405
    %v6422 = vpack.c.b16 %v6408, %v6407
    %v6423 = vpack.c.b16 %v6410, %v6409
    %v6424 = vpack.c.b16 %v6412, %v6411
    %v6425 = vpack.c.b16 %v6414, %v6413
    %v6426 = vpack.c.b16 %v6416, %v6415
    %v6427 = vpack.c.b16 %v6418, %v6417
    %v6428 = vpack.c.b16 %v6420, %v6419
    %6437 = vmatprep.subr.bf16.mxu0 0
    %6438 = vmatpush1.bf16.msra.mxu0 %v6421
    %6439 = vmatprep.subr.bf16.mxu0 0
    %6440 = vmatpush1.bf16.msra.mxu0 %v6422
    %6441 = vmatprep.subr.bf16.mxu0 0
    %6442 = vmatpush1.bf16.msra.mxu0 %v6423
    %6443 = vmatprep.subr.bf16.mxu0 0
    %6444 = vmatpush1.bf16.msra.mxu0 %v6424
    %6445 = vmatprep.subr.bf16.mxu0 0
    %6446 = vmatpush1.bf16.msra.mxu0 %v6425
    %6447 = vmatprep.subr.bf16.mxu0 0
    %6448 = vmatpush1.bf16.msra.mxu0 %v6426
    %6449 = vmatprep.subr.bf16.mxu0 0
    %6450 = vmatpush1.bf16.msra.mxu0 %v6427
    %6451 = vmatprep.subr.bf16.mxu0 0
    %6452 = vmatpush1.bf16.msra.mxu0 %v6428
    %6453 = vmatprep.subr.bf16.mxu0 0
    %6454 = vmatpush1.bf16.msra.mxu0 0
    %6455 = vmatprep.subr.bf16.mxu0 0
    %6456 = vmatpush1.bf16.msra.mxu0 0
    %6457 = vmatprep.subr.bf16.mxu0 0
    %6458 = vmatpush1.bf16.msra.mxu0 0
    %6459 = vmatprep.subr.bf16.mxu0 0
    %6460 = vmatpush1.bf16.msra.mxu0 0
    %6461 = vmatprep.subr.bf16.mxu0 0
    %6462 = vmatpush1.bf16.msra.mxu0 0
    %6463 = vmatprep.subr.bf16.mxu0 0
    %6464 = vmatpush1.bf16.msra.mxu0 0
    %6465 = vmatprep.subr.bf16.mxu0 0
    %6466 = vmatpush1.bf16.msra.mxu0 0
    %6467 = vmatprep.subr.bf16.mxu0 0
    %6468 = vmatpush1.bf16.msra.mxu0 0
    %6469 = vmatprep.mubr.bf16.mxu0 0
    %6470 = vmatmul.mubr.bf16.gmra.mrb[0].mxu0 %v6266
    %v6471 = vpop.f32.mrb[0].mxu0
    %v6472 = vadd.f32 %v6384, %v6471
    %v6473 = vpop.f32.mrb[0].mxu0
    %v6474 = vpop.f32.mrb[0].mxu0
    %v6475 = vpop.f32.mrb[0].mxu0
    %6476 = vdwg.mxu0
    %v6477 = vld [vmem:[#allocation3 + $0x8] sm:$0xf]
    %v6478 = vpack.c.bf16 %v6477, %v6477
    %v6479 = vld [vmem:[%s6158] sm:$0xf]
    %v6480 = vld [vmem:[%s6158 + $0x4] sm:$0xf]
    %v6481 = vld [vmem:[%s6158 + $0x8] sm:$0xf]
    %v6482 = vld [vmem:[%s6158 + $0xc] sm:$0xf]
    %v6483 = vld [vmem:[%s6158 + $0x10] sm:$0xf]
    %v6484 = vld [vmem:[%s6158 + $0x14] sm:$0xf]
    %v6485 = vld [vmem:[%s6158 + $0x18] sm:$0xf]
    %v6486 = vld [vmem:[%s6158 + $0x1c] sm:$0xf]
    %v6487 = vld [vmem:[%s6158 + $0x20] sm:$0xf]
    %v6488 = vld [vmem:[%s6158 + $0x24] sm:$0xf]
    %v6489 = vld [vmem:[%s6158 + $0x28] sm:$0xf]
    %v6490 = vld [vmem:[%s6158 + $0x2c] sm:$0xf]
    %v6491 = vld [vmem:[%s6158 + $0x30] sm:$0xf]
    %v6492 = vld [vmem:[%s6158 + $0x34] sm:$0xf]
    %v6493 = vld [vmem:[%s6158 + $0x38] sm:$0xf]
    %v6494 = vld [vmem:[%s6158 + $0x3c] sm:$0xf]
    %v6511 = vunpack.c.l.b16 %v6479
    %v6512 = vunpack.c.l.b16 %v6480
    %v6513 = vunpack.c.l.b16 %v6481
    %v6514 = vunpack.c.l.b16 %v6482
    %v6515 = vunpack.c.l.b16 %v6483
    %v6516 = vunpack.c.l.b16 %v6484
    %v6517 = vunpack.c.l.b16 %v6485
    %v6518 = vunpack.c.l.b16 %v6486
    %v6519 = vunpack.c.l.b16 %v6487
    %v6520 = vunpack.c.l.b16 %v6488
    %v6521 = vunpack.c.l.b16 %v6489
    %v6522 = vunpack.c.l.b16 %v6490
    %v6523 = vunpack.c.l.b16 %v6491
    %v6524 = vunpack.c.l.b16 %v6492
    %v6525 = vunpack.c.l.b16 %v6493
    %v6526 = vunpack.c.l.b16 %v6494
    %v6527 = vpack.c.b16 %v6512, %v6511
    %v6528 = vpack.c.b16 %v6514, %v6513
    %v6529 = vpack.c.b16 %v6516, %v6515
    %v6530 = vpack.c.b16 %v6518, %v6517
    %v6531 = vpack.c.b16 %v6520, %v6519
    %v6532 = vpack.c.b16 %v6522, %v6521
    %v6533 = vpack.c.b16 %v6524, %v6523
    %v6534 = vpack.c.b16 %v6526, %v6525
    %6543 = vmatprep.subr.bf16.mxu0 0
    %6544 = vmatpush1.bf16.msra.mxu0 %v6527
    %6545 = vmatprep.subr.bf16.mxu0 0
    %6546 = vmatpush1.bf16.msra.mxu0 %v6528
    %6547 = vmatprep.subr.bf16.mxu0 0
    %6548 = vmatpush1.bf16.msra.mxu0 %v6529
    %6549 = vmatprep.subr.bf16.mxu0 0
    %6550 = vmatpush1.bf16.msra.mxu0 %v6530
    %6551 = vmatprep.subr.bf16.mxu0 0
    %6552 = vmatpush1.bf16.msra.mxu0 %v6531
    %6553 = vmatprep.subr.bf16.mxu0 0
    %6554 = vmatpush1.bf16.msra.mxu0 %v6532
    %6555 = vmatprep.subr.bf16.mxu0 0
    %6556 = vmatpush1.bf16.msra.mxu0 %v6533
    %6557 = vmatprep.subr.bf16.mxu0 0
    %6558 = vmatpush1.bf16.msra.mxu0 %v6534
    %6559 = vmatprep.subr.bf16.mxu0 0
    %6560 = vmatpush1.bf16.msra.mxu0 0
    %6561 = vmatprep.subr.bf16.mxu0 0
    %6562 = vmatpush1.bf16.msra.mxu0 0
    %6563 = vmatprep.subr.bf16.mxu0 0
    %6564 = vmatpush1.bf16.msra.mxu0 0
    %6565 = vmatprep.subr.bf16.mxu0 0
    %6566 = vmatpush1.bf16.msra.mxu0 0
    %6567 = vmatprep.subr.bf16.mxu0 0
    %6568 = vmatpush1.bf16.msra.mxu0 0
    %6569 = vmatprep.subr.bf16.mxu0 0
    %6570 = vmatpush1.bf16.msra.mxu0 0
    %6571 = vmatprep.subr.bf16.mxu0 0
    %6572 = vmatpush1.bf16.msra.mxu0 0
    %6573 = vmatprep.subr.bf16.mxu0 0
    %6574 = vmatpush1.bf16.msra.mxu0 0
    %6575 = vmatprep.mubr.bf16.mxu0 0
    %6576 = vmatmul.mubr.bf16.gmra.mrb[0].mxu0 %v6478
    %v6577 = vpop.f32.mrb[0].mxu0
    %v6578 = vadd.f32 0.0, %v6577
    %v6579 = vpop.f32.mrb[0].mxu0
    %v6580 = vpop.f32.mrb[0].mxu0
    %v6581 = vpop.f32.mrb[0].mxu0
    %6582 = vdwg.mxu0
    %v6583 = vadd.f32 %v6472, %v6578
    %6584 = vst [vmem:[#allocation4 + $0x4] sm:$0xf] %v6583
    %v6585 = vld [vmem:[#allocation4] sm:$0xff]
    %v6586 = vld [vmem:[#allocation12 + $0x11] sm:$0x1]
    %v6587 = vld [vmem:[#allocation14 + $0x11] sm:$0x1]
    %v6588 = vlaneseq
    %v6589 = vshrl.u32 %v6588, 7
    %v6590 = vsub.s32 0, %v6589
    %v6591 = vrot.slane %v6586, %v6590
    %v6592 = vmul.f32 %v6585, %v6591
    %v6593 = vlaneseq
    %v6594 = vshrl.u32 %v6593, 7
    %v6595 = vsub.s32 0, %v6594
    %v6596 = vrot.slane %v6587, %v6595
    %v6597 = vadd.f32 %v6592, %v6596
    %v6598 = vmax.f32 %v6597, 0.0
    %v6599 = vpack.c.bf16 %v6598, %v6598
    %s6600 = scalar_lea.vmem [#allocation11], 832
    %v6601 = vld [vmem:[%s6600] sm:$0xf]
    %v6602 = vld [vmem:[%s6600 + $0x4] sm:$0xf]
    %v6603 = vld [vmem:[%s6600 + $0x8] sm:$0xf]
    %v6604 = vld [vmem:[%s6600 + $0xc] sm:$0xf]
    %v6605 = vld [vmem:[%s6600 + $0x10] sm:$0xf]
    %v6606 = vld [vmem:[%s6600 + $0x14] sm:$0xf]
    %v6607 = vld [vmem:[%s6600 + $0x18] sm:$0xf]
    %v6608 = vld [vmem:[%s6600 + $0x1c] sm:$0xf]
    %v6609 = vld [vmem:[%s6600 + $0x20] sm:$0xf]
    %v6610 = vld [vmem:[%s6600 + $0x24] sm:$0xf]
    %v6611 = vld [vmem:[%s6600 + $0x28] sm:$0xf]
    %v6612 = vld [vmem:[%s6600 + $0x2c] sm:$0xf]
    %v6613 = vld [vmem:[%s6600 + $0x30] sm:$0xf]
    %v6614 = vld [vmem:[%s6600 + $0x34] sm:$0xf]
    %v6615 = vld [vmem:[%s6600 + $0x38] sm:$0xf]
    %v6616 = vld [vmem:[%s6600 + $0x3c] sm:$0xf]
    %v6633 = vunpack.c.l.b16 %v6601
    %v6634 = vunpack.c.l.b16 %v6602
    %v6635 = vunpack.c.l.b16 %v6603
    %v6636 = vunpack.c.l.b16 %v6604
    %v6637 = vunpack.c.l.b16 %v6605
    %v6638 = vunpack.c.l.b16 %v6606
    %v6639 = vunpack.c.l.b16 %v6607
    %v6640 = vunpack.c.l.b16 %v6608
    %v6641 = vunpack.c.l.b16 %v6609
    %v6642 = vunpack.c.l.b16 %v6610
    %v6643 = vunpack.c.l.b16 %v6611
    %v6644 = vunpack.c.l.b16 %v6612
    %v6645 = vunpack.c.l.b16 %v6613
    %v6646 = vunpack.c.l.b16 %v6614
    %v6647 = vunpack.c.l.b16 %v6615
    %v6648 = vunpack.c.l.b16 %v6616
    %v6649 = vpack.c.b16 %v6634, %v6633
    %v6650 = vpack.c.b16 %v6636, %v6635
    %v6651 = vpack.c.b16 %v6638, %v6637
    %v6652 = vpack.c.b16 %v6640, %v6639
    %v6653 = vpack.c.b16 %v6642, %v6641
    %v6654 = vpack.c.b16 %v6644, %v6643
    %v6655 = vpack.c.b16 %v6646, %v6645
    %v6656 = vpack.c.b16 %v6648, %v6647
    %6665 = vmatprep.subr.bf16.mxu0 0
    %6666 = vmatpush1.bf16.msra.mxu0 %v6649
    %6667 = vmatprep.subr.bf16.mxu0 0
    %6668 = vmatpush1.bf16.msra.mxu0 %v6650
    %6669 = vmatprep.subr.bf16.mxu0 0
    %6670 = vmatpush1.bf16.msra.mxu0 %v6651
    %6671 = vmatprep.subr.bf16.mxu0 0
    %6672 = vmatpush1.bf16.msra.mxu0 %v6652
    %6673 = vmatprep.subr.bf16.mxu0 0
    %6674 = vmatpush1.bf16.msra.mxu0 %v6653
    %6675 = vmatprep.subr.bf16.mxu0 0
    %6676 = vmatpush1.bf16.msra.mxu0 %v6654
    %6677 = vmatprep.subr.bf16.mxu0 0
    %6678 = vmatpush1.bf16.msra.mxu0 %v6655
    %6679 = vmatprep.subr.bf16.mxu0 0
    %6680 = vmatpush1.bf16.msra.mxu0 %v6656
    %6681 = vmatprep.subr.bf16.mxu0 0
    %6682 = vmatpush1.bf16.msra.mxu0 0
    %6683 = vmatprep.subr.bf16.mxu0 0
    %6684 = vmatpush1.bf16.msra.mxu0 0
    %6685 = vmatprep.subr.bf16.mxu0 0
    %6686 = vmatpush1.bf16.msra.mxu0 0
    %6687 = vmatprep.subr.bf16.mxu0 0
    %6688 = vmatpush1.bf16.msra.mxu0 0
    %6689 = vmatprep.subr.bf16.mxu0 0
    %6690 = vmatpush1.bf16.msra.mxu0 0
    %6691 = vmatprep.subr.bf16.mxu0 0
    %6692 = vmatpush1.bf16.msra.mxu0 0
    %6693 = vmatprep.subr.bf16.mxu0 0
    %6694 = vmatpush1.bf16.msra.mxu0 0
    %6695 = vmatprep.subr.bf16.mxu0 0
    %6696 = vmatpush1.bf16.msra.mxu0 0
    %6697 = vmatprep.mubr.bf16.mxu0 0
    %6698 = vmatmul.mubr.bf16.gmra.mrb[0].mxu0 %v6599
    %v6699 = vpop.f32.mrb[0].mxu0
    %v6700 = vadd.f32 0.0, %v6699
    %v6701 = vpop.f32.mrb[0].mxu0
    %v6702 = vpop.f32.mrb[0].mxu0
    %v6703 = vpop.f32.mrb[0].mxu0
    %6704 = vdwg.mxu0
    %6705 = vst [vmem:[#allocation4] sm:$0xff] %v6700
    %v6706 = vld [vmem:[#allocation4] sm:$0xf]
    %vm6707 = vcmask 1043456
    %v6708 = vsel %vm6707, %v6706, 0.0
    %v6709 = vrot.slane %v6708, 4
    %v6710 = vadd.f32 %v6708, %v6709
    %v6711 = vrot.slane %v6710, 2
    %v6712 = vadd.f32 %v6710, %v6711
    %v6713 = vrot.slane %v6712, 1
    %v6714 = vadd.f32 %v6712, %v6713
    %v6715 = vmul.f32 %v6714, 0.25
    %v6716 = vld [vmem:[%s5] sm:$0x1]
    %v6717 = vmul.f32 %v6715, %v6716
    %vm6718 = vcmask 1040384
    %v6719 = vsel %vm6718, %v6717, 0.0
    %6720 = vadd.xlane.f32.xlu0 %v6719
    %v6721 = vpop.xlane.xlu0 %6720
    %v6722 = vld [vmem:[#allocation6] sm:$0x1]
    %v6723 = vadd.f32 %v6721, %v6722
    %vm6724 = vcmask 0
    %6725 = vst.msk [vmem:[%s7] sm:$0x1] %vm6724, %v6723
    %v6726 = vld [vmem:[#allocation4 + $0x4] sm:$0xf]
    %v6727 = vsel %vm6707, %v6726, 0.0
    %v6728 = vrot.slane %v6727, 4
    %v6729 = vadd.f32 %v6727, %v6728
    %v6730 = vrot.slane %v6729, 2
    %v6731 = vadd.f32 %v6729, %v6730
    %v6732 = vrot.slane %v6731, 1
    %v6733 = vadd.f32 %v6731, %v6732
    %v6734 = vmul.f32 %v6733, 0.25
    %v6735 = vld [vmem:[%s5] sm:$0x1]
    %v6736 = vmul.f32 %v6734, %v6735
    %v6737 = vsel %vm6718, %v6736, 0.0
    %6738 = vadd.xlane.f32.xlu0 %v6737
    %v6739 = vpop.xlane.xlu0 %6738
    %v6740 = vld [vmem:[#allocation6] sm:$0x1]
    %v6741 = vadd.f32 %v6739, %v6740
    %6742 = vst.msk [vmem:[%s7 + $0x1] sm:$0x1] %vm6724, %v6741
    // Predicated region
    $region50: #{tpu_custom_call.1} parent=1 // pred_check
      _
    $region51: #{tpu_custom_call.1} parent=1 // pred_check_branch
      %6744 = sbr.rel (0) target = $region53
    $region52: #{tpu_custom_call.1} parent=1 // pred_region
      _
    $region53: #{tpu_custom_call.1} parent=1 // pred_fallthru
      _
    // Predicated region
    $region54: #{tpu_custom_call.1} parent=1 // pred_check
      _
    $region55: #{tpu_custom_call.1} parent=1 // pred_check_branch
      %6746 = sbr.rel (0) target = $region57
    $region56: #{tpu_custom_call.1} parent=1 // pred_region
      _
    $region57: #{tpu_custom_call.1} parent=1 // pred_fallthru
      _
    %6747 = vsyncpa [#allocation8], 1
    %6748 = vsyncpa [#allocation10], 1
    %6749 = vsyncpa [#allocation13], 1

</llo_original>
